<compile_context>
chip_gen: v7x
topology: tpu7x:2x2x1
jax: 0.10.0
libtpu: 0.0.40
codegen_flags: <defaults>
</compile_context>

<pallas_src>
import jax
import jax.numpy as jnp
from jax.experimental import pallas as pl
from jax.experimental.pallas import tpu as pltpu

OUT_PAD = 128  # lane-dense output width (real logits occupy the first 5 lanes)


# ----------------------------------------------------------------------------
# Fused kernel: 2 x bidirectional LSTM layers + output projection.
# Gate layout follows PyTorch: [i | f | g | o].
# ----------------------------------------------------------------------------
def _mymodel0_kernel(x_ref,
                     w1f_ih_ref, w1f_hh_ref, b1f_ref,
                     w1b_ih_ref, w1b_hh_ref, b1b_ref,
                     w2f_ih_ref, w2f_hh_ref, b2f_ref,
                     w2b_ih_ref, w2b_hh_ref, b2b_ref,
                     lw_ref, lb_ref,
                     out_ref,
                     y1f_ref, y1b_ref, y2f_ref, y2b_ref):
    T, B, _ = x_ref.shape
    H = w1f_hh_ref.shape[0]
    f32 = jnp.float32

    def cell(gates, c):
        i = jax.nn.sigmoid(gates[:, 0 * H:1 * H])
        f = jax.nn.sigmoid(gates[:, 1 * H:2 * H])
        g = jnp.tanh(gates[:, 2 * H:3 * H])
        o = jax.nn.sigmoid(gates[:, 3 * H:4 * H])
        c_new = f * c + i * g
        h_new = o * jnp.tanh(c_new)
        return h_new, c_new

    zeros = jnp.zeros((B, H), f32)

    # ---------------- layer 1: x (T,B,E) -> y1f / y1b (T,B,H) ----------------
    w1f_ih = w1f_ih_ref[...]
    w1f_hh = w1f_hh_ref[...]
    b1f = b1f_ref[...]
    w1b_ih = w1b_ih_ref[...]
    w1b_hh = w1b_hh_ref[...]
    b1b = b1b_ref[...]

    def l1_step(s, carry):
        h_f, c_f, h_b, c_b = carry
        # forward direction, time s
        g_f = (jnp.dot(x_ref[s], w1f_ih, preferred_element_type=f32)
               + jnp.dot(h_f, w1f_hh, preferred_element_type=f32) + b1f)
        h_f, c_f = cell(g_f, c_f)
        y1f_ref[s] = h_f
        # backward direction, time T-1-s
        sb = T - 1 - s
        g_b = (jnp.dot(x_ref[sb], w1b_ih, preferred_element_type=f32)
               + jnp.dot(h_b, w1b_hh, preferred_element_type=f32) + b1b)
        h_b, c_b = cell(g_b, c_b)
        y1b_ref[sb] = h_b
        return h_f, c_f, h_b, c_b

    jax.lax.fori_loop(0, T, l1_step, (zeros, zeros, zeros, zeros), unroll=True)

    # ---------------- layer 2: [y1f ; y1b] (2H) -> y2f / y2b ------------------
    # W2_ih is (2H, 4H); split its rows statically so no lane-concat is needed.
    w2f_ih_f = w2f_ih_ref[0:H, :]
    w2f_ih_b = w2f_ih_ref[H:2 * H, :]
    w2f_hh = w2f_hh_ref[...]
    b2f = b2f_ref[...]
    w2b_ih_f = w2b_ih_ref[0:H, :]
    w2b_ih_b = w2b_ih_ref[H:2 * H, :]
    w2b_hh = w2b_hh_ref[...]
    b2b = b2b_ref[...]

    def l2_step(s, carry):
        h_f, c_f, h_b, c_b = carry
        g_f = (jnp.dot(y1f_ref[s], w2f_ih_f, preferred_element_type=f32)
               + jnp.dot(y1b_ref[s], w2f_ih_b, preferred_element_type=f32)
               + jnp.dot(h_f, w2f_hh, preferred_element_type=f32) + b2f)
        h_f, c_f = cell(g_f, c_f)
        y2f_ref[s] = h_f
        sb = T - 1 - s
        g_b = (jnp.dot(y1f_ref[sb], w2b_ih_f, preferred_element_type=f32)
               + jnp.dot(y1b_ref[sb], w2b_ih_b, preferred_element_type=f32)
               + jnp.dot(h_b, w2b_hh, preferred_element_type=f32) + b2b)
        h_b, c_b = cell(g_b, c_b)
        y2b_ref[sb] = h_b
        return h_f, c_f, h_b, c_b

    jax.lax.fori_loop(0, T, l2_step, (zeros, zeros, zeros, zeros), unroll=True)

    # ---------- fused final linear: [y2f ; y2b] @ lw_pad + lb_pad -------------
    lw_f = lw_ref[0:H, :]          # (H, 128)
    lw_b = lw_ref[H:2 * H, :]      # (H, 128)
    lb = lb_ref[...]               # (1, 128)

    def proj_step(t, carry):
        out_ref[t] = (jnp.dot(y2f_ref[t], lw_f, preferred_element_type=f32)
                      + jnp.dot(y2b_ref[t], lw_b, preferred_element_type=f32) + lb)
        return carry

    jax.lax.fori_loop(0, T, proj_step, 0, unroll=True)


# ----------------------------------------------------------------------------
# Parameters (deterministic synthetic init, mirroring the nn.Module shapes).
# PyTorch stores W_ih as (4H, D); we keep the pre-transposed (D, 4H) layout and
# fold b_ih + b_hh into one bias.
# ----------------------------------------------------------------------------
def init_params(key, vocab, E, H):
    keys = jax.random.split(key, 20)
    k = 1.0 / (H ** 0.5)
    params = {"embed": jax.random.normal(keys[0], (vocab, E), jnp.float32)}
    lstm = []
    ki = 1
    for layer in range(2):
        D = E if layer == 0 else 2 * H
        dirs = {}
        for d in ("fwd", "bwd"):
            w_ih = jax.random.uniform(keys[ki], (D, 4 * H), jnp.float32, -k, k); ki += 1
            w_hh = jax.random.uniform(keys[ki], (H, 4 * H), jnp.float32, -k, k); ki += 1
            b_ih = jax.random.uniform(keys[ki], (1, 4 * H), jnp.float32, -k, k); ki += 1
            b_hh = jax.random.uniform(keys[ki], (1, 4 * H), jnp.float32, -k, k); ki += 1
            dirs[d] = (w_ih, w_hh, b_ih + b_hh)
        lstm.append(dirs)
    params["lstm"] = lstm
    kl = 1.0 / ((2 * H) ** 0.5)
    params["lin_w"] = jax.random.uniform(keys[17], (2 * H, 5), jnp.float32, -kl, kl)
    params["lin_b"] = jax.random.uniform(keys[18], (1, 5), jnp.float32, -kl, kl)
    return params


# ----------------------------------------------------------------------------
# Forward pass == MyModel0.forward
# ----------------------------------------------------------------------------
def my_model0_forward(params, inpt):
    # inpt: (T, B) int32 token ids  ->  (T, B, 5)
    x = jnp.take(params["embed"], inpt, axis=0).astype(jnp.float32)   # (T, B, E)
    T, B, _ = x.shape
    H = params["lstm"][0]["fwd"][1].shape[0]

    lw = params["lin_w"]                       # (2H, 5)
    lb = params["lin_b"]                       # (1, 5)
    n_out = lw.shape[1]
    lw_pad = jnp.pad(lw, ((0, 0), (0, OUT_PAD - n_out)))   # lane-dense (2H, 128)
    lb_pad = jnp.pad(lb, ((0, 0), (0, OUT_PAD - n_out)))   # (1, 128)

    l1, l2 = params["lstm"]
    args = (x,
            *l1["fwd"], *l1["bwd"],
            *l2["fwd"], *l2["bwd"],
            lw_pad, lb_pad)

    vmem = pl.BlockSpec(memory_space=pltpu.MemorySpace.VMEM)
    out = pl.pallas_call(
        _mymodel0_kernel,
        out_shape=jax.ShapeDtypeStruct((T, B, OUT_PAD), jnp.float32),
        in_specs=[vmem] * len(args),
        out_specs=vmem,
        scratch_shapes=[pltpu.VMEM((T, B, H), jnp.float32) for _ in range(4)],
    )(*args)
    return out[:, :, :n_out]


# ----------------------------------------------------------------------------
# Pure-JAX reference (for correctness check against the Pallas path).
# ----------------------------------------------------------------------------
def _ref_lstm_dir(x, w_ih, w_hh, b, reverse):
    T, B, D = x.shape
    H = w_hh.shape[0]

    def step(carry, xt):
        h, c = carry
        g = xt @ w_ih + h @ w_hh + b[0]
        i = jax.nn.sigmoid(g[:, :H]); f = jax.nn.sigmoid(g[:, H:2 * H])
        gg = jnp.tanh(g[:, 2 * H:3 * H]); o = jax.nn.sigmoid(g[:, 3 * H:])
        c = f * c + i * gg
        h = o * jnp.tanh(c)
        return (h, c), h

    xs = x[::-1] if reverse else x
    zeros = jnp.zeros((B, H), jnp.float32)
    _, hs = jax.lax.scan(step, (zeros, zeros), xs)
    return hs[::-1] if reverse else hs


def reference_forward(params, inpt):
    x = jnp.take(params["embed"], inpt, axis=0)
    for layer in range(2):
        fwd = _ref_lstm_dir(x, *params["lstm"][layer]["fwd"], False)
        bwd = _ref_lstm_dir(x, *params["lstm"][layer]["bwd"], True)
        x = jnp.concatenate([fwd, bwd], axis=-1)
    return x @ params["lin_w"] + params["lin_b"][0]


if __name__ == "__main__":
    VOCAB, E, H = 16, 32, 32
    T, B = 8, 2

    key = jax.random.PRNGKey(0)
    pkey, ikey = jax.random.split(key)
    params = init_params(pkey, VOCAB, E, H)
    inpt = jax.random.randint(ikey, (T, B), 0, VOCAB, dtype=jnp.int32)

    out = jax.block_until_ready(my_model0_forward(params, inpt))
    assert out.shape == (T, B, 5), out.shape

    ref = jax.block_until_ready(reference_forward(params, inpt))
    assert jnp.allclose(out, ref, atol=1e-4, rtol=1e-4), float(jnp.max(jnp.abs(out - ref)))

    print("KERNEL_OK")
</pallas_src>

<mosaic_0001>
module attributes {stable_mosaic.version = 11 : i64} {
  func.func @_mymodel0_kernel(%arg0: memref<8x2x32xf32, #tpu.memory_space<vmem>>, %arg1: memref<32x128xf32, #tpu.memory_space<vmem>>, %arg2: memref<32x128xf32, #tpu.memory_space<vmem>>, %arg3: memref<1x128xf32, #tpu.memory_space<vmem>>, %arg4: memref<32x128xf32, #tpu.memory_space<vmem>>, %arg5: memref<32x128xf32, #tpu.memory_space<vmem>>, %arg6: memref<1x128xf32, #tpu.memory_space<vmem>>, %arg7: memref<64x128xf32, #tpu.memory_space<vmem>>, %arg8: memref<32x128xf32, #tpu.memory_space<vmem>>, %arg9: memref<1x128xf32, #tpu.memory_space<vmem>>, %arg10: memref<64x128xf32, #tpu.memory_space<vmem>>, %arg11: memref<32x128xf32, #tpu.memory_space<vmem>>, %arg12: memref<1x128xf32, #tpu.memory_space<vmem>>, %arg13: memref<64x128xf32, #tpu.memory_space<vmem>>, %arg14: memref<1x128xf32, #tpu.memory_space<vmem>>, %arg15: memref<8x2x128xf32, #tpu.memory_space<vmem>>, %arg16: memref<8x2x32xf32, #tpu.memory_space<vmem>>, %arg17: memref<8x2x32xf32, #tpu.memory_space<vmem>>, %arg18: memref<8x2x32xf32, #tpu.memory_space<vmem>>, %arg19: memref<8x2x32xf32, #tpu.memory_space<vmem>>) attributes {dimension_semantics = [], scalar_prefetch = 0 : i64, scratch_operands = 4 : i64, tpu.core_type = #tpu.core_type<tc>} {
    %cst = arith.constant 0.000000e+00 : f32
    %0 = vector.broadcast %cst : f32 to vector<2x32xf32>
    %c0 = arith.constant 0 : index
    %c0_0 = arith.constant 0 : index
    %1 = vector.load %arg1[%c0, %c0_0] : memref<32x128xf32, #tpu.memory_space<vmem>>, vector<32x128xf32>
    %c0_1 = arith.constant 0 : index
    %c0_2 = arith.constant 0 : index
    %2 = vector.load %arg2[%c0_1, %c0_2] : memref<32x128xf32, #tpu.memory_space<vmem>>, vector<32x128xf32>
    %c0_3 = arith.constant 0 : index
    %c0_4 = arith.constant 0 : index
    %3 = vector.load %arg3[%c0_3, %c0_4] : memref<1x128xf32, #tpu.memory_space<vmem>>, vector<1x128xf32>
    %c0_5 = arith.constant 0 : index
    %c0_6 = arith.constant 0 : index
    %4 = vector.load %arg4[%c0_5, %c0_6] : memref<32x128xf32, #tpu.memory_space<vmem>>, vector<32x128xf32>
    %c0_7 = arith.constant 0 : index
    %c0_8 = arith.constant 0 : index
    %5 = vector.load %arg5[%c0_7, %c0_8] : memref<32x128xf32, #tpu.memory_space<vmem>>, vector<32x128xf32>
    %c0_9 = arith.constant 0 : index
    %c0_10 = arith.constant 0 : index
    %6 = vector.load %arg6[%c0_9, %c0_10] : memref<1x128xf32, #tpu.memory_space<vmem>>, vector<1x128xf32>
    %c0_i32 = arith.constant 0 : i32
    %7 = arith.index_cast %c0_i32 : i32 to index
    %c0_11 = arith.constant 0 : index
    %c0_12 = arith.constant 0 : index
    %8 = vector.load %arg0[%7, %c0_11, %c0_12] : memref<8x2x32xf32, #tpu.memory_space<vmem>>, vector<1x2x32xf32>
    %9 = vector.shape_cast %8 : vector<1x2x32xf32> to vector<2x32xf32>
    %cst_13 = arith.constant dense<0.000000e+00> : vector<2x128xf32>
    %10 = tpu.matmul %9, %1, %cst_13 {dimension_numbers = #tpu.dot_dimension_numbers<[1], [0], [0], [1], [0, 0, 1, 1], [], []>} : vector<2x32xf32>, vector<32x128xf32>, vector<2x128xf32> -> vector<2x128xf32>
    %cst_14 = arith.constant dense<0.000000e+00> : vector<2x128xf32>
    %11 = tpu.matmul %0, %2, %cst_14 {dimension_numbers = #tpu.dot_dimension_numbers<[1], [0], [0], [1], [0, 0, 1, 1], [], []>} : vector<2x32xf32>, vector<32x128xf32>, vector<2x128xf32> -> vector<2x128xf32>
    %12 = arith.addf %10, %11 : vector<2x128xf32>
    %13 = vector.broadcast %3 : vector<1x128xf32> to vector<2x128xf32>
    %14 = arith.addf %12, %13 : vector<2x128xf32>
    %15 = vector.extract_strided_slice %14 {offsets = [0, 0], sizes = [2, 32], strides = [1, 1]} : vector<2x128xf32> to vector<2x32xf32>
    %16 = arith.negf %15 : vector<2x32xf32>
    %17 = math.exp %16 : vector<2x32xf32>
    %cst_15 = arith.constant 1.000000e+00 : f32
    %18 = vector.broadcast %cst_15 : f32 to vector<2x32xf32>
    %19 = arith.addf %18, %17 : vector<2x32xf32>
    %20 = arith.divf %18, %19 : vector<2x32xf32>
    %21 = vector.extract_strided_slice %14 {offsets = [0, 32], sizes = [2, 32], strides = [1, 1]} : vector<2x128xf32> to vector<2x32xf32>
    %22 = arith.negf %21 : vector<2x32xf32>
    %23 = math.exp %22 : vector<2x32xf32>
    %cst_16 = arith.constant 1.000000e+00 : f32
    %24 = vector.broadcast %cst_16 : f32 to vector<2x32xf32>
    %25 = arith.addf %24, %23 : vector<2x32xf32>
    %26 = arith.divf %24, %25 : vector<2x32xf32>
    %27 = vector.extract_strided_slice %14 {offsets = [0, 64], sizes = [2, 32], strides = [1, 1]} : vector<2x128xf32> to vector<2x32xf32>
    %28 = math.tanh %27 : vector<2x32xf32>
    %29 = vector.extract_strided_slice %14 {offsets = [0, 96], sizes = [2, 32], strides = [1, 1]} : vector<2x128xf32> to vector<2x32xf32>
    %30 = arith.negf %29 : vector<2x32xf32>
    %31 = math.exp %30 : vector<2x32xf32>
    %cst_17 = arith.constant 1.000000e+00 : f32
    %32 = vector.broadcast %cst_17 : f32 to vector<2x32xf32>
    %33 = arith.addf %32, %31 : vector<2x32xf32>
    %34 = arith.divf %32, %33 : vector<2x32xf32>
    %35 = arith.mulf %26, %0 : vector<2x32xf32>
    %36 = arith.mulf %20, %28 : vector<2x32xf32>
    %37 = arith.addf %35, %36 : vector<2x32xf32>
    %38 = math.tanh %37 : vector<2x32xf32>
    %39 = arith.mulf %34, %38 : vector<2x32xf32>
    %40 = arith.index_cast %c0_i32 : i32 to index
    %c0_18 = arith.constant 0 : index
    %c0_19 = arith.constant 0 : index
    %41 = vector.load %arg16[%40, %c0_18, %c0_19] : memref<8x2x32xf32, #tpu.memory_space<vmem>>, vector<1x2x32xf32>
    %42 = vector.shape_cast %41 : vector<1x2x32xf32> to vector<2x32xf32>
    %43 = vector.shape_cast %39 : vector<2x32xf32> to vector<1x2x32xf32>
    tpu.vector_store %arg16[%40, %c0_18, %c0_19], %43 {strides = array<i32>} : memref<8x2x32xf32, #tpu.memory_space<vmem>>, vector<1x2x32xf32>,
    %c7_i32 = arith.constant 7 : i32
    %44 = arith.subi %c7_i32, %c0_i32 : i32
    %45 = arith.index_cast %44 : i32 to index
    %c0_20 = arith.constant 0 : index
    %c0_21 = arith.constant 0 : index
    %46 = vector.load %arg0[%45, %c0_20, %c0_21] : memref<8x2x32xf32, #tpu.memory_space<vmem>>, vector<1x2x32xf32>
    %47 = vector.shape_cast %46 : vector<1x2x32xf32> to vector<2x32xf32>
    %cst_22 = arith.constant dense<0.000000e+00> : vector<2x128xf32>
    %48 = tpu.matmul %47, %4, %cst_22 {dimension_numbers = #tpu.dot_dimension_numbers<[1], [0], [0], [1], [0, 0, 1, 1], [], []>} : vector<2x32xf32>, vector<32x128xf32>, vector<2x128xf32> -> vector<2x128xf32>
    %cst_23 = arith.constant dense<0.000000e+00> : vector<2x128xf32>
    %49 = tpu.matmul %0, %5, %cst_23 {dimension_numbers = #tpu.dot_dimension_numbers<[1], [0], [0], [1], [0, 0, 1, 1], [], []>} : vector<2x32xf32>, vector<32x128xf32>, vector<2x128xf32> -> vector<2x128xf32>
    %50 = arith.addf %48, %49 : vector<2x128xf32>
    %51 = vector.broadcast %6 : vector<1x128xf32> to vector<2x128xf32>
    %52 = arith.addf %50, %51 : vector<2x128xf32>
    %53 = vector.extract_strided_slice %52 {offsets = [0, 0], sizes = [2, 32], strides = [1, 1]} : vector<2x128xf32> to vector<2x32xf32>
    %54 = arith.negf %53 : vector<2x32xf32>
    %55 = math.exp %54 : vector<2x32xf32>
    %cst_24 = arith.constant 1.000000e+00 : f32
    %56 = vector.broadcast %cst_24 : f32 to vector<2x32xf32>
    %57 = arith.addf %56, %55 : vector<2x32xf32>
    %58 = arith.divf %56, %57 : vector<2x32xf32>
    %59 = vector.extract_strided_slice %52 {offsets = [0, 32], sizes = [2, 32], strides = [1, 1]} : vector<2x128xf32> to vector<2x32xf32>
    %60 = arith.negf %59 : vector<2x32xf32>
    %61 = math.exp %60 : vector<2x32xf32>
    %cst_25 = arith.constant 1.000000e+00 : f32
    %62 = vector.broadcast %cst_25 : f32 to vector<2x32xf32>
    %63 = arith.addf %62, %61 : vector<2x32xf32>
    %64 = arith.divf %62, %63 : vector<2x32xf32>
    %65 = vector.extract_strided_slice %52 {offsets = [0, 64], sizes = [2, 32], strides = [1, 1]} : vector<2x128xf32> to vector<2x32xf32>
    %66 = math.tanh %65 : vector<2x32xf32>
    %67 = vector.extract_strided_slice %52 {offsets = [0, 96], sizes = [2, 32], strides = [1, 1]} : vector<2x128xf32> to vector<2x32xf32>
    %68 = arith.negf %67 : vector<2x32xf32>
    %69 = math.exp %68 : vector<2x32xf32>
    %cst_26 = arith.constant 1.000000e+00 : f32
    %70 = vector.broadcast %cst_26 : f32 to vector<2x32xf32>
    %71 = arith.addf %70, %69 : vector<2x32xf32>
    %72 = arith.divf %70, %71 : vector<2x32xf32>
    %73 = arith.mulf %64, %0 : vector<2x32xf32>
    %74 = arith.mulf %58, %66 : vector<2x32xf32>
    %75 = arith.addf %73, %74 : vector<2x32xf32>
    %76 = math.tanh %75 : vector<2x32xf32>
    %77 = arith.mulf %72, %76 : vector<2x32xf32>
    %78 = arith.index_cast %44 : i32 to index
    %c0_27 = arith.constant 0 : index
    %c0_28 = arith.constant 0 : index
    %79 = vector.load %arg17[%78, %c0_27, %c0_28] : memref<8x2x32xf32, #tpu.memory_space<vmem>>, vector<1x2x32xf32>
    %80 = vector.shape_cast %79 : vector<1x2x32xf32> to vector<2x32xf32>
    %81 = vector.shape_cast %77 : vector<2x32xf32> to vector<1x2x32xf32>
    tpu.vector_store %arg17[%78, %c0_27, %c0_28], %81 {strides = array<i32>} : memref<8x2x32xf32, #tpu.memory_space<vmem>>, vector<1x2x32xf32>,
    %c1_i32 = arith.constant 1 : i32
    %82 = arith.index_cast %c1_i32 : i32 to index
    %c0_29 = arith.constant 0 : index
    %c0_30 = arith.constant 0 : index
    %83 = vector.load %arg0[%82, %c0_29, %c0_30] : memref<8x2x32xf32, #tpu.memory_space<vmem>>, vector<1x2x32xf32>
    %84 = vector.shape_cast %83 : vector<1x2x32xf32> to vector<2x32xf32>
    %cst_31 = arith.constant dense<0.000000e+00> : vector<2x128xf32>
    %85 = tpu.matmul %84, %1, %cst_31 {dimension_numbers = #tpu.dot_dimension_numbers<[1], [0], [0], [1], [0, 0, 1, 1], [], []>} : vector<2x32xf32>, vector<32x128xf32>, vector<2x128xf32> -> vector<2x128xf32>
    %cst_32 = arith.constant dense<0.000000e+00> : vector<2x128xf32>
    %86 = tpu.matmul %39, %2, %cst_32 {dimension_numbers = #tpu.dot_dimension_numbers<[1], [0], [0], [1], [0, 0, 1, 1], [], []>} : vector<2x32xf32>, vector<32x128xf32>, vector<2x128xf32> -> vector<2x128xf32>
    %87 = arith.addf %85, %86 : vector<2x128xf32>
    %88 = vector.broadcast %3 : vector<1x128xf32> to vector<2x128xf32>
    %89 = arith.addf %87, %88 : vector<2x128xf32>
    %90 = vector.extract_strided_slice %89 {offsets = [0, 0], sizes = [2, 32], strides = [1, 1]} : vector<2x128xf32> to vector<2x32xf32>
    %91 = arith.negf %90 : vector<2x32xf32>
    %92 = math.exp %91 : vector<2x32xf32>
    %cst_33 = arith.constant 1.000000e+00 : f32
    %93 = vector.broadcast %cst_33 : f32 to vector<2x32xf32>
    %94 = arith.addf %93, %92 : vector<2x32xf32>
    %95 = arith.divf %93, %94 : vector<2x32xf32>
    %96 = vector.extract_strided_slice %89 {offsets = [0, 32], sizes = [2, 32], strides = [1, 1]} : vector<2x128xf32> to vector<2x32xf32>
    %97 = arith.negf %96 : vector<2x32xf32>
    %98 = math.exp %97 : vector<2x32xf32>
    %cst_34 = arith.constant 1.000000e+00 : f32
    %99 = vector.broadcast %cst_34 : f32 to vector<2x32xf32>
    %100 = arith.addf %99, %98 : vector<2x32xf32>
    %101 = arith.divf %99, %100 : vector<2x32xf32>
    %102 = vector.extract_strided_slice %89 {offsets = [0, 64], sizes = [2, 32], strides = [1, 1]} : vector<2x128xf32> to vector<2x32xf32>
    %103 = math.tanh %102 : vector<2x32xf32>
    %104 = vector.extract_strided_slice %89 {offsets = [0, 96], sizes = [2, 32], strides = [1, 1]} : vector<2x128xf32> to vector<2x32xf32>
    %105 = arith.negf %104 : vector<2x32xf32>
    %106 = math.exp %105 : vector<2x32xf32>
    %cst_35 = arith.constant 1.000000e+00 : f32
    %107 = vector.broadcast %cst_35 : f32 to vector<2x32xf32>
    %108 = arith.addf %107, %106 : vector<2x32xf32>
    %109 = arith.divf %107, %108 : vector<2x32xf32>
    %110 = arith.mulf %101, %37 : vector<2x32xf32>
    %111 = arith.mulf %95, %103 : vector<2x32xf32>
    %112 = arith.addf %110, %111 : vector<2x32xf32>
    %113 = math.tanh %112 : vector<2x32xf32>
    %114 = arith.mulf %109, %113 : vector<2x32xf32>
    %115 = arith.index_cast %c1_i32 : i32 to index
    %c0_36 = arith.constant 0 : index
    %c0_37 = arith.constant 0 : index
    %116 = vector.load %arg16[%115, %c0_36, %c0_37] : memref<8x2x32xf32, #tpu.memory_space<vmem>>, vector<1x2x32xf32>
    %117 = vector.shape_cast %116 : vector<1x2x32xf32> to vector<2x32xf32>
    %118 = vector.shape_cast %114 : vector<2x32xf32> to vector<1x2x32xf32>
    tpu.vector_store %arg16[%115, %c0_36, %c0_37], %118 {strides = array<i32>} : memref<8x2x32xf32, #tpu.memory_space<vmem>>, vector<1x2x32xf32>,
    %c7_i32_38 = arith.constant 7 : i32
    %119 = arith.subi %c7_i32_38, %c1_i32 : i32
    %120 = arith.index_cast %119 : i32 to index
    %c0_39 = arith.constant 0 : index
    %c0_40 = arith.constant 0 : index
    %121 = vector.load %arg0[%120, %c0_39, %c0_40] : memref<8x2x32xf32, #tpu.memory_space<vmem>>, vector<1x2x32xf32>
    %122 = vector.shape_cast %121 : vector<1x2x32xf32> to vector<2x32xf32>
    %cst_41 = arith.constant dense<0.000000e+00> : vector<2x128xf32>
    %123 = tpu.matmul %122, %4, %cst_41 {dimension_numbers = #tpu.dot_dimension_numbers<[1], [0], [0], [1], [0, 0, 1, 1], [], []>} : vector<2x32xf32>, vector<32x128xf32>, vector<2x128xf32> -> vector<2x128xf32>
    %cst_42 = arith.constant dense<0.000000e+00> : vector<2x128xf32>
    %124 = tpu.matmul %77, %5, %cst_42 {dimension_numbers = #tpu.dot_dimension_numbers<[1], [0], [0], [1], [0, 0, 1, 1], [], []>} : vector<2x32xf32>, vector<32x128xf32>, vector<2x128xf32> -> vector<2x128xf32>
    %125 = arith.addf %123, %124 : vector<2x128xf32>
    %126 = vector.broadcast %6 : vector<1x128xf32> to vector<2x128xf32>
    %127 = arith.addf %125, %126 : vector<2x128xf32>
    %128 = vector.extract_strided_slice %127 {offsets = [0, 0], sizes = [2, 32], strides = [1, 1]} : vector<2x128xf32> to vector<2x32xf32>
    %129 = arith.negf %128 : vector<2x32xf32>
    %130 = math.exp %129 : vector<2x32xf32>
    %cst_43 = arith.constant 1.000000e+00 : f32
    %131 = vector.broadcast %cst_43 : f32 to vector<2x32xf32>
    %132 = arith.addf %131, %130 : vector<2x32xf32>
    %133 = arith.divf %131, %132 : vector<2x32xf32>
    %134 = vector.extract_strided_slice %127 {offsets = [0, 32], sizes = [2, 32], strides = [1, 1]} : vector<2x128xf32> to vector<2x32xf32>
    %135 = arith.negf %134 : vector<2x32xf32>
    %136 = math.exp %135 : vector<2x32xf32>
    %cst_44 = arith.constant 1.000000e+00 : f32
    %137 = vector.broadcast %cst_44 : f32 to vector<2x32xf32>
    %138 = arith.addf %137, %136 : vector<2x32xf32>
    %139 = arith.divf %137, %138 : vector<2x32xf32>
    %140 = vector.extract_strided_slice %127 {offsets = [0, 64], sizes = [2, 32], strides = [1, 1]} : vector<2x128xf32> to vector<2x32xf32>
    %141 = math.tanh %140 : vector<2x32xf32>
    %142 = vector.extract_strided_slice %127 {offsets = [0, 96], sizes = [2, 32], strides = [1, 1]} : vector<2x128xf32> to vector<2x32xf32>
    %143 = arith.negf %142 : vector<2x32xf32>
    %144 = math.exp %143 : vector<2x32xf32>
    %cst_45 = arith.constant 1.000000e+00 : f32
    %145 = vector.broadcast %cst_45 : f32 to vector<2x32xf32>
    %146 = arith.addf %145, %144 : vector<2x32xf32>
    %147 = arith.divf %145, %146 : vector<2x32xf32>
    %148 = arith.mulf %139, %75 : vector<2x32xf32>
    %149 = arith.mulf %133, %141 : vector<2x32xf32>
    %150 = arith.addf %148, %149 : vector<2x32xf32>
    %151 = math.tanh %150 : vector<2x32xf32>
    %152 = arith.mulf %147, %151 : vector<2x32xf32>
    %153 = arith.index_cast %119 : i32 to index
    %c0_46 = arith.constant 0 : index
    %c0_47 = arith.constant 0 : index
    %154 = vector.load %arg17[%153, %c0_46, %c0_47] : memref<8x2x32xf32, #tpu.memory_space<vmem>>, vector<1x2x32xf32>
    %155 = vector.shape_cast %154 : vector<1x2x32xf32> to vector<2x32xf32>
    %156 = vector.shape_cast %152 : vector<2x32xf32> to vector<1x2x32xf32>
    tpu.vector_store %arg17[%153, %c0_46, %c0_47], %156 {strides = array<i32>} : memref<8x2x32xf32, #tpu.memory_space<vmem>>, vector<1x2x32xf32>,
    %c2_i32 = arith.constant 2 : i32
    %157 = arith.index_cast %c2_i32 : i32 to index
    %c0_48 = arith.constant 0 : index
    %c0_49 = arith.constant 0 : index
    %158 = vector.load %arg0[%157, %c0_48, %c0_49] : memref<8x2x32xf32, #tpu.memory_space<vmem>>, vector<1x2x32xf32>
    %159 = vector.shape_cast %158 : vector<1x2x32xf32> to vector<2x32xf32>
    %cst_50 = arith.constant dense<0.000000e+00> : vector<2x128xf32>
    %160 = tpu.matmul %159, %1, %cst_50 {dimension_numbers = #tpu.dot_dimension_numbers<[1], [0], [0], [1], [0, 0, 1, 1], [], []>} : vector<2x32xf32>, vector<32x128xf32>, vector<2x128xf32> -> vector<2x128xf32>
    %cst_51 = arith.constant dense<0.000000e+00> : vector<2x128xf32>
    %161 = tpu.matmul %114, %2, %cst_51 {dimension_numbers = #tpu.dot_dimension_numbers<[1], [0], [0], [1], [0, 0, 1, 1], [], []>} : vector<2x32xf32>, vector<32x128xf32>, vector<2x128xf32> -> vector<2x128xf32>
    %162 = arith.addf %160, %161 : vector<2x128xf32>
    %163 = vector.broadcast %3 : vector<1x128xf32> to vector<2x128xf32>
    %164 = arith.addf %162, %163 : vector<2x128xf32>
    %165 = vector.extract_strided_slice %164 {offsets = [0, 0], sizes = [2, 32], strides = [1, 1]} : vector<2x128xf32> to vector<2x32xf32>
    %166 = arith.negf %165 : vector<2x32xf32>
    %167 = math.exp %166 : vector<2x32xf32>
    %cst_52 = arith.constant 1.000000e+00 : f32
    %168 = vector.broadcast %cst_52 : f32 to vector<2x32xf32>
    %169 = arith.addf %168, %167 : vector<2x32xf32>
    %170 = arith.divf %168, %169 : vector<2x32xf32>
    %171 = vector.extract_strided_slice %164 {offsets = [0, 32], sizes = [2, 32], strides = [1, 1]} : vector<2x128xf32> to vector<2x32xf32>
    %172 = arith.negf %171 : vector<2x32xf32>
    %173 = math.exp %172 : vector<2x32xf32>
    %cst_53 = arith.constant 1.000000e+00 : f32
    %174 = vector.broadcast %cst_53 : f32 to vector<2x32xf32>
    %175 = arith.addf %174, %173 : vector<2x32xf32>
    %176 = arith.divf %174, %175 : vector<2x32xf32>
    %177 = vector.extract_strided_slice %164 {offsets = [0, 64], sizes = [2, 32], strides = [1, 1]} : vector<2x128xf32> to vector<2x32xf32>
    %178 = math.tanh %177 : vector<2x32xf32>
    %179 = vector.extract_strided_slice %164 {offsets = [0, 96], sizes = [2, 32], strides = [1, 1]} : vector<2x128xf32> to vector<2x32xf32>
    %180 = arith.negf %179 : vector<2x32xf32>
    %181 = math.exp %180 : vector<2x32xf32>
    %cst_54 = arith.constant 1.000000e+00 : f32
    %182 = vector.broadcast %cst_54 : f32 to vector<2x32xf32>
    %183 = arith.addf %182, %181 : vector<2x32xf32>
    %184 = arith.divf %182, %183 : vector<2x32xf32>
    %185 = arith.mulf %176, %112 : vector<2x32xf32>
    %186 = arith.mulf %170, %178 : vector<2x32xf32>
    %187 = arith.addf %185, %186 : vector<2x32xf32>
    %188 = math.tanh %187 : vector<2x32xf32>
    %189 = arith.mulf %184, %188 : vector<2x32xf32>
    %190 = arith.index_cast %c2_i32 : i32 to index
    %c0_55 = arith.constant 0 : index
    %c0_56 = arith.constant 0 : index
    %191 = vector.load %arg16[%190, %c0_55, %c0_56] : memref<8x2x32xf32, #tpu.memory_space<vmem>>, vector<1x2x32xf32>
    %192 = vector.shape_cast %191 : vector<1x2x32xf32> to vector<2x32xf32>
    %193 = vector.shape_cast %189 : vector<2x32xf32> to vector<1x2x32xf32>
    tpu.vector_store %arg16[%190, %c0_55, %c0_56], %193 {strides = array<i32>} : memref<8x2x32xf32, #tpu.memory_space<vmem>>, vector<1x2x32xf32>,
    %c7_i32_57 = arith.constant 7 : i32
    %194 = arith.subi %c7_i32_57, %c2_i32 : i32
    %195 = arith.index_cast %194 : i32 to index
    %c0_58 = arith.constant 0 : index
    %c0_59 = arith.constant 0 : index
    %196 = vector.load %arg0[%195, %c0_58, %c0_59] : memref<8x2x32xf32, #tpu.memory_space<vmem>>, vector<1x2x32xf32>
    %197 = vector.shape_cast %196 : vector<1x2x32xf32> to vector<2x32xf32>
    %cst_60 = arith.constant dense<0.000000e+00> : vector<2x128xf32>
    %198 = tpu.matmul %197, %4, %cst_60 {dimension_numbers = #tpu.dot_dimension_numbers<[1], [0], [0], [1], [0, 0, 1, 1], [], []>} : vector<2x32xf32>, vector<32x128xf32>, vector<2x128xf32> -> vector<2x128xf32>
    %cst_61 = arith.constant dense<0.000000e+00> : vector<2x128xf32>
    %199 = tpu.matmul %152, %5, %cst_61 {dimension_numbers = #tpu.dot_dimension_numbers<[1], [0], [0], [1], [0, 0, 1, 1], [], []>} : vector<2x32xf32>, vector<32x128xf32>, vector<2x128xf32> -> vector<2x128xf32>
    %200 = arith.addf %198, %199 : vector<2x128xf32>
    %201 = vector.broadcast %6 : vector<1x128xf32> to vector<2x128xf32>
    %202 = arith.addf %200, %201 : vector<2x128xf32>
    %203 = vector.extract_strided_slice %202 {offsets = [0, 0], sizes = [2, 32], strides = [1, 1]} : vector<2x128xf32> to vector<2x32xf32>
    %204 = arith.negf %203 : vector<2x32xf32>
    %205 = math.exp %204 : vector<2x32xf32>
    %cst_62 = arith.constant 1.000000e+00 : f32
    %206 = vector.broadcast %cst_62 : f32 to vector<2x32xf32>
    %207 = arith.addf %206, %205 : vector<2x32xf32>
    %208 = arith.divf %206, %207 : vector<2x32xf32>
    %209 = vector.extract_strided_slice %202 {offsets = [0, 32], sizes = [2, 32], strides = [1, 1]} : vector<2x128xf32> to vector<2x32xf32>
    %210 = arith.negf %209 : vector<2x32xf32>
    %211 = math.exp %210 : vector<2x32xf32>
    %cst_63 = arith.constant 1.000000e+00 : f32
    %212 = vector.broadcast %cst_63 : f32 to vector<2x32xf32>
    %213 = arith.addf %212, %211 : vector<2x32xf32>
    %214 = arith.divf %212, %213 : vector<2x32xf32>
    %215 = vector.extract_strided_slice %202 {offsets = [0, 64], sizes = [2, 32], strides = [1, 1]} : vector<2x128xf32> to vector<2x32xf32>
    %216 = math.tanh %215 : vector<2x32xf32>
    %217 = vector.extract_strided_slice %202 {offsets = [0, 96], sizes = [2, 32], strides = [1, 1]} : vector<2x128xf32> to vector<2x32xf32>
    %218 = arith.negf %217 : vector<2x32xf32>
    %219 = math.exp %218 : vector<2x32xf32>
    %cst_64 = arith.constant 1.000000e+00 : f32
    %220 = vector.broadcast %cst_64 : f32 to vector<2x32xf32>
    %221 = arith.addf %220, %219 : vector<2x32xf32>
    %222 = arith.divf %220, %221 : vector<2x32xf32>
    %223 = arith.mulf %214, %150 : vector<2x32xf32>
    %224 = arith.mulf %208, %216 : vector<2x32xf32>
    %225 = arith.addf %223, %224 : vector<2x32xf32>
    %226 = math.tanh %225 : vector<2x32xf32>
    %227 = arith.mulf %222, %226 : vector<2x32xf32>
    %228 = arith.index_cast %194 : i32 to index
    %c0_65 = arith.constant 0 : index
    %c0_66 = arith.constant 0 : index
    %229 = vector.load %arg17[%228, %c0_65, %c0_66] : memref<8x2x32xf32, #tpu.memory_space<vmem>>, vector<1x2x32xf32>
    %230 = vector.shape_cast %229 : vector<1x2x32xf32> to vector<2x32xf32>
    %231 = vector.shape_cast %227 : vector<2x32xf32> to vector<1x2x32xf32>
    tpu.vector_store %arg17[%228, %c0_65, %c0_66], %231 {strides = array<i32>} : memref<8x2x32xf32, #tpu.memory_space<vmem>>, vector<1x2x32xf32>,
    %c3_i32 = arith.constant 3 : i32
    %232 = arith.index_cast %c3_i32 : i32 to index
    %c0_67 = arith.constant 0 : index
    %c0_68 = arith.constant 0 : index
    %233 = vector.load %arg0[%232, %c0_67, %c0_68] : memref<8x2x32xf32, #tpu.memory_space<vmem>>, vector<1x2x32xf32>
    %234 = vector.shape_cast %233 : vector<1x2x32xf32> to vector<2x32xf32>
    %cst_69 = arith.constant dense<0.000000e+00> : vector<2x128xf32>
    %235 = tpu.matmul %234, %1, %cst_69 {dimension_numbers = #tpu.dot_dimension_numbers<[1], [0], [0], [1], [0, 0, 1, 1], [], []>} : vector<2x32xf32>, vector<32x128xf32>, vector<2x128xf32> -> vector<2x128xf32>
    %cst_70 = arith.constant dense<0.000000e+00> : vector<2x128xf32>
    %236 = tpu.matmul %189, %2, %cst_70 {dimension_numbers = #tpu.dot_dimension_numbers<[1], [0], [0], [1], [0, 0, 1, 1], [], []>} : vector<2x32xf32>, vector<32x128xf32>, vector<2x128xf32> -> vector<2x128xf32>
    %237 = arith.addf %235, %236 : vector<2x128xf32>
    %238 = vector.broadcast %3 : vector<1x128xf32> to vector<2x128xf32>
    %239 = arith.addf %237, %238 : vector<2x128xf32>
    %240 = vector.extract_strided_slice %239 {offsets = [0, 0], sizes = [2, 32], strides = [1, 1]} : vector<2x128xf32> to vector<2x32xf32>
    %241 = arith.negf %240 : vector<2x32xf32>
    %242 = math.exp %241 : vector<2x32xf32>
    %cst_71 = arith.constant 1.000000e+00 : f32
    %243 = vector.broadcast %cst_71 : f32 to vector<2x32xf32>
    %244 = arith.addf %243, %242 : vector<2x32xf32>
    %245 = arith.divf %243, %244 : vector<2x32xf32>
    %246 = vector.extract_strided_slice %239 {offsets = [0, 32], sizes = [2, 32], strides = [1, 1]} : vector<2x128xf32> to vector<2x32xf32>
    %247 = arith.negf %246 : vector<2x32xf32>
    %248 = math.exp %247 : vector<2x32xf32>
    %cst_72 = arith.constant 1.000000e+00 : f32
    %249 = vector.broadcast %cst_72 : f32 to vector<2x32xf32>
    %250 = arith.addf %249, %248 : vector<2x32xf32>
    %251 = arith.divf %249, %250 : vector<2x32xf32>
    %252 = vector.extract_strided_slice %239 {offsets = [0, 64], sizes = [2, 32], strides = [1, 1]} : vector<2x128xf32> to vector<2x32xf32>
    %253 = math.tanh %252 : vector<2x32xf32>
    %254 = vector.extract_strided_slice %239 {offsets = [0, 96], sizes = [2, 32], strides = [1, 1]} : vector<2x128xf32> to vector<2x32xf32>
    %255 = arith.negf %254 : vector<2x32xf32>
    %256 = math.exp %255 : vector<2x32xf32>
    %cst_73 = arith.constant 1.000000e+00 : f32
    %257 = vector.broadcast %cst_73 : f32 to vector<2x32xf32>
    %258 = arith.addf %257, %256 : vector<2x32xf32>
    %259 = arith.divf %257, %258 : vector<2x32xf32>
    %260 = arith.mulf %251, %187 : vector<2x32xf32>
    %261 = arith.mulf %245, %253 : vector<2x32xf32>
    %262 = arith.addf %260, %261 : vector<2x32xf32>
    %263 = math.tanh %262 : vector<2x32xf32>
    %264 = arith.mulf %259, %263 : vector<2x32xf32>
    %265 = arith.index_cast %c3_i32 : i32 to index
    %c0_74 = arith.constant 0 : index
    %c0_75 = arith.constant 0 : index
    %266 = vector.load %arg16[%265, %c0_74, %c0_75] : memref<8x2x32xf32, #tpu.memory_space<vmem>>, vector<1x2x32xf32>
    %267 = vector.shape_cast %266 : vector<1x2x32xf32> to vector<2x32xf32>
    %268 = vector.shape_cast %264 : vector<2x32xf32> to vector<1x2x32xf32>
    tpu.vector_store %arg16[%265, %c0_74, %c0_75], %268 {strides = array<i32>} : memref<8x2x32xf32, #tpu.memory_space<vmem>>, vector<1x2x32xf32>,
    %c7_i32_76 = arith.constant 7 : i32
    %269 = arith.subi %c7_i32_76, %c3_i32 : i32
    %270 = arith.index_cast %269 : i32 to index
    %c0_77 = arith.constant 0 : index
    %c0_78 = arith.constant 0 : index
    %271 = vector.load %arg0[%270, %c0_77, %c0_78] : memref<8x2x32xf32, #tpu.memory_space<vmem>>, vector<1x2x32xf32>
    %272 = vector.shape_cast %271 : vector<1x2x32xf32> to vector<2x32xf32>
    %cst_79 = arith.constant dense<0.000000e+00> : vector<2x128xf32>
    %273 = tpu.matmul %272, %4, %cst_79 {dimension_numbers = #tpu.dot_dimension_numbers<[1], [0], [0], [1], [0, 0, 1, 1], [], []>} : vector<2x32xf32>, vector<32x128xf32>, vector<2x128xf32> -> vector<2x128xf32>
    %cst_80 = arith.constant dense<0.000000e+00> : vector<2x128xf32>
    %274 = tpu.matmul %227, %5, %cst_80 {dimension_numbers = #tpu.dot_dimension_numbers<[1], [0], [0], [1], [0, 0, 1, 1], [], []>} : vector<2x32xf32>, vector<32x128xf32>, vector<2x128xf32> -> vector<2x128xf32>
    %275 = arith.addf %273, %274 : vector<2x128xf32>
    %276 = vector.broadcast %6 : vector<1x128xf32> to vector<2x128xf32>
    %277 = arith.addf %275, %276 : vector<2x128xf32>
    %278 = vector.extract_strided_slice %277 {offsets = [0, 0], sizes = [2, 32], strides = [1, 1]} : vector<2x128xf32> to vector<2x32xf32>
    %279 = arith.negf %278 : vector<2x32xf32>
    %280 = math.exp %279 : vector<2x32xf32>
    %cst_81 = arith.constant 1.000000e+00 : f32
    %281 = vector.broadcast %cst_81 : f32 to vector<2x32xf32>
    %282 = arith.addf %281, %280 : vector<2x32xf32>
    %283 = arith.divf %281, %282 : vector<2x32xf32>
    %284 = vector.extract_strided_slice %277 {offsets = [0, 32], sizes = [2, 32], strides = [1, 1]} : vector<2x128xf32> to vector<2x32xf32>
    %285 = arith.negf %284 : vector<2x32xf32>
    %286 = math.exp %285 : vector<2x32xf32>
    %cst_82 = arith.constant 1.000000e+00 : f32
    %287 = vector.broadcast %cst_82 : f32 to vector<2x32xf32>
    %288 = arith.addf %287, %286 : vector<2x32xf32>
    %289 = arith.divf %287, %288 : vector<2x32xf32>
    %290 = vector.extract_strided_slice %277 {offsets = [0, 64], sizes = [2, 32], strides = [1, 1]} : vector<2x128xf32> to vector<2x32xf32>
    %291 = math.tanh %290 : vector<2x32xf32>
    %292 = vector.extract_strided_slice %277 {offsets = [0, 96], sizes = [2, 32], strides = [1, 1]} : vector<2x128xf32> to vector<2x32xf32>
    %293 = arith.negf %292 : vector<2x32xf32>
    %294 = math.exp %293 : vector<2x32xf32>
    %cst_83 = arith.constant 1.000000e+00 : f32
    %295 = vector.broadcast %cst_83 : f32 to vector<2x32xf32>
    %296 = arith.addf %295, %294 : vector<2x32xf32>
    %297 = arith.divf %295, %296 : vector<2x32xf32>
    %298 = arith.mulf %289, %225 : vector<2x32xf32>
    %299 = arith.mulf %283, %291 : vector<2x32xf32>
    %300 = arith.addf %298, %299 : vector<2x32xf32>
    %301 = math.tanh %300 : vector<2x32xf32>
    %302 = arith.mulf %297, %301 : vector<2x32xf32>
    %303 = arith.index_cast %269 : i32 to index
    %c0_84 = arith.constant 0 : index
    %c0_85 = arith.constant 0 : index
    %304 = vector.load %arg17[%303, %c0_84, %c0_85] : memref<8x2x32xf32, #tpu.memory_space<vmem>>, vector<1x2x32xf32>
    %305 = vector.shape_cast %304 : vector<1x2x32xf32> to vector<2x32xf32>
    %306 = vector.shape_cast %302 : vector<2x32xf32> to vector<1x2x32xf32>
    tpu.vector_store %arg17[%303, %c0_84, %c0_85], %306 {strides = array<i32>} : memref<8x2x32xf32, #tpu.memory_space<vmem>>, vector<1x2x32xf32>,
    %c4_i32 = arith.constant 4 : i32
    %307 = arith.index_cast %c4_i32 : i32 to index
    %c0_86 = arith.constant 0 : index
    %c0_87 = arith.constant 0 : index
    %308 = vector.load %arg0[%307, %c0_86, %c0_87] : memref<8x2x32xf32, #tpu.memory_space<vmem>>, vector<1x2x32xf32>
    %309 = vector.shape_cast %308 : vector<1x2x32xf32> to vector<2x32xf32>
    %cst_88 = arith.constant dense<0.000000e+00> : vector<2x128xf32>
    %310 = tpu.matmul %309, %1, %cst_88 {dimension_numbers = #tpu.dot_dimension_numbers<[1], [0], [0], [1], [0, 0, 1, 1], [], []>} : vector<2x32xf32>, vector<32x128xf32>, vector<2x128xf32> -> vector<2x128xf32>
    %cst_89 = arith.constant dense<0.000000e+00> : vector<2x128xf32>
    %311 = tpu.matmul %264, %2, %cst_89 {dimension_numbers = #tpu.dot_dimension_numbers<[1], [0], [0], [1], [0, 0, 1, 1], [], []>} : vector<2x32xf32>, vector<32x128xf32>, vector<2x128xf32> -> vector<2x128xf32>
    %312 = arith.addf %310, %311 : vector<2x128xf32>
    %313 = vector.broadcast %3 : vector<1x128xf32> to vector<2x128xf32>
    %314 = arith.addf %312, %313 : vector<2x128xf32>
    %315 = vector.extract_strided_slice %314 {offsets = [0, 0], sizes = [2, 32], strides = [1, 1]} : vector<2x128xf32> to vector<2x32xf32>
    %316 = arith.negf %315 : vector<2x32xf32>
    %317 = math.exp %316 : vector<2x32xf32>
    %cst_90 = arith.constant 1.000000e+00 : f32
    %318 = vector.broadcast %cst_90 : f32 to vector<2x32xf32>
    %319 = arith.addf %318, %317 : vector<2x32xf32>
    %320 = arith.divf %318, %319 : vector<2x32xf32>
    %321 = vector.extract_strided_slice %314 {offsets = [0, 32], sizes = [2, 32], strides = [1, 1]} : vector<2x128xf32> to vector<2x32xf32>
    %322 = arith.negf %321 : vector<2x32xf32>
    %323 = math.exp %322 : vector<2x32xf32>
    %cst_91 = arith.constant 1.000000e+00 : f32
    %324 = vector.broadcast %cst_91 : f32 to vector<2x32xf32>
    %325 = arith.addf %324, %323 : vector<2x32xf32>
    %326 = arith.divf %324, %325 : vector<2x32xf32>
    %327 = vector.extract_strided_slice %314 {offsets = [0, 64], sizes = [2, 32], strides = [1, 1]} : vector<2x128xf32> to vector<2x32xf32>
    %328 = math.tanh %327 : vector<2x32xf32>
    %329 = vector.extract_strided_slice %314 {offsets = [0, 96], sizes = [2, 32], strides = [1, 1]} : vector<2x128xf32> to vector<2x32xf32>
    %330 = arith.negf %329 : vector<2x32xf32>
    %331 = math.exp %330 : vector<2x32xf32>
    %cst_92 = arith.constant 1.000000e+00 : f32
    %332 = vector.broadcast %cst_92 : f32 to vector<2x32xf32>
    %333 = arith.addf %332, %331 : vector<2x32xf32>
    %334 = arith.divf %332, %333 : vector<2x32xf32>
    %335 = arith.mulf %326, %262 : vector<2x32xf32>
    %336 = arith.mulf %320, %328 : vector<2x32xf32>
    %337 = arith.addf %335, %336 : vector<2x32xf32>
    %338 = math.tanh %337 : vector<2x32xf32>
    %339 = arith.mulf %334, %338 : vector<2x32xf32>
    %340 = arith.index_cast %c4_i32 : i32 to index
    %c0_93 = arith.constant 0 : index
    %c0_94 = arith.constant 0 : index
    %341 = vector.load %arg16[%340, %c0_93, %c0_94] : memref<8x2x32xf32, #tpu.memory_space<vmem>>, vector<1x2x32xf32>
    %342 = vector.shape_cast %341 : vector<1x2x32xf32> to vector<2x32xf32>
    %343 = vector.shape_cast %339 : vector<2x32xf32> to vector<1x2x32xf32>
    tpu.vector_store %arg16[%340, %c0_93, %c0_94], %343 {strides = array<i32>} : memref<8x2x32xf32, #tpu.memory_space<vmem>>, vector<1x2x32xf32>,
    %c7_i32_95 = arith.constant 7 : i32
    %344 = arith.subi %c7_i32_95, %c4_i32 : i32
    %345 = arith.index_cast %344 : i32 to index
    %c0_96 = arith.constant 0 : index
    %c0_97 = arith.constant 0 : index
    %346 = vector.load %arg0[%345, %c0_96, %c0_97] : memref<8x2x32xf32, #tpu.memory_space<vmem>>, vector<1x2x32xf32>
    %347 = vector.shape_cast %346 : vector<1x2x32xf32> to vector<2x32xf32>
    %cst_98 = arith.constant dense<0.000000e+00> : vector<2x128xf32>
    %348 = tpu.matmul %347, %4, %cst_98 {dimension_numbers = #tpu.dot_dimension_numbers<[1], [0], [0], [1], [0, 0, 1, 1], [], []>} : vector<2x32xf32>, vector<32x128xf32>, vector<2x128xf32> -> vector<2x128xf32>
    %cst_99 = arith.constant dense<0.000000e+00> : vector<2x128xf32>
    %349 = tpu.matmul %302, %5, %cst_99 {dimension_numbers = #tpu.dot_dimension_numbers<[1], [0], [0], [1], [0, 0, 1, 1], [], []>} : vector<2x32xf32>, vector<32x128xf32>, vector<2x128xf32> -> vector<2x128xf32>
    %350 = arith.addf %348, %349 : vector<2x128xf32>
    %351 = vector.broadcast %6 : vector<1x128xf32> to vector<2x128xf32>
    %352 = arith.addf %350, %351 : vector<2x128xf32>
    %353 = vector.extract_strided_slice %352 {offsets = [0, 0], sizes = [2, 32], strides = [1, 1]} : vector<2x128xf32> to vector<2x32xf32>
    %354 = arith.negf %353 : vector<2x32xf32>
    %355 = math.exp %354 : vector<2x32xf32>
    %cst_100 = arith.constant 1.000000e+00 : f32
    %356 = vector.broadcast %cst_100 : f32 to vector<2x32xf32>
    %357 = arith.addf %356, %355 : vector<2x32xf32>
    %358 = arith.divf %356, %357 : vector<2x32xf32>
    %359 = vector.extract_strided_slice %352 {offsets = [0, 32], sizes = [2, 32], strides = [1, 1]} : vector<2x128xf32> to vector<2x32xf32>
    %360 = arith.negf %359 : vector<2x32xf32>
    %361 = math.exp %360 : vector<2x32xf32>
    %cst_101 = arith.constant 1.000000e+00 : f32
    %362 = vector.broadcast %cst_101 : f32 to vector<2x32xf32>
    %363 = arith.addf %362, %361 : vector<2x32xf32>
    %364 = arith.divf %362, %363 : vector<2x32xf32>
    %365 = vector.extract_strided_slice %352 {offsets = [0, 64], sizes = [2, 32], strides = [1, 1]} : vector<2x128xf32> to vector<2x32xf32>
    %366 = math.tanh %365 : vector<2x32xf32>
    %367 = vector.extract_strided_slice %352 {offsets = [0, 96], sizes = [2, 32], strides = [1, 1]} : vector<2x128xf32> to vector<2x32xf32>
    %368 = arith.negf %367 : vector<2x32xf32>
    %369 = math.exp %368 : vector<2x32xf32>
    %cst_102 = arith.constant 1.000000e+00 : f32
    %370 = vector.broadcast %cst_102 : f32 to vector<2x32xf32>
    %371 = arith.addf %370, %369 : vector<2x32xf32>
    %372 = arith.divf %370, %371 : vector<2x32xf32>
    %373 = arith.mulf %364, %300 : vector<2x32xf32>
    %374 = arith.mulf %358, %366 : vector<2x32xf32>
    %375 = arith.addf %373, %374 : vector<2x32xf32>
    %376 = math.tanh %375 : vector<2x32xf32>
    %377 = arith.mulf %372, %376 : vector<2x32xf32>
    %378 = arith.index_cast %344 : i32 to index
    %c0_103 = arith.constant 0 : index
    %c0_104 = arith.constant 0 : index
    %379 = vector.load %arg17[%378, %c0_103, %c0_104] : memref<8x2x32xf32, #tpu.memory_space<vmem>>, vector<1x2x32xf32>
    %380 = vector.shape_cast %379 : vector<1x2x32xf32> to vector<2x32xf32>
    %381 = vector.shape_cast %377 : vector<2x32xf32> to vector<1x2x32xf32>
    tpu.vector_store %arg17[%378, %c0_103, %c0_104], %381 {strides = array<i32>} : memref<8x2x32xf32, #tpu.memory_space<vmem>>, vector<1x2x32xf32>,
    %c5_i32 = arith.constant 5 : i32
    %382 = arith.index_cast %c5_i32 : i32 to index
    %c0_105 = arith.constant 0 : index
    %c0_106 = arith.constant 0 : index
    %383 = vector.load %arg0[%382, %c0_105, %c0_106] : memref<8x2x32xf32, #tpu.memory_space<vmem>>, vector<1x2x32xf32>
    %384 = vector.shape_cast %383 : vector<1x2x32xf32> to vector<2x32xf32>
    %cst_107 = arith.constant dense<0.000000e+00> : vector<2x128xf32>
    %385 = tpu.matmul %384, %1, %cst_107 {dimension_numbers = #tpu.dot_dimension_numbers<[1], [0], [0], [1], [0, 0, 1, 1], [], []>} : vector<2x32xf32>, vector<32x128xf32>, vector<2x128xf32> -> vector<2x128xf32>
    %cst_108 = arith.constant dense<0.000000e+00> : vector<2x128xf32>
    %386 = tpu.matmul %339, %2, %cst_108 {dimension_numbers = #tpu.dot_dimension_numbers<[1], [0], [0], [1], [0, 0, 1, 1], [], []>} : vector<2x32xf32>, vector<32x128xf32>, vector<2x128xf32> -> vector<2x128xf32>
    %387 = arith.addf %385, %386 : vector<2x128xf32>
    %388 = vector.broadcast %3 : vector<1x128xf32> to vector<2x128xf32>
    %389 = arith.addf %387, %388 : vector<2x128xf32>
    %390 = vector.extract_strided_slice %389 {offsets = [0, 0], sizes = [2, 32], strides = [1, 1]} : vector<2x128xf32> to vector<2x32xf32>
    %391 = arith.negf %390 : vector<2x32xf32>
    %392 = math.exp %391 : vector<2x32xf32>
    %cst_109 = arith.constant 1.000000e+00 : f32
    %393 = vector.broadcast %cst_109 : f32 to vector<2x32xf32>
    %394 = arith.addf %393, %392 : vector<2x32xf32>
    %395 = arith.divf %393, %394 : vector<2x32xf32>
    %396 = vector.extract_strided_slice %389 {offsets = [0, 32], sizes = [2, 32], strides = [1, 1]} : vector<2x128xf32> to vector<2x32xf32>
    %397 = arith.negf %396 : vector<2x32xf32>
    %398 = math.exp %397 : vector<2x32xf32>
    %cst_110 = arith.constant 1.000000e+00 : f32
    %399 = vector.broadcast %cst_110 : f32 to vector<2x32xf32>
    %400 = arith.addf %399, %398 : vector<2x32xf32>
    %401 = arith.divf %399, %400 : vector<2x32xf32>
    %402 = vector.extract_strided_slice %389 {offsets = [0, 64], sizes = [2, 32], strides = [1, 1]} : vector<2x128xf32> to vector<2x32xf32>
    %403 = math.tanh %402 : vector<2x32xf32>
    %404 = vector.extract_strided_slice %389 {offsets = [0, 96], sizes = [2, 32], strides = [1, 1]} : vector<2x128xf32> to vector<2x32xf32>
    %405 = arith.negf %404 : vector<2x32xf32>
    %406 = math.exp %405 : vector<2x32xf32>
    %cst_111 = arith.constant 1.000000e+00 : f32
    %407 = vector.broadcast %cst_111 : f32 to vector<2x32xf32>
    %408 = arith.addf %407, %406 : vector<2x32xf32>
    %409 = arith.divf %407, %408 : vector<2x32xf32>
    %410 = arith.mulf %401, %337 : vector<2x32xf32>
    %411 = arith.mulf %395, %403 : vector<2x32xf32>
    %412 = arith.addf %410, %411 : vector<2x32xf32>
    %413 = math.tanh %412 : vector<2x32xf32>
    %414 = arith.mulf %409, %413 : vector<2x32xf32>
    %415 = arith.index_cast %c5_i32 : i32 to index
    %c0_112 = arith.constant 0 : index
    %c0_113 = arith.constant 0 : index
    %416 = vector.load %arg16[%415, %c0_112, %c0_113] : memref<8x2x32xf32, #tpu.memory_space<vmem>>, vector<1x2x32xf32>
    %417 = vector.shape_cast %416 : vector<1x2x32xf32> to vector<2x32xf32>
    %418 = vector.shape_cast %414 : vector<2x32xf32> to vector<1x2x32xf32>
    tpu.vector_store %arg16[%415, %c0_112, %c0_113], %418 {strides = array<i32>} : memref<8x2x32xf32, #tpu.memory_space<vmem>>, vector<1x2x32xf32>,
    %c7_i32_114 = arith.constant 7 : i32
    %419 = arith.subi %c7_i32_114, %c5_i32 : i32
    %420 = arith.index_cast %419 : i32 to index
    %c0_115 = arith.constant 0 : index
    %c0_116 = arith.constant 0 : index
    %421 = vector.load %arg0[%420, %c0_115, %c0_116] : memref<8x2x32xf32, #tpu.memory_space<vmem>>, vector<1x2x32xf32>
    %422 = vector.shape_cast %421 : vector<1x2x32xf32> to vector<2x32xf32>
    %cst_117 = arith.constant dense<0.000000e+00> : vector<2x128xf32>
    %423 = tpu.matmul %422, %4, %cst_117 {dimension_numbers = #tpu.dot_dimension_numbers<[1], [0], [0], [1], [0, 0, 1, 1], [], []>} : vector<2x32xf32>, vector<32x128xf32>, vector<2x128xf32> -> vector<2x128xf32>
    %cst_118 = arith.constant dense<0.000000e+00> : vector<2x128xf32>
    %424 = tpu.matmul %377, %5, %cst_118 {dimension_numbers = #tpu.dot_dimension_numbers<[1], [0], [0], [1], [0, 0, 1, 1], [], []>} : vector<2x32xf32>, vector<32x128xf32>, vector<2x128xf32> -> vector<2x128xf32>
    %425 = arith.addf %423, %424 : vector<2x128xf32>
    %426 = vector.broadcast %6 : vector<1x128xf32> to vector<2x128xf32>
    %427 = arith.addf %425, %426 : vector<2x128xf32>
    %428 = vector.extract_strided_slice %427 {offsets = [0, 0], sizes = [2, 32], strides = [1, 1]} : vector<2x128xf32> to vector<2x32xf32>
    %429 = arith.negf %428 : vector<2x32xf32>
    %430 = math.exp %429 : vector<2x32xf32>
    %cst_119 = arith.constant 1.000000e+00 : f32
    %431 = vector.broadcast %cst_119 : f32 to vector<2x32xf32>
    %432 = arith.addf %431, %430 : vector<2x32xf32>
    %433 = arith.divf %431, %432 : vector<2x32xf32>
    %434 = vector.extract_strided_slice %427 {offsets = [0, 32], sizes = [2, 32], strides = [1, 1]} : vector<2x128xf32> to vector<2x32xf32>
    %435 = arith.negf %434 : vector<2x32xf32>
    %436 = math.exp %435 : vector<2x32xf32>
    %cst_120 = arith.constant 1.000000e+00 : f32
    %437 = vector.broadcast %cst_120 : f32 to vector<2x32xf32>
    %438 = arith.addf %437, %436 : vector<2x32xf32>
    %439 = arith.divf %437, %438 : vector<2x32xf32>
    %440 = vector.extract_strided_slice %427 {offsets = [0, 64], sizes = [2, 32], strides = [1, 1]} : vector<2x128xf32> to vector<2x32xf32>
    %441 = math.tanh %440 : vector<2x32xf32>
    %442 = vector.extract_strided_slice %427 {offsets = [0, 96], sizes = [2, 32], strides = [1, 1]} : vector<2x128xf32> to vector<2x32xf32>
    %443 = arith.negf %442 : vector<2x32xf32>
    %444 = math.exp %443 : vector<2x32xf32>
    %cst_121 = arith.constant 1.000000e+00 : f32
    %445 = vector.broadcast %cst_121 : f32 to vector<2x32xf32>
    %446 = arith.addf %445, %444 : vector<2x32xf32>
    %447 = arith.divf %445, %446 : vector<2x32xf32>
    %448 = arith.mulf %439, %375 : vector<2x32xf32>
    %449 = arith.mulf %433, %441 : vector<2x32xf32>
    %450 = arith.addf %448, %449 : vector<2x32xf32>
    %451 = math.tanh %450 : vector<2x32xf32>
    %452 = arith.mulf %447, %451 : vector<2x32xf32>
    %453 = arith.index_cast %419 : i32 to index
    %c0_122 = arith.constant 0 : index
    %c0_123 = arith.constant 0 : index
    %454 = vector.load %arg17[%453, %c0_122, %c0_123] : memref<8x2x32xf32, #tpu.memory_space<vmem>>, vector<1x2x32xf32>
    %455 = vector.shape_cast %454 : vector<1x2x32xf32> to vector<2x32xf32>
    %456 = vector.shape_cast %452 : vector<2x32xf32> to vector<1x2x32xf32>
    tpu.vector_store %arg17[%453, %c0_122, %c0_123], %456 {strides = array<i32>} : memref<8x2x32xf32, #tpu.memory_space<vmem>>, vector<1x2x32xf32>,
    %c6_i32 = arith.constant 6 : i32
    %457 = arith.index_cast %c6_i32 : i32 to index
    %c0_124 = arith.constant 0 : index
    %c0_125 = arith.constant 0 : index
    %458 = vector.load %arg0[%457, %c0_124, %c0_125] : memref<8x2x32xf32, #tpu.memory_space<vmem>>, vector<1x2x32xf32>
    %459 = vector.shape_cast %458 : vector<1x2x32xf32> to vector<2x32xf32>
    %cst_126 = arith.constant dense<0.000000e+00> : vector<2x128xf32>
    %460 = tpu.matmul %459, %1, %cst_126 {dimension_numbers = #tpu.dot_dimension_numbers<[1], [0], [0], [1], [0, 0, 1, 1], [], []>} : vector<2x32xf32>, vector<32x128xf32>, vector<2x128xf32> -> vector<2x128xf32>
    %cst_127 = arith.constant dense<0.000000e+00> : vector<2x128xf32>
    %461 = tpu.matmul %414, %2, %cst_127 {dimension_numbers = #tpu.dot_dimension_numbers<[1], [0], [0], [1], [0, 0, 1, 1], [], []>} : vector<2x32xf32>, vector<32x128xf32>, vector<2x128xf32> -> vector<2x128xf32>
    %462 = arith.addf %460, %461 : vector<2x128xf32>
    %463 = vector.broadcast %3 : vector<1x128xf32> to vector<2x128xf32>
    %464 = arith.addf %462, %463 : vector<2x128xf32>
    %465 = vector.extract_strided_slice %464 {offsets = [0, 0], sizes = [2, 32], strides = [1, 1]} : vector<2x128xf32> to vector<2x32xf32>
    %466 = arith.negf %465 : vector<2x32xf32>
    %467 = math.exp %466 : vector<2x32xf32>
    %cst_128 = arith.constant 1.000000e+00 : f32
    %468 = vector.broadcast %cst_128 : f32 to vector<2x32xf32>
    %469 = arith.addf %468, %467 : vector<2x32xf32>
    %470 = arith.divf %468, %469 : vector<2x32xf32>
    %471 = vector.extract_strided_slice %464 {offsets = [0, 32], sizes = [2, 32], strides = [1, 1]} : vector<2x128xf32> to vector<2x32xf32>
    %472 = arith.negf %471 : vector<2x32xf32>
    %473 = math.exp %472 : vector<2x32xf32>
    %cst_129 = arith.constant 1.000000e+00 : f32
    %474 = vector.broadcast %cst_129 : f32 to vector<2x32xf32>
    %475 = arith.addf %474, %473 : vector<2x32xf32>
    %476 = arith.divf %474, %475 : vector<2x32xf32>
    %477 = vector.extract_strided_slice %464 {offsets = [0, 64], sizes = [2, 32], strides = [1, 1]} : vector<2x128xf32> to vector<2x32xf32>
    %478 = math.tanh %477 : vector<2x32xf32>
    %479 = vector.extract_strided_slice %464 {offsets = [0, 96], sizes = [2, 32], strides = [1, 1]} : vector<2x128xf32> to vector<2x32xf32>
    %480 = arith.negf %479 : vector<2x32xf32>
    %481 = math.exp %480 : vector<2x32xf32>
    %cst_130 = arith.constant 1.000000e+00 : f32
    %482 = vector.broadcast %cst_130 : f32 to vector<2x32xf32>
    %483 = arith.addf %482, %481 : vector<2x32xf32>
    %484 = arith.divf %482, %483 : vector<2x32xf32>
    %485 = arith.mulf %476, %412 : vector<2x32xf32>
    %486 = arith.mulf %470, %478 : vector<2x32xf32>
    %487 = arith.addf %485, %486 : vector<2x32xf32>
    %488 = math.tanh %487 : vector<2x32xf32>
    %489 = arith.mulf %484, %488 : vector<2x32xf32>
    %490 = arith.index_cast %c6_i32 : i32 to index
    %c0_131 = arith.constant 0 : index
    %c0_132 = arith.constant 0 : index
    %491 = vector.load %arg16[%490, %c0_131, %c0_132] : memref<8x2x32xf32, #tpu.memory_space<vmem>>, vector<1x2x32xf32>
    %492 = vector.shape_cast %491 : vector<1x2x32xf32> to vector<2x32xf32>
    %493 = vector.shape_cast %489 : vector<2x32xf32> to vector<1x2x32xf32>
    tpu.vector_store %arg16[%490, %c0_131, %c0_132], %493 {strides = array<i32>} : memref<8x2x32xf32, #tpu.memory_space<vmem>>, vector<1x2x32xf32>,
    %c7_i32_133 = arith.constant 7 : i32
    %494 = arith.subi %c7_i32_133, %c6_i32 : i32
    %495 = arith.index_cast %494 : i32 to index
    %c0_134 = arith.constant 0 : index
    %c0_135 = arith.constant 0 : index
    %496 = vector.load %arg0[%495, %c0_134, %c0_135] : memref<8x2x32xf32, #tpu.memory_space<vmem>>, vector<1x2x32xf32>
    %497 = vector.shape_cast %496 : vector<1x2x32xf32> to vector<2x32xf32>
    %cst_136 = arith.constant dense<0.000000e+00> : vector<2x128xf32>
    %498 = tpu.matmul %497, %4, %cst_136 {dimension_numbers = #tpu.dot_dimension_numbers<[1], [0], [0], [1], [0, 0, 1, 1], [], []>} : vector<2x32xf32>, vector<32x128xf32>, vector<2x128xf32> -> vector<2x128xf32>
    %cst_137 = arith.constant dense<0.000000e+00> : vector<2x128xf32>
    %499 = tpu.matmul %452, %5, %cst_137 {dimension_numbers = #tpu.dot_dimension_numbers<[1], [0], [0], [1], [0, 0, 1, 1], [], []>} : vector<2x32xf32>, vector<32x128xf32>, vector<2x128xf32> -> vector<2x128xf32>
    %500 = arith.addf %498, %499 : vector<2x128xf32>
    %501 = vector.broadcast %6 : vector<1x128xf32> to vector<2x128xf32>
    %502 = arith.addf %500, %501 : vector<2x128xf32>
    %503 = vector.extract_strided_slice %502 {offsets = [0, 0], sizes = [2, 32], strides = [1, 1]} : vector<2x128xf32> to vector<2x32xf32>
    %504 = arith.negf %503 : vector<2x32xf32>
    %505 = math.exp %504 : vector<2x32xf32>
    %cst_138 = arith.constant 1.000000e+00 : f32
    %506 = vector.broadcast %cst_138 : f32 to vector<2x32xf32>
    %507 = arith.addf %506, %505 : vector<2x32xf32>
    %508 = arith.divf %506, %507 : vector<2x32xf32>
    %509 = vector.extract_strided_slice %502 {offsets = [0, 32], sizes = [2, 32], strides = [1, 1]} : vector<2x128xf32> to vector<2x32xf32>
    %510 = arith.negf %509 : vector<2x32xf32>
    %511 = math.exp %510 : vector<2x32xf32>
    %cst_139 = arith.constant 1.000000e+00 : f32
    %512 = vector.broadcast %cst_139 : f32 to vector<2x32xf32>
    %513 = arith.addf %512, %511 : vector<2x32xf32>
    %514 = arith.divf %512, %513 : vector<2x32xf32>
    %515 = vector.extract_strided_slice %502 {offsets = [0, 64], sizes = [2, 32], strides = [1, 1]} : vector<2x128xf32> to vector<2x32xf32>
    %516 = math.tanh %515 : vector<2x32xf32>
    %517 = vector.extract_strided_slice %502 {offsets = [0, 96], sizes = [2, 32], strides = [1, 1]} : vector<2x128xf32> to vector<2x32xf32>
    %518 = arith.negf %517 : vector<2x32xf32>
    %519 = math.exp %518 : vector<2x32xf32>
    %cst_140 = arith.constant 1.000000e+00 : f32
    %520 = vector.broadcast %cst_140 : f32 to vector<2x32xf32>
    %521 = arith.addf %520, %519 : vector<2x32xf32>
    %522 = arith.divf %520, %521 : vector<2x32xf32>
    %523 = arith.mulf %514, %450 : vector<2x32xf32>
    %524 = arith.mulf %508, %516 : vector<2x32xf32>
    %525 = arith.addf %523, %524 : vector<2x32xf32>
    %526 = math.tanh %525 : vector<2x32xf32>
    %527 = arith.mulf %522, %526 : vector<2x32xf32>
    %528 = arith.index_cast %494 : i32 to index
    %c0_141 = arith.constant 0 : index
    %c0_142 = arith.constant 0 : index
    %529 = vector.load %arg17[%528, %c0_141, %c0_142] : memref<8x2x32xf32, #tpu.memory_space<vmem>>, vector<1x2x32xf32>
    %530 = vector.shape_cast %529 : vector<1x2x32xf32> to vector<2x32xf32>
    %531 = vector.shape_cast %527 : vector<2x32xf32> to vector<1x2x32xf32>
    tpu.vector_store %arg17[%528, %c0_141, %c0_142], %531 {strides = array<i32>} : memref<8x2x32xf32, #tpu.memory_space<vmem>>, vector<1x2x32xf32>,
    %c7_i32_143 = arith.constant 7 : i32
    %532 = arith.index_cast %c7_i32_143 : i32 to index
    %c0_144 = arith.constant 0 : index
    %c0_145 = arith.constant 0 : index
    %533 = vector.load %arg0[%532, %c0_144, %c0_145] : memref<8x2x32xf32, #tpu.memory_space<vmem>>, vector<1x2x32xf32>
    %534 = vector.shape_cast %533 : vector<1x2x32xf32> to vector<2x32xf32>
    %cst_146 = arith.constant dense<0.000000e+00> : vector<2x128xf32>
    %535 = tpu.matmul %534, %1, %cst_146 {dimension_numbers = #tpu.dot_dimension_numbers<[1], [0], [0], [1], [0, 0, 1, 1], [], []>} : vector<2x32xf32>, vector<32x128xf32>, vector<2x128xf32> -> vector<2x128xf32>
    %cst_147 = arith.constant dense<0.000000e+00> : vector<2x128xf32>
    %536 = tpu.matmul %489, %2, %cst_147 {dimension_numbers = #tpu.dot_dimension_numbers<[1], [0], [0], [1], [0, 0, 1, 1], [], []>} : vector<2x32xf32>, vector<32x128xf32>, vector<2x128xf32> -> vector<2x128xf32>
    %537 = arith.addf %535, %536 : vector<2x128xf32>
    %538 = vector.broadcast %3 : vector<1x128xf32> to vector<2x128xf32>
    %539 = arith.addf %537, %538 : vector<2x128xf32>
    %540 = vector.extract_strided_slice %539 {offsets = [0, 0], sizes = [2, 32], strides = [1, 1]} : vector<2x128xf32> to vector<2x32xf32>
    %541 = arith.negf %540 : vector<2x32xf32>
    %542 = math.exp %541 : vector<2x32xf32>
    %cst_148 = arith.constant 1.000000e+00 : f32
    %543 = vector.broadcast %cst_148 : f32 to vector<2x32xf32>
    %544 = arith.addf %543, %542 : vector<2x32xf32>
    %545 = arith.divf %543, %544 : vector<2x32xf32>
    %546 = vector.extract_strided_slice %539 {offsets = [0, 32], sizes = [2, 32], strides = [1, 1]} : vector<2x128xf32> to vector<2x32xf32>
    %547 = arith.negf %546 : vector<2x32xf32>
    %548 = math.exp %547 : vector<2x32xf32>
    %cst_149 = arith.constant 1.000000e+00 : f32
    %549 = vector.broadcast %cst_149 : f32 to vector<2x32xf32>
    %550 = arith.addf %549, %548 : vector<2x32xf32>
    %551 = arith.divf %549, %550 : vector<2x32xf32>
    %552 = vector.extract_strided_slice %539 {offsets = [0, 64], sizes = [2, 32], strides = [1, 1]} : vector<2x128xf32> to vector<2x32xf32>
    %553 = math.tanh %552 : vector<2x32xf32>
    %554 = vector.extract_strided_slice %539 {offsets = [0, 96], sizes = [2, 32], strides = [1, 1]} : vector<2x128xf32> to vector<2x32xf32>
    %555 = arith.negf %554 : vector<2x32xf32>
    %556 = math.exp %555 : vector<2x32xf32>
    %cst_150 = arith.constant 1.000000e+00 : f32
    %557 = vector.broadcast %cst_150 : f32 to vector<2x32xf32>
    %558 = arith.addf %557, %556 : vector<2x32xf32>
    %559 = arith.divf %557, %558 : vector<2x32xf32>
    %560 = arith.mulf %551, %487 : vector<2x32xf32>
    %561 = arith.mulf %545, %553 : vector<2x32xf32>
    %562 = arith.addf %560, %561 : vector<2x32xf32>
    %563 = math.tanh %562 : vector<2x32xf32>
    %564 = arith.mulf %559, %563 : vector<2x32xf32>
    %565 = arith.index_cast %c7_i32_143 : i32 to index
    %c0_151 = arith.constant 0 : index
    %c0_152 = arith.constant 0 : index
    %566 = vector.load %arg16[%565, %c0_151, %c0_152] : memref<8x2x32xf32, #tpu.memory_space<vmem>>, vector<1x2x32xf32>
    %567 = vector.shape_cast %566 : vector<1x2x32xf32> to vector<2x32xf32>
    %568 = vector.shape_cast %564 : vector<2x32xf32> to vector<1x2x32xf32>
    tpu.vector_store %arg16[%565, %c0_151, %c0_152], %568 {strides = array<i32>} : memref<8x2x32xf32, #tpu.memory_space<vmem>>, vector<1x2x32xf32>,
    %c7_i32_153 = arith.constant 7 : i32
    %569 = arith.subi %c7_i32_153, %c7_i32_143 : i32
    %570 = arith.index_cast %569 : i32 to index
    %c0_154 = arith.constant 0 : index
    %c0_155 = arith.constant 0 : index
    %571 = vector.load %arg0[%570, %c0_154, %c0_155] : memref<8x2x32xf32, #tpu.memory_space<vmem>>, vector<1x2x32xf32>
    %572 = vector.shape_cast %571 : vector<1x2x32xf32> to vector<2x32xf32>
    %cst_156 = arith.constant dense<0.000000e+00> : vector<2x128xf32>
    %573 = tpu.matmul %572, %4, %cst_156 {dimension_numbers = #tpu.dot_dimension_numbers<[1], [0], [0], [1], [0, 0, 1, 1], [], []>} : vector<2x32xf32>, vector<32x128xf32>, vector<2x128xf32> -> vector<2x128xf32>
    %cst_157 = arith.constant dense<0.000000e+00> : vector<2x128xf32>
    %574 = tpu.matmul %527, %5, %cst_157 {dimension_numbers = #tpu.dot_dimension_numbers<[1], [0], [0], [1], [0, 0, 1, 1], [], []>} : vector<2x32xf32>, vector<32x128xf32>, vector<2x128xf32> -> vector<2x128xf32>
    %575 = arith.addf %573, %574 : vector<2x128xf32>
    %576 = vector.broadcast %6 : vector<1x128xf32> to vector<2x128xf32>
    %577 = arith.addf %575, %576 : vector<2x128xf32>
    %578 = vector.extract_strided_slice %577 {offsets = [0, 0], sizes = [2, 32], strides = [1, 1]} : vector<2x128xf32> to vector<2x32xf32>
    %579 = arith.negf %578 : vector<2x32xf32>
    %580 = math.exp %579 : vector<2x32xf32>
    %cst_158 = arith.constant 1.000000e+00 : f32
    %581 = vector.broadcast %cst_158 : f32 to vector<2x32xf32>
    %582 = arith.addf %581, %580 : vector<2x32xf32>
    %583 = arith.divf %581, %582 : vector<2x32xf32>
    %584 = vector.extract_strided_slice %577 {offsets = [0, 32], sizes = [2, 32], strides = [1, 1]} : vector<2x128xf32> to vector<2x32xf32>
    %585 = arith.negf %584 : vector<2x32xf32>
    %586 = math.exp %585 : vector<2x32xf32>
    %cst_159 = arith.constant 1.000000e+00 : f32
    %587 = vector.broadcast %cst_159 : f32 to vector<2x32xf32>
    %588 = arith.addf %587, %586 : vector<2x32xf32>
    %589 = arith.divf %587, %588 : vector<2x32xf32>
    %590 = vector.extract_strided_slice %577 {offsets = [0, 64], sizes = [2, 32], strides = [1, 1]} : vector<2x128xf32> to vector<2x32xf32>
    %591 = math.tanh %590 : vector<2x32xf32>
    %592 = vector.extract_strided_slice %577 {offsets = [0, 96], sizes = [2, 32], strides = [1, 1]} : vector<2x128xf32> to vector<2x32xf32>
    %593 = arith.negf %592 : vector<2x32xf32>
    %594 = math.exp %593 : vector<2x32xf32>
    %cst_160 = arith.constant 1.000000e+00 : f32
    %595 = vector.broadcast %cst_160 : f32 to vector<2x32xf32>
    %596 = arith.addf %595, %594 : vector<2x32xf32>
    %597 = arith.divf %595, %596 : vector<2x32xf32>
    %598 = arith.mulf %589, %525 : vector<2x32xf32>
    %599 = arith.mulf %583, %591 : vector<2x32xf32>
    %600 = arith.addf %598, %599 : vector<2x32xf32>
    %601 = math.tanh %600 : vector<2x32xf32>
    %602 = arith.mulf %597, %601 : vector<2x32xf32>
    %603 = arith.index_cast %569 : i32 to index
    %c0_161 = arith.constant 0 : index
    %c0_162 = arith.constant 0 : index
    %604 = vector.load %arg17[%603, %c0_161, %c0_162] : memref<8x2x32xf32, #tpu.memory_space<vmem>>, vector<1x2x32xf32>
    %605 = vector.shape_cast %604 : vector<1x2x32xf32> to vector<2x32xf32>
    %606 = vector.shape_cast %602 : vector<2x32xf32> to vector<1x2x32xf32>
    tpu.vector_store %arg17[%603, %c0_161, %c0_162], %606 {strides = array<i32>} : memref<8x2x32xf32, #tpu.memory_space<vmem>>, vector<1x2x32xf32>,
    %c8_i32 = arith.constant 8 : i32
    %c0_163 = arith.constant 0 : index
    %c0_164 = arith.constant 0 : index
    %607 = vector.load %arg7[%c0_163, %c0_164] : memref<64x128xf32, #tpu.memory_space<vmem>>, vector<32x128xf32>
    %c32 = arith.constant 32 : index
    %c0_165 = arith.constant 0 : index
    %608 = vector.load %arg7[%c32, %c0_165] : memref<64x128xf32, #tpu.memory_space<vmem>>, vector<32x128xf32>
    %c0_166 = arith.constant 0 : index
    %c0_167 = arith.constant 0 : index
    %609 = vector.load %arg8[%c0_166, %c0_167] : memref<32x128xf32, #tpu.memory_space<vmem>>, vector<32x128xf32>
    %c0_168 = arith.constant 0 : index
    %c0_169 = arith.constant 0 : index
    %610 = vector.load %arg9[%c0_168, %c0_169] : memref<1x128xf32, #tpu.memory_space<vmem>>, vector<1x128xf32>
    %c0_170 = arith.constant 0 : index
    %c0_171 = arith.constant 0 : index
    %611 = vector.load %arg10[%c0_170, %c0_171] : memref<64x128xf32, #tpu.memory_space<vmem>>, vector<32x128xf32>
    %c32_172 = arith.constant 32 : index
    %c0_173 = arith.constant 0 : index
    %612 = vector.load %arg10[%c32_172, %c0_173] : memref<64x128xf32, #tpu.memory_space<vmem>>, vector<32x128xf32>
    %c0_174 = arith.constant 0 : index
    %c0_175 = arith.constant 0 : index
    %613 = vector.load %arg11[%c0_174, %c0_175] : memref<32x128xf32, #tpu.memory_space<vmem>>, vector<32x128xf32>
    %c0_176 = arith.constant 0 : index
    %c0_177 = arith.constant 0 : index
    %614 = vector.load %arg12[%c0_176, %c0_177] : memref<1x128xf32, #tpu.memory_space<vmem>>, vector<1x128xf32>
    %c0_i32_178 = arith.constant 0 : i32
    %615 = arith.index_cast %c0_i32_178 : i32 to index
    %c0_179 = arith.constant 0 : index
    %c0_180 = arith.constant 0 : index
    %616 = vector.load %arg16[%615, %c0_179, %c0_180] : memref<8x2x32xf32, #tpu.memory_space<vmem>>, vector<1x2x32xf32>
    %617 = vector.shape_cast %616 : vector<1x2x32xf32> to vector<2x32xf32>
    %cst_181 = arith.constant dense<0.000000e+00> : vector<2x128xf32>
    %618 = tpu.matmul %617, %607, %cst_181 {dimension_numbers = #tpu.dot_dimension_numbers<[1], [0], [0], [1], [0, 0, 1, 1], [], []>} : vector<2x32xf32>, vector<32x128xf32>, vector<2x128xf32> -> vector<2x128xf32>
    %619 = arith.index_cast %c0_i32_178 : i32 to index
    %c0_182 = arith.constant 0 : index
    %c0_183 = arith.constant 0 : index
    %620 = vector.load %arg17[%619, %c0_182, %c0_183] : memref<8x2x32xf32, #tpu.memory_space<vmem>>, vector<1x2x32xf32>
    %621 = vector.shape_cast %620 : vector<1x2x32xf32> to vector<2x32xf32>
    %cst_184 = arith.constant dense<0.000000e+00> : vector<2x128xf32>
    %622 = tpu.matmul %621, %608, %cst_184 {dimension_numbers = #tpu.dot_dimension_numbers<[1], [0], [0], [1], [0, 0, 1, 1], [], []>} : vector<2x32xf32>, vector<32x128xf32>, vector<2x128xf32> -> vector<2x128xf32>
    %623 = arith.addf %618, %622 : vector<2x128xf32>
    %cst_185 = arith.constant dense<0.000000e+00> : vector<2x128xf32>
    %624 = tpu.matmul %0, %609, %cst_185 {dimension_numbers = #tpu.dot_dimension_numbers<[1], [0], [0], [1], [0, 0, 1, 1], [], []>} : vector<2x32xf32>, vector<32x128xf32>, vector<2x128xf32> -> vector<2x128xf32>
    %625 = arith.addf %623, %624 : vector<2x128xf32>
    %626 = vector.broadcast %610 : vector<1x128xf32> to vector<2x128xf32>
    %627 = arith.addf %625, %626 : vector<2x128xf32>
    %628 = vector.extract_strided_slice %627 {offsets = [0, 0], sizes = [2, 32], strides = [1, 1]} : vector<2x128xf32> to vector<2x32xf32>
    %629 = arith.negf %628 : vector<2x32xf32>
    %630 = math.exp %629 : vector<2x32xf32>
    %cst_186 = arith.constant 1.000000e+00 : f32
    %631 = vector.broadcast %cst_186 : f32 to vector<2x32xf32>
    %632 = arith.addf %631, %630 : vector<2x32xf32>
    %633 = arith.divf %631, %632 : vector<2x32xf32>
    %634 = vector.extract_strided_slice %627 {offsets = [0, 32], sizes = [2, 32], strides = [1, 1]} : vector<2x128xf32> to vector<2x32xf32>
    %635 = arith.negf %634 : vector<2x32xf32>
    %636 = math.exp %635 : vector<2x32xf32>
    %cst_187 = arith.constant 1.000000e+00 : f32
    %637 = vector.broadcast %cst_187 : f32 to vector<2x32xf32>
    %638 = arith.addf %637, %636 : vector<2x32xf32>
    %639 = arith.divf %637, %638 : vector<2x32xf32>
    %640 = vector.extract_strided_slice %627 {offsets = [0, 64], sizes = [2, 32], strides = [1, 1]} : vector<2x128xf32> to vector<2x32xf32>
    %641 = math.tanh %640 : vector<2x32xf32>
    %642 = vector.extract_strided_slice %627 {offsets = [0, 96], sizes = [2, 32], strides = [1, 1]} : vector<2x128xf32> to vector<2x32xf32>
    %643 = arith.negf %642 : vector<2x32xf32>
    %644 = math.exp %643 : vector<2x32xf32>
    %cst_188 = arith.constant 1.000000e+00 : f32
    %645 = vector.broadcast %cst_188 : f32 to vector<2x32xf32>
    %646 = arith.addf %645, %644 : vector<2x32xf32>
    %647 = arith.divf %645, %646 : vector<2x32xf32>
    %648 = arith.mulf %639, %0 : vector<2x32xf32>
    %649 = arith.mulf %633, %641 : vector<2x32xf32>
    %650 = arith.addf %648, %649 : vector<2x32xf32>
    %651 = math.tanh %650 : vector<2x32xf32>
    %652 = arith.mulf %647, %651 : vector<2x32xf32>
    %653 = arith.index_cast %c0_i32_178 : i32 to index
    %c0_189 = arith.constant 0 : index
    %c0_190 = arith.constant 0 : index
    %654 = vector.load %arg18[%653, %c0_189, %c0_190] : memref<8x2x32xf32, #tpu.memory_space<vmem>>, vector<1x2x32xf32>
    %655 = vector.shape_cast %654 : vector<1x2x32xf32> to vector<2x32xf32>
    %656 = vector.shape_cast %652 : vector<2x32xf32> to vector<1x2x32xf32>
    tpu.vector_store %arg18[%653, %c0_189, %c0_190], %656 {strides = array<i32>} : memref<8x2x32xf32, #tpu.memory_space<vmem>>, vector<1x2x32xf32>,
    %c7_i32_191 = arith.constant 7 : i32
    %657 = arith.subi %c7_i32_191, %c0_i32_178 : i32
    %658 = arith.index_cast %657 : i32 to index
    %c0_192 = arith.constant 0 : index
    %c0_193 = arith.constant 0 : index
    %659 = vector.load %arg16[%658, %c0_192, %c0_193] : memref<8x2x32xf32, #tpu.memory_space<vmem>>, vector<1x2x32xf32>
    %660 = vector.shape_cast %659 : vector<1x2x32xf32> to vector<2x32xf32>
    %cst_194 = arith.constant dense<0.000000e+00> : vector<2x128xf32>
    %661 = tpu.matmul %660, %611, %cst_194 {dimension_numbers = #tpu.dot_dimension_numbers<[1], [0], [0], [1], [0, 0, 1, 1], [], []>} : vector<2x32xf32>, vector<32x128xf32>, vector<2x128xf32> -> vector<2x128xf32>
    %662 = arith.index_cast %657 : i32 to index
    %c0_195 = arith.constant 0 : index
    %c0_196 = arith.constant 0 : index
    %663 = vector.load %arg17[%662, %c0_195, %c0_196] : memref<8x2x32xf32, #tpu.memory_space<vmem>>, vector<1x2x32xf32>
    %664 = vector.shape_cast %663 : vector<1x2x32xf32> to vector<2x32xf32>
    %cst_197 = arith.constant dense<0.000000e+00> : vector<2x128xf32>
    %665 = tpu.matmul %664, %612, %cst_197 {dimension_numbers = #tpu.dot_dimension_numbers<[1], [0], [0], [1], [0, 0, 1, 1], [], []>} : vector<2x32xf32>, vector<32x128xf32>, vector<2x128xf32> -> vector<2x128xf32>
    %666 = arith.addf %661, %665 : vector<2x128xf32>
    %cst_198 = arith.constant dense<0.000000e+00> : vector<2x128xf32>
    %667 = tpu.matmul %0, %613, %cst_198 {dimension_numbers = #tpu.dot_dimension_numbers<[1], [0], [0], [1], [0, 0, 1, 1], [], []>} : vector<2x32xf32>, vector<32x128xf32>, vector<2x128xf32> -> vector<2x128xf32>
    %668 = arith.addf %666, %667 : vector<2x128xf32>
    %669 = vector.broadcast %614 : vector<1x128xf32> to vector<2x128xf32>
    %670 = arith.addf %668, %669 : vector<2x128xf32>
    %671 = vector.extract_strided_slice %670 {offsets = [0, 0], sizes = [2, 32], strides = [1, 1]} : vector<2x128xf32> to vector<2x32xf32>
    %672 = arith.negf %671 : vector<2x32xf32>
    %673 = math.exp %672 : vector<2x32xf32>
    %cst_199 = arith.constant 1.000000e+00 : f32
    %674 = vector.broadcast %cst_199 : f32 to vector<2x32xf32>
    %675 = arith.addf %674, %673 : vector<2x32xf32>
    %676 = arith.divf %674, %675 : vector<2x32xf32>
    %677 = vector.extract_strided_slice %670 {offsets = [0, 32], sizes = [2, 32], strides = [1, 1]} : vector<2x128xf32> to vector<2x32xf32>
    %678 = arith.negf %677 : vector<2x32xf32>
    %679 = math.exp %678 : vector<2x32xf32>
    %cst_200 = arith.constant 1.000000e+00 : f32
    %680 = vector.broadcast %cst_200 : f32 to vector<2x32xf32>
    %681 = arith.addf %680, %679 : vector<2x32xf32>
    %682 = arith.divf %680, %681 : vector<2x32xf32>
    %683 = vector.extract_strided_slice %670 {offsets = [0, 64], sizes = [2, 32], strides = [1, 1]} : vector<2x128xf32> to vector<2x32xf32>
    %684 = math.tanh %683 : vector<2x32xf32>
    %685 = vector.extract_strided_slice %670 {offsets = [0, 96], sizes = [2, 32], strides = [1, 1]} : vector<2x128xf32> to vector<2x32xf32>
    %686 = arith.negf %685 : vector<2x32xf32>
    %687 = math.exp %686 : vector<2x32xf32>
    %cst_201 = arith.constant 1.000000e+00 : f32
    %688 = vector.broadcast %cst_201 : f32 to vector<2x32xf32>
    %689 = arith.addf %688, %687 : vector<2x32xf32>
    %690 = arith.divf %688, %689 : vector<2x32xf32>
    %691 = arith.mulf %682, %0 : vector<2x32xf32>
    %692 = arith.mulf %676, %684 : vector<2x32xf32>
    %693 = arith.addf %691, %692 : vector<2x32xf32>
    %694 = math.tanh %693 : vector<2x32xf32>
    %695 = arith.mulf %690, %694 : vector<2x32xf32>
    %696 = arith.index_cast %657 : i32 to index
    %c0_202 = arith.constant 0 : index
    %c0_203 = arith.constant 0 : index
    %697 = vector.load %arg19[%696, %c0_202, %c0_203] : memref<8x2x32xf32, #tpu.memory_space<vmem>>, vector<1x2x32xf32>
    %698 = vector.shape_cast %697 : vector<1x2x32xf32> to vector<2x32xf32>
    %699 = vector.shape_cast %695 : vector<2x32xf32> to vector<1x2x32xf32>
    tpu.vector_store %arg19[%696, %c0_202, %c0_203], %699 {strides = array<i32>} : memref<8x2x32xf32, #tpu.memory_space<vmem>>, vector<1x2x32xf32>,
    %c1_i32_204 = arith.constant 1 : i32
    %700 = arith.index_cast %c1_i32_204 : i32 to index
    %c0_205 = arith.constant 0 : index
    %c0_206 = arith.constant 0 : index
    %701 = vector.load %arg16[%700, %c0_205, %c0_206] : memref<8x2x32xf32, #tpu.memory_space<vmem>>, vector<1x2x32xf32>
    %702 = vector.shape_cast %701 : vector<1x2x32xf32> to vector<2x32xf32>
    %cst_207 = arith.constant dense<0.000000e+00> : vector<2x128xf32>
    %703 = tpu.matmul %702, %607, %cst_207 {dimension_numbers = #tpu.dot_dimension_numbers<[1], [0], [0], [1], [0, 0, 1, 1], [], []>} : vector<2x32xf32>, vector<32x128xf32>, vector<2x128xf32> -> vector<2x128xf32>
    %704 = arith.index_cast %c1_i32_204 : i32 to index
    %c0_208 = arith.constant 0 : index
    %c0_209 = arith.constant 0 : index
    %705 = vector.load %arg17[%704, %c0_208, %c0_209] : memref<8x2x32xf32, #tpu.memory_space<vmem>>, vector<1x2x32xf32>
    %706 = vector.shape_cast %705 : vector<1x2x32xf32> to vector<2x32xf32>
    %cst_210 = arith.constant dense<0.000000e+00> : vector<2x128xf32>
    %707 = tpu.matmul %706, %608, %cst_210 {dimension_numbers = #tpu.dot_dimension_numbers<[1], [0], [0], [1], [0, 0, 1, 1], [], []>} : vector<2x32xf32>, vector<32x128xf32>, vector<2x128xf32> -> vector<2x128xf32>
    %708 = arith.addf %703, %707 : vector<2x128xf32>
    %cst_211 = arith.constant dense<0.000000e+00> : vector<2x128xf32>
    %709 = tpu.matmul %652, %609, %cst_211 {dimension_numbers = #tpu.dot_dimension_numbers<[1], [0], [0], [1], [0, 0, 1, 1], [], []>} : vector<2x32xf32>, vector<32x128xf32>, vector<2x128xf32> -> vector<2x128xf32>
    %710 = arith.addf %708, %709 : vector<2x128xf32>
    %711 = vector.broadcast %610 : vector<1x128xf32> to vector<2x128xf32>
    %712 = arith.addf %710, %711 : vector<2x128xf32>
    %713 = vector.extract_strided_slice %712 {offsets = [0, 0], sizes = [2, 32], strides = [1, 1]} : vector<2x128xf32> to vector<2x32xf32>
    %714 = arith.negf %713 : vector<2x32xf32>
    %715 = math.exp %714 : vector<2x32xf32>
    %cst_212 = arith.constant 1.000000e+00 : f32
    %716 = vector.broadcast %cst_212 : f32 to vector<2x32xf32>
    %717 = arith.addf %716, %715 : vector<2x32xf32>
    %718 = arith.divf %716, %717 : vector<2x32xf32>
    %719 = vector.extract_strided_slice %712 {offsets = [0, 32], sizes = [2, 32], strides = [1, 1]} : vector<2x128xf32> to vector<2x32xf32>
    %720 = arith.negf %719 : vector<2x32xf32>
    %721 = math.exp %720 : vector<2x32xf32>
    %cst_213 = arith.constant 1.000000e+00 : f32
    %722 = vector.broadcast %cst_213 : f32 to vector<2x32xf32>
    %723 = arith.addf %722, %721 : vector<2x32xf32>
    %724 = arith.divf %722, %723 : vector<2x32xf32>
    %725 = vector.extract_strided_slice %712 {offsets = [0, 64], sizes = [2, 32], strides = [1, 1]} : vector<2x128xf32> to vector<2x32xf32>
    %726 = math.tanh %725 : vector<2x32xf32>
    %727 = vector.extract_strided_slice %712 {offsets = [0, 96], sizes = [2, 32], strides = [1, 1]} : vector<2x128xf32> to vector<2x32xf32>
    %728 = arith.negf %727 : vector<2x32xf32>
    %729 = math.exp %728 : vector<2x32xf32>
    %cst_214 = arith.constant 1.000000e+00 : f32
    %730 = vector.broadcast %cst_214 : f32 to vector<2x32xf32>
    %731 = arith.addf %730, %729 : vector<2x32xf32>
    %732 = arith.divf %730, %731 : vector<2x32xf32>
    %733 = arith.mulf %724, %650 : vector<2x32xf32>
    %734 = arith.mulf %718, %726 : vector<2x32xf32>
    %735 = arith.addf %733, %734 : vector<2x32xf32>
    %736 = math.tanh %735 : vector<2x32xf32>
    %737 = arith.mulf %732, %736 : vector<2x32xf32>
    %738 = arith.index_cast %c1_i32_204 : i32 to index
    %c0_215 = arith.constant 0 : index
    %c0_216 = arith.constant 0 : index
    %739 = vector.load %arg18[%738, %c0_215, %c0_216] : memref<8x2x32xf32, #tpu.memory_space<vmem>>, vector<1x2x32xf32>
    %740 = vector.shape_cast %739 : vector<1x2x32xf32> to vector<2x32xf32>
    %741 = vector.shape_cast %737 : vector<2x32xf32> to vector<1x2x32xf32>
    tpu.vector_store %arg18[%738, %c0_215, %c0_216], %741 {strides = array<i32>} : memref<8x2x32xf32, #tpu.memory_space<vmem>>, vector<1x2x32xf32>,
    %c7_i32_217 = arith.constant 7 : i32
    %742 = arith.subi %c7_i32_217, %c1_i32_204 : i32
    %743 = arith.index_cast %742 : i32 to index
    %c0_218 = arith.constant 0 : index
    %c0_219 = arith.constant 0 : index
    %744 = vector.load %arg16[%743, %c0_218, %c0_219] : memref<8x2x32xf32, #tpu.memory_space<vmem>>, vector<1x2x32xf32>
    %745 = vector.shape_cast %744 : vector<1x2x32xf32> to vector<2x32xf32>
    %cst_220 = arith.constant dense<0.000000e+00> : vector<2x128xf32>
    %746 = tpu.matmul %745, %611, %cst_220 {dimension_numbers = #tpu.dot_dimension_numbers<[1], [0], [0], [1], [0, 0, 1, 1], [], []>} : vector<2x32xf32>, vector<32x128xf32>, vector<2x128xf32> -> vector<2x128xf32>
    %747 = arith.index_cast %742 : i32 to index
    %c0_221 = arith.constant 0 : index
    %c0_222 = arith.constant 0 : index
    %748 = vector.load %arg17[%747, %c0_221, %c0_222] : memref<8x2x32xf32, #tpu.memory_space<vmem>>, vector<1x2x32xf32>
    %749 = vector.shape_cast %748 : vector<1x2x32xf32> to vector<2x32xf32>
    %cst_223 = arith.constant dense<0.000000e+00> : vector<2x128xf32>
    %750 = tpu.matmul %749, %612, %cst_223 {dimension_numbers = #tpu.dot_dimension_numbers<[1], [0], [0], [1], [0, 0, 1, 1], [], []>} : vector<2x32xf32>, vector<32x128xf32>, vector<2x128xf32> -> vector<2x128xf32>
    %751 = arith.addf %746, %750 : vector<2x128xf32>
    %cst_224 = arith.constant dense<0.000000e+00> : vector<2x128xf32>
    %752 = tpu.matmul %695, %613, %cst_224 {dimension_numbers = #tpu.dot_dimension_numbers<[1], [0], [0], [1], [0, 0, 1, 1], [], []>} : vector<2x32xf32>, vector<32x128xf32>, vector<2x128xf32> -> vector<2x128xf32>
    %753 = arith.addf %751, %752 : vector<2x128xf32>
    %754 = vector.broadcast %614 : vector<1x128xf32> to vector<2x128xf32>
    %755 = arith.addf %753, %754 : vector<2x128xf32>
    %756 = vector.extract_strided_slice %755 {offsets = [0, 0], sizes = [2, 32], strides = [1, 1]} : vector<2x128xf32> to vector<2x32xf32>
    %757 = arith.negf %756 : vector<2x32xf32>
    %758 = math.exp %757 : vector<2x32xf32>
    %cst_225 = arith.constant 1.000000e+00 : f32
    %759 = vector.broadcast %cst_225 : f32 to vector<2x32xf32>
    %760 = arith.addf %759, %758 : vector<2x32xf32>
    %761 = arith.divf %759, %760 : vector<2x32xf32>
    %762 = vector.extract_strided_slice %755 {offsets = [0, 32], sizes = [2, 32], strides = [1, 1]} : vector<2x128xf32> to vector<2x32xf32>
    %763 = arith.negf %762 : vector<2x32xf32>
    %764 = math.exp %763 : vector<2x32xf32>
    %cst_226 = arith.constant 1.000000e+00 : f32
    %765 = vector.broadcast %cst_226 : f32 to vector<2x32xf32>
    %766 = arith.addf %765, %764 : vector<2x32xf32>
    %767 = arith.divf %765, %766 : vector<2x32xf32>
    %768 = vector.extract_strided_slice %755 {offsets = [0, 64], sizes = [2, 32], strides = [1, 1]} : vector<2x128xf32> to vector<2x32xf32>
    %769 = math.tanh %768 : vector<2x32xf32>
    %770 = vector.extract_strided_slice %755 {offsets = [0, 96], sizes = [2, 32], strides = [1, 1]} : vector<2x128xf32> to vector<2x32xf32>
    %771 = arith.negf %770 : vector<2x32xf32>
    %772 = math.exp %771 : vector<2x32xf32>
    %cst_227 = arith.constant 1.000000e+00 : f32
    %773 = vector.broadcast %cst_227 : f32 to vector<2x32xf32>
    %774 = arith.addf %773, %772 : vector<2x32xf32>
    %775 = arith.divf %773, %774 : vector<2x32xf32>
    %776 = arith.mulf %767, %693 : vector<2x32xf32>
    %777 = arith.mulf %761, %769 : vector<2x32xf32>
    %778 = arith.addf %776, %777 : vector<2x32xf32>
    %779 = math.tanh %778 : vector<2x32xf32>
    %780 = arith.mulf %775, %779 : vector<2x32xf32>
    %781 = arith.index_cast %742 : i32 to index
    %c0_228 = arith.constant 0 : index
    %c0_229 = arith.constant 0 : index
    %782 = vector.load %arg19[%781, %c0_228, %c0_229] : memref<8x2x32xf32, #tpu.memory_space<vmem>>, vector<1x2x32xf32>
    %783 = vector.shape_cast %782 : vector<1x2x32xf32> to vector<2x32xf32>
    %784 = vector.shape_cast %780 : vector<2x32xf32> to vector<1x2x32xf32>
    tpu.vector_store %arg19[%781, %c0_228, %c0_229], %784 {strides = array<i32>} : memref<8x2x32xf32, #tpu.memory_space<vmem>>, vector<1x2x32xf32>,
    %c2_i32_230 = arith.constant 2 : i32
    %785 = arith.index_cast %c2_i32_230 : i32 to index
    %c0_231 = arith.constant 0 : index
    %c0_232 = arith.constant 0 : index
    %786 = vector.load %arg16[%785, %c0_231, %c0_232] : memref<8x2x32xf32, #tpu.memory_space<vmem>>, vector<1x2x32xf32>
    %787 = vector.shape_cast %786 : vector<1x2x32xf32> to vector<2x32xf32>
    %cst_233 = arith.constant dense<0.000000e+00> : vector<2x128xf32>
    %788 = tpu.matmul %787, %607, %cst_233 {dimension_numbers = #tpu.dot_dimension_numbers<[1], [0], [0], [1], [0, 0, 1, 1], [], []>} : vector<2x32xf32>, vector<32x128xf32>, vector<2x128xf32> -> vector<2x128xf32>
    %789 = arith.index_cast %c2_i32_230 : i32 to index
    %c0_234 = arith.constant 0 : index
    %c0_235 = arith.constant 0 : index
    %790 = vector.load %arg17[%789, %c0_234, %c0_235] : memref<8x2x32xf32, #tpu.memory_space<vmem>>, vector<1x2x32xf32>
    %791 = vector.shape_cast %790 : vector<1x2x32xf32> to vector<2x32xf32>
    %cst_236 = arith.constant dense<0.000000e+00> : vector<2x128xf32>
    %792 = tpu.matmul %791, %608, %cst_236 {dimension_numbers = #tpu.dot_dimension_numbers<[1], [0], [0], [1], [0, 0, 1, 1], [], []>} : vector<2x32xf32>, vector<32x128xf32>, vector<2x128xf32> -> vector<2x128xf32>
    %793 = arith.addf %788, %792 : vector<2x128xf32>
    %cst_237 = arith.constant dense<0.000000e+00> : vector<2x128xf32>
    %794 = tpu.matmul %737, %609, %cst_237 {dimension_numbers = #tpu.dot_dimension_numbers<[1], [0], [0], [1], [0, 0, 1, 1], [], []>} : vector<2x32xf32>, vector<32x128xf32>, vector<2x128xf32> -> vector<2x128xf32>
    %795 = arith.addf %793, %794 : vector<2x128xf32>
    %796 = vector.broadcast %610 : vector<1x128xf32> to vector<2x128xf32>
    %797 = arith.addf %795, %796 : vector<2x128xf32>
    %798 = vector.extract_strided_slice %797 {offsets = [0, 0], sizes = [2, 32], strides = [1, 1]} : vector<2x128xf32> to vector<2x32xf32>
    %799 = arith.negf %798 : vector<2x32xf32>
    %800 = math.exp %799 : vector<2x32xf32>
    %cst_238 = arith.constant 1.000000e+00 : f32
    %801 = vector.broadcast %cst_238 : f32 to vector<2x32xf32>
    %802 = arith.addf %801, %800 : vector<2x32xf32>
    %803 = arith.divf %801, %802 : vector<2x32xf32>
    %804 = vector.extract_strided_slice %797 {offsets = [0, 32], sizes = [2, 32], strides = [1, 1]} : vector<2x128xf32> to vector<2x32xf32>
    %805 = arith.negf %804 : vector<2x32xf32>
    %806 = math.exp %805 : vector<2x32xf32>
    %cst_239 = arith.constant 1.000000e+00 : f32
    %807 = vector.broadcast %cst_239 : f32 to vector<2x32xf32>
    %808 = arith.addf %807, %806 : vector<2x32xf32>
    %809 = arith.divf %807, %808 : vector<2x32xf32>
    %810 = vector.extract_strided_slice %797 {offsets = [0, 64], sizes = [2, 32], strides = [1, 1]} : vector<2x128xf32> to vector<2x32xf32>
    %811 = math.tanh %810 : vector<2x32xf32>
    %812 = vector.extract_strided_slice %797 {offsets = [0, 96], sizes = [2, 32], strides = [1, 1]} : vector<2x128xf32> to vector<2x32xf32>
    %813 = arith.negf %812 : vector<2x32xf32>
    %814 = math.exp %813 : vector<2x32xf32>
    %cst_240 = arith.constant 1.000000e+00 : f32
    %815 = vector.broadcast %cst_240 : f32 to vector<2x32xf32>
    %816 = arith.addf %815, %814 : vector<2x32xf32>
    %817 = arith.divf %815, %816 : vector<2x32xf32>
    %818 = arith.mulf %809, %735 : vector<2x32xf32>
    %819 = arith.mulf %803, %811 : vector<2x32xf32>
    %820 = arith.addf %818, %819 : vector<2x32xf32>
    %821 = math.tanh %820 : vector<2x32xf32>
    %822 = arith.mulf %817, %821 : vector<2x32xf32>
    %823 = arith.index_cast %c2_i32_230 : i32 to index
    %c0_241 = arith.constant 0 : index
    %c0_242 = arith.constant 0 : index
    %824 = vector.load %arg18[%823, %c0_241, %c0_242] : memref<8x2x32xf32, #tpu.memory_space<vmem>>, vector<1x2x32xf32>
    %825 = vector.shape_cast %824 : vector<1x2x32xf32> to vector<2x32xf32>
    %826 = vector.shape_cast %822 : vector<2x32xf32> to vector<1x2x32xf32>
    tpu.vector_store %arg18[%823, %c0_241, %c0_242], %826 {strides = array<i32>} : memref<8x2x32xf32, #tpu.memory_space<vmem>>, vector<1x2x32xf32>,
    %c7_i32_243 = arith.constant 7 : i32
    %827 = arith.subi %c7_i32_243, %c2_i32_230 : i32
    %828 = arith.index_cast %827 : i32 to index
    %c0_244 = arith.constant 0 : index
    %c0_245 = arith.constant 0 : index
    %829 = vector.load %arg16[%828, %c0_244, %c0_245] : memref<8x2x32xf32, #tpu.memory_space<vmem>>, vector<1x2x32xf32>
    %830 = vector.shape_cast %829 : vector<1x2x32xf32> to vector<2x32xf32>
    %cst_246 = arith.constant dense<0.000000e+00> : vector<2x128xf32>
    %831 = tpu.matmul %830, %611, %cst_246 {dimension_numbers = #tpu.dot_dimension_numbers<[1], [0], [0], [1], [0, 0, 1, 1], [], []>} : vector<2x32xf32>, vector<32x128xf32>, vector<2x128xf32> -> vector<2x128xf32>
    %832 = arith.index_cast %827 : i32 to index
    %c0_247 = arith.constant 0 : index
    %c0_248 = arith.constant 0 : index
    %833 = vector.load %arg17[%832, %c0_247, %c0_248] : memref<8x2x32xf32, #tpu.memory_space<vmem>>, vector<1x2x32xf32>
    %834 = vector.shape_cast %833 : vector<1x2x32xf32> to vector<2x32xf32>
    %cst_249 = arith.constant dense<0.000000e+00> : vector<2x128xf32>
    %835 = tpu.matmul %834, %612, %cst_249 {dimension_numbers = #tpu.dot_dimension_numbers<[1], [0], [0], [1], [0, 0, 1, 1], [], []>} : vector<2x32xf32>, vector<32x128xf32>, vector<2x128xf32> -> vector<2x128xf32>
    %836 = arith.addf %831, %835 : vector<2x128xf32>
    %cst_250 = arith.constant dense<0.000000e+00> : vector<2x128xf32>
    %837 = tpu.matmul %780, %613, %cst_250 {dimension_numbers = #tpu.dot_dimension_numbers<[1], [0], [0], [1], [0, 0, 1, 1], [], []>} : vector<2x32xf32>, vector<32x128xf32>, vector<2x128xf32> -> vector<2x128xf32>
    %838 = arith.addf %836, %837 : vector<2x128xf32>
    %839 = vector.broadcast %614 : vector<1x128xf32> to vector<2x128xf32>
    %840 = arith.addf %838, %839 : vector<2x128xf32>
    %841 = vector.extract_strided_slice %840 {offsets = [0, 0], sizes = [2, 32], strides = [1, 1]} : vector<2x128xf32> to vector<2x32xf32>
    %842 = arith.negf %841 : vector<2x32xf32>
    %843 = math.exp %842 : vector<2x32xf32>
    %cst_251 = arith.constant 1.000000e+00 : f32
    %844 = vector.broadcast %cst_251 : f32 to vector<2x32xf32>
    %845 = arith.addf %844, %843 : vector<2x32xf32>
    %846 = arith.divf %844, %845 : vector<2x32xf32>
    %847 = vector.extract_strided_slice %840 {offsets = [0, 32], sizes = [2, 32], strides = [1, 1]} : vector<2x128xf32> to vector<2x32xf32>
    %848 = arith.negf %847 : vector<2x32xf32>
    %849 = math.exp %848 : vector<2x32xf32>
    %cst_252 = arith.constant 1.000000e+00 : f32
    %850 = vector.broadcast %cst_252 : f32 to vector<2x32xf32>
    %851 = arith.addf %850, %849 : vector<2x32xf32>
    %852 = arith.divf %850, %851 : vector<2x32xf32>
    %853 = vector.extract_strided_slice %840 {offsets = [0, 64], sizes = [2, 32], strides = [1, 1]} : vector<2x128xf32> to vector<2x32xf32>
    %854 = math.tanh %853 : vector<2x32xf32>
    %855 = vector.extract_strided_slice %840 {offsets = [0, 96], sizes = [2, 32], strides = [1, 1]} : vector<2x128xf32> to vector<2x32xf32>
    %856 = arith.negf %855 : vector<2x32xf32>
    %857 = math.exp %856 : vector<2x32xf32>
    %cst_253 = arith.constant 1.000000e+00 : f32
    %858 = vector.broadcast %cst_253 : f32 to vector<2x32xf32>
    %859 = arith.addf %858, %857 : vector<2x32xf32>
    %860 = arith.divf %858, %859 : vector<2x32xf32>
    %861 = arith.mulf %852, %778 : vector<2x32xf32>
    %862 = arith.mulf %846, %854 : vector<2x32xf32>
    %863 = arith.addf %861, %862 : vector<2x32xf32>
    %864 = math.tanh %863 : vector<2x32xf32>
    %865 = arith.mulf %860, %864 : vector<2x32xf32>
    %866 = arith.index_cast %827 : i32 to index
    %c0_254 = arith.constant 0 : index
    %c0_255 = arith.constant 0 : index
    %867 = vector.load %arg19[%866, %c0_254, %c0_255] : memref<8x2x32xf32, #tpu.memory_space<vmem>>, vector<1x2x32xf32>
    %868 = vector.shape_cast %867 : vector<1x2x32xf32> to vector<2x32xf32>
    %869 = vector.shape_cast %865 : vector<2x32xf32> to vector<1x2x32xf32>
    tpu.vector_store %arg19[%866, %c0_254, %c0_255], %869 {strides = array<i32>} : memref<8x2x32xf32, #tpu.memory_space<vmem>>, vector<1x2x32xf32>,
    %c3_i32_256 = arith.constant 3 : i32
    %870 = arith.index_cast %c3_i32_256 : i32 to index
    %c0_257 = arith.constant 0 : index
    %c0_258 = arith.constant 0 : index
    %871 = vector.load %arg16[%870, %c0_257, %c0_258] : memref<8x2x32xf32, #tpu.memory_space<vmem>>, vector<1x2x32xf32>
    %872 = vector.shape_cast %871 : vector<1x2x32xf32> to vector<2x32xf32>
    %cst_259 = arith.constant dense<0.000000e+00> : vector<2x128xf32>
    %873 = tpu.matmul %872, %607, %cst_259 {dimension_numbers = #tpu.dot_dimension_numbers<[1], [0], [0], [1], [0, 0, 1, 1], [], []>} : vector<2x32xf32>, vector<32x128xf32>, vector<2x128xf32> -> vector<2x128xf32>
    %874 = arith.index_cast %c3_i32_256 : i32 to index
    %c0_260 = arith.constant 0 : index
    %c0_261 = arith.constant 0 : index
    %875 = vector.load %arg17[%874, %c0_260, %c0_261] : memref<8x2x32xf32, #tpu.memory_space<vmem>>, vector<1x2x32xf32>
    %876 = vector.shape_cast %875 : vector<1x2x32xf32> to vector<2x32xf32>
    %cst_262 = arith.constant dense<0.000000e+00> : vector<2x128xf32>
    %877 = tpu.matmul %876, %608, %cst_262 {dimension_numbers = #tpu.dot_dimension_numbers<[1], [0], [0], [1], [0, 0, 1, 1], [], []>} : vector<2x32xf32>, vector<32x128xf32>, vector<2x128xf32> -> vector<2x128xf32>
    %878 = arith.addf %873, %877 : vector<2x128xf32>
    %cst_263 = arith.constant dense<0.000000e+00> : vector<2x128xf32>
    %879 = tpu.matmul %822, %609, %cst_263 {dimension_numbers = #tpu.dot_dimension_numbers<[1], [0], [0], [1], [0, 0, 1, 1], [], []>} : vector<2x32xf32>, vector<32x128xf32>, vector<2x128xf32> -> vector<2x128xf32>
    %880 = arith.addf %878, %879 : vector<2x128xf32>
    %881 = vector.broadcast %610 : vector<1x128xf32> to vector<2x128xf32>
    %882 = arith.addf %880, %881 : vector<2x128xf32>
    %883 = vector.extract_strided_slice %882 {offsets = [0, 0], sizes = [2, 32], strides = [1, 1]} : vector<2x128xf32> to vector<2x32xf32>
    %884 = arith.negf %883 : vector<2x32xf32>
    %885 = math.exp %884 : vector<2x32xf32>
    %cst_264 = arith.constant 1.000000e+00 : f32
    %886 = vector.broadcast %cst_264 : f32 to vector<2x32xf32>
    %887 = arith.addf %886, %885 : vector<2x32xf32>
    %888 = arith.divf %886, %887 : vector<2x32xf32>
    %889 = vector.extract_strided_slice %882 {offsets = [0, 32], sizes = [2, 32], strides = [1, 1]} : vector<2x128xf32> to vector<2x32xf32>
    %890 = arith.negf %889 : vector<2x32xf32>
    %891 = math.exp %890 : vector<2x32xf32>
    %cst_265 = arith.constant 1.000000e+00 : f32
    %892 = vector.broadcast %cst_265 : f32 to vector<2x32xf32>
    %893 = arith.addf %892, %891 : vector<2x32xf32>
    %894 = arith.divf %892, %893 : vector<2x32xf32>
    %895 = vector.extract_strided_slice %882 {offsets = [0, 64], sizes = [2, 32], strides = [1, 1]} : vector<2x128xf32> to vector<2x32xf32>
    %896 = math.tanh %895 : vector<2x32xf32>
    %897 = vector.extract_strided_slice %882 {offsets = [0, 96], sizes = [2, 32], strides = [1, 1]} : vector<2x128xf32> to vector<2x32xf32>
    %898 = arith.negf %897 : vector<2x32xf32>
    %899 = math.exp %898 : vector<2x32xf32>
    %cst_266 = arith.constant 1.000000e+00 : f32
    %900 = vector.broadcast %cst_266 : f32 to vector<2x32xf32>
    %901 = arith.addf %900, %899 : vector<2x32xf32>
    %902 = arith.divf %900, %901 : vector<2x32xf32>
    %903 = arith.mulf %894, %820 : vector<2x32xf32>
    %904 = arith.mulf %888, %896 : vector<2x32xf32>
    %905 = arith.addf %903, %904 : vector<2x32xf32>
    %906 = math.tanh %905 : vector<2x32xf32>
    %907 = arith.mulf %902, %906 : vector<2x32xf32>
    %908 = arith.index_cast %c3_i32_256 : i32 to index
    %c0_267 = arith.constant 0 : index
    %c0_268 = arith.constant 0 : index
    %909 = vector.load %arg18[%908, %c0_267, %c0_268] : memref<8x2x32xf32, #tpu.memory_space<vmem>>, vector<1x2x32xf32>
    %910 = vector.shape_cast %909 : vector<1x2x32xf32> to vector<2x32xf32>
    %911 = vector.shape_cast %907 : vector<2x32xf32> to vector<1x2x32xf32>
    tpu.vector_store %arg18[%908, %c0_267, %c0_268], %911 {strides = array<i32>} : memref<8x2x32xf32, #tpu.memory_space<vmem>>, vector<1x2x32xf32>,
    %c7_i32_269 = arith.constant 7 : i32
    %912 = arith.subi %c7_i32_269, %c3_i32_256 : i32
    %913 = arith.index_cast %912 : i32 to index
    %c0_270 = arith.constant 0 : index
    %c0_271 = arith.constant 0 : index
    %914 = vector.load %arg16[%913, %c0_270, %c0_271] : memref<8x2x32xf32, #tpu.memory_space<vmem>>, vector<1x2x32xf32>
    %915 = vector.shape_cast %914 : vector<1x2x32xf32> to vector<2x32xf32>
    %cst_272 = arith.constant dense<0.000000e+00> : vector<2x128xf32>
    %916 = tpu.matmul %915, %611, %cst_272 {dimension_numbers = #tpu.dot_dimension_numbers<[1], [0], [0], [1], [0, 0, 1, 1], [], []>} : vector<2x32xf32>, vector<32x128xf32>, vector<2x128xf32> -> vector<2x128xf32>
    %917 = arith.index_cast %912 : i32 to index
    %c0_273 = arith.constant 0 : index
    %c0_274 = arith.constant 0 : index
    %918 = vector.load %arg17[%917, %c0_273, %c0_274] : memref<8x2x32xf32, #tpu.memory_space<vmem>>, vector<1x2x32xf32>
    %919 = vector.shape_cast %918 : vector<1x2x32xf32> to vector<2x32xf32>
    %cst_275 = arith.constant dense<0.000000e+00> : vector<2x128xf32>
    %920 = tpu.matmul %919, %612, %cst_275 {dimension_numbers = #tpu.dot_dimension_numbers<[1], [0], [0], [1], [0, 0, 1, 1], [], []>} : vector<2x32xf32>, vector<32x128xf32>, vector<2x128xf32> -> vector<2x128xf32>
    %921 = arith.addf %916, %920 : vector<2x128xf32>
    %cst_276 = arith.constant dense<0.000000e+00> : vector<2x128xf32>
    %922 = tpu.matmul %865, %613, %cst_276 {dimension_numbers = #tpu.dot_dimension_numbers<[1], [0], [0], [1], [0, 0, 1, 1], [], []>} : vector<2x32xf32>, vector<32x128xf32>, vector<2x128xf32> -> vector<2x128xf32>
    %923 = arith.addf %921, %922 : vector<2x128xf32>
    %924 = vector.broadcast %614 : vector<1x128xf32> to vector<2x128xf32>
    %925 = arith.addf %923, %924 : vector<2x128xf32>
    %926 = vector.extract_strided_slice %925 {offsets = [0, 0], sizes = [2, 32], strides = [1, 1]} : vector<2x128xf32> to vector<2x32xf32>
    %927 = arith.negf %926 : vector<2x32xf32>
    %928 = math.exp %927 : vector<2x32xf32>
    %cst_277 = arith.constant 1.000000e+00 : f32
    %929 = vector.broadcast %cst_277 : f32 to vector<2x32xf32>
    %930 = arith.addf %929, %928 : vector<2x32xf32>
    %931 = arith.divf %929, %930 : vector<2x32xf32>
    %932 = vector.extract_strided_slice %925 {offsets = [0, 32], sizes = [2, 32], strides = [1, 1]} : vector<2x128xf32> to vector<2x32xf32>
    %933 = arith.negf %932 : vector<2x32xf32>
    %934 = math.exp %933 : vector<2x32xf32>
    %cst_278 = arith.constant 1.000000e+00 : f32
    %935 = vector.broadcast %cst_278 : f32 to vector<2x32xf32>
    %936 = arith.addf %935, %934 : vector<2x32xf32>
    %937 = arith.divf %935, %936 : vector<2x32xf32>
    %938 = vector.extract_strided_slice %925 {offsets = [0, 64], sizes = [2, 32], strides = [1, 1]} : vector<2x128xf32> to vector<2x32xf32>
    %939 = math.tanh %938 : vector<2x32xf32>
    %940 = vector.extract_strided_slice %925 {offsets = [0, 96], sizes = [2, 32], strides = [1, 1]} : vector<2x128xf32> to vector<2x32xf32>
    %941 = arith.negf %940 : vector<2x32xf32>
    %942 = math.exp %941 : vector<2x32xf32>
    %cst_279 = arith.constant 1.000000e+00 : f32
    %943 = vector.broadcast %cst_279 : f32 to vector<2x32xf32>
    %944 = arith.addf %943, %942 : vector<2x32xf32>
    %945 = arith.divf %943, %944 : vector<2x32xf32>
    %946 = arith.mulf %937, %863 : vector<2x32xf32>
    %947 = arith.mulf %931, %939 : vector<2x32xf32>
    %948 = arith.addf %946, %947 : vector<2x32xf32>
    %949 = math.tanh %948 : vector<2x32xf32>
    %950 = arith.mulf %945, %949 : vector<2x32xf32>
    %951 = arith.index_cast %912 : i32 to index
    %c0_280 = arith.constant 0 : index
    %c0_281 = arith.constant 0 : index
    %952 = vector.load %arg19[%951, %c0_280, %c0_281] : memref<8x2x32xf32, #tpu.memory_space<vmem>>, vector<1x2x32xf32>
    %953 = vector.shape_cast %952 : vector<1x2x32xf32> to vector<2x32xf32>
    %954 = vector.shape_cast %950 : vector<2x32xf32> to vector<1x2x32xf32>
    tpu.vector_store %arg19[%951, %c0_280, %c0_281], %954 {strides = array<i32>} : memref<8x2x32xf32, #tpu.memory_space<vmem>>, vector<1x2x32xf32>,
    %c4_i32_282 = arith.constant 4 : i32
    %955 = arith.index_cast %c4_i32_282 : i32 to index
    %c0_283 = arith.constant 0 : index
    %c0_284 = arith.constant 0 : index
    %956 = vector.load %arg16[%955, %c0_283, %c0_284] : memref<8x2x32xf32, #tpu.memory_space<vmem>>, vector<1x2x32xf32>
    %957 = vector.shape_cast %956 : vector<1x2x32xf32> to vector<2x32xf32>
    %cst_285 = arith.constant dense<0.000000e+00> : vector<2x128xf32>
    %958 = tpu.matmul %957, %607, %cst_285 {dimension_numbers = #tpu.dot_dimension_numbers<[1], [0], [0], [1], [0, 0, 1, 1], [], []>} : vector<2x32xf32>, vector<32x128xf32>, vector<2x128xf32> -> vector<2x128xf32>
    %959 = arith.index_cast %c4_i32_282 : i32 to index
    %c0_286 = arith.constant 0 : index
    %c0_287 = arith.constant 0 : index
    %960 = vector.load %arg17[%959, %c0_286, %c0_287] : memref<8x2x32xf32, #tpu.memory_space<vmem>>, vector<1x2x32xf32>
    %961 = vector.shape_cast %960 : vector<1x2x32xf32> to vector<2x32xf32>
    %cst_288 = arith.constant dense<0.000000e+00> : vector<2x128xf32>
    %962 = tpu.matmul %961, %608, %cst_288 {dimension_numbers = #tpu.dot_dimension_numbers<[1], [0], [0], [1], [0, 0, 1, 1], [], []>} : vector<2x32xf32>, vector<32x128xf32>, vector<2x128xf32> -> vector<2x128xf32>
    %963 = arith.addf %958, %962 : vector<2x128xf32>
    %cst_289 = arith.constant dense<0.000000e+00> : vector<2x128xf32>
    %964 = tpu.matmul %907, %609, %cst_289 {dimension_numbers = #tpu.dot_dimension_numbers<[1], [0], [0], [1], [0, 0, 1, 1], [], []>} : vector<2x32xf32>, vector<32x128xf32>, vector<2x128xf32> -> vector<2x128xf32>
    %965 = arith.addf %963, %964 : vector<2x128xf32>
    %966 = vector.broadcast %610 : vector<1x128xf32> to vector<2x128xf32>
    %967 = arith.addf %965, %966 : vector<2x128xf32>
    %968 = vector.extract_strided_slice %967 {offsets = [0, 0], sizes = [2, 32], strides = [1, 1]} : vector<2x128xf32> to vector<2x32xf32>
    %969 = arith.negf %968 : vector<2x32xf32>
    %970 = math.exp %969 : vector<2x32xf32>
    %cst_290 = arith.constant 1.000000e+00 : f32
    %971 = vector.broadcast %cst_290 : f32 to vector<2x32xf32>
    %972 = arith.addf %971, %970 : vector<2x32xf32>
    %973 = arith.divf %971, %972 : vector<2x32xf32>
    %974 = vector.extract_strided_slice %967 {offsets = [0, 32], sizes = [2, 32], strides = [1, 1]} : vector<2x128xf32> to vector<2x32xf32>
    %975 = arith.negf %974 : vector<2x32xf32>
    %976 = math.exp %975 : vector<2x32xf32>
    %cst_291 = arith.constant 1.000000e+00 : f32
    %977 = vector.broadcast %cst_291 : f32 to vector<2x32xf32>
    %978 = arith.addf %977, %976 : vector<2x32xf32>
    %979 = arith.divf %977, %978 : vector<2x32xf32>
    %980 = vector.extract_strided_slice %967 {offsets = [0, 64], sizes = [2, 32], strides = [1, 1]} : vector<2x128xf32> to vector<2x32xf32>
    %981 = math.tanh %980 : vector<2x32xf32>
    %982 = vector.extract_strided_slice %967 {offsets = [0, 96], sizes = [2, 32], strides = [1, 1]} : vector<2x128xf32> to vector<2x32xf32>
    %983 = arith.negf %982 : vector<2x32xf32>
    %984 = math.exp %983 : vector<2x32xf32>
    %cst_292 = arith.constant 1.000000e+00 : f32
    %985 = vector.broadcast %cst_292 : f32 to vector<2x32xf32>
    %986 = arith.addf %985, %984 : vector<2x32xf32>
    %987 = arith.divf %985, %986 : vector<2x32xf32>
    %988 = arith.mulf %979, %905 : vector<2x32xf32>
    %989 = arith.mulf %973, %981 : vector<2x32xf32>
    %990 = arith.addf %988, %989 : vector<2x32xf32>
    %991 = math.tanh %990 : vector<2x32xf32>
    %992 = arith.mulf %987, %991 : vector<2x32xf32>
    %993 = arith.index_cast %c4_i32_282 : i32 to index
    %c0_293 = arith.constant 0 : index
    %c0_294 = arith.constant 0 : index
    %994 = vector.load %arg18[%993, %c0_293, %c0_294] : memref<8x2x32xf32, #tpu.memory_space<vmem>>, vector<1x2x32xf32>
    %995 = vector.shape_cast %994 : vector<1x2x32xf32> to vector<2x32xf32>
    %996 = vector.shape_cast %992 : vector<2x32xf32> to vector<1x2x32xf32>
    tpu.vector_store %arg18[%993, %c0_293, %c0_294], %996 {strides = array<i32>} : memref<8x2x32xf32, #tpu.memory_space<vmem>>, vector<1x2x32xf32>,
    %c7_i32_295 = arith.constant 7 : i32
    %997 = arith.subi %c7_i32_295, %c4_i32_282 : i32
    %998 = arith.index_cast %997 : i32 to index
    %c0_296 = arith.constant 0 : index
    %c0_297 = arith.constant 0 : index
    %999 = vector.load %arg16[%998, %c0_296, %c0_297] : memref<8x2x32xf32, #tpu.memory_space<vmem>>, vector<1x2x32xf32>
    %1000 = vector.shape_cast %999 : vector<1x2x32xf32> to vector<2x32xf32>
    %cst_298 = arith.constant dense<0.000000e+00> : vector<2x128xf32>
    %1001 = tpu.matmul %1000, %611, %cst_298 {dimension_numbers = #tpu.dot_dimension_numbers<[1], [0], [0], [1], [0, 0, 1, 1], [], []>} : vector<2x32xf32>, vector<32x128xf32>, vector<2x128xf32> -> vector<2x128xf32>
    %1002 = arith.index_cast %997 : i32 to index
    %c0_299 = arith.constant 0 : index
    %c0_300 = arith.constant 0 : index
    %1003 = vector.load %arg17[%1002, %c0_299, %c0_300] : memref<8x2x32xf32, #tpu.memory_space<vmem>>, vector<1x2x32xf32>
    %1004 = vector.shape_cast %1003 : vector<1x2x32xf32> to vector<2x32xf32>
    %cst_301 = arith.constant dense<0.000000e+00> : vector<2x128xf32>
    %1005 = tpu.matmul %1004, %612, %cst_301 {dimension_numbers = #tpu.dot_dimension_numbers<[1], [0], [0], [1], [0, 0, 1, 1], [], []>} : vector<2x32xf32>, vector<32x128xf32>, vector<2x128xf32> -> vector<2x128xf32>
    %1006 = arith.addf %1001, %1005 : vector<2x128xf32>
    %cst_302 = arith.constant dense<0.000000e+00> : vector<2x128xf32>
    %1007 = tpu.matmul %950, %613, %cst_302 {dimension_numbers = #tpu.dot_dimension_numbers<[1], [0], [0], [1], [0, 0, 1, 1], [], []>} : vector<2x32xf32>, vector<32x128xf32>, vector<2x128xf32> -> vector<2x128xf32>
    %1008 = arith.addf %1006, %1007 : vector<2x128xf32>
    %1009 = vector.broadcast %614 : vector<1x128xf32> to vector<2x128xf32>
    %1010 = arith.addf %1008, %1009 : vector<2x128xf32>
    %1011 = vector.extract_strided_slice %1010 {offsets = [0, 0], sizes = [2, 32], strides = [1, 1]} : vector<2x128xf32> to vector<2x32xf32>
    %1012 = arith.negf %1011 : vector<2x32xf32>
    %1013 = math.exp %1012 : vector<2x32xf32>
    %cst_303 = arith.constant 1.000000e+00 : f32
    %1014 = vector.broadcast %cst_303 : f32 to vector<2x32xf32>
    %1015 = arith.addf %1014, %1013 : vector<2x32xf32>
    %1016 = arith.divf %1014, %1015 : vector<2x32xf32>
    %1017 = vector.extract_strided_slice %1010 {offsets = [0, 32], sizes = [2, 32], strides = [1, 1]} : vector<2x128xf32> to vector<2x32xf32>
    %1018 = arith.negf %1017 : vector<2x32xf32>
    %1019 = math.exp %1018 : vector<2x32xf32>
    %cst_304 = arith.constant 1.000000e+00 : f32
    %1020 = vector.broadcast %cst_304 : f32 to vector<2x32xf32>
    %1021 = arith.addf %1020, %1019 : vector<2x32xf32>
    %1022 = arith.divf %1020, %1021 : vector<2x32xf32>
    %1023 = vector.extract_strided_slice %1010 {offsets = [0, 64], sizes = [2, 32], strides = [1, 1]} : vector<2x128xf32> to vector<2x32xf32>
    %1024 = math.tanh %1023 : vector<2x32xf32>
    %1025 = vector.extract_strided_slice %1010 {offsets = [0, 96], sizes = [2, 32], strides = [1, 1]} : vector<2x128xf32> to vector<2x32xf32>
    %1026 = arith.negf %1025 : vector<2x32xf32>
    %1027 = math.exp %1026 : vector<2x32xf32>
    %cst_305 = arith.constant 1.000000e+00 : f32
    %1028 = vector.broadcast %cst_305 : f32 to vector<2x32xf32>
    %1029 = arith.addf %1028, %1027 : vector<2x32xf32>
    %1030 = arith.divf %1028, %1029 : vector<2x32xf32>
    %1031 = arith.mulf %1022, %948 : vector<2x32xf32>
    %1032 = arith.mulf %1016, %1024 : vector<2x32xf32>
    %1033 = arith.addf %1031, %1032 : vector<2x32xf32>
    %1034 = math.tanh %1033 : vector<2x32xf32>
    %1035 = arith.mulf %1030, %1034 : vector<2x32xf32>
    %1036 = arith.index_cast %997 : i32 to index
    %c0_306 = arith.constant 0 : index
    %c0_307 = arith.constant 0 : index
    %1037 = vector.load %arg19[%1036, %c0_306, %c0_307] : memref<8x2x32xf32, #tpu.memory_space<vmem>>, vector<1x2x32xf32>
    %1038 = vector.shape_cast %1037 : vector<1x2x32xf32> to vector<2x32xf32>
    %1039 = vector.shape_cast %1035 : vector<2x32xf32> to vector<1x2x32xf32>
    tpu.vector_store %arg19[%1036, %c0_306, %c0_307], %1039 {strides = array<i32>} : memref<8x2x32xf32, #tpu.memory_space<vmem>>, vector<1x2x32xf32>,
    %c5_i32_308 = arith.constant 5 : i32
    %1040 = arith.index_cast %c5_i32_308 : i32 to index
    %c0_309 = arith.constant 0 : index
    %c0_310 = arith.constant 0 : index
    %1041 = vector.load %arg16[%1040, %c0_309, %c0_310] : memref<8x2x32xf32, #tpu.memory_space<vmem>>, vector<1x2x32xf32>
    %1042 = vector.shape_cast %1041 : vector<1x2x32xf32> to vector<2x32xf32>
    %cst_311 = arith.constant dense<0.000000e+00> : vector<2x128xf32>
    %1043 = tpu.matmul %1042, %607, %cst_311 {dimension_numbers = #tpu.dot_dimension_numbers<[1], [0], [0], [1], [0, 0, 1, 1], [], []>} : vector<2x32xf32>, vector<32x128xf32>, vector<2x128xf32> -> vector<2x128xf32>
    %1044 = arith.index_cast %c5_i32_308 : i32 to index
    %c0_312 = arith.constant 0 : index
    %c0_313 = arith.constant 0 : index
    %1045 = vector.load %arg17[%1044, %c0_312, %c0_313] : memref<8x2x32xf32, #tpu.memory_space<vmem>>, vector<1x2x32xf32>
    %1046 = vector.shape_cast %1045 : vector<1x2x32xf32> to vector<2x32xf32>
    %cst_314 = arith.constant dense<0.000000e+00> : vector<2x128xf32>
    %1047 = tpu.matmul %1046, %608, %cst_314 {dimension_numbers = #tpu.dot_dimension_numbers<[1], [0], [0], [1], [0, 0, 1, 1], [], []>} : vector<2x32xf32>, vector<32x128xf32>, vector<2x128xf32> -> vector<2x128xf32>
    %1048 = arith.addf %1043, %1047 : vector<2x128xf32>
    %cst_315 = arith.constant dense<0.000000e+00> : vector<2x128xf32>
    %1049 = tpu.matmul %992, %609, %cst_315 {dimension_numbers = #tpu.dot_dimension_numbers<[1], [0], [0], [1], [0, 0, 1, 1], [], []>} : vector<2x32xf32>, vector<32x128xf32>, vector<2x128xf32> -> vector<2x128xf32>
    %1050 = arith.addf %1048, %1049 : vector<2x128xf32>
    %1051 = vector.broadcast %610 : vector<1x128xf32> to vector<2x128xf32>
    %1052 = arith.addf %1050, %1051 : vector<2x128xf32>
    %1053 = vector.extract_strided_slice %1052 {offsets = [0, 0], sizes = [2, 32], strides = [1, 1]} : vector<2x128xf32> to vector<2x32xf32>
    %1054 = arith.negf %1053 : vector<2x32xf32>
    %1055 = math.exp %1054 : vector<2x32xf32>
    %cst_316 = arith.constant 1.000000e+00 : f32
    %1056 = vector.broadcast %cst_316 : f32 to vector<2x32xf32>
    %1057 = arith.addf %1056, %1055 : vector<2x32xf32>
    %1058 = arith.divf %1056, %1057 : vector<2x32xf32>
    %1059 = vector.extract_strided_slice %1052 {offsets = [0, 32], sizes = [2, 32], strides = [1, 1]} : vector<2x128xf32> to vector<2x32xf32>
    %1060 = arith.negf %1059 : vector<2x32xf32>
    %1061 = math.exp %1060 : vector<2x32xf32>
    %cst_317 = arith.constant 1.000000e+00 : f32
    %1062 = vector.broadcast %cst_317 : f32 to vector<2x32xf32>
    %1063 = arith.addf %1062, %1061 : vector<2x32xf32>
    %1064 = arith.divf %1062, %1063 : vector<2x32xf32>
    %1065 = vector.extract_strided_slice %1052 {offsets = [0, 64], sizes = [2, 32], strides = [1, 1]} : vector<2x128xf32> to vector<2x32xf32>
    %1066 = math.tanh %1065 : vector<2x32xf32>
    %1067 = vector.extract_strided_slice %1052 {offsets = [0, 96], sizes = [2, 32], strides = [1, 1]} : vector<2x128xf32> to vector<2x32xf32>
    %1068 = arith.negf %1067 : vector<2x32xf32>
    %1069 = math.exp %1068 : vector<2x32xf32>
    %cst_318 = arith.constant 1.000000e+00 : f32
    %1070 = vector.broadcast %cst_318 : f32 to vector<2x32xf32>
    %1071 = arith.addf %1070, %1069 : vector<2x32xf32>
    %1072 = arith.divf %1070, %1071 : vector<2x32xf32>
    %1073 = arith.mulf %1064, %990 : vector<2x32xf32>
    %1074 = arith.mulf %1058, %1066 : vector<2x32xf32>
    %1075 = arith.addf %1073, %1074 : vector<2x32xf32>
    %1076 = math.tanh %1075 : vector<2x32xf32>
    %1077 = arith.mulf %1072, %1076 : vector<2x32xf32>
    %1078 = arith.index_cast %c5_i32_308 : i32 to index
    %c0_319 = arith.constant 0 : index
    %c0_320 = arith.constant 0 : index
    %1079 = vector.load %arg18[%1078, %c0_319, %c0_320] : memref<8x2x32xf32, #tpu.memory_space<vmem>>, vector<1x2x32xf32>
    %1080 = vector.shape_cast %1079 : vector<1x2x32xf32> to vector<2x32xf32>
    %1081 = vector.shape_cast %1077 : vector<2x32xf32> to vector<1x2x32xf32>
    tpu.vector_store %arg18[%1078, %c0_319, %c0_320], %1081 {strides = array<i32>} : memref<8x2x32xf32, #tpu.memory_space<vmem>>, vector<1x2x32xf32>,
    %c7_i32_321 = arith.constant 7 : i32
    %1082 = arith.subi %c7_i32_321, %c5_i32_308 : i32
    %1083 = arith.index_cast %1082 : i32 to index
    %c0_322 = arith.constant 0 : index
    %c0_323 = arith.constant 0 : index
    %1084 = vector.load %arg16[%1083, %c0_322, %c0_323] : memref<8x2x32xf32, #tpu.memory_space<vmem>>, vector<1x2x32xf32>
    %1085 = vector.shape_cast %1084 : vector<1x2x32xf32> to vector<2x32xf32>
    %cst_324 = arith.constant dense<0.000000e+00> : vector<2x128xf32>
    %1086 = tpu.matmul %1085, %611, %cst_324 {dimension_numbers = #tpu.dot_dimension_numbers<[1], [0], [0], [1], [0, 0, 1, 1], [], []>} : vector<2x32xf32>, vector<32x128xf32>, vector<2x128xf32> -> vector<2x128xf32>
    %1087 = arith.index_cast %1082 : i32 to index
    %c0_325 = arith.constant 0 : index
    %c0_326 = arith.constant 0 : index
    %1088 = vector.load %arg17[%1087, %c0_325, %c0_326] : memref<8x2x32xf32, #tpu.memory_space<vmem>>, vector<1x2x32xf32>
    %1089 = vector.shape_cast %1088 : vector<1x2x32xf32> to vector<2x32xf32>
    %cst_327 = arith.constant dense<0.000000e+00> : vector<2x128xf32>
    %1090 = tpu.matmul %1089, %612, %cst_327 {dimension_numbers = #tpu.dot_dimension_numbers<[1], [0], [0], [1], [0, 0, 1, 1], [], []>} : vector<2x32xf32>, vector<32x128xf32>, vector<2x128xf32> -> vector<2x128xf32>
    %1091 = arith.addf %1086, %1090 : vector<2x128xf32>
    %cst_328 = arith.constant dense<0.000000e+00> : vector<2x128xf32>
    %1092 = tpu.matmul %1035, %613, %cst_328 {dimension_numbers = #tpu.dot_dimension_numbers<[1], [0], [0], [1], [0, 0, 1, 1], [], []>} : vector<2x32xf32>, vector<32x128xf32>, vector<2x128xf32> -> vector<2x128xf32>
    %1093 = arith.addf %1091, %1092 : vector<2x128xf32>
    %1094 = vector.broadcast %614 : vector<1x128xf32> to vector<2x128xf32>
    %1095 = arith.addf %1093, %1094 : vector<2x128xf32>
    %1096 = vector.extract_strided_slice %1095 {offsets = [0, 0], sizes = [2, 32], strides = [1, 1]} : vector<2x128xf32> to vector<2x32xf32>
    %1097 = arith.negf %1096 : vector<2x32xf32>
    %1098 = math.exp %1097 : vector<2x32xf32>
    %cst_329 = arith.constant 1.000000e+00 : f32
    %1099 = vector.broadcast %cst_329 : f32 to vector<2x32xf32>
    %1100 = arith.addf %1099, %1098 : vector<2x32xf32>
    %1101 = arith.divf %1099, %1100 : vector<2x32xf32>
    %1102 = vector.extract_strided_slice %1095 {offsets = [0, 32], sizes = [2, 32], strides = [1, 1]} : vector<2x128xf32> to vector<2x32xf32>
    %1103 = arith.negf %1102 : vector<2x32xf32>
    %1104 = math.exp %1103 : vector<2x32xf32>
    %cst_330 = arith.constant 1.000000e+00 : f32
    %1105 = vector.broadcast %cst_330 : f32 to vector<2x32xf32>
    %1106 = arith.addf %1105, %1104 : vector<2x32xf32>
    %1107 = arith.divf %1105, %1106 : vector<2x32xf32>
    %1108 = vector.extract_strided_slice %1095 {offsets = [0, 64], sizes = [2, 32], strides = [1, 1]} : vector<2x128xf32> to vector<2x32xf32>
    %1109 = math.tanh %1108 : vector<2x32xf32>
    %1110 = vector.extract_strided_slice %1095 {offsets = [0, 96], sizes = [2, 32], strides = [1, 1]} : vector<2x128xf32> to vector<2x32xf32>
    %1111 = arith.negf %1110 : vector<2x32xf32>
    %1112 = math.exp %1111 : vector<2x32xf32>
    %cst_331 = arith.constant 1.000000e+00 : f32
    %1113 = vector.broadcast %cst_331 : f32 to vector<2x32xf32>
    %1114 = arith.addf %1113, %1112 : vector<2x32xf32>
    %1115 = arith.divf %1113, %1114 : vector<2x32xf32>
    %1116 = arith.mulf %1107, %1033 : vector<2x32xf32>
    %1117 = arith.mulf %1101, %1109 : vector<2x32xf32>
    %1118 = arith.addf %1116, %1117 : vector<2x32xf32>
    %1119 = math.tanh %1118 : vector<2x32xf32>
    %1120 = arith.mulf %1115, %1119 : vector<2x32xf32>
    %1121 = arith.index_cast %1082 : i32 to index
    %c0_332 = arith.constant 0 : index
    %c0_333 = arith.constant 0 : index
    %1122 = vector.load %arg19[%1121, %c0_332, %c0_333] : memref<8x2x32xf32, #tpu.memory_space<vmem>>, vector<1x2x32xf32>
    %1123 = vector.shape_cast %1122 : vector<1x2x32xf32> to vector<2x32xf32>
    %1124 = vector.shape_cast %1120 : vector<2x32xf32> to vector<1x2x32xf32>
    tpu.vector_store %arg19[%1121, %c0_332, %c0_333], %1124 {strides = array<i32>} : memref<8x2x32xf32, #tpu.memory_space<vmem>>, vector<1x2x32xf32>,
    %c6_i32_334 = arith.constant 6 : i32
    %1125 = arith.index_cast %c6_i32_334 : i32 to index
    %c0_335 = arith.constant 0 : index
    %c0_336 = arith.constant 0 : index
    %1126 = vector.load %arg16[%1125, %c0_335, %c0_336] : memref<8x2x32xf32, #tpu.memory_space<vmem>>, vector<1x2x32xf32>
    %1127 = vector.shape_cast %1126 : vector<1x2x32xf32> to vector<2x32xf32>
    %cst_337 = arith.constant dense<0.000000e+00> : vector<2x128xf32>
    %1128 = tpu.matmul %1127, %607, %cst_337 {dimension_numbers = #tpu.dot_dimension_numbers<[1], [0], [0], [1], [0, 0, 1, 1], [], []>} : vector<2x32xf32>, vector<32x128xf32>, vector<2x128xf32> -> vector<2x128xf32>
    %1129 = arith.index_cast %c6_i32_334 : i32 to index
    %c0_338 = arith.constant 0 : index
    %c0_339 = arith.constant 0 : index
    %1130 = vector.load %arg17[%1129, %c0_338, %c0_339] : memref<8x2x32xf32, #tpu.memory_space<vmem>>, vector<1x2x32xf32>
    %1131 = vector.shape_cast %1130 : vector<1x2x32xf32> to vector<2x32xf32>
    %cst_340 = arith.constant dense<0.000000e+00> : vector<2x128xf32>
    %1132 = tpu.matmul %1131, %608, %cst_340 {dimension_numbers = #tpu.dot_dimension_numbers<[1], [0], [0], [1], [0, 0, 1, 1], [], []>} : vector<2x32xf32>, vector<32x128xf32>, vector<2x128xf32> -> vector<2x128xf32>
    %1133 = arith.addf %1128, %1132 : vector<2x128xf32>
    %cst_341 = arith.constant dense<0.000000e+00> : vector<2x128xf32>
    %1134 = tpu.matmul %1077, %609, %cst_341 {dimension_numbers = #tpu.dot_dimension_numbers<[1], [0], [0], [1], [0, 0, 1, 1], [], []>} : vector<2x32xf32>, vector<32x128xf32>, vector<2x128xf32> -> vector<2x128xf32>
    %1135 = arith.addf %1133, %1134 : vector<2x128xf32>
    %1136 = vector.broadcast %610 : vector<1x128xf32> to vector<2x128xf32>
    %1137 = arith.addf %1135, %1136 : vector<2x128xf32>
    %1138 = vector.extract_strided_slice %1137 {offsets = [0, 0], sizes = [2, 32], strides = [1, 1]} : vector<2x128xf32> to vector<2x32xf32>
    %1139 = arith.negf %1138 : vector<2x32xf32>
    %1140 = math.exp %1139 : vector<2x32xf32>
    %cst_342 = arith.constant 1.000000e+00 : f32
    %1141 = vector.broadcast %cst_342 : f32 to vector<2x32xf32>
    %1142 = arith.addf %1141, %1140 : vector<2x32xf32>
    %1143 = arith.divf %1141, %1142 : vector<2x32xf32>
    %1144 = vector.extract_strided_slice %1137 {offsets = [0, 32], sizes = [2, 32], strides = [1, 1]} : vector<2x128xf32> to vector<2x32xf32>
    %1145 = arith.negf %1144 : vector<2x32xf32>
    %1146 = math.exp %1145 : vector<2x32xf32>
    %cst_343 = arith.constant 1.000000e+00 : f32
    %1147 = vector.broadcast %cst_343 : f32 to vector<2x32xf32>
    %1148 = arith.addf %1147, %1146 : vector<2x32xf32>
    %1149 = arith.divf %1147, %1148 : vector<2x32xf32>
    %1150 = vector.extract_strided_slice %1137 {offsets = [0, 64], sizes = [2, 32], strides = [1, 1]} : vector<2x128xf32> to vector<2x32xf32>
    %1151 = math.tanh %1150 : vector<2x32xf32>
    %1152 = vector.extract_strided_slice %1137 {offsets = [0, 96], sizes = [2, 32], strides = [1, 1]} : vector<2x128xf32> to vector<2x32xf32>
    %1153 = arith.negf %1152 : vector<2x32xf32>
    %1154 = math.exp %1153 : vector<2x32xf32>
    %cst_344 = arith.constant 1.000000e+00 : f32
    %1155 = vector.broadcast %cst_344 : f32 to vector<2x32xf32>
    %1156 = arith.addf %1155, %1154 : vector<2x32xf32>
    %1157 = arith.divf %1155, %1156 : vector<2x32xf32>
    %1158 = arith.mulf %1149, %1075 : vector<2x32xf32>
    %1159 = arith.mulf %1143, %1151 : vector<2x32xf32>
    %1160 = arith.addf %1158, %1159 : vector<2x32xf32>
    %1161 = math.tanh %1160 : vector<2x32xf32>
    %1162 = arith.mulf %1157, %1161 : vector<2x32xf32>
    %1163 = arith.index_cast %c6_i32_334 : i32 to index
    %c0_345 = arith.constant 0 : index
    %c0_346 = arith.constant 0 : index
    %1164 = vector.load %arg18[%1163, %c0_345, %c0_346] : memref<8x2x32xf32, #tpu.memory_space<vmem>>, vector<1x2x32xf32>
    %1165 = vector.shape_cast %1164 : vector<1x2x32xf32> to vector<2x32xf32>
    %1166 = vector.shape_cast %1162 : vector<2x32xf32> to vector<1x2x32xf32>
    tpu.vector_store %arg18[%1163, %c0_345, %c0_346], %1166 {strides = array<i32>} : memref<8x2x32xf32, #tpu.memory_space<vmem>>, vector<1x2x32xf32>,
    %c7_i32_347 = arith.constant 7 : i32
    %1167 = arith.subi %c7_i32_347, %c6_i32_334 : i32
    %1168 = arith.index_cast %1167 : i32 to index
    %c0_348 = arith.constant 0 : index
    %c0_349 = arith.constant 0 : index
    %1169 = vector.load %arg16[%1168, %c0_348, %c0_349] : memref<8x2x32xf32, #tpu.memory_space<vmem>>, vector<1x2x32xf32>
    %1170 = vector.shape_cast %1169 : vector<1x2x32xf32> to vector<2x32xf32>
    %cst_350 = arith.constant dense<0.000000e+00> : vector<2x128xf32>
    %1171 = tpu.matmul %1170, %611, %cst_350 {dimension_numbers = #tpu.dot_dimension_numbers<[1], [0], [0], [1], [0, 0, 1, 1], [], []>} : vector<2x32xf32>, vector<32x128xf32>, vector<2x128xf32> -> vector<2x128xf32>
    %1172 = arith.index_cast %1167 : i32 to index
    %c0_351 = arith.constant 0 : index
    %c0_352 = arith.constant 0 : index
    %1173 = vector.load %arg17[%1172, %c0_351, %c0_352] : memref<8x2x32xf32, #tpu.memory_space<vmem>>, vector<1x2x32xf32>
    %1174 = vector.shape_cast %1173 : vector<1x2x32xf32> to vector<2x32xf32>
    %cst_353 = arith.constant dense<0.000000e+00> : vector<2x128xf32>
    %1175 = tpu.matmul %1174, %612, %cst_353 {dimension_numbers = #tpu.dot_dimension_numbers<[1], [0], [0], [1], [0, 0, 1, 1], [], []>} : vector<2x32xf32>, vector<32x128xf32>, vector<2x128xf32> -> vector<2x128xf32>
    %1176 = arith.addf %1171, %1175 : vector<2x128xf32>
    %cst_354 = arith.constant dense<0.000000e+00> : vector<2x128xf32>
    %1177 = tpu.matmul %1120, %613, %cst_354 {dimension_numbers = #tpu.dot_dimension_numbers<[1], [0], [0], [1], [0, 0, 1, 1], [], []>} : vector<2x32xf32>, vector<32x128xf32>, vector<2x128xf32> -> vector<2x128xf32>
    %1178 = arith.addf %1176, %1177 : vector<2x128xf32>
    %1179 = vector.broadcast %614 : vector<1x128xf32> to vector<2x128xf32>
    %1180 = arith.addf %1178, %1179 : vector<2x128xf32>
    %1181 = vector.extract_strided_slice %1180 {offsets = [0, 0], sizes = [2, 32], strides = [1, 1]} : vector<2x128xf32> to vector<2x32xf32>
    %1182 = arith.negf %1181 : vector<2x32xf32>
    %1183 = math.exp %1182 : vector<2x32xf32>
    %cst_355 = arith.constant 1.000000e+00 : f32
    %1184 = vector.broadcast %cst_355 : f32 to vector<2x32xf32>
    %1185 = arith.addf %1184, %1183 : vector<2x32xf32>
    %1186 = arith.divf %1184, %1185 : vector<2x32xf32>
    %1187 = vector.extract_strided_slice %1180 {offsets = [0, 32], sizes = [2, 32], strides = [1, 1]} : vector<2x128xf32> to vector<2x32xf32>
    %1188 = arith.negf %1187 : vector<2x32xf32>
    %1189 = math.exp %1188 : vector<2x32xf32>
    %cst_356 = arith.constant 1.000000e+00 : f32
    %1190 = vector.broadcast %cst_356 : f32 to vector<2x32xf32>
    %1191 = arith.addf %1190, %1189 : vector<2x32xf32>
    %1192 = arith.divf %1190, %1191 : vector<2x32xf32>
    %1193 = vector.extract_strided_slice %1180 {offsets = [0, 64], sizes = [2, 32], strides = [1, 1]} : vector<2x128xf32> to vector<2x32xf32>
    %1194 = math.tanh %1193 : vector<2x32xf32>
    %1195 = vector.extract_strided_slice %1180 {offsets = [0, 96], sizes = [2, 32], strides = [1, 1]} : vector<2x128xf32> to vector<2x32xf32>
    %1196 = arith.negf %1195 : vector<2x32xf32>
    %1197 = math.exp %1196 : vector<2x32xf32>
    %cst_357 = arith.constant 1.000000e+00 : f32
    %1198 = vector.broadcast %cst_357 : f32 to vector<2x32xf32>
    %1199 = arith.addf %1198, %1197 : vector<2x32xf32>
    %1200 = arith.divf %1198, %1199 : vector<2x32xf32>
    %1201 = arith.mulf %1192, %1118 : vector<2x32xf32>
    %1202 = arith.mulf %1186, %1194 : vector<2x32xf32>
    %1203 = arith.addf %1201, %1202 : vector<2x32xf32>
    %1204 = math.tanh %1203 : vector<2x32xf32>
    %1205 = arith.mulf %1200, %1204 : vector<2x32xf32>
    %1206 = arith.index_cast %1167 : i32 to index
    %c0_358 = arith.constant 0 : index
    %c0_359 = arith.constant 0 : index
    %1207 = vector.load %arg19[%1206, %c0_358, %c0_359] : memref<8x2x32xf32, #tpu.memory_space<vmem>>, vector<1x2x32xf32>
    %1208 = vector.shape_cast %1207 : vector<1x2x32xf32> to vector<2x32xf32>
    %1209 = vector.shape_cast %1205 : vector<2x32xf32> to vector<1x2x32xf32>
    tpu.vector_store %arg19[%1206, %c0_358, %c0_359], %1209 {strides = array<i32>} : memref<8x2x32xf32, #tpu.memory_space<vmem>>, vector<1x2x32xf32>,
    %c7_i32_360 = arith.constant 7 : i32
    %1210 = arith.index_cast %c7_i32_360 : i32 to index
    %c0_361 = arith.constant 0 : index
    %c0_362 = arith.constant 0 : index
    %1211 = vector.load %arg16[%1210, %c0_361, %c0_362] : memref<8x2x32xf32, #tpu.memory_space<vmem>>, vector<1x2x32xf32>
    %1212 = vector.shape_cast %1211 : vector<1x2x32xf32> to vector<2x32xf32>
    %cst_363 = arith.constant dense<0.000000e+00> : vector<2x128xf32>
    %1213 = tpu.matmul %1212, %607, %cst_363 {dimension_numbers = #tpu.dot_dimension_numbers<[1], [0], [0], [1], [0, 0, 1, 1], [], []>} : vector<2x32xf32>, vector<32x128xf32>, vector<2x128xf32> -> vector<2x128xf32>
    %1214 = arith.index_cast %c7_i32_360 : i32 to index
    %c0_364 = arith.constant 0 : index
    %c0_365 = arith.constant 0 : index
    %1215 = vector.load %arg17[%1214, %c0_364, %c0_365] : memref<8x2x32xf32, #tpu.memory_space<vmem>>, vector<1x2x32xf32>
    %1216 = vector.shape_cast %1215 : vector<1x2x32xf32> to vector<2x32xf32>
    %cst_366 = arith.constant dense<0.000000e+00> : vector<2x128xf32>
    %1217 = tpu.matmul %1216, %608, %cst_366 {dimension_numbers = #tpu.dot_dimension_numbers<[1], [0], [0], [1], [0, 0, 1, 1], [], []>} : vector<2x32xf32>, vector<32x128xf32>, vector<2x128xf32> -> vector<2x128xf32>
    %1218 = arith.addf %1213, %1217 : vector<2x128xf32>
    %cst_367 = arith.constant dense<0.000000e+00> : vector<2x128xf32>
    %1219 = tpu.matmul %1162, %609, %cst_367 {dimension_numbers = #tpu.dot_dimension_numbers<[1], [0], [0], [1], [0, 0, 1, 1], [], []>} : vector<2x32xf32>, vector<32x128xf32>, vector<2x128xf32> -> vector<2x128xf32>
    %1220 = arith.addf %1218, %1219 : vector<2x128xf32>
    %1221 = vector.broadcast %610 : vector<1x128xf32> to vector<2x128xf32>
    %1222 = arith.addf %1220, %1221 : vector<2x128xf32>
    %1223 = vector.extract_strided_slice %1222 {offsets = [0, 0], sizes = [2, 32], strides = [1, 1]} : vector<2x128xf32> to vector<2x32xf32>
    %1224 = arith.negf %1223 : vector<2x32xf32>
    %1225 = math.exp %1224 : vector<2x32xf32>
    %cst_368 = arith.constant 1.000000e+00 : f32
    %1226 = vector.broadcast %cst_368 : f32 to vector<2x32xf32>
    %1227 = arith.addf %1226, %1225 : vector<2x32xf32>
    %1228 = arith.divf %1226, %1227 : vector<2x32xf32>
    %1229 = vector.extract_strided_slice %1222 {offsets = [0, 32], sizes = [2, 32], strides = [1, 1]} : vector<2x128xf32> to vector<2x32xf32>
    %1230 = arith.negf %1229 : vector<2x32xf32>
    %1231 = math.exp %1230 : vector<2x32xf32>
    %cst_369 = arith.constant 1.000000e+00 : f32
    %1232 = vector.broadcast %cst_369 : f32 to vector<2x32xf32>
    %1233 = arith.addf %1232, %1231 : vector<2x32xf32>
    %1234 = arith.divf %1232, %1233 : vector<2x32xf32>
    %1235 = vector.extract_strided_slice %1222 {offsets = [0, 64], sizes = [2, 32], strides = [1, 1]} : vector<2x128xf32> to vector<2x32xf32>
    %1236 = math.tanh %1235 : vector<2x32xf32>
    %1237 = vector.extract_strided_slice %1222 {offsets = [0, 96], sizes = [2, 32], strides = [1, 1]} : vector<2x128xf32> to vector<2x32xf32>
    %1238 = arith.negf %1237 : vector<2x32xf32>
    %1239 = math.exp %1238 : vector<2x32xf32>
    %cst_370 = arith.constant 1.000000e+00 : f32
    %1240 = vector.broadcast %cst_370 : f32 to vector<2x32xf32>
    %1241 = arith.addf %1240, %1239 : vector<2x32xf32>
    %1242 = arith.divf %1240, %1241 : vector<2x32xf32>
    %1243 = arith.mulf %1234, %1160 : vector<2x32xf32>
    %1244 = arith.mulf %1228, %1236 : vector<2x32xf32>
    %1245 = arith.addf %1243, %1244 : vector<2x32xf32>
    %1246 = math.tanh %1245 : vector<2x32xf32>
    %1247 = arith.mulf %1242, %1246 : vector<2x32xf32>
    %1248 = arith.index_cast %c7_i32_360 : i32 to index
    %c0_371 = arith.constant 0 : index
    %c0_372 = arith.constant 0 : index
    %1249 = vector.load %arg18[%1248, %c0_371, %c0_372] : memref<8x2x32xf32, #tpu.memory_space<vmem>>, vector<1x2x32xf32>
    %1250 = vector.shape_cast %1249 : vector<1x2x32xf32> to vector<2x32xf32>
    %1251 = vector.shape_cast %1247 : vector<2x32xf32> to vector<1x2x32xf32>
    tpu.vector_store %arg18[%1248, %c0_371, %c0_372], %1251 {strides = array<i32>} : memref<8x2x32xf32, #tpu.memory_space<vmem>>, vector<1x2x32xf32>,
    %c7_i32_373 = arith.constant 7 : i32
    %1252 = arith.subi %c7_i32_373, %c7_i32_360 : i32
    %1253 = arith.index_cast %1252 : i32 to index
    %c0_374 = arith.constant 0 : index
    %c0_375 = arith.constant 0 : index
    %1254 = vector.load %arg16[%1253, %c0_374, %c0_375] : memref<8x2x32xf32, #tpu.memory_space<vmem>>, vector<1x2x32xf32>
    %1255 = vector.shape_cast %1254 : vector<1x2x32xf32> to vector<2x32xf32>
    %cst_376 = arith.constant dense<0.000000e+00> : vector<2x128xf32>
    %1256 = tpu.matmul %1255, %611, %cst_376 {dimension_numbers = #tpu.dot_dimension_numbers<[1], [0], [0], [1], [0, 0, 1, 1], [], []>} : vector<2x32xf32>, vector<32x128xf32>, vector<2x128xf32> -> vector<2x128xf32>
    %1257 = arith.index_cast %1252 : i32 to index
    %c0_377 = arith.constant 0 : index
    %c0_378 = arith.constant 0 : index
    %1258 = vector.load %arg17[%1257, %c0_377, %c0_378] : memref<8x2x32xf32, #tpu.memory_space<vmem>>, vector<1x2x32xf32>
    %1259 = vector.shape_cast %1258 : vector<1x2x32xf32> to vector<2x32xf32>
    %cst_379 = arith.constant dense<0.000000e+00> : vector<2x128xf32>
    %1260 = tpu.matmul %1259, %612, %cst_379 {dimension_numbers = #tpu.dot_dimension_numbers<[1], [0], [0], [1], [0, 0, 1, 1], [], []>} : vector<2x32xf32>, vector<32x128xf32>, vector<2x128xf32> -> vector<2x128xf32>
    %1261 = arith.addf %1256, %1260 : vector<2x128xf32>
    %cst_380 = arith.constant dense<0.000000e+00> : vector<2x128xf32>
    %1262 = tpu.matmul %1205, %613, %cst_380 {dimension_numbers = #tpu.dot_dimension_numbers<[1], [0], [0], [1], [0, 0, 1, 1], [], []>} : vector<2x32xf32>, vector<32x128xf32>, vector<2x128xf32> -> vector<2x128xf32>
    %1263 = arith.addf %1261, %1262 : vector<2x128xf32>
    %1264 = vector.broadcast %614 : vector<1x128xf32> to vector<2x128xf32>
    %1265 = arith.addf %1263, %1264 : vector<2x128xf32>
    %1266 = vector.extract_strided_slice %1265 {offsets = [0, 0], sizes = [2, 32], strides = [1, 1]} : vector<2x128xf32> to vector<2x32xf32>
    %1267 = arith.negf %1266 : vector<2x32xf32>
    %1268 = math.exp %1267 : vector<2x32xf32>
    %cst_381 = arith.constant 1.000000e+00 : f32
    %1269 = vector.broadcast %cst_381 : f32 to vector<2x32xf32>
    %1270 = arith.addf %1269, %1268 : vector<2x32xf32>
    %1271 = arith.divf %1269, %1270 : vector<2x32xf32>
    %1272 = vector.extract_strided_slice %1265 {offsets = [0, 32], sizes = [2, 32], strides = [1, 1]} : vector<2x128xf32> to vector<2x32xf32>
    %1273 = arith.negf %1272 : vector<2x32xf32>
    %1274 = math.exp %1273 : vector<2x32xf32>
    %cst_382 = arith.constant 1.000000e+00 : f32
    %1275 = vector.broadcast %cst_382 : f32 to vector<2x32xf32>
    %1276 = arith.addf %1275, %1274 : vector<2x32xf32>
    %1277 = arith.divf %1275, %1276 : vector<2x32xf32>
    %1278 = vector.extract_strided_slice %1265 {offsets = [0, 64], sizes = [2, 32], strides = [1, 1]} : vector<2x128xf32> to vector<2x32xf32>
    %1279 = math.tanh %1278 : vector<2x32xf32>
    %1280 = vector.extract_strided_slice %1265 {offsets = [0, 96], sizes = [2, 32], strides = [1, 1]} : vector<2x128xf32> to vector<2x32xf32>
    %1281 = arith.negf %1280 : vector<2x32xf32>
    %1282 = math.exp %1281 : vector<2x32xf32>
    %cst_383 = arith.constant 1.000000e+00 : f32
    %1283 = vector.broadcast %cst_383 : f32 to vector<2x32xf32>
    %1284 = arith.addf %1283, %1282 : vector<2x32xf32>
    %1285 = arith.divf %1283, %1284 : vector<2x32xf32>
    %1286 = arith.mulf %1277, %1203 : vector<2x32xf32>
    %1287 = arith.mulf %1271, %1279 : vector<2x32xf32>
    %1288 = arith.addf %1286, %1287 : vector<2x32xf32>
    %1289 = math.tanh %1288 : vector<2x32xf32>
    %1290 = arith.mulf %1285, %1289 : vector<2x32xf32>
    %1291 = arith.index_cast %1252 : i32 to index
    %c0_384 = arith.constant 0 : index
    %c0_385 = arith.constant 0 : index
    %1292 = vector.load %arg19[%1291, %c0_384, %c0_385] : memref<8x2x32xf32, #tpu.memory_space<vmem>>, vector<1x2x32xf32>
    %1293 = vector.shape_cast %1292 : vector<1x2x32xf32> to vector<2x32xf32>
    %1294 = vector.shape_cast %1290 : vector<2x32xf32> to vector<1x2x32xf32>
    tpu.vector_store %arg19[%1291, %c0_384, %c0_385], %1294 {strides = array<i32>} : memref<8x2x32xf32, #tpu.memory_space<vmem>>, vector<1x2x32xf32>,
    %c8_i32_386 = arith.constant 8 : i32
    %c0_387 = arith.constant 0 : index
    %c0_388 = arith.constant 0 : index
    %1295 = vector.load %arg13[%c0_387, %c0_388] : memref<64x128xf32, #tpu.memory_space<vmem>>, vector<32x128xf32>
    %c32_389 = arith.constant 32 : index
    %c0_390 = arith.constant 0 : index
    %1296 = vector.load %arg13[%c32_389, %c0_390] : memref<64x128xf32, #tpu.memory_space<vmem>>, vector<32x128xf32>
    %c0_391 = arith.constant 0 : index
    %c0_392 = arith.constant 0 : index
    %1297 = vector.load %arg14[%c0_391, %c0_392] : memref<1x128xf32, #tpu.memory_space<vmem>>, vector<1x128xf32>
    %c0_i32_393 = arith.constant 0 : i32
    %1298 = arith.index_cast %c0_i32_393 : i32 to index
    %c0_394 = arith.constant 0 : index
    %c0_395 = arith.constant 0 : index
    %1299 = vector.load %arg18[%1298, %c0_394, %c0_395] : memref<8x2x32xf32, #tpu.memory_space<vmem>>, vector<1x2x32xf32>
    %1300 = vector.shape_cast %1299 : vector<1x2x32xf32> to vector<2x32xf32>
    %cst_396 = arith.constant dense<0.000000e+00> : vector<2x128xf32>
    %1301 = tpu.matmul %1300, %1295, %cst_396 {dimension_numbers = #tpu.dot_dimension_numbers<[1], [0], [0], [1], [0, 0, 1, 1], [], []>} : vector<2x32xf32>, vector<32x128xf32>, vector<2x128xf32> -> vector<2x128xf32>
    %1302 = arith.index_cast %c0_i32_393 : i32 to index
    %c0_397 = arith.constant 0 : index
    %c0_398 = arith.constant 0 : index
    %1303 = vector.load %arg19[%1302, %c0_397, %c0_398] : memref<8x2x32xf32, #tpu.memory_space<vmem>>, vector<1x2x32xf32>
    %1304 = vector.shape_cast %1303 : vector<1x2x32xf32> to vector<2x32xf32>
    %cst_399 = arith.constant dense<0.000000e+00> : vector<2x128xf32>
    %1305 = tpu.matmul %1304, %1296, %cst_399 {dimension_numbers = #tpu.dot_dimension_numbers<[1], [0], [0], [1], [0, 0, 1, 1], [], []>} : vector<2x32xf32>, vector<32x128xf32>, vector<2x128xf32> -> vector<2x128xf32>
    %1306 = arith.addf %1301, %1305 : vector<2x128xf32>
    %1307 = vector.broadcast %1297 : vector<1x128xf32> to vector<2x128xf32>
    %1308 = arith.addf %1306, %1307 : vector<2x128xf32>
    %1309 = arith.index_cast %c0_i32_393 : i32 to index
    %c0_400 = arith.constant 0 : index
    %c0_401 = arith.constant 0 : index
    %1310 = vector.load %arg15[%1309, %c0_400, %c0_401] : memref<8x2x128xf32, #tpu.memory_space<vmem>>, vector<1x2x128xf32>
    %1311 = vector.shape_cast %1310 : vector<1x2x128xf32> to vector<2x128xf32>
    %1312 = vector.shape_cast %1308 : vector<2x128xf32> to vector<1x2x128xf32>
    tpu.vector_store %arg15[%1309, %c0_400, %c0_401], %1312 {strides = array<i32>} : memref<8x2x128xf32, #tpu.memory_space<vmem>>, vector<1x2x128xf32>,
    %c1_i32_402 = arith.constant 1 : i32
    %1313 = arith.index_cast %c1_i32_402 : i32 to index
    %c0_403 = arith.constant 0 : index
    %c0_404 = arith.constant 0 : index
    %1314 = vector.load %arg18[%1313, %c0_403, %c0_404] : memref<8x2x32xf32, #tpu.memory_space<vmem>>, vector<1x2x32xf32>
    %1315 = vector.shape_cast %1314 : vector<1x2x32xf32> to vector<2x32xf32>
    %cst_405 = arith.constant dense<0.000000e+00> : vector<2x128xf32>
    %1316 = tpu.matmul %1315, %1295, %cst_405 {dimension_numbers = #tpu.dot_dimension_numbers<[1], [0], [0], [1], [0, 0, 1, 1], [], []>} : vector<2x32xf32>, vector<32x128xf32>, vector<2x128xf32> -> vector<2x128xf32>
    %1317 = arith.index_cast %c1_i32_402 : i32 to index
    %c0_406 = arith.constant 0 : index
    %c0_407 = arith.constant 0 : index
    %1318 = vector.load %arg19[%1317, %c0_406, %c0_407] : memref<8x2x32xf32, #tpu.memory_space<vmem>>, vector<1x2x32xf32>
    %1319 = vector.shape_cast %1318 : vector<1x2x32xf32> to vector<2x32xf32>
    %cst_408 = arith.constant dense<0.000000e+00> : vector<2x128xf32>
    %1320 = tpu.matmul %1319, %1296, %cst_408 {dimension_numbers = #tpu.dot_dimension_numbers<[1], [0], [0], [1], [0, 0, 1, 1], [], []>} : vector<2x32xf32>, vector<32x128xf32>, vector<2x128xf32> -> vector<2x128xf32>
    %1321 = arith.addf %1316, %1320 : vector<2x128xf32>
    %1322 = vector.broadcast %1297 : vector<1x128xf32> to vector<2x128xf32>
    %1323 = arith.addf %1321, %1322 : vector<2x128xf32>
    %1324 = arith.index_cast %c1_i32_402 : i32 to index
    %c0_409 = arith.constant 0 : index
    %c0_410 = arith.constant 0 : index
    %1325 = vector.load %arg15[%1324, %c0_409, %c0_410] : memref<8x2x128xf32, #tpu.memory_space<vmem>>, vector<1x2x128xf32>
    %1326 = vector.shape_cast %1325 : vector<1x2x128xf32> to vector<2x128xf32>
    %1327 = vector.shape_cast %1323 : vector<2x128xf32> to vector<1x2x128xf32>
    tpu.vector_store %arg15[%1324, %c0_409, %c0_410], %1327 {strides = array<i32>} : memref<8x2x128xf32, #tpu.memory_space<vmem>>, vector<1x2x128xf32>,
    %c2_i32_411 = arith.constant 2 : i32
    %1328 = arith.index_cast %c2_i32_411 : i32 to index
    %c0_412 = arith.constant 0 : index
    %c0_413 = arith.constant 0 : index
    %1329 = vector.load %arg18[%1328, %c0_412, %c0_413] : memref<8x2x32xf32, #tpu.memory_space<vmem>>, vector<1x2x32xf32>
    %1330 = vector.shape_cast %1329 : vector<1x2x32xf32> to vector<2x32xf32>
    %cst_414 = arith.constant dense<0.000000e+00> : vector<2x128xf32>
    %1331 = tpu.matmul %1330, %1295, %cst_414 {dimension_numbers = #tpu.dot_dimension_numbers<[1], [0], [0], [1], [0, 0, 1, 1], [], []>} : vector<2x32xf32>, vector<32x128xf32>, vector<2x128xf32> -> vector<2x128xf32>
    %1332 = arith.index_cast %c2_i32_411 : i32 to index
    %c0_415 = arith.constant 0 : index
    %c0_416 = arith.constant 0 : index
    %1333 = vector.load %arg19[%1332, %c0_415, %c0_416] : memref<8x2x32xf32, #tpu.memory_space<vmem>>, vector<1x2x32xf32>
    %1334 = vector.shape_cast %1333 : vector<1x2x32xf32> to vector<2x32xf32>
    %cst_417 = arith.constant dense<0.000000e+00> : vector<2x128xf32>
    %1335 = tpu.matmul %1334, %1296, %cst_417 {dimension_numbers = #tpu.dot_dimension_numbers<[1], [0], [0], [1], [0, 0, 1, 1], [], []>} : vector<2x32xf32>, vector<32x128xf32>, vector<2x128xf32> -> vector<2x128xf32>
    %1336 = arith.addf %1331, %1335 : vector<2x128xf32>
    %1337 = vector.broadcast %1297 : vector<1x128xf32> to vector<2x128xf32>
    %1338 = arith.addf %1336, %1337 : vector<2x128xf32>
    %1339 = arith.index_cast %c2_i32_411 : i32 to index
    %c0_418 = arith.constant 0 : index
    %c0_419 = arith.constant 0 : index
    %1340 = vector.load %arg15[%1339, %c0_418, %c0_419] : memref<8x2x128xf32, #tpu.memory_space<vmem>>, vector<1x2x128xf32>
    %1341 = vector.shape_cast %1340 : vector<1x2x128xf32> to vector<2x128xf32>
    %1342 = vector.shape_cast %1338 : vector<2x128xf32> to vector<1x2x128xf32>
    tpu.vector_store %arg15[%1339, %c0_418, %c0_419], %1342 {strides = array<i32>} : memref<8x2x128xf32, #tpu.memory_space<vmem>>, vector<1x2x128xf32>,
    %c3_i32_420 = arith.constant 3 : i32
    %1343 = arith.index_cast %c3_i32_420 : i32 to index
    %c0_421 = arith.constant 0 : index
    %c0_422 = arith.constant 0 : index
    %1344 = vector.load %arg18[%1343, %c0_421, %c0_422] : memref<8x2x32xf32, #tpu.memory_space<vmem>>, vector<1x2x32xf32>
    %1345 = vector.shape_cast %1344 : vector<1x2x32xf32> to vector<2x32xf32>
    %cst_423 = arith.constant dense<0.000000e+00> : vector<2x128xf32>
    %1346 = tpu.matmul %1345, %1295, %cst_423 {dimension_numbers = #tpu.dot_dimension_numbers<[1], [0], [0], [1], [0, 0, 1, 1], [], []>} : vector<2x32xf32>, vector<32x128xf32>, vector<2x128xf32> -> vector<2x128xf32>
    %1347 = arith.index_cast %c3_i32_420 : i32 to index
    %c0_424 = arith.constant 0 : index
    %c0_425 = arith.constant 0 : index
    %1348 = vector.load %arg19[%1347, %c0_424, %c0_425] : memref<8x2x32xf32, #tpu.memory_space<vmem>>, vector<1x2x32xf32>
    %1349 = vector.shape_cast %1348 : vector<1x2x32xf32> to vector<2x32xf32>
    %cst_426 = arith.constant dense<0.000000e+00> : vector<2x128xf32>
    %1350 = tpu.matmul %1349, %1296, %cst_426 {dimension_numbers = #tpu.dot_dimension_numbers<[1], [0], [0], [1], [0, 0, 1, 1], [], []>} : vector<2x32xf32>, vector<32x128xf32>, vector<2x128xf32> -> vector<2x128xf32>
    %1351 = arith.addf %1346, %1350 : vector<2x128xf32>
    %1352 = vector.broadcast %1297 : vector<1x128xf32> to vector<2x128xf32>
    %1353 = arith.addf %1351, %1352 : vector<2x128xf32>
    %1354 = arith.index_cast %c3_i32_420 : i32 to index
    %c0_427 = arith.constant 0 : index
    %c0_428 = arith.constant 0 : index
    %1355 = vector.load %arg15[%1354, %c0_427, %c0_428] : memref<8x2x128xf32, #tpu.memory_space<vmem>>, vector<1x2x128xf32>
    %1356 = vector.shape_cast %1355 : vector<1x2x128xf32> to vector<2x128xf32>
    %1357 = vector.shape_cast %1353 : vector<2x128xf32> to vector<1x2x128xf32>
    tpu.vector_store %arg15[%1354, %c0_427, %c0_428], %1357 {strides = array<i32>} : memref<8x2x128xf32, #tpu.memory_space<vmem>>, vector<1x2x128xf32>,
    %c4_i32_429 = arith.constant 4 : i32
    %1358 = arith.index_cast %c4_i32_429 : i32 to index
    %c0_430 = arith.constant 0 : index
    %c0_431 = arith.constant 0 : index
    %1359 = vector.load %arg18[%1358, %c0_430, %c0_431] : memref<8x2x32xf32, #tpu.memory_space<vmem>>, vector<1x2x32xf32>
    %1360 = vector.shape_cast %1359 : vector<1x2x32xf32> to vector<2x32xf32>
    %cst_432 = arith.constant dense<0.000000e+00> : vector<2x128xf32>
    %1361 = tpu.matmul %1360, %1295, %cst_432 {dimension_numbers = #tpu.dot_dimension_numbers<[1], [0], [0], [1], [0, 0, 1, 1], [], []>} : vector<2x32xf32>, vector<32x128xf32>, vector<2x128xf32> -> vector<2x128xf32>
    %1362 = arith.index_cast %c4_i32_429 : i32 to index
    %c0_433 = arith.constant 0 : index
    %c0_434 = arith.constant 0 : index
    %1363 = vector.load %arg19[%1362, %c0_433, %c0_434] : memref<8x2x32xf32, #tpu.memory_space<vmem>>, vector<1x2x32xf32>
    %1364 = vector.shape_cast %1363 : vector<1x2x32xf32> to vector<2x32xf32>
    %cst_435 = arith.constant dense<0.000000e+00> : vector<2x128xf32>
    %1365 = tpu.matmul %1364, %1296, %cst_435 {dimension_numbers = #tpu.dot_dimension_numbers<[1], [0], [0], [1], [0, 0, 1, 1], [], []>} : vector<2x32xf32>, vector<32x128xf32>, vector<2x128xf32> -> vector<2x128xf32>
    %1366 = arith.addf %1361, %1365 : vector<2x128xf32>
    %1367 = vector.broadcast %1297 : vector<1x128xf32> to vector<2x128xf32>
    %1368 = arith.addf %1366, %1367 : vector<2x128xf32>
    %1369 = arith.index_cast %c4_i32_429 : i32 to index
    %c0_436 = arith.constant 0 : index
    %c0_437 = arith.constant 0 : index
    %1370 = vector.load %arg15[%1369, %c0_436, %c0_437] : memref<8x2x128xf32, #tpu.memory_space<vmem>>, vector<1x2x128xf32>
    %1371 = vector.shape_cast %1370 : vector<1x2x128xf32> to vector<2x128xf32>
    %1372 = vector.shape_cast %1368 : vector<2x128xf32> to vector<1x2x128xf32>
    tpu.vector_store %arg15[%1369, %c0_436, %c0_437], %1372 {strides = array<i32>} : memref<8x2x128xf32, #tpu.memory_space<vmem>>, vector<1x2x128xf32>,
    %c5_i32_438 = arith.constant 5 : i32
    %1373 = arith.index_cast %c5_i32_438 : i32 to index
    %c0_439 = arith.constant 0 : index
    %c0_440 = arith.constant 0 : index
    %1374 = vector.load %arg18[%1373, %c0_439, %c0_440] : memref<8x2x32xf32, #tpu.memory_space<vmem>>, vector<1x2x32xf32>
    %1375 = vector.shape_cast %1374 : vector<1x2x32xf32> to vector<2x32xf32>
    %cst_441 = arith.constant dense<0.000000e+00> : vector<2x128xf32>
    %1376 = tpu.matmul %1375, %1295, %cst_441 {dimension_numbers = #tpu.dot_dimension_numbers<[1], [0], [0], [1], [0, 0, 1, 1], [], []>} : vector<2x32xf32>, vector<32x128xf32>, vector<2x128xf32> -> vector<2x128xf32>
    %1377 = arith.index_cast %c5_i32_438 : i32 to index
    %c0_442 = arith.constant 0 : index
    %c0_443 = arith.constant 0 : index
    %1378 = vector.load %arg19[%1377, %c0_442, %c0_443] : memref<8x2x32xf32, #tpu.memory_space<vmem>>, vector<1x2x32xf32>
    %1379 = vector.shape_cast %1378 : vector<1x2x32xf32> to vector<2x32xf32>
    %cst_444 = arith.constant dense<0.000000e+00> : vector<2x128xf32>
    %1380 = tpu.matmul %1379, %1296, %cst_444 {dimension_numbers = #tpu.dot_dimension_numbers<[1], [0], [0], [1], [0, 0, 1, 1], [], []>} : vector<2x32xf32>, vector<32x128xf32>, vector<2x128xf32> -> vector<2x128xf32>
    %1381 = arith.addf %1376, %1380 : vector<2x128xf32>
    %1382 = vector.broadcast %1297 : vector<1x128xf32> to vector<2x128xf32>
    %1383 = arith.addf %1381, %1382 : vector<2x128xf32>
    %1384 = arith.index_cast %c5_i32_438 : i32 to index
    %c0_445 = arith.constant 0 : index
    %c0_446 = arith.constant 0 : index
    %1385 = vector.load %arg15[%1384, %c0_445, %c0_446] : memref<8x2x128xf32, #tpu.memory_space<vmem>>, vector<1x2x128xf32>
    %1386 = vector.shape_cast %1385 : vector<1x2x128xf32> to vector<2x128xf32>
    %1387 = vector.shape_cast %1383 : vector<2x128xf32> to vector<1x2x128xf32>
    tpu.vector_store %arg15[%1384, %c0_445, %c0_446], %1387 {strides = array<i32>} : memref<8x2x128xf32, #tpu.memory_space<vmem>>, vector<1x2x128xf32>,
    %c6_i32_447 = arith.constant 6 : i32
    %1388 = arith.index_cast %c6_i32_447 : i32 to index
    %c0_448 = arith.constant 0 : index
    %c0_449 = arith.constant 0 : index
    %1389 = vector.load %arg18[%1388, %c0_448, %c0_449] : memref<8x2x32xf32, #tpu.memory_space<vmem>>, vector<1x2x32xf32>
    %1390 = vector.shape_cast %1389 : vector<1x2x32xf32> to vector<2x32xf32>
    %cst_450 = arith.constant dense<0.000000e+00> : vector<2x128xf32>
    %1391 = tpu.matmul %1390, %1295, %cst_450 {dimension_numbers = #tpu.dot_dimension_numbers<[1], [0], [0], [1], [0, 0, 1, 1], [], []>} : vector<2x32xf32>, vector<32x128xf32>, vector<2x128xf32> -> vector<2x128xf32>
    %1392 = arith.index_cast %c6_i32_447 : i32 to index
    %c0_451 = arith.constant 0 : index
    %c0_452 = arith.constant 0 : index
    %1393 = vector.load %arg19[%1392, %c0_451, %c0_452] : memref<8x2x32xf32, #tpu.memory_space<vmem>>, vector<1x2x32xf32>
    %1394 = vector.shape_cast %1393 : vector<1x2x32xf32> to vector<2x32xf32>
    %cst_453 = arith.constant dense<0.000000e+00> : vector<2x128xf32>
    %1395 = tpu.matmul %1394, %1296, %cst_453 {dimension_numbers = #tpu.dot_dimension_numbers<[1], [0], [0], [1], [0, 0, 1, 1], [], []>} : vector<2x32xf32>, vector<32x128xf32>, vector<2x128xf32> -> vector<2x128xf32>
    %1396 = arith.addf %1391, %1395 : vector<2x128xf32>
    %1397 = vector.broadcast %1297 : vector<1x128xf32> to vector<2x128xf32>
    %1398 = arith.addf %1396, %1397 : vector<2x128xf32>
    %1399 = arith.index_cast %c6_i32_447 : i32 to index
    %c0_454 = arith.constant 0 : index
    %c0_455 = arith.constant 0 : index
    %1400 = vector.load %arg15[%1399, %c0_454, %c0_455] : memref<8x2x128xf32, #tpu.memory_space<vmem>>, vector<1x2x128xf32>
    %1401 = vector.shape_cast %1400 : vector<1x2x128xf32> to vector<2x128xf32>
    %1402 = vector.shape_cast %1398 : vector<2x128xf32> to vector<1x2x128xf32>
    tpu.vector_store %arg15[%1399, %c0_454, %c0_455], %1402 {strides = array<i32>} : memref<8x2x128xf32, #tpu.memory_space<vmem>>, vector<1x2x128xf32>,
    %c7_i32_456 = arith.constant 7 : i32
    %1403 = arith.index_cast %c7_i32_456 : i32 to index
    %c0_457 = arith.constant 0 : index
    %c0_458 = arith.constant 0 : index
    %1404 = vector.load %arg18[%1403, %c0_457, %c0_458] : memref<8x2x32xf32, #tpu.memory_space<vmem>>, vector<1x2x32xf32>
    %1405 = vector.shape_cast %1404 : vector<1x2x32xf32> to vector<2x32xf32>
    %cst_459 = arith.constant dense<0.000000e+00> : vector<2x128xf32>
    %1406 = tpu.matmul %1405, %1295, %cst_459 {dimension_numbers = #tpu.dot_dimension_numbers<[1], [0], [0], [1], [0, 0, 1, 1], [], []>} : vector<2x32xf32>, vector<32x128xf32>, vector<2x128xf32> -> vector<2x128xf32>
    %1407 = arith.index_cast %c7_i32_456 : i32 to index
    %c0_460 = arith.constant 0 : index
    %c0_461 = arith.constant 0 : index
    %1408 = vector.load %arg19[%1407, %c0_460, %c0_461] : memref<8x2x32xf32, #tpu.memory_space<vmem>>, vector<1x2x32xf32>
    %1409 = vector.shape_cast %1408 : vector<1x2x32xf32> to vector<2x32xf32>
    %cst_462 = arith.constant dense<0.000000e+00> : vector<2x128xf32>
    %1410 = tpu.matmul %1409, %1296, %cst_462 {dimension_numbers = #tpu.dot_dimension_numbers<[1], [0], [0], [1], [0, 0, 1, 1], [], []>} : vector<2x32xf32>, vector<32x128xf32>, vector<2x128xf32> -> vector<2x128xf32>
    %1411 = arith.addf %1406, %1410 : vector<2x128xf32>
    %1412 = vector.broadcast %1297 : vector<1x128xf32> to vector<2x128xf32>
    %1413 = arith.addf %1411, %1412 : vector<2x128xf32>
    %1414 = arith.index_cast %c7_i32_456 : i32 to index
    %c0_463 = arith.constant 0 : index
    %c0_464 = arith.constant 0 : index
    %1415 = vector.load %arg15[%1414, %c0_463, %c0_464] : memref<8x2x128xf32, #tpu.memory_space<vmem>>, vector<1x2x128xf32>
    %1416 = vector.shape_cast %1415 : vector<1x2x128xf32> to vector<2x128xf32>
    %1417 = vector.shape_cast %1413 : vector<2x128xf32> to vector<1x2x128xf32>
    tpu.vector_store %arg15[%1414, %c0_463, %c0_464], %1417 {strides = array<i32>} : memref<8x2x128xf32, #tpu.memory_space<vmem>>, vector<1x2x128xf32>,
    %c8_i32_465 = arith.constant 8 : i32
    return
  }
}

</mosaic_0001>

<llo_original>
// kernel: tpu_custom_call.1
$region0: #{tpu_custom_call.1}
  #allocation0 [shape = 'u32[]', space=smem, size = 0x4, offset = 0x4, fixed_abs, tag = 'smem constant byte address 0x4 - core index']
  #allocation1 [shape = 'u32[144,128]{1,0:T(1,128)}', space=vmem, size = 0x12000, scoped, tag = 'internal scratch']
  #allocation2 [shape = 'f32[8,2,32]{2,1,0:T(2,128)}', space=vmem, size = 0x2000, scoped, tag = 'scratch operand']
  #allocation3 [shape = 'f32[8,2,32]{2,1,0:T(2,128)}', space=vmem, size = 0x2000, scoped, tag = 'scratch operand']
  #allocation4 [shape = 'f32[8,2,32]{2,1,0:T(2,128)}', space=vmem, size = 0x2000, scoped, tag = 'scratch operand']
  #allocation5 [shape = 'f32[8,2,32]{2,1,0:T(2,128)}', space=vmem, size = 0x2000, scoped, tag = 'scratch operand']
  %s0 = inlined_call_operand.hbm [shape: f32[8,2,32], index: 0, kind: input, shape index: {}]
  %s1 = inlined_call_operand.hbm [shape: f32[32,128], index: 1, kind: input, shape index: {}]
  %s2 = inlined_call_operand.hbm [shape: f32[32,128], index: 2, kind: input, shape index: {}]
  %s3 = inlined_call_operand.vmem [shape: f32[1,128], index: 3, kind: input, shape index: {}]
  %s4 = inlined_call_operand.hbm [shape: f32[32,128], index: 4, kind: input, shape index: {}]
  %s5 = inlined_call_operand.hbm [shape: f32[32,128], index: 5, kind: input, shape index: {}]
  %s6 = inlined_call_operand.vmem [shape: f32[1,128], index: 6, kind: input, shape index: {}]
  %s7 = inlined_call_operand.hbm [shape: f32[64,128], index: 7, kind: input, shape index: {}]
  %s8 = inlined_call_operand.hbm [shape: f32[32,128], index: 8, kind: input, shape index: {}]
  %s9 = inlined_call_operand.vmem [shape: f32[1,128], index: 9, kind: input, shape index: {}]
  %s10 = inlined_call_operand.hbm [shape: f32[64,128], index: 10, kind: input, shape index: {}]
  %s11 = inlined_call_operand.vmem [shape: f32[32,128], index: 11, kind: input, shape index: {}]
  %s12 = inlined_call_operand.vmem [shape: f32[1,128], index: 12, kind: input, shape index: {}]
  %s13 = inlined_call_operand.hbm [shape: f32[64,128], index: 13, kind: input, shape index: {}]
  %s14 = inlined_call_operand.vmem [shape: f32[1,128], index: 14, kind: input, shape index: {}]
  %s15 = inlined_call_operand.hbm [shape: f32[8,2,128], index: 15, kind: output, shape index: {}]
  %s16 = sld [smem:[#allocation0]]
  $region106: #{tpu_custom_call.1} parent=0
    _
  %s18 = ssub.s32 1, %s16
  %s19 = scalar_select 0, %s18, %s16
  $region1: #{tpu_custom_call.1} parent=0
    #allocation6 [shape = 'u8[8192]{0}', space=vmem, size = 0x2000, scoped, tag = 'input window, operand 0, single buffered']
    #allocation7 [shape = 's32[1]{0}', space=sflag, size = 0x4, scoped, tag = 'scoped memory for tpu_custom_call.1']
    #allocation8 [shape = 's32[1]{0}', space=sflag, size = 0x4, scoped, tag = 'scoped memory for tpu_custom_call.1']
    #allocation9 [shape = 'u8[16384]{0}', space=vmem, size = 0x4000, scoped, tag = 'input window, operand 1, single buffered']
    #allocation10 [shape = 's32[1]{0}', space=sflag, size = 0x4, scoped, tag = 'scoped memory for tpu_custom_call.1']
    #allocation11 [shape = 'u8[16384]{0}', space=vmem, size = 0x4000, scoped, tag = 'input window, operand 2, single buffered']
    #allocation12 [shape = 'u8[16384]{0}', space=vmem, size = 0x4000, scoped, tag = 'input window, operand 4, single buffered']
    #allocation13 [shape = 's32[1]{0}', space=sflag, size = 0x4, scoped, tag = 'scoped memory for tpu_custom_call.1']
    #allocation14 [shape = 'u8[16384]{0}', space=vmem, size = 0x4000, scoped, tag = 'input window, operand 5, single buffered']
    #allocation15 [shape = 'u8[32768]{0}', space=vmem, size = 0x8000, scoped, tag = 'input window, operand 7, single buffered']
    #allocation16 [shape = 's32[1]{0}', space=sflag, size = 0x4, scoped, tag = 'scoped memory for tpu_custom_call.1']
    #allocation17 [shape = 'u8[16384]{0}', space=vmem, size = 0x4000, scoped, tag = 'input window, operand 8, single buffered']
    #allocation18 [shape = 'u8[32768]{0}', space=vmem, size = 0x8000, scoped, tag = 'input window, operand 10, single buffered']
    #allocation19 [shape = 's32[1]{0}', space=sflag, size = 0x4, scoped, tag = 'scoped memory for tpu_custom_call.1']
    #allocation20 [shape = 'u8[32768]{0}', space=vmem, size = 0x8000, scoped, tag = 'input window, operand 13, single buffered']
    #allocation21 [shape = 'u8[8192]{0}', space=vmem, size = 0x2000, scoped, tag = 'output window, operand 0, single buffered']
    %20 = vsyncpa [#allocation7], 0
    %21 = vsyncpa [#allocation10], 0
    %22 = vsyncpa [#allocation13], 0
    %23 = vsyncpa [#allocation16], 0
    %24 = vsyncpa [#allocation19], 0
    %25 = vsyncpa [#allocation8], 0
    // Predicated region
    $region2: #{tpu_custom_call.1} parent=1 // pred_check
      _
    $region3: #{tpu_custom_call.1} parent=1 // pred_check_branch
      %27 = sbr.rel (0) target = $region5
    $region4: #{tpu_custom_call.1} parent=1 // pred_region
      %s29 = ssub.s32 256, 256
      %30 = vsyncadd [#allocation7], %s29
      %s31 = sshll.u32 [#allocation6], 4
      %s32 = int_to_ptr.vmem [resolvable:$true] %s31
      %37 = dma.hbm_to_vmem [thread:$0]  %s0, 256, %s32, [#allocation7], 32, 32, 2
    $region5: #{tpu_custom_call.1} parent=1 // pred_fallthru
      _
    // Predicated region
    $region6: #{tpu_custom_call.1} parent=1 // pred_check
      _
    $region7: #{tpu_custom_call.1} parent=1 // pred_check_branch
      %39 = sbr.rel (0) target = $region9
    $region8: #{tpu_custom_call.1} parent=1 // pred_region
      %s41 = ssub.s32 512, 512
      %42 = vsyncadd [#allocation10], %s41
      %s43 = sshll.u32 [#allocation9], 4
      %s44 = int_to_ptr.vmem [resolvable:$true] %s43
      %49 = dma.hbm_to_vmem [thread:$0]  %s1, 512, %s44, [#allocation10], 128, 128, 8
    $region9: #{tpu_custom_call.1} parent=1 // pred_fallthru
      _
    // Predicated region
    $region10: #{tpu_custom_call.1} parent=1 // pred_check
      _
    $region11: #{tpu_custom_call.1} parent=1 // pred_check_branch
      %51 = sbr.rel (0) target = $region13
    $region12: #{tpu_custom_call.1} parent=1 // pred_region
      %s53 = ssub.s32 512, 512
      %54 = vsyncadd [#allocation10], %s53
      %s55 = sshll.u32 [#allocation11], 4
      %s56 = int_to_ptr.vmem [resolvable:$true] %s55
      %61 = dma.hbm_to_vmem [thread:$0]  %s2, 512, %s56, [#allocation10], 128, 128, 8
    $region13: #{tpu_custom_call.1} parent=1 // pred_fallthru
      _
    // Predicated region
    $region14: #{tpu_custom_call.1} parent=1 // pred_check
      _
    $region15: #{tpu_custom_call.1} parent=1 // pred_check_branch
      %63 = sbr.rel (0) target = $region17
    $region16: #{tpu_custom_call.1} parent=1 // pred_region
      _
    $region17: #{tpu_custom_call.1} parent=1 // pred_fallthru
      _
    // Predicated region
    $region18: #{tpu_custom_call.1} parent=1 // pred_check
      _
    $region19: #{tpu_custom_call.1} parent=1 // pred_check_branch
      %65 = sbr.rel (0) target = $region21
    $region20: #{tpu_custom_call.1} parent=1 // pred_region
      %s67 = ssub.s32 512, 512
      %68 = vsyncadd [#allocation13], %s67
      %s69 = sshll.u32 [#allocation12], 4
      %s70 = int_to_ptr.vmem [resolvable:$true] %s69
      %75 = dma.hbm_to_vmem [thread:$0]  %s4, 512, %s70, [#allocation13], 128, 128, 8
    $region21: #{tpu_custom_call.1} parent=1 // pred_fallthru
      _
    // Predicated region
    $region22: #{tpu_custom_call.1} parent=1 // pred_check
      _
    $region23: #{tpu_custom_call.1} parent=1 // pred_check_branch
      %77 = sbr.rel (0) target = $region25
    $region24: #{tpu_custom_call.1} parent=1 // pred_region
      %s79 = ssub.s32 512, 512
      %80 = vsyncadd [#allocation13], %s79
      %s81 = sshll.u32 [#allocation14], 4
      %s82 = int_to_ptr.vmem [resolvable:$true] %s81
      %87 = dma.hbm_to_vmem [thread:$0]  %s5, 512, %s82, [#allocation13], 128, 128, 8
    $region25: #{tpu_custom_call.1} parent=1 // pred_fallthru
      _
    // Predicated region
    $region26: #{tpu_custom_call.1} parent=1 // pred_check
      _
    $region27: #{tpu_custom_call.1} parent=1 // pred_check_branch
      %89 = sbr.rel (0) target = $region29
    $region28: #{tpu_custom_call.1} parent=1 // pred_region
      _
    $region29: #{tpu_custom_call.1} parent=1 // pred_fallthru
      _
    // Predicated region
    $region30: #{tpu_custom_call.1} parent=1 // pred_check
      _
    $region31: #{tpu_custom_call.1} parent=1 // pred_check_branch
      %91 = sbr.rel (0) target = $region33
    $region32: #{tpu_custom_call.1} parent=1 // pred_region
      %s93 = ssub.s32 1024, 1024
      %94 = vsyncadd [#allocation16], %s93
      %s95 = sshll.u32 [#allocation15], 4
      %s96 = int_to_ptr.vmem [resolvable:$true] %s95
      %101 = dma.hbm_to_vmem [thread:$0]  %s7, 1024, %s96, [#allocation16], 128, 128, 8
    $region33: #{tpu_custom_call.1} parent=1 // pred_fallthru
      _
    // Predicated region
    $region34: #{tpu_custom_call.1} parent=1 // pred_check
      _
    $region35: #{tpu_custom_call.1} parent=1 // pred_check_branch
      %103 = sbr.rel (0) target = $region37
    $region36: #{tpu_custom_call.1} parent=1 // pred_region
      %s105 = ssub.s32 512, 512
      %106 = vsyncadd [#allocation16], %s105
      %s107 = sshll.u32 [#allocation17], 4
      %s108 = int_to_ptr.vmem [resolvable:$true] %s107
      %113 = dma.hbm_to_vmem [thread:$0]  %s8, 512, %s108, [#allocation16], 128, 128, 8
    $region37: #{tpu_custom_call.1} parent=1 // pred_fallthru
      _
    // Predicated region
    $region38: #{tpu_custom_call.1} parent=1 // pred_check
      _
    $region39: #{tpu_custom_call.1} parent=1 // pred_check_branch
      %115 = sbr.rel (0) target = $region41
    $region40: #{tpu_custom_call.1} parent=1 // pred_region
      _
    $region41: #{tpu_custom_call.1} parent=1 // pred_fallthru
      _
    // Predicated region
    $region42: #{tpu_custom_call.1} parent=1 // pred_check
      _
    $region43: #{tpu_custom_call.1} parent=1 // pred_check_branch
      %117 = sbr.rel (0) target = $region45
    $region44: #{tpu_custom_call.1} parent=1 // pred_region
      %s119 = ssub.s32 1024, 1024
      %120 = vsyncadd [#allocation19], %s119
      %s121 = sshll.u32 [#allocation18], 4
      %s122 = int_to_ptr.vmem [resolvable:$true] %s121
      %127 = dma.hbm_to_vmem [thread:$0]  %s10, 1024, %s122, [#allocation19], 128, 128, 8
    $region45: #{tpu_custom_call.1} parent=1 // pred_fallthru
      _
    // Predicated region
    $region46: #{tpu_custom_call.1} parent=1 // pred_check
      _
    $region47: #{tpu_custom_call.1} parent=1 // pred_check_branch
      %129 = sbr.rel (0) target = $region49
    $region48: #{tpu_custom_call.1} parent=1 // pred_region
      _
    $region49: #{tpu_custom_call.1} parent=1 // pred_fallthru
      _
    // Predicated region
    $region50: #{tpu_custom_call.1} parent=1 // pred_check
      _
    $region51: #{tpu_custom_call.1} parent=1 // pred_check_branch
      %131 = sbr.rel (0) target = $region53
    $region52: #{tpu_custom_call.1} parent=1 // pred_region
      _
    $region53: #{tpu_custom_call.1} parent=1 // pred_fallthru
      _
    // Predicated region
    $region54: #{tpu_custom_call.1} parent=1 // pred_check
      _
    $region55: #{tpu_custom_call.1} parent=1 // pred_check_branch
      %133 = sbr.rel (0) target = $region57
    $region56: #{tpu_custom_call.1} parent=1 // pred_region
      %s135 = ssub.s32 1024, 1024
      %136 = vsyncadd [#allocation19], %s135
      %s137 = sshll.u32 [#allocation20], 4
      %s138 = int_to_ptr.vmem [resolvable:$true] %s137
      %143 = dma.hbm_to_vmem [thread:$0]  %s13, 1024, %s138, [#allocation19], 128, 128, 8
    $region57: #{tpu_custom_call.1} parent=1 // pred_fallthru
      _
    // Predicated region
    $region58: #{tpu_custom_call.1} parent=1 // pred_check
      _
    $region59: #{tpu_custom_call.1} parent=1 // pred_check_branch
      %145 = sbr.rel (0) target = $region61
    $region60: #{tpu_custom_call.1} parent=1 // pred_region
      _
    $region61: #{tpu_custom_call.1} parent=1 // pred_fallthru
      _
    // Predicated region
    $region62: #{tpu_custom_call.1} parent=1 // pred_check
      _
    $region63: #{tpu_custom_call.1} parent=1 // pred_check_branch
      %147 = sbr.rel (0) target = $region65
    $region64: #{tpu_custom_call.1} parent=1 // pred_region
      %148 = dma.done [#allocation7], 256
    $region65: #{tpu_custom_call.1} parent=1 // pred_fallthru
      _
    // Predicated region
    $region66: #{tpu_custom_call.1} parent=1 // pred_check
      _
    $region67: #{tpu_custom_call.1} parent=1 // pred_check_branch
      %150 = sbr.rel (0) target = $region69
    $region68: #{tpu_custom_call.1} parent=1 // pred_region
      %151 = dma.done [#allocation10], 512
    $region69: #{tpu_custom_call.1} parent=1 // pred_fallthru
      _
    // Predicated region
    $region70: #{tpu_custom_call.1} parent=1 // pred_check
      _
    $region71: #{tpu_custom_call.1} parent=1 // pred_check_branch
      %153 = sbr.rel (0) target = $region73
    $region72: #{tpu_custom_call.1} parent=1 // pred_region
      %154 = dma.done [#allocation10], 512
    $region73: #{tpu_custom_call.1} parent=1 // pred_fallthru
      _
    // Predicated region
    $region74: #{tpu_custom_call.1} parent=1 // pred_check
      _
    $region75: #{tpu_custom_call.1} parent=1 // pred_check_branch
      %156 = sbr.rel (0) target = $region77
    $region76: #{tpu_custom_call.1} parent=1 // pred_region
      %157 = dma.done [#allocation13], 512
    $region77: #{tpu_custom_call.1} parent=1 // pred_fallthru
      _
    // Predicated region
    $region78: #{tpu_custom_call.1} parent=1 // pred_check
      _
    $region79: #{tpu_custom_call.1} parent=1 // pred_check_branch
      %159 = sbr.rel (0) target = $region81
    $region80: #{tpu_custom_call.1} parent=1 // pred_region
      %160 = dma.done [#allocation13], 512
    $region81: #{tpu_custom_call.1} parent=1 // pred_fallthru
      _
    // Predicated region
    $region82: #{tpu_custom_call.1} parent=1 // pred_check
      _
    $region83: #{tpu_custom_call.1} parent=1 // pred_check_branch
      %162 = sbr.rel (0) target = $region85
    $region84: #{tpu_custom_call.1} parent=1 // pred_region
      %163 = dma.done [#allocation16], 1024
    $region85: #{tpu_custom_call.1} parent=1 // pred_fallthru
      _
    // Predicated region
    $region86: #{tpu_custom_call.1} parent=1 // pred_check
      _
    $region87: #{tpu_custom_call.1} parent=1 // pred_check_branch
      %165 = sbr.rel (0) target = $region89
    $region88: #{tpu_custom_call.1} parent=1 // pred_region
      %166 = dma.done [#allocation16], 512
    $region89: #{tpu_custom_call.1} parent=1 // pred_fallthru
      _
    // Predicated region
    $region90: #{tpu_custom_call.1} parent=1 // pred_check
      _
    $region91: #{tpu_custom_call.1} parent=1 // pred_check_branch
      %168 = sbr.rel (0) target = $region93
    $region92: #{tpu_custom_call.1} parent=1 // pred_region
      %169 = dma.done [#allocation19], 1024
    $region93: #{tpu_custom_call.1} parent=1 // pred_fallthru
      _
    // Predicated region
    $region94: #{tpu_custom_call.1} parent=1 // pred_check
      _
    $region95: #{tpu_custom_call.1} parent=1 // pred_check_branch
      %171 = sbr.rel (0) target = $region97
    $region96: #{tpu_custom_call.1} parent=1 // pred_region
      %172 = dma.done [#allocation19], 1024
    $region97: #{tpu_custom_call.1} parent=1 // pred_fallthru
      _
    %v173 = vld [vmem:[#allocation9] sm:$0xff]
    %v174 = vld [vmem:[#allocation9 + $0x8] sm:$0xff]
    %v175 = vld [vmem:[#allocation9 + $0x10] sm:$0xff]
    %v176 = vld [vmem:[#allocation9 + $0x18] sm:$0xff]
    %v177 = vld [vmem:[#allocation11] sm:$0xff]
    %v178 = vld [vmem:[#allocation11 + $0x8] sm:$0xff]
    %v179 = vld [vmem:[#allocation11 + $0x10] sm:$0xff]
    %v180 = vld [vmem:[#allocation11 + $0x18] sm:$0xff]
    %v181 = vld [vmem:[%s3] sm:$0x1]
    %v182 = vld [vmem:[#allocation12] sm:$0xff]
    %v183 = vld [vmem:[#allocation12 + $0x8] sm:$0xff]
    %v184 = vld [vmem:[#allocation12 + $0x10] sm:$0xff]
    %v185 = vld [vmem:[#allocation12 + $0x18] sm:$0xff]
    %v186 = vld [vmem:[#allocation14] sm:$0xff]
    %v187 = vld [vmem:[#allocation14 + $0x8] sm:$0xff]
    %v188 = vld [vmem:[#allocation14 + $0x10] sm:$0xff]
    %v189 = vld [vmem:[#allocation14 + $0x18] sm:$0xff]
    %v190 = vld [vmem:[%s6] sm:$0x1]
    %v191 = vld [vmem:[#allocation6] sm:$0x3]
    %vm192 = vcmask 261120
    %v194 = vsel %vm192, 0.0, 0
    %196 = vmatprep.subr.mxu0 0.0
    %197 = vmatpush1.msra.mxu0 %v177
    %198 = vmatprep.subr.mxu0 0.0
    %199 = vmatpush1.msra.mxu0 %v178
    %200 = vmatprep.subr.mxu0 0.0
    %201 = vmatpush1.msra.mxu0 %v179
    %202 = vmatprep.subr.mxu0 0.0
    %203 = vmatpush1.msra.mxu0 %v180
    %204 = vmatprep.subr.mxu0 0.0
    %205 = vmatpush1.msra.mxu0 0.0
    %206 = vmatprep.subr.mxu0 0.0
    %207 = vmatpush1.msra.mxu0 0.0
    %208 = vmatprep.subr.mxu0 0.0
    %209 = vmatpush1.msra.mxu0 0.0
    %210 = vmatprep.subr.mxu0 0.0
    %211 = vmatpush1.msra.mxu0 0.0
    %212 = vmatprep.subr.mxu0 0.0
    %213 = vmatpush1.msra.mxu0 0.0
    %214 = vmatprep.subr.mxu0 0.0
    %215 = vmatpush1.msra.mxu0 0.0
    %216 = vmatprep.subr.mxu0 0.0
    %217 = vmatpush1.msra.mxu0 0.0
    %218 = vmatprep.subr.mxu0 0.0
    %219 = vmatpush1.msra.mxu0 0.0
    %220 = vmatprep.subr.mxu0 0.0
    %221 = vmatpush1.msra.mxu0 0.0
    %222 = vmatprep.subr.mxu0 0.0
    %223 = vmatpush1.msra.mxu0 0.0
    %224 = vmatprep.subr.mxu0 0.0
    %225 = vmatpush1.msra.mxu0 0.0
    %226 = vmatprep.subr.mxu0 0.0
    %227 = vmatpush1.msra.mxu0 0.0
    %228 = vmatprep.subr.mxu0 0.0
    %229 = vmatpush1.msra.mxu0 0.0
    %230 = vmatprep.subr.mxu0 0.0
    %231 = vmatpush1.msra.mxu0 0.0
    %232 = vmatprep.subr.mxu0 0.0
    %233 = vmatpush1.msra.mxu0 0.0
    %234 = vmatprep.subr.mxu0 0.0
    %235 = vmatpush1.msra.mxu0 0.0
    %236 = vmatprep.subr.mxu0 0.0
    %237 = vmatpush1.msra.mxu0 0.0
    %238 = vmatprep.subr.mxu0 0.0
    %239 = vmatpush1.msra.mxu0 0.0
    %240 = vmatprep.subr.mxu0 0.0
    %241 = vmatpush1.msra.mxu0 0.0
    %242 = vmatprep.subr.mxu0 0.0
    %243 = vmatpush1.msra.mxu0 0.0
    %244 = vmatprep.subr.mxu0 0.0
    %245 = vmatpush1.msra.mxu0 0.0
    %246 = vmatprep.subr.mxu0 0.0
    %247 = vmatpush1.msra.mxu0 0.0
    %248 = vmatprep.subr.mxu0 0.0
    %249 = vmatpush1.msra.mxu0 0.0
    %250 = vmatprep.subr.mxu0 0.0
    %251 = vmatpush1.msra.mxu0 0.0
    %252 = vmatprep.subr.mxu0 0.0
    %253 = vmatpush1.msra.mxu0 0.0
    %254 = vmatprep.subr.mxu0 0.0
    %255 = vmatpush1.msra.mxu0 0.0
    %256 = vmatprep.subr.mxu0 0.0
    %257 = vmatpush1.msra.mxu0 0.0
    %258 = vmatprep.subr.mxu0 0.0
    %259 = vmatpush1.msra.mxu0 0.0
    %260 = vmatprep.mubr.f32.mxu0 0.0
    %261 = vmatmul.mubr.f32.gmra.mrb[0].mxu0 %v194
    %v262 = vpop.f32.mrb[0].mxu0
    %v263 = vadd.f32 0.0, %v262
    %v264 = vpop.f32.mrb[0].mxu0
    %265 = vdwg.mxu0
    %v267 = vsel %vm192, %v191, 0
    %269 = vmatprep.subr.mxu0 0.0
    %270 = vmatpush1.msra.mxu0 %v173
    %271 = vmatprep.subr.mxu0 0.0
    %272 = vmatpush1.msra.mxu0 %v174
    %273 = vmatprep.subr.mxu0 0.0
    %274 = vmatpush1.msra.mxu0 %v175
    %275 = vmatprep.subr.mxu0 0.0
    %276 = vmatpush1.msra.mxu0 %v176
    %277 = vmatprep.subr.mxu0 0.0
    %278 = vmatpush1.msra.mxu0 0.0
    %279 = vmatprep.subr.mxu0 0.0
    %280 = vmatpush1.msra.mxu0 0.0
    %281 = vmatprep.subr.mxu0 0.0
    %282 = vmatpush1.msra.mxu0 0.0
    %283 = vmatprep.subr.mxu0 0.0
    %284 = vmatpush1.msra.mxu0 0.0
    %285 = vmatprep.subr.mxu0 0.0
    %286 = vmatpush1.msra.mxu0 0.0
    %287 = vmatprep.subr.mxu0 0.0
    %288 = vmatpush1.msra.mxu0 0.0
    %289 = vmatprep.subr.mxu0 0.0
    %290 = vmatpush1.msra.mxu0 0.0
    %291 = vmatprep.subr.mxu0 0.0
    %292 = vmatpush1.msra.mxu0 0.0
    %293 = vmatprep.subr.mxu0 0.0
    %294 = vmatpush1.msra.mxu0 0.0
    %295 = vmatprep.subr.mxu0 0.0
    %296 = vmatpush1.msra.mxu0 0.0
    %297 = vmatprep.subr.mxu0 0.0
    %298 = vmatpush1.msra.mxu0 0.0
    %299 = vmatprep.subr.mxu0 0.0
    %300 = vmatpush1.msra.mxu0 0.0
    %301 = vmatprep.subr.mxu0 0.0
    %302 = vmatpush1.msra.mxu0 0.0
    %303 = vmatprep.subr.mxu0 0.0
    %304 = vmatpush1.msra.mxu0 0.0
    %305 = vmatprep.subr.mxu0 0.0
    %306 = vmatpush1.msra.mxu0 0.0
    %307 = vmatprep.subr.mxu0 0.0
    %308 = vmatpush1.msra.mxu0 0.0
    %309 = vmatprep.subr.mxu0 0.0
    %310 = vmatpush1.msra.mxu0 0.0
    %311 = vmatprep.subr.mxu0 0.0
    %312 = vmatpush1.msra.mxu0 0.0
    %313 = vmatprep.subr.mxu0 0.0
    %314 = vmatpush1.msra.mxu0 0.0
    %315 = vmatprep.subr.mxu0 0.0
    %316 = vmatpush1.msra.mxu0 0.0
    %317 = vmatprep.subr.mxu0 0.0
    %318 = vmatpush1.msra.mxu0 0.0
    %319 = vmatprep.subr.mxu0 0.0
    %320 = vmatpush1.msra.mxu0 0.0
    %321 = vmatprep.subr.mxu0 0.0
    %322 = vmatpush1.msra.mxu0 0.0
    %323 = vmatprep.subr.mxu0 0.0
    %324 = vmatpush1.msra.mxu0 0.0
    %325 = vmatprep.subr.mxu0 0.0
    %326 = vmatpush1.msra.mxu0 0.0
    %327 = vmatprep.subr.mxu0 0.0
    %328 = vmatpush1.msra.mxu0 0.0
    %329 = vmatprep.subr.mxu0 0.0
    %330 = vmatpush1.msra.mxu0 0.0
    %331 = vmatprep.subr.mxu0 0.0
    %332 = vmatpush1.msra.mxu0 0.0
    %333 = vmatprep.mubr.f32.mxu0 0.0
    %334 = vmatmul.mubr.f32.gmra.mrb[0].mxu0 %v267
    %v335 = vpop.f32.mrb[0].mxu0
    %v336 = vadd.f32 %v263, %v335
    %v337 = vpop.f32.mrb[0].mxu0
    %338 = vdwg.mxu0
    %v340 = vlaneseq
    %v341 = vshrl.u32 %v340, 7
    %v342 = vsub.s32 0, %v341
    %v343 = vrot.slane %v181, %v342
    %v345 = vadd.f32 %v336, %v343
    %v346 = vxor.u32 %v345, 2147483648
    %v347 = vmul.f32 %v346, 1.442695
    %v348 = vpow.pop %v347
    %v349 = vadd.f32 %v348, 1.0
    %v350 = vrcp.pop %v349
    %v351 = vmul.f32 1.0, %v350
    %v352 = vtanh.pop %v345
    %v353 = vmul.f32 %v351, 0.0
    %355 = vrot.lane.b32.xlu0 %v352, 64
    %v356 = vpop.permute.xlu0 %355
    %v358 = vmul.f32 %v351, %v356
    %360 = vrot.lane.b32.xlu0 %v358, 32
    %v361 = vpop.permute.xlu0 %360
    %v363 = vadd.f32 %v353, %v361
    %v364 = vtanh.pop %v363
    %366 = vrot.lane.b32.xlu0 %v364, 64
    %v367 = vpop.permute.xlu0 %366
    %v369 = vmul.f32 %v351, %v367
    %371 = vrot.lane.b32.xlu0 %v369, 32
    %v372 = vpop.permute.xlu0 %371
    %vm374 = vcmask 254976
    %375 = vst.msk [vmem:[#allocation2] sm:$0x3] %vm374, %v372
    %s376 = scalar_lea.vmem [#allocation6], 14
    %v377 = vld [vmem:[%s376] sm:$0x3]
    %378 = vmatprep.subr.mxu0 0.0
    %379 = vmatpush1.msra.mxu0 %v186
    %380 = vmatprep.subr.mxu0 0.0
    %381 = vmatpush1.msra.mxu0 %v187
    %382 = vmatprep.subr.mxu0 0.0
    %383 = vmatpush1.msra.mxu0 %v188
    %384 = vmatprep.subr.mxu0 0.0
    %385 = vmatpush1.msra.mxu0 %v189
    %386 = vmatprep.subr.mxu0 0.0
    %387 = vmatpush1.msra.mxu0 0.0
    %388 = vmatprep.subr.mxu0 0.0
    %389 = vmatpush1.msra.mxu0 0.0
    %390 = vmatprep.subr.mxu0 0.0
    %391 = vmatpush1.msra.mxu0 0.0
    %392 = vmatprep.subr.mxu0 0.0
    %393 = vmatpush1.msra.mxu0 0.0
    %394 = vmatprep.subr.mxu0 0.0
    %395 = vmatpush1.msra.mxu0 0.0
    %396 = vmatprep.subr.mxu0 0.0
    %397 = vmatpush1.msra.mxu0 0.0
    %398 = vmatprep.subr.mxu0 0.0
    %399 = vmatpush1.msra.mxu0 0.0
    %400 = vmatprep.subr.mxu0 0.0
    %401 = vmatpush1.msra.mxu0 0.0
    %402 = vmatprep.subr.mxu0 0.0
    %403 = vmatpush1.msra.mxu0 0.0
    %404 = vmatprep.subr.mxu0 0.0
    %405 = vmatpush1.msra.mxu0 0.0
    %406 = vmatprep.subr.mxu0 0.0
    %407 = vmatpush1.msra.mxu0 0.0
    %408 = vmatprep.subr.mxu0 0.0
    %409 = vmatpush1.msra.mxu0 0.0
    %410 = vmatprep.subr.mxu0 0.0
    %411 = vmatpush1.msra.mxu0 0.0
    %412 = vmatprep.subr.mxu0 0.0
    %413 = vmatpush1.msra.mxu0 0.0
    %414 = vmatprep.subr.mxu0 0.0
    %415 = vmatpush1.msra.mxu0 0.0
    %416 = vmatprep.subr.mxu0 0.0
    %417 = vmatpush1.msra.mxu0 0.0
    %418 = vmatprep.subr.mxu0 0.0
    %419 = vmatpush1.msra.mxu0 0.0
    %420 = vmatprep.subr.mxu0 0.0
    %421 = vmatpush1.msra.mxu0 0.0
    %422 = vmatprep.subr.mxu0 0.0
    %423 = vmatpush1.msra.mxu0 0.0
    %424 = vmatprep.subr.mxu0 0.0
    %425 = vmatpush1.msra.mxu0 0.0
    %426 = vmatprep.subr.mxu0 0.0
    %427 = vmatpush1.msra.mxu0 0.0
    %428 = vmatprep.subr.mxu0 0.0
    %429 = vmatpush1.msra.mxu0 0.0
    %430 = vmatprep.subr.mxu0 0.0
    %431 = vmatpush1.msra.mxu0 0.0
    %432 = vmatprep.subr.mxu0 0.0
    %433 = vmatpush1.msra.mxu0 0.0
    %434 = vmatprep.subr.mxu0 0.0
    %435 = vmatpush1.msra.mxu0 0.0
    %436 = vmatprep.subr.mxu0 0.0
    %437 = vmatpush1.msra.mxu0 0.0
    %438 = vmatprep.subr.mxu0 0.0
    %439 = vmatpush1.msra.mxu0 0.0
    %440 = vmatprep.subr.mxu0 0.0
    %441 = vmatpush1.msra.mxu0 0.0
    %442 = vmatprep.mubr.f32.mxu0 0.0
    %443 = vmatmul.mubr.f32.gmra.mrb[0].mxu0 %v194
    %v444 = vpop.f32.mrb[0].mxu0
    %v445 = vadd.f32 0.0, %v444
    %v446 = vpop.f32.mrb[0].mxu0
    %447 = vdwg.mxu0
    %v449 = vsel %vm192, %v377, 0
    %451 = vmatprep.subr.mxu0 0.0
    %452 = vmatpush1.msra.mxu0 %v182
    %453 = vmatprep.subr.mxu0 0.0
    %454 = vmatpush1.msra.mxu0 %v183
    %455 = vmatprep.subr.mxu0 0.0
    %456 = vmatpush1.msra.mxu0 %v184
    %457 = vmatprep.subr.mxu0 0.0
    %458 = vmatpush1.msra.mxu0 %v185
    %459 = vmatprep.subr.mxu0 0.0
    %460 = vmatpush1.msra.mxu0 0.0
    %461 = vmatprep.subr.mxu0 0.0
    %462 = vmatpush1.msra.mxu0 0.0
    %463 = vmatprep.subr.mxu0 0.0
    %464 = vmatpush1.msra.mxu0 0.0
    %465 = vmatprep.subr.mxu0 0.0
    %466 = vmatpush1.msra.mxu0 0.0
    %467 = vmatprep.subr.mxu0 0.0
    %468 = vmatpush1.msra.mxu0 0.0
    %469 = vmatprep.subr.mxu0 0.0
    %470 = vmatpush1.msra.mxu0 0.0
    %471 = vmatprep.subr.mxu0 0.0
    %472 = vmatpush1.msra.mxu0 0.0
    %473 = vmatprep.subr.mxu0 0.0
    %474 = vmatpush1.msra.mxu0 0.0
    %475 = vmatprep.subr.mxu0 0.0
    %476 = vmatpush1.msra.mxu0 0.0
    %477 = vmatprep.subr.mxu0 0.0
    %478 = vmatpush1.msra.mxu0 0.0
    %479 = vmatprep.subr.mxu0 0.0
    %480 = vmatpush1.msra.mxu0 0.0
    %481 = vmatprep.subr.mxu0 0.0
    %482 = vmatpush1.msra.mxu0 0.0
    %483 = vmatprep.subr.mxu0 0.0
    %484 = vmatpush1.msra.mxu0 0.0
    %485 = vmatprep.subr.mxu0 0.0
    %486 = vmatpush1.msra.mxu0 0.0
    %487 = vmatprep.subr.mxu0 0.0
    %488 = vmatpush1.msra.mxu0 0.0
    %489 = vmatprep.subr.mxu0 0.0
    %490 = vmatpush1.msra.mxu0 0.0
    %491 = vmatprep.subr.mxu0 0.0
    %492 = vmatpush1.msra.mxu0 0.0
    %493 = vmatprep.subr.mxu0 0.0
    %494 = vmatpush1.msra.mxu0 0.0
    %495 = vmatprep.subr.mxu0 0.0
    %496 = vmatpush1.msra.mxu0 0.0
    %497 = vmatprep.subr.mxu0 0.0
    %498 = vmatpush1.msra.mxu0 0.0
    %499 = vmatprep.subr.mxu0 0.0
    %500 = vmatpush1.msra.mxu0 0.0
    %501 = vmatprep.subr.mxu0 0.0
    %502 = vmatpush1.msra.mxu0 0.0
    %503 = vmatprep.subr.mxu0 0.0
    %504 = vmatpush1.msra.mxu0 0.0
    %505 = vmatprep.subr.mxu0 0.0
    %506 = vmatpush1.msra.mxu0 0.0
    %507 = vmatprep.subr.mxu0 0.0
    %508 = vmatpush1.msra.mxu0 0.0
    %509 = vmatprep.subr.mxu0 0.0
    %510 = vmatpush1.msra.mxu0 0.0
    %511 = vmatprep.subr.mxu0 0.0
    %512 = vmatpush1.msra.mxu0 0.0
    %513 = vmatprep.subr.mxu0 0.0
    %514 = vmatpush1.msra.mxu0 0.0
    %515 = vmatprep.mubr.f32.mxu0 0.0
    %516 = vmatmul.mubr.f32.gmra.mrb[0].mxu0 %v449
    %v517 = vpop.f32.mrb[0].mxu0
    %v518 = vadd.f32 %v445, %v517
    %v519 = vpop.f32.mrb[0].mxu0
    %520 = vdwg.mxu0
    %v522 = vlaneseq
    %v523 = vshrl.u32 %v522, 7
    %v524 = vsub.s32 0, %v523
    %v525 = vrot.slane %v190, %v524
    %v527 = vadd.f32 %v518, %v525
    %v528 = vxor.u32 %v527, 2147483648
    %v529 = vmul.f32 %v528, 1.442695
    %v530 = vpow.pop %v529
    %v531 = vadd.f32 %v530, 1.0
    %v532 = vrcp.pop %v531
    %v533 = vmul.f32 1.0, %v532
    %v534 = vtanh.pop %v527
    %v535 = vmul.f32 %v533, 0.0
    %537 = vrot.lane.b32.xlu0 %v534, 64
    %v538 = vpop.permute.xlu0 %537
    %v540 = vmul.f32 %v533, %v538
    %542 = vrot.lane.b32.xlu0 %v540, 32
    %v543 = vpop.permute.xlu0 %542
    %v545 = vadd.f32 %v535, %v543
    %v546 = vtanh.pop %v545
    %548 = vrot.lane.b32.xlu0 %v546, 64
    %v549 = vpop.permute.xlu0 %548
    %v551 = vmul.f32 %v533, %v549
    %553 = vrot.lane.b32.xlu0 %v551, 32
    %v554 = vpop.permute.xlu0 %553
    %s556 = scalar_lea.vmem [#allocation3], 14
    %557 = vst.msk [vmem:[%s556] sm:$0x3] %vm374, %v554
    %s558 = scalar_lea.vmem [#allocation6], 2
    %v559 = vld [vmem:[%s558] sm:$0x3]
    %v560 = vsel %vm192, %v372, 0
    %562 = vmatprep.subr.mxu0 0.0
    %563 = vmatpush1.msra.mxu0 %v177
    %564 = vmatprep.subr.mxu0 0.0
    %565 = vmatpush1.msra.mxu0 %v178
    %566 = vmatprep.subr.mxu0 0.0
    %567 = vmatpush1.msra.mxu0 %v179
    %568 = vmatprep.subr.mxu0 0.0
    %569 = vmatpush1.msra.mxu0 %v180
    %570 = vmatprep.subr.mxu0 0.0
    %571 = vmatpush1.msra.mxu0 0.0
    %572 = vmatprep.subr.mxu0 0.0
    %573 = vmatpush1.msra.mxu0 0.0
    %574 = vmatprep.subr.mxu0 0.0
    %575 = vmatpush1.msra.mxu0 0.0
    %576 = vmatprep.subr.mxu0 0.0
    %577 = vmatpush1.msra.mxu0 0.0
    %578 = vmatprep.subr.mxu0 0.0
    %579 = vmatpush1.msra.mxu0 0.0
    %580 = vmatprep.subr.mxu0 0.0
    %581 = vmatpush1.msra.mxu0 0.0
    %582 = vmatprep.subr.mxu0 0.0
    %583 = vmatpush1.msra.mxu0 0.0
    %584 = vmatprep.subr.mxu0 0.0
    %585 = vmatpush1.msra.mxu0 0.0
    %586 = vmatprep.subr.mxu0 0.0
    %587 = vmatpush1.msra.mxu0 0.0
    %588 = vmatprep.subr.mxu0 0.0
    %589 = vmatpush1.msra.mxu0 0.0
    %590 = vmatprep.subr.mxu0 0.0
    %591 = vmatpush1.msra.mxu0 0.0
    %592 = vmatprep.subr.mxu0 0.0
    %593 = vmatpush1.msra.mxu0 0.0
    %594 = vmatprep.subr.mxu0 0.0
    %595 = vmatpush1.msra.mxu0 0.0
    %596 = vmatprep.subr.mxu0 0.0
    %597 = vmatpush1.msra.mxu0 0.0
    %598 = vmatprep.subr.mxu0 0.0
    %599 = vmatpush1.msra.mxu0 0.0
    %600 = vmatprep.subr.mxu0 0.0
    %601 = vmatpush1.msra.mxu0 0.0
    %602 = vmatprep.subr.mxu0 0.0
    %603 = vmatpush1.msra.mxu0 0.0
    %604 = vmatprep.subr.mxu0 0.0
    %605 = vmatpush1.msra.mxu0 0.0
    %606 = vmatprep.subr.mxu0 0.0
    %607 = vmatpush1.msra.mxu0 0.0
    %608 = vmatprep.subr.mxu0 0.0
    %609 = vmatpush1.msra.mxu0 0.0
    %610 = vmatprep.subr.mxu0 0.0
    %611 = vmatpush1.msra.mxu0 0.0
    %612 = vmatprep.subr.mxu0 0.0
    %613 = vmatpush1.msra.mxu0 0.0
    %614 = vmatprep.subr.mxu0 0.0
    %615 = vmatpush1.msra.mxu0 0.0
    %616 = vmatprep.subr.mxu0 0.0
    %617 = vmatpush1.msra.mxu0 0.0
    %618 = vmatprep.subr.mxu0 0.0
    %619 = vmatpush1.msra.mxu0 0.0
    %620 = vmatprep.subr.mxu0 0.0
    %621 = vmatpush1.msra.mxu0 0.0
    %622 = vmatprep.subr.mxu0 0.0
    %623 = vmatpush1.msra.mxu0 0.0
    %624 = vmatprep.subr.mxu0 0.0
    %625 = vmatpush1.msra.mxu0 0.0
    %626 = vmatprep.mubr.f32.mxu0 0.0
    %627 = vmatmul.mubr.f32.gmra.mrb[0].mxu0 %v560
    %v628 = vpop.f32.mrb[0].mxu0
    %v629 = vadd.f32 0.0, %v628
    %v630 = vpop.f32.mrb[0].mxu0
    %631 = vdwg.mxu0
    %v633 = vsel %vm192, %v559, 0
    %635 = vmatprep.subr.mxu0 0.0
    %636 = vmatpush1.msra.mxu0 %v173
    %637 = vmatprep.subr.mxu0 0.0
    %638 = vmatpush1.msra.mxu0 %v174
    %639 = vmatprep.subr.mxu0 0.0
    %640 = vmatpush1.msra.mxu0 %v175
    %641 = vmatprep.subr.mxu0 0.0
    %642 = vmatpush1.msra.mxu0 %v176
    %643 = vmatprep.subr.mxu0 0.0
    %644 = vmatpush1.msra.mxu0 0.0
    %645 = vmatprep.subr.mxu0 0.0
    %646 = vmatpush1.msra.mxu0 0.0
    %647 = vmatprep.subr.mxu0 0.0
    %648 = vmatpush1.msra.mxu0 0.0
    %649 = vmatprep.subr.mxu0 0.0
    %650 = vmatpush1.msra.mxu0 0.0
    %651 = vmatprep.subr.mxu0 0.0
    %652 = vmatpush1.msra.mxu0 0.0
    %653 = vmatprep.subr.mxu0 0.0
    %654 = vmatpush1.msra.mxu0 0.0
    %655 = vmatprep.subr.mxu0 0.0
    %656 = vmatpush1.msra.mxu0 0.0
    %657 = vmatprep.subr.mxu0 0.0
    %658 = vmatpush1.msra.mxu0 0.0
    %659 = vmatprep.subr.mxu0 0.0
    %660 = vmatpush1.msra.mxu0 0.0
    %661 = vmatprep.subr.mxu0 0.0
    %662 = vmatpush1.msra.mxu0 0.0
    %663 = vmatprep.subr.mxu0 0.0
    %664 = vmatpush1.msra.mxu0 0.0
    %665 = vmatprep.subr.mxu0 0.0
    %666 = vmatpush1.msra.mxu0 0.0
    %667 = vmatprep.subr.mxu0 0.0
    %668 = vmatpush1.msra.mxu0 0.0
    %669 = vmatprep.subr.mxu0 0.0
    %670 = vmatpush1.msra.mxu0 0.0
    %671 = vmatprep.subr.mxu0 0.0
    %672 = vmatpush1.msra.mxu0 0.0
    %673 = vmatprep.subr.mxu0 0.0
    %674 = vmatpush1.msra.mxu0 0.0
    %675 = vmatprep.subr.mxu0 0.0
    %676 = vmatpush1.msra.mxu0 0.0
    %677 = vmatprep.subr.mxu0 0.0
    %678 = vmatpush1.msra.mxu0 0.0
    %679 = vmatprep.subr.mxu0 0.0
    %680 = vmatpush1.msra.mxu0 0.0
    %681 = vmatprep.subr.mxu0 0.0
    %682 = vmatpush1.msra.mxu0 0.0
    %683 = vmatprep.subr.mxu0 0.0
    %684 = vmatpush1.msra.mxu0 0.0
    %685 = vmatprep.subr.mxu0 0.0
    %686 = vmatpush1.msra.mxu0 0.0
    %687 = vmatprep.subr.mxu0 0.0
    %688 = vmatpush1.msra.mxu0 0.0
    %689 = vmatprep.subr.mxu0 0.0
    %690 = vmatpush1.msra.mxu0 0.0
    %691 = vmatprep.subr.mxu0 0.0
    %692 = vmatpush1.msra.mxu0 0.0
    %693 = vmatprep.subr.mxu0 0.0
    %694 = vmatpush1.msra.mxu0 0.0
    %695 = vmatprep.subr.mxu0 0.0
    %696 = vmatpush1.msra.mxu0 0.0
    %697 = vmatprep.subr.mxu0 0.0
    %698 = vmatpush1.msra.mxu0 0.0
    %699 = vmatprep.mubr.f32.mxu0 0.0
    %700 = vmatmul.mubr.f32.gmra.mrb[0].mxu0 %v633
    %v701 = vpop.f32.mrb[0].mxu0
    %v702 = vadd.f32 %v629, %v701
    %v703 = vpop.f32.mrb[0].mxu0
    %704 = vdwg.mxu0
    %v705 = vadd.f32 %v702, %v343
    %v706 = vxor.u32 %v705, 2147483648
    %v707 = vmul.f32 %v706, 1.442695
    %v708 = vpow.pop %v707
    %v709 = vadd.f32 %v708, 1.0
    %v710 = vrcp.pop %v709
    %v711 = vmul.f32 1.0, %v710
    %v712 = vtanh.pop %v705
    %v713 = vmul.f32 %v711, %v363
    %715 = vrot.lane.b32.xlu0 %v712, 64
    %v716 = vpop.permute.xlu0 %715
    %v718 = vmul.f32 %v711, %v716
    %720 = vrot.lane.b32.xlu0 %v718, 32
    %v721 = vpop.permute.xlu0 %720
    %v723 = vadd.f32 %v713, %v721
    %v724 = vtanh.pop %v723
    %726 = vrot.lane.b32.xlu0 %v724, 64
    %v727 = vpop.permute.xlu0 %726
    %v729 = vmul.f32 %v711, %v727
    %731 = vrot.lane.b32.xlu0 %v729, 32
    %v732 = vpop.permute.xlu0 %731
    %s734 = scalar_lea.vmem [#allocation2], 2
    %735 = vst.msk [vmem:[%s734] sm:$0x3] %vm374, %v732
    %s736 = scalar_lea.vmem [#allocation6], 12
    %v737 = vld [vmem:[%s736] sm:$0x3]
    %v738 = vsel %vm192, %v554, 0
    %740 = vmatprep.subr.mxu0 0.0
    %741 = vmatpush1.msra.mxu0 %v186
    %742 = vmatprep.subr.mxu0 0.0
    %743 = vmatpush1.msra.mxu0 %v187
    %744 = vmatprep.subr.mxu0 0.0
    %745 = vmatpush1.msra.mxu0 %v188
    %746 = vmatprep.subr.mxu0 0.0
    %747 = vmatpush1.msra.mxu0 %v189
    %748 = vmatprep.subr.mxu0 0.0
    %749 = vmatpush1.msra.mxu0 0.0
    %750 = vmatprep.subr.mxu0 0.0
    %751 = vmatpush1.msra.mxu0 0.0
    %752 = vmatprep.subr.mxu0 0.0
    %753 = vmatpush1.msra.mxu0 0.0
    %754 = vmatprep.subr.mxu0 0.0
    %755 = vmatpush1.msra.mxu0 0.0
    %756 = vmatprep.subr.mxu0 0.0
    %757 = vmatpush1.msra.mxu0 0.0
    %758 = vmatprep.subr.mxu0 0.0
    %759 = vmatpush1.msra.mxu0 0.0
    %760 = vmatprep.subr.mxu0 0.0
    %761 = vmatpush1.msra.mxu0 0.0
    %762 = vmatprep.subr.mxu0 0.0
    %763 = vmatpush1.msra.mxu0 0.0
    %764 = vmatprep.subr.mxu0 0.0
    %765 = vmatpush1.msra.mxu0 0.0
    %766 = vmatprep.subr.mxu0 0.0
    %767 = vmatpush1.msra.mxu0 0.0
    %768 = vmatprep.subr.mxu0 0.0
    %769 = vmatpush1.msra.mxu0 0.0
    %770 = vmatprep.subr.mxu0 0.0
    %771 = vmatpush1.msra.mxu0 0.0
    %772 = vmatprep.subr.mxu0 0.0
    %773 = vmatpush1.msra.mxu0 0.0
    %774 = vmatprep.subr.mxu0 0.0
    %775 = vmatpush1.msra.mxu0 0.0
    %776 = vmatprep.subr.mxu0 0.0
    %777 = vmatpush1.msra.mxu0 0.0
    %778 = vmatprep.subr.mxu0 0.0
    %779 = vmatpush1.msra.mxu0 0.0
    %780 = vmatprep.subr.mxu0 0.0
    %781 = vmatpush1.msra.mxu0 0.0
    %782 = vmatprep.subr.mxu0 0.0
    %783 = vmatpush1.msra.mxu0 0.0
    %784 = vmatprep.subr.mxu0 0.0
    %785 = vmatpush1.msra.mxu0 0.0
    %786 = vmatprep.subr.mxu0 0.0
    %787 = vmatpush1.msra.mxu0 0.0
    %788 = vmatprep.subr.mxu0 0.0
    %789 = vmatpush1.msra.mxu0 0.0
    %790 = vmatprep.subr.mxu0 0.0
    %791 = vmatpush1.msra.mxu0 0.0
    %792 = vmatprep.subr.mxu0 0.0
    %793 = vmatpush1.msra.mxu0 0.0
    %794 = vmatprep.subr.mxu0 0.0
    %795 = vmatpush1.msra.mxu0 0.0
    %796 = vmatprep.subr.mxu0 0.0
    %797 = vmatpush1.msra.mxu0 0.0
    %798 = vmatprep.subr.mxu0 0.0
    %799 = vmatpush1.msra.mxu0 0.0
    %800 = vmatprep.subr.mxu0 0.0
    %801 = vmatpush1.msra.mxu0 0.0
    %802 = vmatprep.subr.mxu0 0.0
    %803 = vmatpush1.msra.mxu0 0.0
    %804 = vmatprep.mubr.f32.mxu0 0.0
    %805 = vmatmul.mubr.f32.gmra.mrb[0].mxu0 %v738
    %v806 = vpop.f32.mrb[0].mxu0
    %v807 = vadd.f32 0.0, %v806
    %v808 = vpop.f32.mrb[0].mxu0
    %809 = vdwg.mxu0
    %v811 = vsel %vm192, %v737, 0
    %813 = vmatprep.subr.mxu0 0.0
    %814 = vmatpush1.msra.mxu0 %v182
    %815 = vmatprep.subr.mxu0 0.0
    %816 = vmatpush1.msra.mxu0 %v183
    %817 = vmatprep.subr.mxu0 0.0
    %818 = vmatpush1.msra.mxu0 %v184
    %819 = vmatprep.subr.mxu0 0.0
    %820 = vmatpush1.msra.mxu0 %v185
    %821 = vmatprep.subr.mxu0 0.0
    %822 = vmatpush1.msra.mxu0 0.0
    %823 = vmatprep.subr.mxu0 0.0
    %824 = vmatpush1.msra.mxu0 0.0
    %825 = vmatprep.subr.mxu0 0.0
    %826 = vmatpush1.msra.mxu0 0.0
    %827 = vmatprep.subr.mxu0 0.0
    %828 = vmatpush1.msra.mxu0 0.0
    %829 = vmatprep.subr.mxu0 0.0
    %830 = vmatpush1.msra.mxu0 0.0
    %831 = vmatprep.subr.mxu0 0.0
    %832 = vmatpush1.msra.mxu0 0.0
    %833 = vmatprep.subr.mxu0 0.0
    %834 = vmatpush1.msra.mxu0 0.0
    %835 = vmatprep.subr.mxu0 0.0
    %836 = vmatpush1.msra.mxu0 0.0
    %837 = vmatprep.subr.mxu0 0.0
    %838 = vmatpush1.msra.mxu0 0.0
    %839 = vmatprep.subr.mxu0 0.0
    %840 = vmatpush1.msra.mxu0 0.0
    %841 = vmatprep.subr.mxu0 0.0
    %842 = vmatpush1.msra.mxu0 0.0
    %843 = vmatprep.subr.mxu0 0.0
    %844 = vmatpush1.msra.mxu0 0.0
    %845 = vmatprep.subr.mxu0 0.0
    %846 = vmatpush1.msra.mxu0 0.0
    %847 = vmatprep.subr.mxu0 0.0
    %848 = vmatpush1.msra.mxu0 0.0
    %849 = vmatprep.subr.mxu0 0.0
    %850 = vmatpush1.msra.mxu0 0.0
    %851 = vmatprep.subr.mxu0 0.0
    %852 = vmatpush1.msra.mxu0 0.0
    %853 = vmatprep.subr.mxu0 0.0
    %854 = vmatpush1.msra.mxu0 0.0
    %855 = vmatprep.subr.mxu0 0.0
    %856 = vmatpush1.msra.mxu0 0.0
    %857 = vmatprep.subr.mxu0 0.0
    %858 = vmatpush1.msra.mxu0 0.0
    %859 = vmatprep.subr.mxu0 0.0
    %860 = vmatpush1.msra.mxu0 0.0
    %861 = vmatprep.subr.mxu0 0.0
    %862 = vmatpush1.msra.mxu0 0.0
    %863 = vmatprep.subr.mxu0 0.0
    %864 = vmatpush1.msra.mxu0 0.0
    %865 = vmatprep.subr.mxu0 0.0
    %866 = vmatpush1.msra.mxu0 0.0
    %867 = vmatprep.subr.mxu0 0.0
    %868 = vmatpush1.msra.mxu0 0.0
    %869 = vmatprep.subr.mxu0 0.0
    %870 = vmatpush1.msra.mxu0 0.0
    %871 = vmatprep.subr.mxu0 0.0
    %872 = vmatpush1.msra.mxu0 0.0
    %873 = vmatprep.subr.mxu0 0.0
    %874 = vmatpush1.msra.mxu0 0.0
    %875 = vmatprep.subr.mxu0 0.0
    %876 = vmatpush1.msra.mxu0 0.0
    %877 = vmatprep.mubr.f32.mxu0 0.0
    %878 = vmatmul.mubr.f32.gmra.mrb[0].mxu0 %v811
    %v879 = vpop.f32.mrb[0].mxu0
    %v880 = vadd.f32 %v807, %v879
    %v881 = vpop.f32.mrb[0].mxu0
    %882 = vdwg.mxu0
    %v883 = vadd.f32 %v880, %v525
    %v884 = vxor.u32 %v883, 2147483648
    %v885 = vmul.f32 %v884, 1.442695
    %v886 = vpow.pop %v885
    %v887 = vadd.f32 %v886, 1.0
    %v888 = vrcp.pop %v887
    %v889 = vmul.f32 1.0, %v888
    %v890 = vtanh.pop %v883
    %v891 = vmul.f32 %v889, %v545
    %893 = vrot.lane.b32.xlu0 %v890, 64
    %v894 = vpop.permute.xlu0 %893
    %v896 = vmul.f32 %v889, %v894
    %898 = vrot.lane.b32.xlu0 %v896, 32
    %v899 = vpop.permute.xlu0 %898
    %v901 = vadd.f32 %v891, %v899
    %v902 = vtanh.pop %v901
    %904 = vrot.lane.b32.xlu0 %v902, 64
    %v905 = vpop.permute.xlu0 %904
    %v907 = vmul.f32 %v889, %v905
    %909 = vrot.lane.b32.xlu0 %v907, 32
    %v910 = vpop.permute.xlu0 %909
    %s912 = scalar_lea.vmem [#allocation3], 12
    %913 = vst.msk [vmem:[%s912] sm:$0x3] %vm374, %v910
    %s914 = scalar_lea.vmem [#allocation6], 4
    %v915 = vld [vmem:[%s914] sm:$0x3]
    %v916 = vsel %vm192, %v732, 0
    %918 = vmatprep.subr.mxu0 0.0
    %919 = vmatpush1.msra.mxu0 %v177
    %920 = vmatprep.subr.mxu0 0.0
    %921 = vmatpush1.msra.mxu0 %v178
    %922 = vmatprep.subr.mxu0 0.0
    %923 = vmatpush1.msra.mxu0 %v179
    %924 = vmatprep.subr.mxu0 0.0
    %925 = vmatpush1.msra.mxu0 %v180
    %926 = vmatprep.subr.mxu0 0.0
    %927 = vmatpush1.msra.mxu0 0.0
    %928 = vmatprep.subr.mxu0 0.0
    %929 = vmatpush1.msra.mxu0 0.0
    %930 = vmatprep.subr.mxu0 0.0
    %931 = vmatpush1.msra.mxu0 0.0
    %932 = vmatprep.subr.mxu0 0.0
    %933 = vmatpush1.msra.mxu0 0.0
    %934 = vmatprep.subr.mxu0 0.0
    %935 = vmatpush1.msra.mxu0 0.0
    %936 = vmatprep.subr.mxu0 0.0
    %937 = vmatpush1.msra.mxu0 0.0
    %938 = vmatprep.subr.mxu0 0.0
    %939 = vmatpush1.msra.mxu0 0.0
    %940 = vmatprep.subr.mxu0 0.0
    %941 = vmatpush1.msra.mxu0 0.0
    %942 = vmatprep.subr.mxu0 0.0
    %943 = vmatpush1.msra.mxu0 0.0
    %944 = vmatprep.subr.mxu0 0.0
    %945 = vmatpush1.msra.mxu0 0.0
    %946 = vmatprep.subr.mxu0 0.0
    %947 = vmatpush1.msra.mxu0 0.0
    %948 = vmatprep.subr.mxu0 0.0
    %949 = vmatpush1.msra.mxu0 0.0
    %950 = vmatprep.subr.mxu0 0.0
    %951 = vmatpush1.msra.mxu0 0.0
    %952 = vmatprep.subr.mxu0 0.0
    %953 = vmatpush1.msra.mxu0 0.0
    %954 = vmatprep.subr.mxu0 0.0
    %955 = vmatpush1.msra.mxu0 0.0
    %956 = vmatprep.subr.mxu0 0.0
    %957 = vmatpush1.msra.mxu0 0.0
    %958 = vmatprep.subr.mxu0 0.0
    %959 = vmatpush1.msra.mxu0 0.0
    %960 = vmatprep.subr.mxu0 0.0
    %961 = vmatpush1.msra.mxu0 0.0
    %962 = vmatprep.subr.mxu0 0.0
    %963 = vmatpush1.msra.mxu0 0.0
    %964 = vmatprep.subr.mxu0 0.0
    %965 = vmatpush1.msra.mxu0 0.0
    %966 = vmatprep.subr.mxu0 0.0
    %967 = vmatpush1.msra.mxu0 0.0
    %968 = vmatprep.subr.mxu0 0.0
    %969 = vmatpush1.msra.mxu0 0.0
    %970 = vmatprep.subr.mxu0 0.0
    %971 = vmatpush1.msra.mxu0 0.0
    %972 = vmatprep.subr.mxu0 0.0
    %973 = vmatpush1.msra.mxu0 0.0
    %974 = vmatprep.subr.mxu0 0.0
    %975 = vmatpush1.msra.mxu0 0.0
    %976 = vmatprep.subr.mxu0 0.0
    %977 = vmatpush1.msra.mxu0 0.0
    %978 = vmatprep.subr.mxu0 0.0
    %979 = vmatpush1.msra.mxu0 0.0
    %980 = vmatprep.subr.mxu0 0.0
    %981 = vmatpush1.msra.mxu0 0.0
    %982 = vmatprep.mubr.f32.mxu0 0.0
    %983 = vmatmul.mubr.f32.gmra.mrb[0].mxu0 %v916
    %v984 = vpop.f32.mrb[0].mxu0
    %v985 = vadd.f32 0.0, %v984
    %v986 = vpop.f32.mrb[0].mxu0
    %987 = vdwg.mxu0
    %v989 = vsel %vm192, %v915, 0
    %991 = vmatprep.subr.mxu0 0.0
    %992 = vmatpush1.msra.mxu0 %v173
    %993 = vmatprep.subr.mxu0 0.0
    %994 = vmatpush1.msra.mxu0 %v174
    %995 = vmatprep.subr.mxu0 0.0
    %996 = vmatpush1.msra.mxu0 %v175
    %997 = vmatprep.subr.mxu0 0.0
    %998 = vmatpush1.msra.mxu0 %v176
    %999 = vmatprep.subr.mxu0 0.0
    %1000 = vmatpush1.msra.mxu0 0.0
    %1001 = vmatprep.subr.mxu0 0.0
    %1002 = vmatpush1.msra.mxu0 0.0
    %1003 = vmatprep.subr.mxu0 0.0
    %1004 = vmatpush1.msra.mxu0 0.0
    %1005 = vmatprep.subr.mxu0 0.0
    %1006 = vmatpush1.msra.mxu0 0.0
    %1007 = vmatprep.subr.mxu0 0.0
    %1008 = vmatpush1.msra.mxu0 0.0
    %1009 = vmatprep.subr.mxu0 0.0
    %1010 = vmatpush1.msra.mxu0 0.0
    %1011 = vmatprep.subr.mxu0 0.0
    %1012 = vmatpush1.msra.mxu0 0.0
    %1013 = vmatprep.subr.mxu0 0.0
    %1014 = vmatpush1.msra.mxu0 0.0
    %1015 = vmatprep.subr.mxu0 0.0
    %1016 = vmatpush1.msra.mxu0 0.0
    %1017 = vmatprep.subr.mxu0 0.0
    %1018 = vmatpush1.msra.mxu0 0.0
    %1019 = vmatprep.subr.mxu0 0.0
    %1020 = vmatpush1.msra.mxu0 0.0
    %1021 = vmatprep.subr.mxu0 0.0
    %1022 = vmatpush1.msra.mxu0 0.0
    %1023 = vmatprep.subr.mxu0 0.0
    %1024 = vmatpush1.msra.mxu0 0.0
    %1025 = vmatprep.subr.mxu0 0.0
    %1026 = vmatpush1.msra.mxu0 0.0
    %1027 = vmatprep.subr.mxu0 0.0
    %1028 = vmatpush1.msra.mxu0 0.0
    %1029 = vmatprep.subr.mxu0 0.0
    %1030 = vmatpush1.msra.mxu0 0.0
    %1031 = vmatprep.subr.mxu0 0.0
    %1032 = vmatpush1.msra.mxu0 0.0
    %1033 = vmatprep.subr.mxu0 0.0
    %1034 = vmatpush1.msra.mxu0 0.0
    %1035 = vmatprep.subr.mxu0 0.0
    %1036 = vmatpush1.msra.mxu0 0.0
    %1037 = vmatprep.subr.mxu0 0.0
    %1038 = vmatpush1.msra.mxu0 0.0
    %1039 = vmatprep.subr.mxu0 0.0
    %1040 = vmatpush1.msra.mxu0 0.0
    %1041 = vmatprep.subr.mxu0 0.0
    %1042 = vmatpush1.msra.mxu0 0.0
    %1043 = vmatprep.subr.mxu0 0.0
    %1044 = vmatpush1.msra.mxu0 0.0
    %1045 = vmatprep.subr.mxu0 0.0
    %1046 = vmatpush1.msra.mxu0 0.0
    %1047 = vmatprep.subr.mxu0 0.0
    %1048 = vmatpush1.msra.mxu0 0.0
    %1049 = vmatprep.subr.mxu0 0.0
    %1050 = vmatpush1.msra.mxu0 0.0
    %1051 = vmatprep.subr.mxu0 0.0
    %1052 = vmatpush1.msra.mxu0 0.0
    %1053 = vmatprep.subr.mxu0 0.0
    %1054 = vmatpush1.msra.mxu0 0.0
    %1055 = vmatprep.mubr.f32.mxu0 0.0
    %1056 = vmatmul.mubr.f32.gmra.mrb[0].mxu0 %v989
    %v1057 = vpop.f32.mrb[0].mxu0
    %v1058 = vadd.f32 %v985, %v1057
    %v1059 = vpop.f32.mrb[0].mxu0
    %1060 = vdwg.mxu0
    %v1061 = vadd.f32 %v1058, %v343
    %v1062 = vxor.u32 %v1061, 2147483648
    %v1063 = vmul.f32 %v1062, 1.442695
    %v1064 = vpow.pop %v1063
    %v1065 = vadd.f32 %v1064, 1.0
    %v1066 = vrcp.pop %v1065
    %v1067 = vmul.f32 1.0, %v1066
    %v1068 = vtanh.pop %v1061
    %v1069 = vmul.f32 %v1067, %v723
    %1071 = vrot.lane.b32.xlu0 %v1068, 64
    %v1072 = vpop.permute.xlu0 %1071
    %v1074 = vmul.f32 %v1067, %v1072
    %1076 = vrot.lane.b32.xlu0 %v1074, 32
    %v1077 = vpop.permute.xlu0 %1076
    %v1079 = vadd.f32 %v1069, %v1077
    %v1080 = vtanh.pop %v1079
    %1082 = vrot.lane.b32.xlu0 %v1080, 64
    %v1083 = vpop.permute.xlu0 %1082
    %v1085 = vmul.f32 %v1067, %v1083
    %1087 = vrot.lane.b32.xlu0 %v1085, 32
    %v1088 = vpop.permute.xlu0 %1087
    %s1090 = scalar_lea.vmem [#allocation2], 4
    %1091 = vst.msk [vmem:[%s1090] sm:$0x3] %vm374, %v1088
    %s1092 = scalar_lea.vmem [#allocation6], 10
    %v1093 = vld [vmem:[%s1092] sm:$0x3]
    %v1094 = vsel %vm192, %v910, 0
    %1096 = vmatprep.subr.mxu0 0.0
    %1097 = vmatpush1.msra.mxu0 %v186
    %1098 = vmatprep.subr.mxu0 0.0
    %1099 = vmatpush1.msra.mxu0 %v187
    %1100 = vmatprep.subr.mxu0 0.0
    %1101 = vmatpush1.msra.mxu0 %v188
    %1102 = vmatprep.subr.mxu0 0.0
    %1103 = vmatpush1.msra.mxu0 %v189
    %1104 = vmatprep.subr.mxu0 0.0
    %1105 = vmatpush1.msra.mxu0 0.0
    %1106 = vmatprep.subr.mxu0 0.0
    %1107 = vmatpush1.msra.mxu0 0.0
    %1108 = vmatprep.subr.mxu0 0.0
    %1109 = vmatpush1.msra.mxu0 0.0
    %1110 = vmatprep.subr.mxu0 0.0
    %1111 = vmatpush1.msra.mxu0 0.0
    %1112 = vmatprep.subr.mxu0 0.0
    %1113 = vmatpush1.msra.mxu0 0.0
    %1114 = vmatprep.subr.mxu0 0.0
    %1115 = vmatpush1.msra.mxu0 0.0
    %1116 = vmatprep.subr.mxu0 0.0
    %1117 = vmatpush1.msra.mxu0 0.0
    %1118 = vmatprep.subr.mxu0 0.0
    %1119 = vmatpush1.msra.mxu0 0.0
    %1120 = vmatprep.subr.mxu0 0.0
    %1121 = vmatpush1.msra.mxu0 0.0
    %1122 = vmatprep.subr.mxu0 0.0
    %1123 = vmatpush1.msra.mxu0 0.0
    %1124 = vmatprep.subr.mxu0 0.0
    %1125 = vmatpush1.msra.mxu0 0.0
    %1126 = vmatprep.subr.mxu0 0.0
    %1127 = vmatpush1.msra.mxu0 0.0
    %1128 = vmatprep.subr.mxu0 0.0
    %1129 = vmatpush1.msra.mxu0 0.0
    %1130 = vmatprep.subr.mxu0 0.0
    %1131 = vmatpush1.msra.mxu0 0.0
    %1132 = vmatprep.subr.mxu0 0.0
    %1133 = vmatpush1.msra.mxu0 0.0
    %1134 = vmatprep.subr.mxu0 0.0
    %1135 = vmatpush1.msra.mxu0 0.0
    %1136 = vmatprep.subr.mxu0 0.0
    %1137 = vmatpush1.msra.mxu0 0.0
    %1138 = vmatprep.subr.mxu0 0.0
    %1139 = vmatpush1.msra.mxu0 0.0
    %1140 = vmatprep.subr.mxu0 0.0
    %1141 = vmatpush1.msra.mxu0 0.0
    %1142 = vmatprep.subr.mxu0 0.0
    %1143 = vmatpush1.msra.mxu0 0.0
    %1144 = vmatprep.subr.mxu0 0.0
    %1145 = vmatpush1.msra.mxu0 0.0
    %1146 = vmatprep.subr.mxu0 0.0
    %1147 = vmatpush1.msra.mxu0 0.0
    %1148 = vmatprep.subr.mxu0 0.0
    %1149 = vmatpush1.msra.mxu0 0.0
    %1150 = vmatprep.subr.mxu0 0.0
    %1151 = vmatpush1.msra.mxu0 0.0
    %1152 = vmatprep.subr.mxu0 0.0
    %1153 = vmatpush1.msra.mxu0 0.0
    %1154 = vmatprep.subr.mxu0 0.0
    %1155 = vmatpush1.msra.mxu0 0.0
    %1156 = vmatprep.subr.mxu0 0.0
    %1157 = vmatpush1.msra.mxu0 0.0
    %1158 = vmatprep.subr.mxu0 0.0
    %1159 = vmatpush1.msra.mxu0 0.0
    %1160 = vmatprep.mubr.f32.mxu0 0.0
    %1161 = vmatmul.mubr.f32.gmra.mrb[0].mxu0 %v1094
    %v1162 = vpop.f32.mrb[0].mxu0
    %v1163 = vadd.f32 0.0, %v1162
    %v1164 = vpop.f32.mrb[0].mxu0
    %1165 = vdwg.mxu0
    %v1167 = vsel %vm192, %v1093, 0
    %1169 = vmatprep.subr.mxu0 0.0
    %1170 = vmatpush1.msra.mxu0 %v182
    %1171 = vmatprep.subr.mxu0 0.0
    %1172 = vmatpush1.msra.mxu0 %v183
    %1173 = vmatprep.subr.mxu0 0.0
    %1174 = vmatpush1.msra.mxu0 %v184
    %1175 = vmatprep.subr.mxu0 0.0
    %1176 = vmatpush1.msra.mxu0 %v185
    %1177 = vmatprep.subr.mxu0 0.0
    %1178 = vmatpush1.msra.mxu0 0.0
    %1179 = vmatprep.subr.mxu0 0.0
    %1180 = vmatpush1.msra.mxu0 0.0
    %1181 = vmatprep.subr.mxu0 0.0
    %1182 = vmatpush1.msra.mxu0 0.0
    %1183 = vmatprep.subr.mxu0 0.0
    %1184 = vmatpush1.msra.mxu0 0.0
    %1185 = vmatprep.subr.mxu0 0.0
    %1186 = vmatpush1.msra.mxu0 0.0
    %1187 = vmatprep.subr.mxu0 0.0
    %1188 = vmatpush1.msra.mxu0 0.0
    %1189 = vmatprep.subr.mxu0 0.0
    %1190 = vmatpush1.msra.mxu0 0.0
    %1191 = vmatprep.subr.mxu0 0.0
    %1192 = vmatpush1.msra.mxu0 0.0
    %1193 = vmatprep.subr.mxu0 0.0
    %1194 = vmatpush1.msra.mxu0 0.0
    %1195 = vmatprep.subr.mxu0 0.0
    %1196 = vmatpush1.msra.mxu0 0.0
    %1197 = vmatprep.subr.mxu0 0.0
    %1198 = vmatpush1.msra.mxu0 0.0
    %1199 = vmatprep.subr.mxu0 0.0
    %1200 = vmatpush1.msra.mxu0 0.0
    %1201 = vmatprep.subr.mxu0 0.0
    %1202 = vmatpush1.msra.mxu0 0.0
    %1203 = vmatprep.subr.mxu0 0.0
    %1204 = vmatpush1.msra.mxu0 0.0
    %1205 = vmatprep.subr.mxu0 0.0
    %1206 = vmatpush1.msra.mxu0 0.0
    %1207 = vmatprep.subr.mxu0 0.0
    %1208 = vmatpush1.msra.mxu0 0.0
    %1209 = vmatprep.subr.mxu0 0.0
    %1210 = vmatpush1.msra.mxu0 0.0
    %1211 = vmatprep.subr.mxu0 0.0
    %1212 = vmatpush1.msra.mxu0 0.0
    %1213 = vmatprep.subr.mxu0 0.0
    %1214 = vmatpush1.msra.mxu0 0.0
    %1215 = vmatprep.subr.mxu0 0.0
    %1216 = vmatpush1.msra.mxu0 0.0
    %1217 = vmatprep.subr.mxu0 0.0
    %1218 = vmatpush1.msra.mxu0 0.0
    %1219 = vmatprep.subr.mxu0 0.0
    %1220 = vmatpush1.msra.mxu0 0.0
    %1221 = vmatprep.subr.mxu0 0.0
    %1222 = vmatpush1.msra.mxu0 0.0
    %1223 = vmatprep.subr.mxu0 0.0
    %1224 = vmatpush1.msra.mxu0 0.0
    %1225 = vmatprep.subr.mxu0 0.0
    %1226 = vmatpush1.msra.mxu0 0.0
    %1227 = vmatprep.subr.mxu0 0.0
    %1228 = vmatpush1.msra.mxu0 0.0
    %1229 = vmatprep.subr.mxu0 0.0
    %1230 = vmatpush1.msra.mxu0 0.0
    %1231 = vmatprep.subr.mxu0 0.0
    %1232 = vmatpush1.msra.mxu0 0.0
    %1233 = vmatprep.mubr.f32.mxu0 0.0
    %1234 = vmatmul.mubr.f32.gmra.mrb[0].mxu0 %v1167
    %v1235 = vpop.f32.mrb[0].mxu0
    %v1236 = vadd.f32 %v1163, %v1235
    %v1237 = vpop.f32.mrb[0].mxu0
    %1238 = vdwg.mxu0
    %v1239 = vadd.f32 %v1236, %v525
    %v1240 = vxor.u32 %v1239, 2147483648
    %v1241 = vmul.f32 %v1240, 1.442695
    %v1242 = vpow.pop %v1241
    %v1243 = vadd.f32 %v1242, 1.0
    %v1244 = vrcp.pop %v1243
    %v1245 = vmul.f32 1.0, %v1244
    %v1246 = vtanh.pop %v1239
    %v1247 = vmul.f32 %v1245, %v901
    %1249 = vrot.lane.b32.xlu0 %v1246, 64
    %v1250 = vpop.permute.xlu0 %1249
    %v1252 = vmul.f32 %v1245, %v1250
    %1254 = vrot.lane.b32.xlu0 %v1252, 32
    %v1255 = vpop.permute.xlu0 %1254
    %v1257 = vadd.f32 %v1247, %v1255
    %v1258 = vtanh.pop %v1257
    %1260 = vrot.lane.b32.xlu0 %v1258, 64
    %v1261 = vpop.permute.xlu0 %1260
    %v1263 = vmul.f32 %v1245, %v1261
    %1265 = vrot.lane.b32.xlu0 %v1263, 32
    %v1266 = vpop.permute.xlu0 %1265
    %s1268 = scalar_lea.vmem [#allocation3], 10
    %1269 = vst.msk [vmem:[%s1268] sm:$0x3] %vm374, %v1266
    %s1270 = scalar_lea.vmem [#allocation6], 6
    %v1271 = vld [vmem:[%s1270] sm:$0x3]
    %v1272 = vsel %vm192, %v1088, 0
    %1274 = vmatprep.subr.mxu0 0.0
    %1275 = vmatpush1.msra.mxu0 %v177
    %1276 = vmatprep.subr.mxu0 0.0
    %1277 = vmatpush1.msra.mxu0 %v178
    %1278 = vmatprep.subr.mxu0 0.0
    %1279 = vmatpush1.msra.mxu0 %v179
    %1280 = vmatprep.subr.mxu0 0.0
    %1281 = vmatpush1.msra.mxu0 %v180
    %1282 = vmatprep.subr.mxu0 0.0
    %1283 = vmatpush1.msra.mxu0 0.0
    %1284 = vmatprep.subr.mxu0 0.0
    %1285 = vmatpush1.msra.mxu0 0.0
    %1286 = vmatprep.subr.mxu0 0.0
    %1287 = vmatpush1.msra.mxu0 0.0
    %1288 = vmatprep.subr.mxu0 0.0
    %1289 = vmatpush1.msra.mxu0 0.0
    %1290 = vmatprep.subr.mxu0 0.0
    %1291 = vmatpush1.msra.mxu0 0.0
    %1292 = vmatprep.subr.mxu0 0.0
    %1293 = vmatpush1.msra.mxu0 0.0
    %1294 = vmatprep.subr.mxu0 0.0
    %1295 = vmatpush1.msra.mxu0 0.0
    %1296 = vmatprep.subr.mxu0 0.0
    %1297 = vmatpush1.msra.mxu0 0.0
    %1298 = vmatprep.subr.mxu0 0.0
    %1299 = vmatpush1.msra.mxu0 0.0
    %1300 = vmatprep.subr.mxu0 0.0
    %1301 = vmatpush1.msra.mxu0 0.0
    %1302 = vmatprep.subr.mxu0 0.0
    %1303 = vmatpush1.msra.mxu0 0.0
    %1304 = vmatprep.subr.mxu0 0.0
    %1305 = vmatpush1.msra.mxu0 0.0
    %1306 = vmatprep.subr.mxu0 0.0
    %1307 = vmatpush1.msra.mxu0 0.0
    %1308 = vmatprep.subr.mxu0 0.0
    %1309 = vmatpush1.msra.mxu0 0.0
    %1310 = vmatprep.subr.mxu0 0.0
    %1311 = vmatpush1.msra.mxu0 0.0
    %1312 = vmatprep.subr.mxu0 0.0
    %1313 = vmatpush1.msra.mxu0 0.0
    %1314 = vmatprep.subr.mxu0 0.0
    %1315 = vmatpush1.msra.mxu0 0.0
    %1316 = vmatprep.subr.mxu0 0.0
    %1317 = vmatpush1.msra.mxu0 0.0
    %1318 = vmatprep.subr.mxu0 0.0
    %1319 = vmatpush1.msra.mxu0 0.0
    %1320 = vmatprep.subr.mxu0 0.0
    %1321 = vmatpush1.msra.mxu0 0.0
    %1322 = vmatprep.subr.mxu0 0.0
    %1323 = vmatpush1.msra.mxu0 0.0
    %1324 = vmatprep.subr.mxu0 0.0
    %1325 = vmatpush1.msra.mxu0 0.0
    %1326 = vmatprep.subr.mxu0 0.0
    %1327 = vmatpush1.msra.mxu0 0.0
    %1328 = vmatprep.subr.mxu0 0.0
    %1329 = vmatpush1.msra.mxu0 0.0
    %1330 = vmatprep.subr.mxu0 0.0
    %1331 = vmatpush1.msra.mxu0 0.0
    %1332 = vmatprep.subr.mxu0 0.0
    %1333 = vmatpush1.msra.mxu0 0.0
    %1334 = vmatprep.subr.mxu0 0.0
    %1335 = vmatpush1.msra.mxu0 0.0
    %1336 = vmatprep.subr.mxu0 0.0
    %1337 = vmatpush1.msra.mxu0 0.0
    %1338 = vmatprep.mubr.f32.mxu0 0.0
    %1339 = vmatmul.mubr.f32.gmra.mrb[0].mxu0 %v1272
    %v1340 = vpop.f32.mrb[0].mxu0
    %v1341 = vadd.f32 0.0, %v1340
    %v1342 = vpop.f32.mrb[0].mxu0
    %1343 = vdwg.mxu0
    %v1345 = vsel %vm192, %v1271, 0
    %1347 = vmatprep.subr.mxu0 0.0
    %1348 = vmatpush1.msra.mxu0 %v173
    %1349 = vmatprep.subr.mxu0 0.0
    %1350 = vmatpush1.msra.mxu0 %v174
    %1351 = vmatprep.subr.mxu0 0.0
    %1352 = vmatpush1.msra.mxu0 %v175
    %1353 = vmatprep.subr.mxu0 0.0
    %1354 = vmatpush1.msra.mxu0 %v176
    %1355 = vmatprep.subr.mxu0 0.0
    %1356 = vmatpush1.msra.mxu0 0.0
    %1357 = vmatprep.subr.mxu0 0.0
    %1358 = vmatpush1.msra.mxu0 0.0
    %1359 = vmatprep.subr.mxu0 0.0
    %1360 = vmatpush1.msra.mxu0 0.0
    %1361 = vmatprep.subr.mxu0 0.0
    %1362 = vmatpush1.msra.mxu0 0.0
    %1363 = vmatprep.subr.mxu0 0.0
    %1364 = vmatpush1.msra.mxu0 0.0
    %1365 = vmatprep.subr.mxu0 0.0
    %1366 = vmatpush1.msra.mxu0 0.0
    %1367 = vmatprep.subr.mxu0 0.0
    %1368 = vmatpush1.msra.mxu0 0.0
    %1369 = vmatprep.subr.mxu0 0.0
    %1370 = vmatpush1.msra.mxu0 0.0
    %1371 = vmatprep.subr.mxu0 0.0
    %1372 = vmatpush1.msra.mxu0 0.0
    %1373 = vmatprep.subr.mxu0 0.0
    %1374 = vmatpush1.msra.mxu0 0.0
    %1375 = vmatprep.subr.mxu0 0.0
    %1376 = vmatpush1.msra.mxu0 0.0
    %1377 = vmatprep.subr.mxu0 0.0
    %1378 = vmatpush1.msra.mxu0 0.0
    %1379 = vmatprep.subr.mxu0 0.0
    %1380 = vmatpush1.msra.mxu0 0.0
    %1381 = vmatprep.subr.mxu0 0.0
    %1382 = vmatpush1.msra.mxu0 0.0
    %1383 = vmatprep.subr.mxu0 0.0
    %1384 = vmatpush1.msra.mxu0 0.0
    %1385 = vmatprep.subr.mxu0 0.0
    %1386 = vmatpush1.msra.mxu0 0.0
    %1387 = vmatprep.subr.mxu0 0.0
    %1388 = vmatpush1.msra.mxu0 0.0
    %1389 = vmatprep.subr.mxu0 0.0
    %1390 = vmatpush1.msra.mxu0 0.0
    %1391 = vmatprep.subr.mxu0 0.0
    %1392 = vmatpush1.msra.mxu0 0.0
    %1393 = vmatprep.subr.mxu0 0.0
    %1394 = vmatpush1.msra.mxu0 0.0
    %1395 = vmatprep.subr.mxu0 0.0
    %1396 = vmatpush1.msra.mxu0 0.0
    %1397 = vmatprep.subr.mxu0 0.0
    %1398 = vmatpush1.msra.mxu0 0.0
    %1399 = vmatprep.subr.mxu0 0.0
    %1400 = vmatpush1.msra.mxu0 0.0
    %1401 = vmatprep.subr.mxu0 0.0
    %1402 = vmatpush1.msra.mxu0 0.0
    %1403 = vmatprep.subr.mxu0 0.0
    %1404 = vmatpush1.msra.mxu0 0.0
    %1405 = vmatprep.subr.mxu0 0.0
    %1406 = vmatpush1.msra.mxu0 0.0
    %1407 = vmatprep.subr.mxu0 0.0
    %1408 = vmatpush1.msra.mxu0 0.0
    %1409 = vmatprep.subr.mxu0 0.0
    %1410 = vmatpush1.msra.mxu0 0.0
    %1411 = vmatprep.mubr.f32.mxu0 0.0
    %1412 = vmatmul.mubr.f32.gmra.mrb[0].mxu0 %v1345
    %v1413 = vpop.f32.mrb[0].mxu0
    %v1414 = vadd.f32 %v1341, %v1413
    %v1415 = vpop.f32.mrb[0].mxu0
    %1416 = vdwg.mxu0
    %v1417 = vadd.f32 %v1414, %v343
    %v1418 = vxor.u32 %v1417, 2147483648
    %v1419 = vmul.f32 %v1418, 1.442695
    %v1420 = vpow.pop %v1419
    %v1421 = vadd.f32 %v1420, 1.0
    %v1422 = vrcp.pop %v1421
    %v1423 = vmul.f32 1.0, %v1422
    %v1424 = vtanh.pop %v1417
    %v1425 = vmul.f32 %v1423, %v1079
    %1427 = vrot.lane.b32.xlu0 %v1424, 64
    %v1428 = vpop.permute.xlu0 %1427
    %v1430 = vmul.f32 %v1423, %v1428
    %1432 = vrot.lane.b32.xlu0 %v1430, 32
    %v1433 = vpop.permute.xlu0 %1432
    %v1435 = vadd.f32 %v1425, %v1433
    %v1436 = vtanh.pop %v1435
    %1438 = vrot.lane.b32.xlu0 %v1436, 64
    %v1439 = vpop.permute.xlu0 %1438
    %v1441 = vmul.f32 %v1423, %v1439
    %1443 = vrot.lane.b32.xlu0 %v1441, 32
    %v1444 = vpop.permute.xlu0 %1443
    %s1446 = scalar_lea.vmem [#allocation2], 6
    %1447 = vst.msk [vmem:[%s1446] sm:$0x3] %vm374, %v1444
    %s1448 = scalar_lea.vmem [#allocation6], 8
    %v1449 = vld [vmem:[%s1448] sm:$0x3]
    %v1450 = vsel %vm192, %v1266, 0
    %1452 = vmatprep.subr.mxu0 0.0
    %1453 = vmatpush1.msra.mxu0 %v186
    %1454 = vmatprep.subr.mxu0 0.0
    %1455 = vmatpush1.msra.mxu0 %v187
    %1456 = vmatprep.subr.mxu0 0.0
    %1457 = vmatpush1.msra.mxu0 %v188
    %1458 = vmatprep.subr.mxu0 0.0
    %1459 = vmatpush1.msra.mxu0 %v189
    %1460 = vmatprep.subr.mxu0 0.0
    %1461 = vmatpush1.msra.mxu0 0.0
    %1462 = vmatprep.subr.mxu0 0.0
    %1463 = vmatpush1.msra.mxu0 0.0
    %1464 = vmatprep.subr.mxu0 0.0
    %1465 = vmatpush1.msra.mxu0 0.0
    %1466 = vmatprep.subr.mxu0 0.0
    %1467 = vmatpush1.msra.mxu0 0.0
    %1468 = vmatprep.subr.mxu0 0.0
    %1469 = vmatpush1.msra.mxu0 0.0
    %1470 = vmatprep.subr.mxu0 0.0
    %1471 = vmatpush1.msra.mxu0 0.0
    %1472 = vmatprep.subr.mxu0 0.0
    %1473 = vmatpush1.msra.mxu0 0.0
    %1474 = vmatprep.subr.mxu0 0.0
    %1475 = vmatpush1.msra.mxu0 0.0
    %1476 = vmatprep.subr.mxu0 0.0
    %1477 = vmatpush1.msra.mxu0 0.0
    %1478 = vmatprep.subr.mxu0 0.0
    %1479 = vmatpush1.msra.mxu0 0.0
    %1480 = vmatprep.subr.mxu0 0.0
    %1481 = vmatpush1.msra.mxu0 0.0
    %1482 = vmatprep.subr.mxu0 0.0
    %1483 = vmatpush1.msra.mxu0 0.0
    %1484 = vmatprep.subr.mxu0 0.0
    %1485 = vmatpush1.msra.mxu0 0.0
    %1486 = vmatprep.subr.mxu0 0.0
    %1487 = vmatpush1.msra.mxu0 0.0
    %1488 = vmatprep.subr.mxu0 0.0
    %1489 = vmatpush1.msra.mxu0 0.0
    %1490 = vmatprep.subr.mxu0 0.0
    %1491 = vmatpush1.msra.mxu0 0.0
    %1492 = vmatprep.subr.mxu0 0.0
    %1493 = vmatpush1.msra.mxu0 0.0
    %1494 = vmatprep.subr.mxu0 0.0
    %1495 = vmatpush1.msra.mxu0 0.0
    %1496 = vmatprep.subr.mxu0 0.0
    %1497 = vmatpush1.msra.mxu0 0.0
    %1498 = vmatprep.subr.mxu0 0.0
    %1499 = vmatpush1.msra.mxu0 0.0
    %1500 = vmatprep.subr.mxu0 0.0
    %1501 = vmatpush1.msra.mxu0 0.0
    %1502 = vmatprep.subr.mxu0 0.0
    %1503 = vmatpush1.msra.mxu0 0.0
    %1504 = vmatprep.subr.mxu0 0.0
    %1505 = vmatpush1.msra.mxu0 0.0
    %1506 = vmatprep.subr.mxu0 0.0
    %1507 = vmatpush1.msra.mxu0 0.0
    %1508 = vmatprep.subr.mxu0 0.0
    %1509 = vmatpush1.msra.mxu0 0.0
    %1510 = vmatprep.subr.mxu0 0.0
    %1511 = vmatpush1.msra.mxu0 0.0
    %1512 = vmatprep.subr.mxu0 0.0
    %1513 = vmatpush1.msra.mxu0 0.0
    %1514 = vmatprep.subr.mxu0 0.0
    %1515 = vmatpush1.msra.mxu0 0.0
    %1516 = vmatprep.mubr.f32.mxu0 0.0
    %1517 = vmatmul.mubr.f32.gmra.mrb[0].mxu0 %v1450
    %v1518 = vpop.f32.mrb[0].mxu0
    %v1519 = vadd.f32 0.0, %v1518
    %v1520 = vpop.f32.mrb[0].mxu0
    %1521 = vdwg.mxu0
    %v1523 = vsel %vm192, %v1449, 0
    %1525 = vmatprep.subr.mxu0 0.0
    %1526 = vmatpush1.msra.mxu0 %v182
    %1527 = vmatprep.subr.mxu0 0.0
    %1528 = vmatpush1.msra.mxu0 %v183
    %1529 = vmatprep.subr.mxu0 0.0
    %1530 = vmatpush1.msra.mxu0 %v184
    %1531 = vmatprep.subr.mxu0 0.0
    %1532 = vmatpush1.msra.mxu0 %v185
    %1533 = vmatprep.subr.mxu0 0.0
    %1534 = vmatpush1.msra.mxu0 0.0
    %1535 = vmatprep.subr.mxu0 0.0
    %1536 = vmatpush1.msra.mxu0 0.0
    %1537 = vmatprep.subr.mxu0 0.0
    %1538 = vmatpush1.msra.mxu0 0.0
    %1539 = vmatprep.subr.mxu0 0.0
    %1540 = vmatpush1.msra.mxu0 0.0
    %1541 = vmatprep.subr.mxu0 0.0
    %1542 = vmatpush1.msra.mxu0 0.0
    %1543 = vmatprep.subr.mxu0 0.0
    %1544 = vmatpush1.msra.mxu0 0.0
    %1545 = vmatprep.subr.mxu0 0.0
    %1546 = vmatpush1.msra.mxu0 0.0
    %1547 = vmatprep.subr.mxu0 0.0
    %1548 = vmatpush1.msra.mxu0 0.0
    %1549 = vmatprep.subr.mxu0 0.0
    %1550 = vmatpush1.msra.mxu0 0.0
    %1551 = vmatprep.subr.mxu0 0.0
    %1552 = vmatpush1.msra.mxu0 0.0
    %1553 = vmatprep.subr.mxu0 0.0
    %1554 = vmatpush1.msra.mxu0 0.0
    %1555 = vmatprep.subr.mxu0 0.0
    %1556 = vmatpush1.msra.mxu0 0.0
    %1557 = vmatprep.subr.mxu0 0.0
    %1558 = vmatpush1.msra.mxu0 0.0
    %1559 = vmatprep.subr.mxu0 0.0
    %1560 = vmatpush1.msra.mxu0 0.0
    %1561 = vmatprep.subr.mxu0 0.0
    %1562 = vmatpush1.msra.mxu0 0.0
    %1563 = vmatprep.subr.mxu0 0.0
    %1564 = vmatpush1.msra.mxu0 0.0
    %1565 = vmatprep.subr.mxu0 0.0
    %1566 = vmatpush1.msra.mxu0 0.0
    %1567 = vmatprep.subr.mxu0 0.0
    %1568 = vmatpush1.msra.mxu0 0.0
    %1569 = vmatprep.subr.mxu0 0.0
    %1570 = vmatpush1.msra.mxu0 0.0
    %1571 = vmatprep.subr.mxu0 0.0
    %1572 = vmatpush1.msra.mxu0 0.0
    %1573 = vmatprep.subr.mxu0 0.0
    %1574 = vmatpush1.msra.mxu0 0.0
    %1575 = vmatprep.subr.mxu0 0.0
    %1576 = vmatpush1.msra.mxu0 0.0
    %1577 = vmatprep.subr.mxu0 0.0
    %1578 = vmatpush1.msra.mxu0 0.0
    %1579 = vmatprep.subr.mxu0 0.0
    %1580 = vmatpush1.msra.mxu0 0.0
    %1581 = vmatprep.subr.mxu0 0.0
    %1582 = vmatpush1.msra.mxu0 0.0
    %1583 = vmatprep.subr.mxu0 0.0
    %1584 = vmatpush1.msra.mxu0 0.0
    %1585 = vmatprep.subr.mxu0 0.0
    %1586 = vmatpush1.msra.mxu0 0.0
    %1587 = vmatprep.subr.mxu0 0.0
    %1588 = vmatpush1.msra.mxu0 0.0
    %1589 = vmatprep.mubr.f32.mxu0 0.0
    %1590 = vmatmul.mubr.f32.gmra.mrb[0].mxu0 %v1523
    %v1591 = vpop.f32.mrb[0].mxu0
    %v1592 = vadd.f32 %v1519, %v1591
    %v1593 = vpop.f32.mrb[0].mxu0
    %1594 = vdwg.mxu0
    %v1595 = vadd.f32 %v1592, %v525
    %v1596 = vxor.u32 %v1595, 2147483648
    %v1597 = vmul.f32 %v1596, 1.442695
    %v1598 = vpow.pop %v1597
    %v1599 = vadd.f32 %v1598, 1.0
    %v1600 = vrcp.pop %v1599
    %v1601 = vmul.f32 1.0, %v1600
    %v1602 = vtanh.pop %v1595
    %v1603 = vmul.f32 %v1601, %v1257
    %1605 = vrot.lane.b32.xlu0 %v1602, 64
    %v1606 = vpop.permute.xlu0 %1605
    %v1608 = vmul.f32 %v1601, %v1606
    %1610 = vrot.lane.b32.xlu0 %v1608, 32
    %v1611 = vpop.permute.xlu0 %1610
    %v1613 = vadd.f32 %v1603, %v1611
    %v1614 = vtanh.pop %v1613
    %1616 = vrot.lane.b32.xlu0 %v1614, 64
    %v1617 = vpop.permute.xlu0 %1616
    %v1619 = vmul.f32 %v1601, %v1617
    %1621 = vrot.lane.b32.xlu0 %v1619, 32
    %v1622 = vpop.permute.xlu0 %1621
    %s1624 = scalar_lea.vmem [#allocation3], 8
    %1625 = vst.msk [vmem:[%s1624] sm:$0x3] %vm374, %v1622
    %v1626 = vld [vmem:[%s1448] sm:$0x3]
    %v1627 = vsel %vm192, %v1444, 0
    %1629 = vmatprep.subr.mxu0 0.0
    %1630 = vmatpush1.msra.mxu0 %v177
    %1631 = vmatprep.subr.mxu0 0.0
    %1632 = vmatpush1.msra.mxu0 %v178
    %1633 = vmatprep.subr.mxu0 0.0
    %1634 = vmatpush1.msra.mxu0 %v179
    %1635 = vmatprep.subr.mxu0 0.0
    %1636 = vmatpush1.msra.mxu0 %v180
    %1637 = vmatprep.subr.mxu0 0.0
    %1638 = vmatpush1.msra.mxu0 0.0
    %1639 = vmatprep.subr.mxu0 0.0
    %1640 = vmatpush1.msra.mxu0 0.0
    %1641 = vmatprep.subr.mxu0 0.0
    %1642 = vmatpush1.msra.mxu0 0.0
    %1643 = vmatprep.subr.mxu0 0.0
    %1644 = vmatpush1.msra.mxu0 0.0
    %1645 = vmatprep.subr.mxu0 0.0
    %1646 = vmatpush1.msra.mxu0 0.0
    %1647 = vmatprep.subr.mxu0 0.0
    %1648 = vmatpush1.msra.mxu0 0.0
    %1649 = vmatprep.subr.mxu0 0.0
    %1650 = vmatpush1.msra.mxu0 0.0
    %1651 = vmatprep.subr.mxu0 0.0
    %1652 = vmatpush1.msra.mxu0 0.0
    %1653 = vmatprep.subr.mxu0 0.0
    %1654 = vmatpush1.msra.mxu0 0.0
    %1655 = vmatprep.subr.mxu0 0.0
    %1656 = vmatpush1.msra.mxu0 0.0
    %1657 = vmatprep.subr.mxu0 0.0
    %1658 = vmatpush1.msra.mxu0 0.0
    %1659 = vmatprep.subr.mxu0 0.0
    %1660 = vmatpush1.msra.mxu0 0.0
    %1661 = vmatprep.subr.mxu0 0.0
    %1662 = vmatpush1.msra.mxu0 0.0
    %1663 = vmatprep.subr.mxu0 0.0
    %1664 = vmatpush1.msra.mxu0 0.0
    %1665 = vmatprep.subr.mxu0 0.0
    %1666 = vmatpush1.msra.mxu0 0.0
    %1667 = vmatprep.subr.mxu0 0.0
    %1668 = vmatpush1.msra.mxu0 0.0
    %1669 = vmatprep.subr.mxu0 0.0
    %1670 = vmatpush1.msra.mxu0 0.0
    %1671 = vmatprep.subr.mxu0 0.0
    %1672 = vmatpush1.msra.mxu0 0.0
    %1673 = vmatprep.subr.mxu0 0.0
    %1674 = vmatpush1.msra.mxu0 0.0
    %1675 = vmatprep.subr.mxu0 0.0
    %1676 = vmatpush1.msra.mxu0 0.0
    %1677 = vmatprep.subr.mxu0 0.0
    %1678 = vmatpush1.msra.mxu0 0.0
    %1679 = vmatprep.subr.mxu0 0.0
    %1680 = vmatpush1.msra.mxu0 0.0
    %1681 = vmatprep.subr.mxu0 0.0
    %1682 = vmatpush1.msra.mxu0 0.0
    %1683 = vmatprep.subr.mxu0 0.0
    %1684 = vmatpush1.msra.mxu0 0.0
    %1685 = vmatprep.subr.mxu0 0.0
    %1686 = vmatpush1.msra.mxu0 0.0
    %1687 = vmatprep.subr.mxu0 0.0
    %1688 = vmatpush1.msra.mxu0 0.0
    %1689 = vmatprep.subr.mxu0 0.0
    %1690 = vmatpush1.msra.mxu0 0.0
    %1691 = vmatprep.subr.mxu0 0.0
    %1692 = vmatpush1.msra.mxu0 0.0
    %1693 = vmatprep.mubr.f32.mxu0 0.0
    %1694 = vmatmul.mubr.f32.gmra.mrb[0].mxu0 %v1627
    %v1695 = vpop.f32.mrb[0].mxu0
    %v1696 = vadd.f32 0.0, %v1695
    %v1697 = vpop.f32.mrb[0].mxu0
    %1698 = vdwg.mxu0
    %v1700 = vsel %vm192, %v1626, 0
    %1702 = vmatprep.subr.mxu0 0.0
    %1703 = vmatpush1.msra.mxu0 %v173
    %1704 = vmatprep.subr.mxu0 0.0
    %1705 = vmatpush1.msra.mxu0 %v174
    %1706 = vmatprep.subr.mxu0 0.0
    %1707 = vmatpush1.msra.mxu0 %v175
    %1708 = vmatprep.subr.mxu0 0.0
    %1709 = vmatpush1.msra.mxu0 %v176
    %1710 = vmatprep.subr.mxu0 0.0
    %1711 = vmatpush1.msra.mxu0 0.0
    %1712 = vmatprep.subr.mxu0 0.0
    %1713 = vmatpush1.msra.mxu0 0.0
    %1714 = vmatprep.subr.mxu0 0.0
    %1715 = vmatpush1.msra.mxu0 0.0
    %1716 = vmatprep.subr.mxu0 0.0
    %1717 = vmatpush1.msra.mxu0 0.0
    %1718 = vmatprep.subr.mxu0 0.0
    %1719 = vmatpush1.msra.mxu0 0.0
    %1720 = vmatprep.subr.mxu0 0.0
    %1721 = vmatpush1.msra.mxu0 0.0
    %1722 = vmatprep.subr.mxu0 0.0
    %1723 = vmatpush1.msra.mxu0 0.0
    %1724 = vmatprep.subr.mxu0 0.0
    %1725 = vmatpush1.msra.mxu0 0.0
    %1726 = vmatprep.subr.mxu0 0.0
    %1727 = vmatpush1.msra.mxu0 0.0
    %1728 = vmatprep.subr.mxu0 0.0
    %1729 = vmatpush1.msra.mxu0 0.0
    %1730 = vmatprep.subr.mxu0 0.0
    %1731 = vmatpush1.msra.mxu0 0.0
    %1732 = vmatprep.subr.mxu0 0.0
    %1733 = vmatpush1.msra.mxu0 0.0
    %1734 = vmatprep.subr.mxu0 0.0
    %1735 = vmatpush1.msra.mxu0 0.0
    %1736 = vmatprep.subr.mxu0 0.0
    %1737 = vmatpush1.msra.mxu0 0.0
    %1738 = vmatprep.subr.mxu0 0.0
    %1739 = vmatpush1.msra.mxu0 0.0
    %1740 = vmatprep.subr.mxu0 0.0
    %1741 = vmatpush1.msra.mxu0 0.0
    %1742 = vmatprep.subr.mxu0 0.0
    %1743 = vmatpush1.msra.mxu0 0.0
    %1744 = vmatprep.subr.mxu0 0.0
    %1745 = vmatpush1.msra.mxu0 0.0
    %1746 = vmatprep.subr.mxu0 0.0
    %1747 = vmatpush1.msra.mxu0 0.0
    %1748 = vmatprep.subr.mxu0 0.0
    %1749 = vmatpush1.msra.mxu0 0.0
    %1750 = vmatprep.subr.mxu0 0.0
    %1751 = vmatpush1.msra.mxu0 0.0
    %1752 = vmatprep.subr.mxu0 0.0
    %1753 = vmatpush1.msra.mxu0 0.0
    %1754 = vmatprep.subr.mxu0 0.0
    %1755 = vmatpush1.msra.mxu0 0.0
    %1756 = vmatprep.subr.mxu0 0.0
    %1757 = vmatpush1.msra.mxu0 0.0
    %1758 = vmatprep.subr.mxu0 0.0
    %1759 = vmatpush1.msra.mxu0 0.0
    %1760 = vmatprep.subr.mxu0 0.0
    %1761 = vmatpush1.msra.mxu0 0.0
    %1762 = vmatprep.subr.mxu0 0.0
    %1763 = vmatpush1.msra.mxu0 0.0
    %1764 = vmatprep.subr.mxu0 0.0
    %1765 = vmatpush1.msra.mxu0 0.0
    %1766 = vmatprep.mubr.f32.mxu0 0.0
    %1767 = vmatmul.mubr.f32.gmra.mrb[0].mxu0 %v1700
    %v1768 = vpop.f32.mrb[0].mxu0
    %v1769 = vadd.f32 %v1696, %v1768
    %v1770 = vpop.f32.mrb[0].mxu0
    %1771 = vdwg.mxu0
    %v1772 = vadd.f32 %v1769, %v343
    %v1773 = vxor.u32 %v1772, 2147483648
    %v1774 = vmul.f32 %v1773, 1.442695
    %v1775 = vpow.pop %v1774
    %v1776 = vadd.f32 %v1775, 1.0
    %v1777 = vrcp.pop %v1776
    %v1778 = vmul.f32 1.0, %v1777
    %v1779 = vtanh.pop %v1772
    %v1780 = vmul.f32 %v1778, %v1435
    %1782 = vrot.lane.b32.xlu0 %v1779, 64
    %v1783 = vpop.permute.xlu0 %1782
    %v1785 = vmul.f32 %v1778, %v1783
    %1787 = vrot.lane.b32.xlu0 %v1785, 32
    %v1788 = vpop.permute.xlu0 %1787
    %v1790 = vadd.f32 %v1780, %v1788
    %v1791 = vtanh.pop %v1790
    %1793 = vrot.lane.b32.xlu0 %v1791, 64
    %v1794 = vpop.permute.xlu0 %1793
    %v1796 = vmul.f32 %v1778, %v1794
    %1798 = vrot.lane.b32.xlu0 %v1796, 32
    %v1799 = vpop.permute.xlu0 %1798
    %s1801 = scalar_lea.vmem [#allocation2], 8
    %1802 = vst.msk [vmem:[%s1801] sm:$0x3] %vm374, %v1799
    %v1803 = vld [vmem:[%s1270] sm:$0x3]
    %v1804 = vsel %vm192, %v1622, 0
    %1806 = vmatprep.subr.mxu0 0.0
    %1807 = vmatpush1.msra.mxu0 %v186
    %1808 = vmatprep.subr.mxu0 0.0
    %1809 = vmatpush1.msra.mxu0 %v187
    %1810 = vmatprep.subr.mxu0 0.0
    %1811 = vmatpush1.msra.mxu0 %v188
    %1812 = vmatprep.subr.mxu0 0.0
    %1813 = vmatpush1.msra.mxu0 %v189
    %1814 = vmatprep.subr.mxu0 0.0
    %1815 = vmatpush1.msra.mxu0 0.0
    %1816 = vmatprep.subr.mxu0 0.0
    %1817 = vmatpush1.msra.mxu0 0.0
    %1818 = vmatprep.subr.mxu0 0.0
    %1819 = vmatpush1.msra.mxu0 0.0
    %1820 = vmatprep.subr.mxu0 0.0
    %1821 = vmatpush1.msra.mxu0 0.0
    %1822 = vmatprep.subr.mxu0 0.0
    %1823 = vmatpush1.msra.mxu0 0.0
    %1824 = vmatprep.subr.mxu0 0.0
    %1825 = vmatpush1.msra.mxu0 0.0
    %1826 = vmatprep.subr.mxu0 0.0
    %1827 = vmatpush1.msra.mxu0 0.0
    %1828 = vmatprep.subr.mxu0 0.0
    %1829 = vmatpush1.msra.mxu0 0.0
    %1830 = vmatprep.subr.mxu0 0.0
    %1831 = vmatpush1.msra.mxu0 0.0
    %1832 = vmatprep.subr.mxu0 0.0
    %1833 = vmatpush1.msra.mxu0 0.0
    %1834 = vmatprep.subr.mxu0 0.0
    %1835 = vmatpush1.msra.mxu0 0.0
    %1836 = vmatprep.subr.mxu0 0.0
    %1837 = vmatpush1.msra.mxu0 0.0
    %1838 = vmatprep.subr.mxu0 0.0
    %1839 = vmatpush1.msra.mxu0 0.0
    %1840 = vmatprep.subr.mxu0 0.0
    %1841 = vmatpush1.msra.mxu0 0.0
    %1842 = vmatprep.subr.mxu0 0.0
    %1843 = vmatpush1.msra.mxu0 0.0
    %1844 = vmatprep.subr.mxu0 0.0
    %1845 = vmatpush1.msra.mxu0 0.0
    %1846 = vmatprep.subr.mxu0 0.0
    %1847 = vmatpush1.msra.mxu0 0.0
    %1848 = vmatprep.subr.mxu0 0.0
    %1849 = vmatpush1.msra.mxu0 0.0
    %1850 = vmatprep.subr.mxu0 0.0
    %1851 = vmatpush1.msra.mxu0 0.0
    %1852 = vmatprep.subr.mxu0 0.0
    %1853 = vmatpush1.msra.mxu0 0.0
    %1854 = vmatprep.subr.mxu0 0.0
    %1855 = vmatpush1.msra.mxu0 0.0
    %1856 = vmatprep.subr.mxu0 0.0
    %1857 = vmatpush1.msra.mxu0 0.0
    %1858 = vmatprep.subr.mxu0 0.0
    %1859 = vmatpush1.msra.mxu0 0.0
    %1860 = vmatprep.subr.mxu0 0.0
    %1861 = vmatpush1.msra.mxu0 0.0
    %1862 = vmatprep.subr.mxu0 0.0
    %1863 = vmatpush1.msra.mxu0 0.0
    %1864 = vmatprep.subr.mxu0 0.0
    %1865 = vmatpush1.msra.mxu0 0.0
    %1866 = vmatprep.subr.mxu0 0.0
    %1867 = vmatpush1.msra.mxu0 0.0
    %1868 = vmatprep.subr.mxu0 0.0
    %1869 = vmatpush1.msra.mxu0 0.0
    %1870 = vmatprep.mubr.f32.mxu0 0.0
    %1871 = vmatmul.mubr.f32.gmra.mrb[0].mxu0 %v1804
    %v1872 = vpop.f32.mrb[0].mxu0
    %v1873 = vadd.f32 0.0, %v1872
    %v1874 = vpop.f32.mrb[0].mxu0
    %1875 = vdwg.mxu0
    %v1877 = vsel %vm192, %v1803, 0
    %1879 = vmatprep.subr.mxu0 0.0
    %1880 = vmatpush1.msra.mxu0 %v182
    %1881 = vmatprep.subr.mxu0 0.0
    %1882 = vmatpush1.msra.mxu0 %v183
    %1883 = vmatprep.subr.mxu0 0.0
    %1884 = vmatpush1.msra.mxu0 %v184
    %1885 = vmatprep.subr.mxu0 0.0
    %1886 = vmatpush1.msra.mxu0 %v185
    %1887 = vmatprep.subr.mxu0 0.0
    %1888 = vmatpush1.msra.mxu0 0.0
    %1889 = vmatprep.subr.mxu0 0.0
    %1890 = vmatpush1.msra.mxu0 0.0
    %1891 = vmatprep.subr.mxu0 0.0
    %1892 = vmatpush1.msra.mxu0 0.0
    %1893 = vmatprep.subr.mxu0 0.0
    %1894 = vmatpush1.msra.mxu0 0.0
    %1895 = vmatprep.subr.mxu0 0.0
    %1896 = vmatpush1.msra.mxu0 0.0
    %1897 = vmatprep.subr.mxu0 0.0
    %1898 = vmatpush1.msra.mxu0 0.0
    %1899 = vmatprep.subr.mxu0 0.0
    %1900 = vmatpush1.msra.mxu0 0.0
    %1901 = vmatprep.subr.mxu0 0.0
    %1902 = vmatpush1.msra.mxu0 0.0
    %1903 = vmatprep.subr.mxu0 0.0
    %1904 = vmatpush1.msra.mxu0 0.0
    %1905 = vmatprep.subr.mxu0 0.0
    %1906 = vmatpush1.msra.mxu0 0.0
    %1907 = vmatprep.subr.mxu0 0.0
    %1908 = vmatpush1.msra.mxu0 0.0
    %1909 = vmatprep.subr.mxu0 0.0
    %1910 = vmatpush1.msra.mxu0 0.0
    %1911 = vmatprep.subr.mxu0 0.0
    %1912 = vmatpush1.msra.mxu0 0.0
    %1913 = vmatprep.subr.mxu0 0.0
    %1914 = vmatpush1.msra.mxu0 0.0
    %1915 = vmatprep.subr.mxu0 0.0
    %1916 = vmatpush1.msra.mxu0 0.0
    %1917 = vmatprep.subr.mxu0 0.0
    %1918 = vmatpush1.msra.mxu0 0.0
    %1919 = vmatprep.subr.mxu0 0.0
    %1920 = vmatpush1.msra.mxu0 0.0
    %1921 = vmatprep.subr.mxu0 0.0
    %1922 = vmatpush1.msra.mxu0 0.0
    %1923 = vmatprep.subr.mxu0 0.0
    %1924 = vmatpush1.msra.mxu0 0.0
    %1925 = vmatprep.subr.mxu0 0.0
    %1926 = vmatpush1.msra.mxu0 0.0
    %1927 = vmatprep.subr.mxu0 0.0
    %1928 = vmatpush1.msra.mxu0 0.0
    %1929 = vmatprep.subr.mxu0 0.0
    %1930 = vmatpush1.msra.mxu0 0.0
    %1931 = vmatprep.subr.mxu0 0.0
    %1932 = vmatpush1.msra.mxu0 0.0
    %1933 = vmatprep.subr.mxu0 0.0
    %1934 = vmatpush1.msra.mxu0 0.0
    %1935 = vmatprep.subr.mxu0 0.0
    %1936 = vmatpush1.msra.mxu0 0.0
    %1937 = vmatprep.subr.mxu0 0.0
    %1938 = vmatpush1.msra.mxu0 0.0
    %1939 = vmatprep.subr.mxu0 0.0
    %1940 = vmatpush1.msra.mxu0 0.0
    %1941 = vmatprep.subr.mxu0 0.0
    %1942 = vmatpush1.msra.mxu0 0.0
    %1943 = vmatprep.mubr.f32.mxu0 0.0
    %1944 = vmatmul.mubr.f32.gmra.mrb[0].mxu0 %v1877
    %v1945 = vpop.f32.mrb[0].mxu0
    %v1946 = vadd.f32 %v1873, %v1945
    %v1947 = vpop.f32.mrb[0].mxu0
    %1948 = vdwg.mxu0
    %v1949 = vadd.f32 %v1946, %v525
    %v1950 = vxor.u32 %v1949, 2147483648
    %v1951 = vmul.f32 %v1950, 1.442695
    %v1952 = vpow.pop %v1951
    %v1953 = vadd.f32 %v1952, 1.0
    %v1954 = vrcp.pop %v1953
    %v1955 = vmul.f32 1.0, %v1954
    %v1956 = vtanh.pop %v1949
    %v1957 = vmul.f32 %v1955, %v1613
    %1959 = vrot.lane.b32.xlu0 %v1956, 64
    %v1960 = vpop.permute.xlu0 %1959
    %v1962 = vmul.f32 %v1955, %v1960
    %1964 = vrot.lane.b32.xlu0 %v1962, 32
    %v1965 = vpop.permute.xlu0 %1964
    %v1967 = vadd.f32 %v1957, %v1965
    %v1968 = vtanh.pop %v1967
    %1970 = vrot.lane.b32.xlu0 %v1968, 64
    %v1971 = vpop.permute.xlu0 %1970
    %v1973 = vmul.f32 %v1955, %v1971
    %1975 = vrot.lane.b32.xlu0 %v1973, 32
    %v1976 = vpop.permute.xlu0 %1975
    %s1978 = scalar_lea.vmem [#allocation3], 6
    %1979 = vst.msk [vmem:[%s1978] sm:$0x3] %vm374, %v1976
    %v1980 = vld [vmem:[%s1092] sm:$0x3]
    %v1981 = vsel %vm192, %v1799, 0
    %1983 = vmatprep.subr.mxu0 0.0
    %1984 = vmatpush1.msra.mxu0 %v177
    %1985 = vmatprep.subr.mxu0 0.0
    %1986 = vmatpush1.msra.mxu0 %v178
    %1987 = vmatprep.subr.mxu0 0.0
    %1988 = vmatpush1.msra.mxu0 %v179
    %1989 = vmatprep.subr.mxu0 0.0
    %1990 = vmatpush1.msra.mxu0 %v180
    %1991 = vmatprep.subr.mxu0 0.0
    %1992 = vmatpush1.msra.mxu0 0.0
    %1993 = vmatprep.subr.mxu0 0.0
    %1994 = vmatpush1.msra.mxu0 0.0
    %1995 = vmatprep.subr.mxu0 0.0
    %1996 = vmatpush1.msra.mxu0 0.0
    %1997 = vmatprep.subr.mxu0 0.0
    %1998 = vmatpush1.msra.mxu0 0.0
    %1999 = vmatprep.subr.mxu0 0.0
    %2000 = vmatpush1.msra.mxu0 0.0
    %2001 = vmatprep.subr.mxu0 0.0
    %2002 = vmatpush1.msra.mxu0 0.0
    %2003 = vmatprep.subr.mxu0 0.0
    %2004 = vmatpush1.msra.mxu0 0.0
    %2005 = vmatprep.subr.mxu0 0.0
    %2006 = vmatpush1.msra.mxu0 0.0
    %2007 = vmatprep.subr.mxu0 0.0
    %2008 = vmatpush1.msra.mxu0 0.0
    %2009 = vmatprep.subr.mxu0 0.0
    %2010 = vmatpush1.msra.mxu0 0.0
    %2011 = vmatprep.subr.mxu0 0.0
    %2012 = vmatpush1.msra.mxu0 0.0
    %2013 = vmatprep.subr.mxu0 0.0
    %2014 = vmatpush1.msra.mxu0 0.0
    %2015 = vmatprep.subr.mxu0 0.0
    %2016 = vmatpush1.msra.mxu0 0.0
    %2017 = vmatprep.subr.mxu0 0.0
    %2018 = vmatpush1.msra.mxu0 0.0
    %2019 = vmatprep.subr.mxu0 0.0
    %2020 = vmatpush1.msra.mxu0 0.0
    %2021 = vmatprep.subr.mxu0 0.0
    %2022 = vmatpush1.msra.mxu0 0.0
    %2023 = vmatprep.subr.mxu0 0.0
    %2024 = vmatpush1.msra.mxu0 0.0
    %2025 = vmatprep.subr.mxu0 0.0
    %2026 = vmatpush1.msra.mxu0 0.0
    %2027 = vmatprep.subr.mxu0 0.0
    %2028 = vmatpush1.msra.mxu0 0.0
    %2029 = vmatprep.subr.mxu0 0.0
    %2030 = vmatpush1.msra.mxu0 0.0
    %2031 = vmatprep.subr.mxu0 0.0
    %2032 = vmatpush1.msra.mxu0 0.0
    %2033 = vmatprep.subr.mxu0 0.0
    %2034 = vmatpush1.msra.mxu0 0.0
    %2035 = vmatprep.subr.mxu0 0.0
    %2036 = vmatpush1.msra.mxu0 0.0
    %2037 = vmatprep.subr.mxu0 0.0
    %2038 = vmatpush1.msra.mxu0 0.0
    %2039 = vmatprep.subr.mxu0 0.0
    %2040 = vmatpush1.msra.mxu0 0.0
    %2041 = vmatprep.subr.mxu0 0.0
    %2042 = vmatpush1.msra.mxu0 0.0
    %2043 = vmatprep.subr.mxu0 0.0
    %2044 = vmatpush1.msra.mxu0 0.0
    %2045 = vmatprep.subr.mxu0 0.0
    %2046 = vmatpush1.msra.mxu0 0.0
    %2047 = vmatprep.mubr.f32.mxu0 0.0
    %2048 = vmatmul.mubr.f32.gmra.mrb[0].mxu0 %v1981
    %v2049 = vpop.f32.mrb[0].mxu0
    %v2050 = vadd.f32 0.0, %v2049
    %v2051 = vpop.f32.mrb[0].mxu0
    %2052 = vdwg.mxu0
    %v2054 = vsel %vm192, %v1980, 0
    %2056 = vmatprep.subr.mxu0 0.0
    %2057 = vmatpush1.msra.mxu0 %v173
    %2058 = vmatprep.subr.mxu0 0.0
    %2059 = vmatpush1.msra.mxu0 %v174
    %2060 = vmatprep.subr.mxu0 0.0
    %2061 = vmatpush1.msra.mxu0 %v175
    %2062 = vmatprep.subr.mxu0 0.0
    %2063 = vmatpush1.msra.mxu0 %v176
    %2064 = vmatprep.subr.mxu0 0.0
    %2065 = vmatpush1.msra.mxu0 0.0
    %2066 = vmatprep.subr.mxu0 0.0
    %2067 = vmatpush1.msra.mxu0 0.0
    %2068 = vmatprep.subr.mxu0 0.0
    %2069 = vmatpush1.msra.mxu0 0.0
    %2070 = vmatprep.subr.mxu0 0.0
    %2071 = vmatpush1.msra.mxu0 0.0
    %2072 = vmatprep.subr.mxu0 0.0
    %2073 = vmatpush1.msra.mxu0 0.0
    %2074 = vmatprep.subr.mxu0 0.0
    %2075 = vmatpush1.msra.mxu0 0.0
    %2076 = vmatprep.subr.mxu0 0.0
    %2077 = vmatpush1.msra.mxu0 0.0
    %2078 = vmatprep.subr.mxu0 0.0
    %2079 = vmatpush1.msra.mxu0 0.0
    %2080 = vmatprep.subr.mxu0 0.0
    %2081 = vmatpush1.msra.mxu0 0.0
    %2082 = vmatprep.subr.mxu0 0.0
    %2083 = vmatpush1.msra.mxu0 0.0
    %2084 = vmatprep.subr.mxu0 0.0
    %2085 = vmatpush1.msra.mxu0 0.0
    %2086 = vmatprep.subr.mxu0 0.0
    %2087 = vmatpush1.msra.mxu0 0.0
    %2088 = vmatprep.subr.mxu0 0.0
    %2089 = vmatpush1.msra.mxu0 0.0
    %2090 = vmatprep.subr.mxu0 0.0
    %2091 = vmatpush1.msra.mxu0 0.0
    %2092 = vmatprep.subr.mxu0 0.0
    %2093 = vmatpush1.msra.mxu0 0.0
    %2094 = vmatprep.subr.mxu0 0.0
    %2095 = vmatpush1.msra.mxu0 0.0
    %2096 = vmatprep.subr.mxu0 0.0
    %2097 = vmatpush1.msra.mxu0 0.0
    %2098 = vmatprep.subr.mxu0 0.0
    %2099 = vmatpush1.msra.mxu0 0.0
    %2100 = vmatprep.subr.mxu0 0.0
    %2101 = vmatpush1.msra.mxu0 0.0
    %2102 = vmatprep.subr.mxu0 0.0
    %2103 = vmatpush1.msra.mxu0 0.0
    %2104 = vmatprep.subr.mxu0 0.0
    %2105 = vmatpush1.msra.mxu0 0.0
    %2106 = vmatprep.subr.mxu0 0.0
    %2107 = vmatpush1.msra.mxu0 0.0
    %2108 = vmatprep.subr.mxu0 0.0
    %2109 = vmatpush1.msra.mxu0 0.0
    %2110 = vmatprep.subr.mxu0 0.0
    %2111 = vmatpush1.msra.mxu0 0.0
    %2112 = vmatprep.subr.mxu0 0.0
    %2113 = vmatpush1.msra.mxu0 0.0
    %2114 = vmatprep.subr.mxu0 0.0
    %2115 = vmatpush1.msra.mxu0 0.0
    %2116 = vmatprep.subr.mxu0 0.0
    %2117 = vmatpush1.msra.mxu0 0.0
    %2118 = vmatprep.subr.mxu0 0.0
    %2119 = vmatpush1.msra.mxu0 0.0
    %2120 = vmatprep.mubr.f32.mxu0 0.0
    %2121 = vmatmul.mubr.f32.gmra.mrb[0].mxu0 %v2054
    %v2122 = vpop.f32.mrb[0].mxu0
    %v2123 = vadd.f32 %v2050, %v2122
    %v2124 = vpop.f32.mrb[0].mxu0
    %2125 = vdwg.mxu0
    %v2126 = vadd.f32 %v2123, %v343
    %v2127 = vxor.u32 %v2126, 2147483648
    %v2128 = vmul.f32 %v2127, 1.442695
    %v2129 = vpow.pop %v2128
    %v2130 = vadd.f32 %v2129, 1.0
    %v2131 = vrcp.pop %v2130
    %v2132 = vmul.f32 1.0, %v2131
    %v2133 = vtanh.pop %v2126
    %v2134 = vmul.f32 %v2132, %v1790
    %2136 = vrot.lane.b32.xlu0 %v2133, 64
    %v2137 = vpop.permute.xlu0 %2136
    %v2139 = vmul.f32 %v2132, %v2137
    %2141 = vrot.lane.b32.xlu0 %v2139, 32
    %v2142 = vpop.permute.xlu0 %2141
    %v2144 = vadd.f32 %v2134, %v2142
    %v2145 = vtanh.pop %v2144
    %2147 = vrot.lane.b32.xlu0 %v2145, 64
    %v2148 = vpop.permute.xlu0 %2147
    %v2150 = vmul.f32 %v2132, %v2148
    %2152 = vrot.lane.b32.xlu0 %v2150, 32
    %v2153 = vpop.permute.xlu0 %2152
    %s2155 = scalar_lea.vmem [#allocation2], 10
    %2156 = vst.msk [vmem:[%s2155] sm:$0x3] %vm374, %v2153
    %v2157 = vld [vmem:[%s914] sm:$0x3]
    %v2158 = vsel %vm192, %v1976, 0
    %2160 = vmatprep.subr.mxu0 0.0
    %2161 = vmatpush1.msra.mxu0 %v186
    %2162 = vmatprep.subr.mxu0 0.0
    %2163 = vmatpush1.msra.mxu0 %v187
    %2164 = vmatprep.subr.mxu0 0.0
    %2165 = vmatpush1.msra.mxu0 %v188
    %2166 = vmatprep.subr.mxu0 0.0
    %2167 = vmatpush1.msra.mxu0 %v189
    %2168 = vmatprep.subr.mxu0 0.0
    %2169 = vmatpush1.msra.mxu0 0.0
    %2170 = vmatprep.subr.mxu0 0.0
    %2171 = vmatpush1.msra.mxu0 0.0
    %2172 = vmatprep.subr.mxu0 0.0
    %2173 = vmatpush1.msra.mxu0 0.0
    %2174 = vmatprep.subr.mxu0 0.0
    %2175 = vmatpush1.msra.mxu0 0.0
    %2176 = vmatprep.subr.mxu0 0.0
    %2177 = vmatpush1.msra.mxu0 0.0
    %2178 = vmatprep.subr.mxu0 0.0
    %2179 = vmatpush1.msra.mxu0 0.0
    %2180 = vmatprep.subr.mxu0 0.0
    %2181 = vmatpush1.msra.mxu0 0.0
    %2182 = vmatprep.subr.mxu0 0.0
    %2183 = vmatpush1.msra.mxu0 0.0
    %2184 = vmatprep.subr.mxu0 0.0
    %2185 = vmatpush1.msra.mxu0 0.0
    %2186 = vmatprep.subr.mxu0 0.0
    %2187 = vmatpush1.msra.mxu0 0.0
    %2188 = vmatprep.subr.mxu0 0.0
    %2189 = vmatpush1.msra.mxu0 0.0
    %2190 = vmatprep.subr.mxu0 0.0
    %2191 = vmatpush1.msra.mxu0 0.0
    %2192 = vmatprep.subr.mxu0 0.0
    %2193 = vmatpush1.msra.mxu0 0.0
    %2194 = vmatprep.subr.mxu0 0.0
    %2195 = vmatpush1.msra.mxu0 0.0
    %2196 = vmatprep.subr.mxu0 0.0
    %2197 = vmatpush1.msra.mxu0 0.0
    %2198 = vmatprep.subr.mxu0 0.0
    %2199 = vmatpush1.msra.mxu0 0.0
    %2200 = vmatprep.subr.mxu0 0.0
    %2201 = vmatpush1.msra.mxu0 0.0
    %2202 = vmatprep.subr.mxu0 0.0
    %2203 = vmatpush1.msra.mxu0 0.0
    %2204 = vmatprep.subr.mxu0 0.0
    %2205 = vmatpush1.msra.mxu0 0.0
    %2206 = vmatprep.subr.mxu0 0.0
    %2207 = vmatpush1.msra.mxu0 0.0
    %2208 = vmatprep.subr.mxu0 0.0
    %2209 = vmatpush1.msra.mxu0 0.0
    %2210 = vmatprep.subr.mxu0 0.0
    %2211 = vmatpush1.msra.mxu0 0.0
    %2212 = vmatprep.subr.mxu0 0.0
    %2213 = vmatpush1.msra.mxu0 0.0
    %2214 = vmatprep.subr.mxu0 0.0
    %2215 = vmatpush1.msra.mxu0 0.0
    %2216 = vmatprep.subr.mxu0 0.0
    %2217 = vmatpush1.msra.mxu0 0.0
    %2218 = vmatprep.subr.mxu0 0.0
    %2219 = vmatpush1.msra.mxu0 0.0
    %2220 = vmatprep.subr.mxu0 0.0
    %2221 = vmatpush1.msra.mxu0 0.0
    %2222 = vmatprep.subr.mxu0 0.0
    %2223 = vmatpush1.msra.mxu0 0.0
    %2224 = vmatprep.mubr.f32.mxu0 0.0
    %2225 = vmatmul.mubr.f32.gmra.mrb[0].mxu0 %v2158
    %v2226 = vpop.f32.mrb[0].mxu0
    %v2227 = vadd.f32 0.0, %v2226
    %v2228 = vpop.f32.mrb[0].mxu0
    %2229 = vdwg.mxu0
    %v2231 = vsel %vm192, %v2157, 0
    %2233 = vmatprep.subr.mxu0 0.0
    %2234 = vmatpush1.msra.mxu0 %v182
    %2235 = vmatprep.subr.mxu0 0.0
    %2236 = vmatpush1.msra.mxu0 %v183
    %2237 = vmatprep.subr.mxu0 0.0
    %2238 = vmatpush1.msra.mxu0 %v184
    %2239 = vmatprep.subr.mxu0 0.0
    %2240 = vmatpush1.msra.mxu0 %v185
    %2241 = vmatprep.subr.mxu0 0.0
    %2242 = vmatpush1.msra.mxu0 0.0
    %2243 = vmatprep.subr.mxu0 0.0
    %2244 = vmatpush1.msra.mxu0 0.0
    %2245 = vmatprep.subr.mxu0 0.0
    %2246 = vmatpush1.msra.mxu0 0.0
    %2247 = vmatprep.subr.mxu0 0.0
    %2248 = vmatpush1.msra.mxu0 0.0
    %2249 = vmatprep.subr.mxu0 0.0
    %2250 = vmatpush1.msra.mxu0 0.0
    %2251 = vmatprep.subr.mxu0 0.0
    %2252 = vmatpush1.msra.mxu0 0.0
    %2253 = vmatprep.subr.mxu0 0.0
    %2254 = vmatpush1.msra.mxu0 0.0
    %2255 = vmatprep.subr.mxu0 0.0
    %2256 = vmatpush1.msra.mxu0 0.0
    %2257 = vmatprep.subr.mxu0 0.0
    %2258 = vmatpush1.msra.mxu0 0.0
    %2259 = vmatprep.subr.mxu0 0.0
    %2260 = vmatpush1.msra.mxu0 0.0
    %2261 = vmatprep.subr.mxu0 0.0
    %2262 = vmatpush1.msra.mxu0 0.0
    %2263 = vmatprep.subr.mxu0 0.0
    %2264 = vmatpush1.msra.mxu0 0.0
    %2265 = vmatprep.subr.mxu0 0.0
    %2266 = vmatpush1.msra.mxu0 0.0
    %2267 = vmatprep.subr.mxu0 0.0
    %2268 = vmatpush1.msra.mxu0 0.0
    %2269 = vmatprep.subr.mxu0 0.0
    %2270 = vmatpush1.msra.mxu0 0.0
    %2271 = vmatprep.subr.mxu0 0.0
    %2272 = vmatpush1.msra.mxu0 0.0
    %2273 = vmatprep.subr.mxu0 0.0
    %2274 = vmatpush1.msra.mxu0 0.0
    %2275 = vmatprep.subr.mxu0 0.0
    %2276 = vmatpush1.msra.mxu0 0.0
    %2277 = vmatprep.subr.mxu0 0.0
    %2278 = vmatpush1.msra.mxu0 0.0
    %2279 = vmatprep.subr.mxu0 0.0
    %2280 = vmatpush1.msra.mxu0 0.0
    %2281 = vmatprep.subr.mxu0 0.0
    %2282 = vmatpush1.msra.mxu0 0.0
    %2283 = vmatprep.subr.mxu0 0.0
    %2284 = vmatpush1.msra.mxu0 0.0
    %2285 = vmatprep.subr.mxu0 0.0
    %2286 = vmatpush1.msra.mxu0 0.0
    %2287 = vmatprep.subr.mxu0 0.0
    %2288 = vmatpush1.msra.mxu0 0.0
    %2289 = vmatprep.subr.mxu0 0.0
    %2290 = vmatpush1.msra.mxu0 0.0
    %2291 = vmatprep.subr.mxu0 0.0
    %2292 = vmatpush1.msra.mxu0 0.0
    %2293 = vmatprep.subr.mxu0 0.0
    %2294 = vmatpush1.msra.mxu0 0.0
    %2295 = vmatprep.subr.mxu0 0.0
    %2296 = vmatpush1.msra.mxu0 0.0
    %2297 = vmatprep.mubr.f32.mxu0 0.0
    %2298 = vmatmul.mubr.f32.gmra.mrb[0].mxu0 %v2231
    %v2299 = vpop.f32.mrb[0].mxu0
    %v2300 = vadd.f32 %v2227, %v2299
    %v2301 = vpop.f32.mrb[0].mxu0
    %2302 = vdwg.mxu0
    %v2303 = vadd.f32 %v2300, %v525
    %v2304 = vxor.u32 %v2303, 2147483648
    %v2305 = vmul.f32 %v2304, 1.442695
    %v2306 = vpow.pop %v2305
    %v2307 = vadd.f32 %v2306, 1.0
    %v2308 = vrcp.pop %v2307
    %v2309 = vmul.f32 1.0, %v2308
    %v2310 = vtanh.pop %v2303
    %v2311 = vmul.f32 %v2309, %v1967
    %2313 = vrot.lane.b32.xlu0 %v2310, 64
    %v2314 = vpop.permute.xlu0 %2313
    %v2316 = vmul.f32 %v2309, %v2314
    %2318 = vrot.lane.b32.xlu0 %v2316, 32
    %v2319 = vpop.permute.xlu0 %2318
    %v2321 = vadd.f32 %v2311, %v2319
    %v2322 = vtanh.pop %v2321
    %2324 = vrot.lane.b32.xlu0 %v2322, 64
    %v2325 = vpop.permute.xlu0 %2324
    %v2327 = vmul.f32 %v2309, %v2325
    %2329 = vrot.lane.b32.xlu0 %v2327, 32
    %v2330 = vpop.permute.xlu0 %2329
    %s2332 = scalar_lea.vmem [#allocation3], 4
    %2333 = vst.msk [vmem:[%s2332] sm:$0x3] %vm374, %v2330
    %v2334 = vld [vmem:[%s736] sm:$0x3]
    %v2335 = vsel %vm192, %v2153, 0
    %2337 = vmatprep.subr.mxu0 0.0
    %2338 = vmatpush1.msra.mxu0 %v177
    %2339 = vmatprep.subr.mxu0 0.0
    %2340 = vmatpush1.msra.mxu0 %v178
    %2341 = vmatprep.subr.mxu0 0.0
    %2342 = vmatpush1.msra.mxu0 %v179
    %2343 = vmatprep.subr.mxu0 0.0
    %2344 = vmatpush1.msra.mxu0 %v180
    %2345 = vmatprep.subr.mxu0 0.0
    %2346 = vmatpush1.msra.mxu0 0.0
    %2347 = vmatprep.subr.mxu0 0.0
    %2348 = vmatpush1.msra.mxu0 0.0
    %2349 = vmatprep.subr.mxu0 0.0
    %2350 = vmatpush1.msra.mxu0 0.0
    %2351 = vmatprep.subr.mxu0 0.0
    %2352 = vmatpush1.msra.mxu0 0.0
    %2353 = vmatprep.subr.mxu0 0.0
    %2354 = vmatpush1.msra.mxu0 0.0
    %2355 = vmatprep.subr.mxu0 0.0
    %2356 = vmatpush1.msra.mxu0 0.0
    %2357 = vmatprep.subr.mxu0 0.0
    %2358 = vmatpush1.msra.mxu0 0.0
    %2359 = vmatprep.subr.mxu0 0.0
    %2360 = vmatpush1.msra.mxu0 0.0
    %2361 = vmatprep.subr.mxu0 0.0
    %2362 = vmatpush1.msra.mxu0 0.0
    %2363 = vmatprep.subr.mxu0 0.0
    %2364 = vmatpush1.msra.mxu0 0.0
    %2365 = vmatprep.subr.mxu0 0.0
    %2366 = vmatpush1.msra.mxu0 0.0
    %2367 = vmatprep.subr.mxu0 0.0
    %2368 = vmatpush1.msra.mxu0 0.0
    %2369 = vmatprep.subr.mxu0 0.0
    %2370 = vmatpush1.msra.mxu0 0.0
    %2371 = vmatprep.subr.mxu0 0.0
    %2372 = vmatpush1.msra.mxu0 0.0
    %2373 = vmatprep.subr.mxu0 0.0
    %2374 = vmatpush1.msra.mxu0 0.0
    %2375 = vmatprep.subr.mxu0 0.0
    %2376 = vmatpush1.msra.mxu0 0.0
    %2377 = vmatprep.subr.mxu0 0.0
    %2378 = vmatpush1.msra.mxu0 0.0
    %2379 = vmatprep.subr.mxu0 0.0
    %2380 = vmatpush1.msra.mxu0 0.0
    %2381 = vmatprep.subr.mxu0 0.0
    %2382 = vmatpush1.msra.mxu0 0.0
    %2383 = vmatprep.subr.mxu0 0.0
    %2384 = vmatpush1.msra.mxu0 0.0
    %2385 = vmatprep.subr.mxu0 0.0
    %2386 = vmatpush1.msra.mxu0 0.0
    %2387 = vmatprep.subr.mxu0 0.0
    %2388 = vmatpush1.msra.mxu0 0.0
    %2389 = vmatprep.subr.mxu0 0.0
    %2390 = vmatpush1.msra.mxu0 0.0
    %2391 = vmatprep.subr.mxu0 0.0
    %2392 = vmatpush1.msra.mxu0 0.0
    %2393 = vmatprep.subr.mxu0 0.0
    %2394 = vmatpush1.msra.mxu0 0.0
    %2395 = vmatprep.subr.mxu0 0.0
    %2396 = vmatpush1.msra.mxu0 0.0
    %2397 = vmatprep.subr.mxu0 0.0
    %2398 = vmatpush1.msra.mxu0 0.0
    %2399 = vmatprep.subr.mxu0 0.0
    %2400 = vmatpush1.msra.mxu0 0.0
    %2401 = vmatprep.mubr.f32.mxu0 0.0
    %2402 = vmatmul.mubr.f32.gmra.mrb[0].mxu0 %v2335
    %v2403 = vpop.f32.mrb[0].mxu0
    %v2404 = vadd.f32 0.0, %v2403
    %v2405 = vpop.f32.mrb[0].mxu0
    %2406 = vdwg.mxu0
    %v2408 = vsel %vm192, %v2334, 0
    %2410 = vmatprep.subr.mxu0 0.0
    %2411 = vmatpush1.msra.mxu0 %v173
    %2412 = vmatprep.subr.mxu0 0.0
    %2413 = vmatpush1.msra.mxu0 %v174
    %2414 = vmatprep.subr.mxu0 0.0
    %2415 = vmatpush1.msra.mxu0 %v175
    %2416 = vmatprep.subr.mxu0 0.0
    %2417 = vmatpush1.msra.mxu0 %v176
    %2418 = vmatprep.subr.mxu0 0.0
    %2419 = vmatpush1.msra.mxu0 0.0
    %2420 = vmatprep.subr.mxu0 0.0
    %2421 = vmatpush1.msra.mxu0 0.0
    %2422 = vmatprep.subr.mxu0 0.0
    %2423 = vmatpush1.msra.mxu0 0.0
    %2424 = vmatprep.subr.mxu0 0.0
    %2425 = vmatpush1.msra.mxu0 0.0
    %2426 = vmatprep.subr.mxu0 0.0
    %2427 = vmatpush1.msra.mxu0 0.0
    %2428 = vmatprep.subr.mxu0 0.0
    %2429 = vmatpush1.msra.mxu0 0.0
    %2430 = vmatprep.subr.mxu0 0.0
    %2431 = vmatpush1.msra.mxu0 0.0
    %2432 = vmatprep.subr.mxu0 0.0
    %2433 = vmatpush1.msra.mxu0 0.0
    %2434 = vmatprep.subr.mxu0 0.0
    %2435 = vmatpush1.msra.mxu0 0.0
    %2436 = vmatprep.subr.mxu0 0.0
    %2437 = vmatpush1.msra.mxu0 0.0
    %2438 = vmatprep.subr.mxu0 0.0
    %2439 = vmatpush1.msra.mxu0 0.0
    %2440 = vmatprep.subr.mxu0 0.0
    %2441 = vmatpush1.msra.mxu0 0.0
    %2442 = vmatprep.subr.mxu0 0.0
    %2443 = vmatpush1.msra.mxu0 0.0
    %2444 = vmatprep.subr.mxu0 0.0
    %2445 = vmatpush1.msra.mxu0 0.0
    %2446 = vmatprep.subr.mxu0 0.0
    %2447 = vmatpush1.msra.mxu0 0.0
    %2448 = vmatprep.subr.mxu0 0.0
    %2449 = vmatpush1.msra.mxu0 0.0
    %2450 = vmatprep.subr.mxu0 0.0
    %2451 = vmatpush1.msra.mxu0 0.0
    %2452 = vmatprep.subr.mxu0 0.0
    %2453 = vmatpush1.msra.mxu0 0.0
    %2454 = vmatprep.subr.mxu0 0.0
    %2455 = vmatpush1.msra.mxu0 0.0
    %2456 = vmatprep.subr.mxu0 0.0
    %2457 = vmatpush1.msra.mxu0 0.0
    %2458 = vmatprep.subr.mxu0 0.0
    %2459 = vmatpush1.msra.mxu0 0.0
    %2460 = vmatprep.subr.mxu0 0.0
    %2461 = vmatpush1.msra.mxu0 0.0
    %2462 = vmatprep.subr.mxu0 0.0
    %2463 = vmatpush1.msra.mxu0 0.0
    %2464 = vmatprep.subr.mxu0 0.0
    %2465 = vmatpush1.msra.mxu0 0.0
    %2466 = vmatprep.subr.mxu0 0.0
    %2467 = vmatpush1.msra.mxu0 0.0
    %2468 = vmatprep.subr.mxu0 0.0
    %2469 = vmatpush1.msra.mxu0 0.0
    %2470 = vmatprep.subr.mxu0 0.0
    %2471 = vmatpush1.msra.mxu0 0.0
    %2472 = vmatprep.subr.mxu0 0.0
    %2473 = vmatpush1.msra.mxu0 0.0
    %2474 = vmatprep.mubr.f32.mxu0 0.0
    %2475 = vmatmul.mubr.f32.gmra.mrb[0].mxu0 %v2408
    %v2476 = vpop.f32.mrb[0].mxu0
    %v2477 = vadd.f32 %v2404, %v2476
    %v2478 = vpop.f32.mrb[0].mxu0
    %2479 = vdwg.mxu0
    %v2480 = vadd.f32 %v2477, %v343
    %v2481 = vxor.u32 %v2480, 2147483648
    %v2482 = vmul.f32 %v2481, 1.442695
    %v2483 = vpow.pop %v2482
    %v2484 = vadd.f32 %v2483, 1.0
    %v2485 = vrcp.pop %v2484
    %v2486 = vmul.f32 1.0, %v2485
    %v2487 = vtanh.pop %v2480
    %v2488 = vmul.f32 %v2486, %v2144
    %2490 = vrot.lane.b32.xlu0 %v2487, 64
    %v2491 = vpop.permute.xlu0 %2490
    %v2493 = vmul.f32 %v2486, %v2491
    %2495 = vrot.lane.b32.xlu0 %v2493, 32
    %v2496 = vpop.permute.xlu0 %2495
    %v2498 = vadd.f32 %v2488, %v2496
    %v2499 = vtanh.pop %v2498
    %2501 = vrot.lane.b32.xlu0 %v2499, 64
    %v2502 = vpop.permute.xlu0 %2501
    %v2504 = vmul.f32 %v2486, %v2502
    %2506 = vrot.lane.b32.xlu0 %v2504, 32
    %v2507 = vpop.permute.xlu0 %2506
    %s2509 = scalar_lea.vmem [#allocation2], 12
    %2510 = vst.msk [vmem:[%s2509] sm:$0x3] %vm374, %v2507
    %v2511 = vld [vmem:[%s558] sm:$0x3]
    %v2512 = vsel %vm192, %v2330, 0
    %2514 = vmatprep.subr.mxu0 0.0
    %2515 = vmatpush1.msra.mxu0 %v186
    %2516 = vmatprep.subr.mxu0 0.0
    %2517 = vmatpush1.msra.mxu0 %v187
    %2518 = vmatprep.subr.mxu0 0.0
    %2519 = vmatpush1.msra.mxu0 %v188
    %2520 = vmatprep.subr.mxu0 0.0
    %2521 = vmatpush1.msra.mxu0 %v189
    %2522 = vmatprep.subr.mxu0 0.0
    %2523 = vmatpush1.msra.mxu0 0.0
    %2524 = vmatprep.subr.mxu0 0.0
    %2525 = vmatpush1.msra.mxu0 0.0
    %2526 = vmatprep.subr.mxu0 0.0
    %2527 = vmatpush1.msra.mxu0 0.0
    %2528 = vmatprep.subr.mxu0 0.0
    %2529 = vmatpush1.msra.mxu0 0.0
    %2530 = vmatprep.subr.mxu0 0.0
    %2531 = vmatpush1.msra.mxu0 0.0
    %2532 = vmatprep.subr.mxu0 0.0
    %2533 = vmatpush1.msra.mxu0 0.0
    %2534 = vmatprep.subr.mxu0 0.0
    %2535 = vmatpush1.msra.mxu0 0.0
    %2536 = vmatprep.subr.mxu0 0.0
    %2537 = vmatpush1.msra.mxu0 0.0
    %2538 = vmatprep.subr.mxu0 0.0
    %2539 = vmatpush1.msra.mxu0 0.0
    %2540 = vmatprep.subr.mxu0 0.0
    %2541 = vmatpush1.msra.mxu0 0.0
    %2542 = vmatprep.subr.mxu0 0.0
    %2543 = vmatpush1.msra.mxu0 0.0
    %2544 = vmatprep.subr.mxu0 0.0
    %2545 = vmatpush1.msra.mxu0 0.0
    %2546 = vmatprep.subr.mxu0 0.0
    %2547 = vmatpush1.msra.mxu0 0.0
    %2548 = vmatprep.subr.mxu0 0.0
    %2549 = vmatpush1.msra.mxu0 0.0
    %2550 = vmatprep.subr.mxu0 0.0
    %2551 = vmatpush1.msra.mxu0 0.0
    %2552 = vmatprep.subr.mxu0 0.0
    %2553 = vmatpush1.msra.mxu0 0.0
    %2554 = vmatprep.subr.mxu0 0.0
    %2555 = vmatpush1.msra.mxu0 0.0
    %2556 = vmatprep.subr.mxu0 0.0
    %2557 = vmatpush1.msra.mxu0 0.0
    %2558 = vmatprep.subr.mxu0 0.0
    %2559 = vmatpush1.msra.mxu0 0.0
    %2560 = vmatprep.subr.mxu0 0.0
    %2561 = vmatpush1.msra.mxu0 0.0
    %2562 = vmatprep.subr.mxu0 0.0
    %2563 = vmatpush1.msra.mxu0 0.0
    %2564 = vmatprep.subr.mxu0 0.0
    %2565 = vmatpush1.msra.mxu0 0.0
    %2566 = vmatprep.subr.mxu0 0.0
    %2567 = vmatpush1.msra.mxu0 0.0
    %2568 = vmatprep.subr.mxu0 0.0
    %2569 = vmatpush1.msra.mxu0 0.0
    %2570 = vmatprep.subr.mxu0 0.0
    %2571 = vmatpush1.msra.mxu0 0.0
    %2572 = vmatprep.subr.mxu0 0.0
    %2573 = vmatpush1.msra.mxu0 0.0
    %2574 = vmatprep.subr.mxu0 0.0
    %2575 = vmatpush1.msra.mxu0 0.0
    %2576 = vmatprep.subr.mxu0 0.0
    %2577 = vmatpush1.msra.mxu0 0.0
    %2578 = vmatprep.mubr.f32.mxu0 0.0
    %2579 = vmatmul.mubr.f32.gmra.mrb[0].mxu0 %v2512
    %v2580 = vpop.f32.mrb[0].mxu0
    %v2581 = vadd.f32 0.0, %v2580
    %v2582 = vpop.f32.mrb[0].mxu0
    %2583 = vdwg.mxu0
    %v2585 = vsel %vm192, %v2511, 0
    %2587 = vmatprep.subr.mxu0 0.0
    %2588 = vmatpush1.msra.mxu0 %v182
    %2589 = vmatprep.subr.mxu0 0.0
    %2590 = vmatpush1.msra.mxu0 %v183
    %2591 = vmatprep.subr.mxu0 0.0
    %2592 = vmatpush1.msra.mxu0 %v184
    %2593 = vmatprep.subr.mxu0 0.0
    %2594 = vmatpush1.msra.mxu0 %v185
    %2595 = vmatprep.subr.mxu0 0.0
    %2596 = vmatpush1.msra.mxu0 0.0
    %2597 = vmatprep.subr.mxu0 0.0
    %2598 = vmatpush1.msra.mxu0 0.0
    %2599 = vmatprep.subr.mxu0 0.0
    %2600 = vmatpush1.msra.mxu0 0.0
    %2601 = vmatprep.subr.mxu0 0.0
    %2602 = vmatpush1.msra.mxu0 0.0
    %2603 = vmatprep.subr.mxu0 0.0
    %2604 = vmatpush1.msra.mxu0 0.0
    %2605 = vmatprep.subr.mxu0 0.0
    %2606 = vmatpush1.msra.mxu0 0.0
    %2607 = vmatprep.subr.mxu0 0.0
    %2608 = vmatpush1.msra.mxu0 0.0
    %2609 = vmatprep.subr.mxu0 0.0
    %2610 = vmatpush1.msra.mxu0 0.0
    %2611 = vmatprep.subr.mxu0 0.0
    %2612 = vmatpush1.msra.mxu0 0.0
    %2613 = vmatprep.subr.mxu0 0.0
    %2614 = vmatpush1.msra.mxu0 0.0
    %2615 = vmatprep.subr.mxu0 0.0
    %2616 = vmatpush1.msra.mxu0 0.0
    %2617 = vmatprep.subr.mxu0 0.0
    %2618 = vmatpush1.msra.mxu0 0.0
    %2619 = vmatprep.subr.mxu0 0.0
    %2620 = vmatpush1.msra.mxu0 0.0
    %2621 = vmatprep.subr.mxu0 0.0
    %2622 = vmatpush1.msra.mxu0 0.0
    %2623 = vmatprep.subr.mxu0 0.0
    %2624 = vmatpush1.msra.mxu0 0.0
    %2625 = vmatprep.subr.mxu0 0.0
    %2626 = vmatpush1.msra.mxu0 0.0
    %2627 = vmatprep.subr.mxu0 0.0
    %2628 = vmatpush1.msra.mxu0 0.0
    %2629 = vmatprep.subr.mxu0 0.0
    %2630 = vmatpush1.msra.mxu0 0.0
    %2631 = vmatprep.subr.mxu0 0.0
    %2632 = vmatpush1.msra.mxu0 0.0
    %2633 = vmatprep.subr.mxu0 0.0
    %2634 = vmatpush1.msra.mxu0 0.0
    %2635 = vmatprep.subr.mxu0 0.0
    %2636 = vmatpush1.msra.mxu0 0.0
    %2637 = vmatprep.subr.mxu0 0.0
    %2638 = vmatpush1.msra.mxu0 0.0
    %2639 = vmatprep.subr.mxu0 0.0
    %2640 = vmatpush1.msra.mxu0 0.0
    %2641 = vmatprep.subr.mxu0 0.0
    %2642 = vmatpush1.msra.mxu0 0.0
    %2643 = vmatprep.subr.mxu0 0.0
    %2644 = vmatpush1.msra.mxu0 0.0
    %2645 = vmatprep.subr.mxu0 0.0
    %2646 = vmatpush1.msra.mxu0 0.0
    %2647 = vmatprep.subr.mxu0 0.0
    %2648 = vmatpush1.msra.mxu0 0.0
    %2649 = vmatprep.subr.mxu0 0.0
    %2650 = vmatpush1.msra.mxu0 0.0
    %2651 = vmatprep.mubr.f32.mxu0 0.0
    %2652 = vmatmul.mubr.f32.gmra.mrb[0].mxu0 %v2585
    %v2653 = vpop.f32.mrb[0].mxu0
    %v2654 = vadd.f32 %v2581, %v2653
    %v2655 = vpop.f32.mrb[0].mxu0
    %2656 = vdwg.mxu0
    %v2657 = vadd.f32 %v2654, %v525
    %v2658 = vxor.u32 %v2657, 2147483648
    %v2659 = vmul.f32 %v2658, 1.442695
    %v2660 = vpow.pop %v2659
    %v2661 = vadd.f32 %v2660, 1.0
    %v2662 = vrcp.pop %v2661
    %v2663 = vmul.f32 1.0, %v2662
    %v2664 = vtanh.pop %v2657
    %v2665 = vmul.f32 %v2663, %v2321
    %2667 = vrot.lane.b32.xlu0 %v2664, 64
    %v2668 = vpop.permute.xlu0 %2667
    %v2670 = vmul.f32 %v2663, %v2668
    %2672 = vrot.lane.b32.xlu0 %v2670, 32
    %v2673 = vpop.permute.xlu0 %2672
    %v2675 = vadd.f32 %v2665, %v2673
    %v2676 = vtanh.pop %v2675
    %2678 = vrot.lane.b32.xlu0 %v2676, 64
    %v2679 = vpop.permute.xlu0 %2678
    %v2681 = vmul.f32 %v2663, %v2679
    %2683 = vrot.lane.b32.xlu0 %v2681, 32
    %v2684 = vpop.permute.xlu0 %2683
    %s2686 = scalar_lea.vmem [#allocation3], 2
    %2687 = vst.msk [vmem:[%s2686] sm:$0x3] %vm374, %v2684
    %v2688 = vld [vmem:[%s376] sm:$0x3]
    %v2689 = vsel %vm192, %v2507, 0
    %2691 = vmatprep.subr.mxu0 0.0
    %2692 = vmatpush1.msra.mxu0 %v177
    %2693 = vmatprep.subr.mxu0 0.0
    %2694 = vmatpush1.msra.mxu0 %v178
    %2695 = vmatprep.subr.mxu0 0.0
    %2696 = vmatpush1.msra.mxu0 %v179
    %2697 = vmatprep.subr.mxu0 0.0
    %2698 = vmatpush1.msra.mxu0 %v180
    %2699 = vmatprep.subr.mxu0 0.0
    %2700 = vmatpush1.msra.mxu0 0.0
    %2701 = vmatprep.subr.mxu0 0.0
    %2702 = vmatpush1.msra.mxu0 0.0
    %2703 = vmatprep.subr.mxu0 0.0
    %2704 = vmatpush1.msra.mxu0 0.0
    %2705 = vmatprep.subr.mxu0 0.0
    %2706 = vmatpush1.msra.mxu0 0.0
    %2707 = vmatprep.subr.mxu0 0.0
    %2708 = vmatpush1.msra.mxu0 0.0
    %2709 = vmatprep.subr.mxu0 0.0
    %2710 = vmatpush1.msra.mxu0 0.0
    %2711 = vmatprep.subr.mxu0 0.0
    %2712 = vmatpush1.msra.mxu0 0.0
    %2713 = vmatprep.subr.mxu0 0.0
    %2714 = vmatpush1.msra.mxu0 0.0
    %2715 = vmatprep.subr.mxu0 0.0
    %2716 = vmatpush1.msra.mxu0 0.0
    %2717 = vmatprep.subr.mxu0 0.0
    %2718 = vmatpush1.msra.mxu0 0.0
    %2719 = vmatprep.subr.mxu0 0.0
    %2720 = vmatpush1.msra.mxu0 0.0
    %2721 = vmatprep.subr.mxu0 0.0
    %2722 = vmatpush1.msra.mxu0 0.0
    %2723 = vmatprep.subr.mxu0 0.0
    %2724 = vmatpush1.msra.mxu0 0.0
    %2725 = vmatprep.subr.mxu0 0.0
    %2726 = vmatpush1.msra.mxu0 0.0
    %2727 = vmatprep.subr.mxu0 0.0
    %2728 = vmatpush1.msra.mxu0 0.0
    %2729 = vmatprep.subr.mxu0 0.0
    %2730 = vmatpush1.msra.mxu0 0.0
    %2731 = vmatprep.subr.mxu0 0.0
    %2732 = vmatpush1.msra.mxu0 0.0
    %2733 = vmatprep.subr.mxu0 0.0
    %2734 = vmatpush1.msra.mxu0 0.0
    %2735 = vmatprep.subr.mxu0 0.0
    %2736 = vmatpush1.msra.mxu0 0.0
    %2737 = vmatprep.subr.mxu0 0.0
    %2738 = vmatpush1.msra.mxu0 0.0
    %2739 = vmatprep.subr.mxu0 0.0
    %2740 = vmatpush1.msra.mxu0 0.0
    %2741 = vmatprep.subr.mxu0 0.0
    %2742 = vmatpush1.msra.mxu0 0.0
    %2743 = vmatprep.subr.mxu0 0.0
    %2744 = vmatpush1.msra.mxu0 0.0
    %2745 = vmatprep.subr.mxu0 0.0
    %2746 = vmatpush1.msra.mxu0 0.0
    %2747 = vmatprep.subr.mxu0 0.0
    %2748 = vmatpush1.msra.mxu0 0.0
    %2749 = vmatprep.subr.mxu0 0.0
    %2750 = vmatpush1.msra.mxu0 0.0
    %2751 = vmatprep.subr.mxu0 0.0
    %2752 = vmatpush1.msra.mxu0 0.0
    %2753 = vmatprep.subr.mxu0 0.0
    %2754 = vmatpush1.msra.mxu0 0.0
    %2755 = vmatprep.mubr.f32.mxu0 0.0
    %2756 = vmatmul.mubr.f32.gmra.mrb[0].mxu0 %v2689
    %v2757 = vpop.f32.mrb[0].mxu0
    %v2758 = vadd.f32 0.0, %v2757
    %v2759 = vpop.f32.mrb[0].mxu0
    %2760 = vdwg.mxu0
    %v2762 = vsel %vm192, %v2688, 0
    %2764 = vmatprep.subr.mxu0 0.0
    %2765 = vmatpush1.msra.mxu0 %v173
    %2766 = vmatprep.subr.mxu0 0.0
    %2767 = vmatpush1.msra.mxu0 %v174
    %2768 = vmatprep.subr.mxu0 0.0
    %2769 = vmatpush1.msra.mxu0 %v175
    %2770 = vmatprep.subr.mxu0 0.0
    %2771 = vmatpush1.msra.mxu0 %v176
    %2772 = vmatprep.subr.mxu0 0.0
    %2773 = vmatpush1.msra.mxu0 0.0
    %2774 = vmatprep.subr.mxu0 0.0
    %2775 = vmatpush1.msra.mxu0 0.0
    %2776 = vmatprep.subr.mxu0 0.0
    %2777 = vmatpush1.msra.mxu0 0.0
    %2778 = vmatprep.subr.mxu0 0.0
    %2779 = vmatpush1.msra.mxu0 0.0
    %2780 = vmatprep.subr.mxu0 0.0
    %2781 = vmatpush1.msra.mxu0 0.0
    %2782 = vmatprep.subr.mxu0 0.0
    %2783 = vmatpush1.msra.mxu0 0.0
    %2784 = vmatprep.subr.mxu0 0.0
    %2785 = vmatpush1.msra.mxu0 0.0
    %2786 = vmatprep.subr.mxu0 0.0
    %2787 = vmatpush1.msra.mxu0 0.0
    %2788 = vmatprep.subr.mxu0 0.0
    %2789 = vmatpush1.msra.mxu0 0.0
    %2790 = vmatprep.subr.mxu0 0.0
    %2791 = vmatpush1.msra.mxu0 0.0
    %2792 = vmatprep.subr.mxu0 0.0
    %2793 = vmatpush1.msra.mxu0 0.0
    %2794 = vmatprep.subr.mxu0 0.0
    %2795 = vmatpush1.msra.mxu0 0.0
    %2796 = vmatprep.subr.mxu0 0.0
    %2797 = vmatpush1.msra.mxu0 0.0
    %2798 = vmatprep.subr.mxu0 0.0
    %2799 = vmatpush1.msra.mxu0 0.0
    %2800 = vmatprep.subr.mxu0 0.0
    %2801 = vmatpush1.msra.mxu0 0.0
    %2802 = vmatprep.subr.mxu0 0.0
    %2803 = vmatpush1.msra.mxu0 0.0
    %2804 = vmatprep.subr.mxu0 0.0
    %2805 = vmatpush1.msra.mxu0 0.0
    %2806 = vmatprep.subr.mxu0 0.0
    %2807 = vmatpush1.msra.mxu0 0.0
    %2808 = vmatprep.subr.mxu0 0.0
    %2809 = vmatpush1.msra.mxu0 0.0
    %2810 = vmatprep.subr.mxu0 0.0
    %2811 = vmatpush1.msra.mxu0 0.0
    %2812 = vmatprep.subr.mxu0 0.0
    %2813 = vmatpush1.msra.mxu0 0.0
    %2814 = vmatprep.subr.mxu0 0.0
    %2815 = vmatpush1.msra.mxu0 0.0
    %2816 = vmatprep.subr.mxu0 0.0
    %2817 = vmatpush1.msra.mxu0 0.0
    %2818 = vmatprep.subr.mxu0 0.0
    %2819 = vmatpush1.msra.mxu0 0.0
    %2820 = vmatprep.subr.mxu0 0.0
    %2821 = vmatpush1.msra.mxu0 0.0
    %2822 = vmatprep.subr.mxu0 0.0
    %2823 = vmatpush1.msra.mxu0 0.0
    %2824 = vmatprep.subr.mxu0 0.0
    %2825 = vmatpush1.msra.mxu0 0.0
    %2826 = vmatprep.subr.mxu0 0.0
    %2827 = vmatpush1.msra.mxu0 0.0
    %2828 = vmatprep.mubr.f32.mxu0 0.0
    %2829 = vmatmul.mubr.f32.gmra.mrb[0].mxu0 %v2762
    %v2830 = vpop.f32.mrb[0].mxu0
    %v2831 = vadd.f32 %v2758, %v2830
    %v2832 = vpop.f32.mrb[0].mxu0
    %2833 = vdwg.mxu0
    %v2834 = vadd.f32 %v2831, %v343
    %v2835 = vxor.u32 %v2834, 2147483648
    %v2836 = vmul.f32 %v2835, 1.442695
    %v2837 = vpow.pop %v2836
    %v2838 = vadd.f32 %v2837, 1.0
    %v2839 = vrcp.pop %v2838
    %v2840 = vmul.f32 1.0, %v2839
    %v2841 = vtanh.pop %v2834
    %v2842 = vmul.f32 %v2840, %v2498
    %2844 = vrot.lane.b32.xlu0 %v2841, 64
    %v2845 = vpop.permute.xlu0 %2844
    %v2847 = vmul.f32 %v2840, %v2845
    %2849 = vrot.lane.b32.xlu0 %v2847, 32
    %v2850 = vpop.permute.xlu0 %2849
    %v2852 = vadd.f32 %v2842, %v2850
    %v2853 = vtanh.pop %v2852
    %2855 = vrot.lane.b32.xlu0 %v2853, 64
    %v2856 = vpop.permute.xlu0 %2855
    %v2858 = vmul.f32 %v2840, %v2856
    %2860 = vrot.lane.b32.xlu0 %v2858, 32
    %v2861 = vpop.permute.xlu0 %2860
    %s2863 = scalar_lea.vmem [#allocation2], 14
    %2864 = vst.msk [vmem:[%s2863] sm:$0x3] %vm374, %v2861
    %v2865 = vld [vmem:[#allocation6] sm:$0x3]
    %v2866 = vsel %vm192, %v2684, 0
    %2868 = vmatprep.subr.mxu0 0.0
    %2869 = vmatpush1.msra.mxu0 %v186
    %2870 = vmatprep.subr.mxu0 0.0
    %2871 = vmatpush1.msra.mxu0 %v187
    %2872 = vmatprep.subr.mxu0 0.0
    %2873 = vmatpush1.msra.mxu0 %v188
    %2874 = vmatprep.subr.mxu0 0.0
    %2875 = vmatpush1.msra.mxu0 %v189
    %2876 = vmatprep.subr.mxu0 0.0
    %2877 = vmatpush1.msra.mxu0 0.0
    %2878 = vmatprep.subr.mxu0 0.0
    %2879 = vmatpush1.msra.mxu0 0.0
    %2880 = vmatprep.subr.mxu0 0.0
    %2881 = vmatpush1.msra.mxu0 0.0
    %2882 = vmatprep.subr.mxu0 0.0
    %2883 = vmatpush1.msra.mxu0 0.0
    %2884 = vmatprep.subr.mxu0 0.0
    %2885 = vmatpush1.msra.mxu0 0.0
    %2886 = vmatprep.subr.mxu0 0.0
    %2887 = vmatpush1.msra.mxu0 0.0
    %2888 = vmatprep.subr.mxu0 0.0
    %2889 = vmatpush1.msra.mxu0 0.0
    %2890 = vmatprep.subr.mxu0 0.0
    %2891 = vmatpush1.msra.mxu0 0.0
    %2892 = vmatprep.subr.mxu0 0.0
    %2893 = vmatpush1.msra.mxu0 0.0
    %2894 = vmatprep.subr.mxu0 0.0
    %2895 = vmatpush1.msra.mxu0 0.0
    %2896 = vmatprep.subr.mxu0 0.0
    %2897 = vmatpush1.msra.mxu0 0.0
    %2898 = vmatprep.subr.mxu0 0.0
    %2899 = vmatpush1.msra.mxu0 0.0
    %2900 = vmatprep.subr.mxu0 0.0
    %2901 = vmatpush1.msra.mxu0 0.0
    %2902 = vmatprep.subr.mxu0 0.0
    %2903 = vmatpush1.msra.mxu0 0.0
    %2904 = vmatprep.subr.mxu0 0.0
    %2905 = vmatpush1.msra.mxu0 0.0
    %2906 = vmatprep.subr.mxu0 0.0
    %2907 = vmatpush1.msra.mxu0 0.0
    %2908 = vmatprep.subr.mxu0 0.0
    %2909 = vmatpush1.msra.mxu0 0.0
    %2910 = vmatprep.subr.mxu0 0.0
    %2911 = vmatpush1.msra.mxu0 0.0
    %2912 = vmatprep.subr.mxu0 0.0
    %2913 = vmatpush1.msra.mxu0 0.0
    %2914 = vmatprep.subr.mxu0 0.0
    %2915 = vmatpush1.msra.mxu0 0.0
    %2916 = vmatprep.subr.mxu0 0.0
    %2917 = vmatpush1.msra.mxu0 0.0
    %2918 = vmatprep.subr.mxu0 0.0
    %2919 = vmatpush1.msra.mxu0 0.0
    %2920 = vmatprep.subr.mxu0 0.0
    %2921 = vmatpush1.msra.mxu0 0.0
    %2922 = vmatprep.subr.mxu0 0.0
    %2923 = vmatpush1.msra.mxu0 0.0
    %2924 = vmatprep.subr.mxu0 0.0
    %2925 = vmatpush1.msra.mxu0 0.0
    %2926 = vmatprep.subr.mxu0 0.0
    %2927 = vmatpush1.msra.mxu0 0.0
    %2928 = vmatprep.subr.mxu0 0.0
    %2929 = vmatpush1.msra.mxu0 0.0
    %2930 = vmatprep.subr.mxu0 0.0
    %2931 = vmatpush1.msra.mxu0 0.0
    %2932 = vmatprep.mubr.f32.mxu0 0.0
    %2933 = vmatmul.mubr.f32.gmra.mrb[0].mxu0 %v2866
    %v2934 = vpop.f32.mrb[0].mxu0
    %v2935 = vadd.f32 0.0, %v2934
    %v2936 = vpop.f32.mrb[0].mxu0
    %2937 = vdwg.mxu0
    %v2939 = vsel %vm192, %v2865, 0
    %2941 = vmatprep.subr.mxu0 0.0
    %2942 = vmatpush1.msra.mxu0 %v182
    %2943 = vmatprep.subr.mxu0 0.0
    %2944 = vmatpush1.msra.mxu0 %v183
    %2945 = vmatprep.subr.mxu0 0.0
    %2946 = vmatpush1.msra.mxu0 %v184
    %2947 = vmatprep.subr.mxu0 0.0
    %2948 = vmatpush1.msra.mxu0 %v185
    %2949 = vmatprep.subr.mxu0 0.0
    %2950 = vmatpush1.msra.mxu0 0.0
    %2951 = vmatprep.subr.mxu0 0.0
    %2952 = vmatpush1.msra.mxu0 0.0
    %2953 = vmatprep.subr.mxu0 0.0
    %2954 = vmatpush1.msra.mxu0 0.0
    %2955 = vmatprep.subr.mxu0 0.0
    %2956 = vmatpush1.msra.mxu0 0.0
    %2957 = vmatprep.subr.mxu0 0.0
    %2958 = vmatpush1.msra.mxu0 0.0
    %2959 = vmatprep.subr.mxu0 0.0
    %2960 = vmatpush1.msra.mxu0 0.0
    %2961 = vmatprep.subr.mxu0 0.0
    %2962 = vmatpush1.msra.mxu0 0.0
    %2963 = vmatprep.subr.mxu0 0.0
    %2964 = vmatpush1.msra.mxu0 0.0
    %2965 = vmatprep.subr.mxu0 0.0
    %2966 = vmatpush1.msra.mxu0 0.0
    %2967 = vmatprep.subr.mxu0 0.0
    %2968 = vmatpush1.msra.mxu0 0.0
    %2969 = vmatprep.subr.mxu0 0.0
    %2970 = vmatpush1.msra.mxu0 0.0
    %2971 = vmatprep.subr.mxu0 0.0
    %2972 = vmatpush1.msra.mxu0 0.0
    %2973 = vmatprep.subr.mxu0 0.0
    %2974 = vmatpush1.msra.mxu0 0.0
    %2975 = vmatprep.subr.mxu0 0.0
    %2976 = vmatpush1.msra.mxu0 0.0
    %2977 = vmatprep.subr.mxu0 0.0
    %2978 = vmatpush1.msra.mxu0 0.0
    %2979 = vmatprep.subr.mxu0 0.0
    %2980 = vmatpush1.msra.mxu0 0.0
    %2981 = vmatprep.subr.mxu0 0.0
    %2982 = vmatpush1.msra.mxu0 0.0
    %2983 = vmatprep.subr.mxu0 0.0
    %2984 = vmatpush1.msra.mxu0 0.0
    %2985 = vmatprep.subr.mxu0 0.0
    %2986 = vmatpush1.msra.mxu0 0.0
    %2987 = vmatprep.subr.mxu0 0.0
    %2988 = vmatpush1.msra.mxu0 0.0
    %2989 = vmatprep.subr.mxu0 0.0
    %2990 = vmatpush1.msra.mxu0 0.0
    %2991 = vmatprep.subr.mxu0 0.0
    %2992 = vmatpush1.msra.mxu0 0.0
    %2993 = vmatprep.subr.mxu0 0.0
    %2994 = vmatpush1.msra.mxu0 0.0
    %2995 = vmatprep.subr.mxu0 0.0
    %2996 = vmatpush1.msra.mxu0 0.0
    %2997 = vmatprep.subr.mxu0 0.0
    %2998 = vmatpush1.msra.mxu0 0.0
    %2999 = vmatprep.subr.mxu0 0.0
    %3000 = vmatpush1.msra.mxu0 0.0
    %3001 = vmatprep.subr.mxu0 0.0
    %3002 = vmatpush1.msra.mxu0 0.0
    %3003 = vmatprep.subr.mxu0 0.0
    %3004 = vmatpush1.msra.mxu0 0.0
    %3005 = vmatprep.mubr.f32.mxu0 0.0
    %3006 = vmatmul.mubr.f32.gmra.mrb[0].mxu0 %v2939
    %v3007 = vpop.f32.mrb[0].mxu0
    %v3008 = vadd.f32 %v2935, %v3007
    %v3009 = vpop.f32.mrb[0].mxu0
    %3010 = vdwg.mxu0
    %v3011 = vadd.f32 %v3008, %v525
    %v3012 = vxor.u32 %v3011, 2147483648
    %v3013 = vmul.f32 %v3012, 1.442695
    %v3014 = vpow.pop %v3013
    %v3015 = vadd.f32 %v3014, 1.0
    %v3016 = vrcp.pop %v3015
    %v3017 = vmul.f32 1.0, %v3016
    %v3018 = vtanh.pop %v3011
    %v3019 = vmul.f32 %v3017, %v2675
    %3021 = vrot.lane.b32.xlu0 %v3018, 64
    %v3022 = vpop.permute.xlu0 %3021
    %v3024 = vmul.f32 %v3017, %v3022
    %3026 = vrot.lane.b32.xlu0 %v3024, 32
    %v3027 = vpop.permute.xlu0 %3026
    %v3029 = vadd.f32 %v3019, %v3027
    %v3030 = vtanh.pop %v3029
    %3032 = vrot.lane.b32.xlu0 %v3030, 64
    %v3033 = vpop.permute.xlu0 %3032
    %v3035 = vmul.f32 %v3017, %v3033
    %3037 = vrot.lane.b32.xlu0 %v3035, 32
    %v3038 = vpop.permute.xlu0 %3037
    %3040 = vst.msk [vmem:[#allocation3] sm:$0x3] %vm374, %v3038
    %v3041 = vld [vmem:[#allocation15] sm:$0xff]
    %v3042 = vld [vmem:[#allocation15 + $0x8] sm:$0xff]
    %v3043 = vld [vmem:[#allocation15 + $0x10] sm:$0xff]
    %v3044 = vld [vmem:[#allocation15 + $0x18] sm:$0xff]
    %v3045 = vld [vmem:[#allocation15 + $0x20] sm:$0xff]
    %v3046 = vld [vmem:[#allocation15 + $0x28] sm:$0xff]
    %v3047 = vld [vmem:[#allocation15 + $0x30] sm:$0xff]
    %v3048 = vld [vmem:[#allocation15 + $0x38] sm:$0xff]
    %v3049 = vld [vmem:[#allocation17] sm:$0xff]
    %v3050 = vld [vmem:[#allocation17 + $0x8] sm:$0xff]
    %v3051 = vld [vmem:[#allocation17 + $0x10] sm:$0xff]
    %v3052 = vld [vmem:[#allocation17 + $0x18] sm:$0xff]
    %v3053 = vld [vmem:[%s9] sm:$0x1]
    %v3054 = vld [vmem:[#allocation18] sm:$0xff]
    %v3055 = vld [vmem:[#allocation18 + $0x8] sm:$0xff]
    %v3056 = vld [vmem:[#allocation18 + $0x10] sm:$0xff]
    %v3057 = vld [vmem:[#allocation18 + $0x18] sm:$0xff]
    %v3058 = vld [vmem:[#allocation18 + $0x20] sm:$0xff]
    %v3059 = vld [vmem:[#allocation18 + $0x28] sm:$0xff]
    %v3060 = vld [vmem:[#allocation18 + $0x30] sm:$0xff]
    %v3061 = vld [vmem:[#allocation18 + $0x38] sm:$0xff]
    %v3062 = vld [vmem:[%s11] sm:$0xff]
    %v3063 = vld [vmem:[%s11 + $0x8] sm:$0xff]
    %v3064 = vld [vmem:[%s11 + $0x10] sm:$0xff]
    %v3065 = vld [vmem:[%s11 + $0x18] sm:$0xff]
    %v3066 = vld [vmem:[%s12] sm:$0x1]
    %v3067 = vld [vmem:[#allocation2] sm:$0x3]
    %v3068 = vld [vmem:[#allocation3] sm:$0x3]
    %v3070 = vsel %vm192, %v3068, 0
    %3072 = vmatprep.subr.mxu0 0.0
    %3073 = vmatpush1.msra.mxu0 %v3045
    %3074 = vmatprep.subr.mxu0 0.0
    %3075 = vmatpush1.msra.mxu0 %v3046
    %3076 = vmatprep.subr.mxu0 0.0
    %3077 = vmatpush1.msra.mxu0 %v3047
    %3078 = vmatprep.subr.mxu0 0.0
    %3079 = vmatpush1.msra.mxu0 %v3048
    %3080 = vmatprep.subr.mxu0 0.0
    %3081 = vmatpush1.msra.mxu0 0.0
    %3082 = vmatprep.subr.mxu0 0.0
    %3083 = vmatpush1.msra.mxu0 0.0
    %3084 = vmatprep.subr.mxu0 0.0
    %3085 = vmatpush1.msra.mxu0 0.0
    %3086 = vmatprep.subr.mxu0 0.0
    %3087 = vmatpush1.msra.mxu0 0.0
    %3088 = vmatprep.subr.mxu0 0.0
    %3089 = vmatpush1.msra.mxu0 0.0
    %3090 = vmatprep.subr.mxu0 0.0
    %3091 = vmatpush1.msra.mxu0 0.0
    %3092 = vmatprep.subr.mxu0 0.0
    %3093 = vmatpush1.msra.mxu0 0.0
    %3094 = vmatprep.subr.mxu0 0.0
    %3095 = vmatpush1.msra.mxu0 0.0
    %3096 = vmatprep.subr.mxu0 0.0
    %3097 = vmatpush1.msra.mxu0 0.0
    %3098 = vmatprep.subr.mxu0 0.0
    %3099 = vmatpush1.msra.mxu0 0.0
    %3100 = vmatprep.subr.mxu0 0.0
    %3101 = vmatpush1.msra.mxu0 0.0
    %3102 = vmatprep.subr.mxu0 0.0
    %3103 = vmatpush1.msra.mxu0 0.0
    %3104 = vmatprep.subr.mxu0 0.0
    %3105 = vmatpush1.msra.mxu0 0.0
    %3106 = vmatprep.subr.mxu0 0.0
    %3107 = vmatpush1.msra.mxu0 0.0
    %3108 = vmatprep.subr.mxu0 0.0
    %3109 = vmatpush1.msra.mxu0 0.0
    %3110 = vmatprep.subr.mxu0 0.0
    %3111 = vmatpush1.msra.mxu0 0.0
    %3112 = vmatprep.subr.mxu0 0.0
    %3113 = vmatpush1.msra.mxu0 0.0
    %3114 = vmatprep.subr.mxu0 0.0
    %3115 = vmatpush1.msra.mxu0 0.0
    %3116 = vmatprep.subr.mxu0 0.0
    %3117 = vmatpush1.msra.mxu0 0.0
    %3118 = vmatprep.subr.mxu0 0.0
    %3119 = vmatpush1.msra.mxu0 0.0
    %3120 = vmatprep.subr.mxu0 0.0
    %3121 = vmatpush1.msra.mxu0 0.0
    %3122 = vmatprep.subr.mxu0 0.0
    %3123 = vmatpush1.msra.mxu0 0.0
    %3124 = vmatprep.subr.mxu0 0.0
    %3125 = vmatpush1.msra.mxu0 0.0
    %3126 = vmatprep.subr.mxu0 0.0
    %3127 = vmatpush1.msra.mxu0 0.0
    %3128 = vmatprep.subr.mxu0 0.0
    %3129 = vmatpush1.msra.mxu0 0.0
    %3130 = vmatprep.subr.mxu0 0.0
    %3131 = vmatpush1.msra.mxu0 0.0
    %3132 = vmatprep.subr.mxu0 0.0
    %3133 = vmatpush1.msra.mxu0 0.0
    %3134 = vmatprep.subr.mxu0 0.0
    %3135 = vmatpush1.msra.mxu0 0.0
    %3136 = vmatprep.mubr.f32.mxu0 0.0
    %3137 = vmatmul.mubr.f32.gmra.mrb[0].mxu0 %v3070
    %v3138 = vpop.f32.mrb[0].mxu0
    %v3139 = vadd.f32 0.0, %v3138
    %v3140 = vpop.f32.mrb[0].mxu0
    %3141 = vdwg.mxu0
    %v3143 = vsel %vm192, %v3067, 0
    %3145 = vmatprep.subr.mxu0 0.0
    %3146 = vmatpush1.msra.mxu0 %v3041
    %3147 = vmatprep.subr.mxu0 0.0
    %3148 = vmatpush1.msra.mxu0 %v3042
    %3149 = vmatprep.subr.mxu0 0.0
    %3150 = vmatpush1.msra.mxu0 %v3043
    %3151 = vmatprep.subr.mxu0 0.0
    %3152 = vmatpush1.msra.mxu0 %v3044
    %3153 = vmatprep.subr.mxu0 0.0
    %3154 = vmatpush1.msra.mxu0 0.0
    %3155 = vmatprep.subr.mxu0 0.0
    %3156 = vmatpush1.msra.mxu0 0.0
    %3157 = vmatprep.subr.mxu0 0.0
    %3158 = vmatpush1.msra.mxu0 0.0
    %3159 = vmatprep.subr.mxu0 0.0
    %3160 = vmatpush1.msra.mxu0 0.0
    %3161 = vmatprep.subr.mxu0 0.0
    %3162 = vmatpush1.msra.mxu0 0.0
    %3163 = vmatprep.subr.mxu0 0.0
    %3164 = vmatpush1.msra.mxu0 0.0
    %3165 = vmatprep.subr.mxu0 0.0
    %3166 = vmatpush1.msra.mxu0 0.0
    %3167 = vmatprep.subr.mxu0 0.0
    %3168 = vmatpush1.msra.mxu0 0.0
    %3169 = vmatprep.subr.mxu0 0.0
    %3170 = vmatpush1.msra.mxu0 0.0
    %3171 = vmatprep.subr.mxu0 0.0
    %3172 = vmatpush1.msra.mxu0 0.0
    %3173 = vmatprep.subr.mxu0 0.0
    %3174 = vmatpush1.msra.mxu0 0.0
    %3175 = vmatprep.subr.mxu0 0.0
    %3176 = vmatpush1.msra.mxu0 0.0
    %3177 = vmatprep.subr.mxu0 0.0
    %3178 = vmatpush1.msra.mxu0 0.0
    %3179 = vmatprep.subr.mxu0 0.0
    %3180 = vmatpush1.msra.mxu0 0.0
    %3181 = vmatprep.subr.mxu0 0.0
    %3182 = vmatpush1.msra.mxu0 0.0
    %3183 = vmatprep.subr.mxu0 0.0
    %3184 = vmatpush1.msra.mxu0 0.0
    %3185 = vmatprep.subr.mxu0 0.0
    %3186 = vmatpush1.msra.mxu0 0.0
    %3187 = vmatprep.subr.mxu0 0.0
    %3188 = vmatpush1.msra.mxu0 0.0
    %3189 = vmatprep.subr.mxu0 0.0
    %3190 = vmatpush1.msra.mxu0 0.0
    %3191 = vmatprep.subr.mxu0 0.0
    %3192 = vmatpush1.msra.mxu0 0.0
    %3193 = vmatprep.subr.mxu0 0.0
    %3194 = vmatpush1.msra.mxu0 0.0
    %3195 = vmatprep.subr.mxu0 0.0
    %3196 = vmatpush1.msra.mxu0 0.0
    %3197 = vmatprep.subr.mxu0 0.0
    %3198 = vmatpush1.msra.mxu0 0.0
    %3199 = vmatprep.subr.mxu0 0.0
    %3200 = vmatpush1.msra.mxu0 0.0
    %3201 = vmatprep.subr.mxu0 0.0
    %3202 = vmatpush1.msra.mxu0 0.0
    %3203 = vmatprep.subr.mxu0 0.0
    %3204 = vmatpush1.msra.mxu0 0.0
    %3205 = vmatprep.subr.mxu0 0.0
    %3206 = vmatpush1.msra.mxu0 0.0
    %3207 = vmatprep.subr.mxu0 0.0
    %3208 = vmatpush1.msra.mxu0 0.0
    %3209 = vmatprep.mubr.f32.mxu0 0.0
    %3210 = vmatmul.mubr.f32.gmra.mrb[0].mxu0 %v3143
    %v3211 = vpop.f32.mrb[0].mxu0
    %v3212 = vadd.f32 %v3139, %v3211
    %v3213 = vpop.f32.mrb[0].mxu0
    %3214 = vdwg.mxu0
    %3215 = vmatprep.subr.mxu0 0.0
    %3216 = vmatpush1.msra.mxu0 %v3049
    %3217 = vmatprep.subr.mxu0 0.0
    %3218 = vmatpush1.msra.mxu0 %v3050
    %3219 = vmatprep.subr.mxu0 0.0
    %3220 = vmatpush1.msra.mxu0 %v3051
    %3221 = vmatprep.subr.mxu0 0.0
    %3222 = vmatpush1.msra.mxu0 %v3052
    %3223 = vmatprep.subr.mxu0 0.0
    %3224 = vmatpush1.msra.mxu0 0.0
    %3225 = vmatprep.subr.mxu0 0.0
    %3226 = vmatpush1.msra.mxu0 0.0
    %3227 = vmatprep.subr.mxu0 0.0
    %3228 = vmatpush1.msra.mxu0 0.0
    %3229 = vmatprep.subr.mxu0 0.0
    %3230 = vmatpush1.msra.mxu0 0.0
    %3231 = vmatprep.subr.mxu0 0.0
    %3232 = vmatpush1.msra.mxu0 0.0
    %3233 = vmatprep.subr.mxu0 0.0
    %3234 = vmatpush1.msra.mxu0 0.0
    %3235 = vmatprep.subr.mxu0 0.0
    %3236 = vmatpush1.msra.mxu0 0.0
    %3237 = vmatprep.subr.mxu0 0.0
    %3238 = vmatpush1.msra.mxu0 0.0
    %3239 = vmatprep.subr.mxu0 0.0
    %3240 = vmatpush1.msra.mxu0 0.0
    %3241 = vmatprep.subr.mxu0 0.0
    %3242 = vmatpush1.msra.mxu0 0.0
    %3243 = vmatprep.subr.mxu0 0.0
    %3244 = vmatpush1.msra.mxu0 0.0
    %3245 = vmatprep.subr.mxu0 0.0
    %3246 = vmatpush1.msra.mxu0 0.0
    %3247 = vmatprep.subr.mxu0 0.0
    %3248 = vmatpush1.msra.mxu0 0.0
    %3249 = vmatprep.subr.mxu0 0.0
    %3250 = vmatpush1.msra.mxu0 0.0
    %3251 = vmatprep.subr.mxu0 0.0
    %3252 = vmatpush1.msra.mxu0 0.0
    %3253 = vmatprep.subr.mxu0 0.0
    %3254 = vmatpush1.msra.mxu0 0.0
    %3255 = vmatprep.subr.mxu0 0.0
    %3256 = vmatpush1.msra.mxu0 0.0
    %3257 = vmatprep.subr.mxu0 0.0
    %3258 = vmatpush1.msra.mxu0 0.0
    %3259 = vmatprep.subr.mxu0 0.0
    %3260 = vmatpush1.msra.mxu0 0.0
    %3261 = vmatprep.subr.mxu0 0.0
    %3262 = vmatpush1.msra.mxu0 0.0
    %3263 = vmatprep.subr.mxu0 0.0
    %3264 = vmatpush1.msra.mxu0 0.0
    %3265 = vmatprep.subr.mxu0 0.0
    %3266 = vmatpush1.msra.mxu0 0.0
    %3267 = vmatprep.subr.mxu0 0.0
    %3268 = vmatpush1.msra.mxu0 0.0
    %3269 = vmatprep.subr.mxu0 0.0
    %3270 = vmatpush1.msra.mxu0 0.0
    %3271 = vmatprep.subr.mxu0 0.0
    %3272 = vmatpush1.msra.mxu0 0.0
    %3273 = vmatprep.subr.mxu0 0.0
    %3274 = vmatpush1.msra.mxu0 0.0
    %3275 = vmatprep.subr.mxu0 0.0
    %3276 = vmatpush1.msra.mxu0 0.0
    %3277 = vmatprep.subr.mxu0 0.0
    %3278 = vmatpush1.msra.mxu0 0.0
    %3279 = vmatprep.mubr.f32.mxu0 0.0
    %3280 = vmatmul.mubr.f32.gmra.mrb[0].mxu0 %v194
    %v3281 = vpop.f32.mrb[0].mxu0
    %v3282 = vadd.f32 0.0, %v3281
    %v3283 = vpop.f32.mrb[0].mxu0
    %3284 = vdwg.mxu0
    %v3285 = vadd.f32 %v3212, %v3282
    %v3287 = vlaneseq
    %v3288 = vshrl.u32 %v3287, 7
    %v3289 = vsub.s32 0, %v3288
    %v3290 = vrot.slane %v3053, %v3289
    %v3292 = vadd.f32 %v3285, %v3290
    %v3293 = vxor.u32 %v3292, 2147483648
    %v3294 = vmul.f32 %v3293, 1.442695
    %v3295 = vpow.pop %v3294
    %v3296 = vadd.f32 %v3295, 1.0
    %v3297 = vrcp.pop %v3296
    %v3298 = vmul.f32 1.0, %v3297
    %v3299 = vtanh.pop %v3292
    %v3300 = vmul.f32 %v3298, 0.0
    %3302 = vrot.lane.b32.xlu0 %v3299, 64
    %v3303 = vpop.permute.xlu0 %3302
    %v3305 = vmul.f32 %v3298, %v3303
    %3307 = vrot.lane.b32.xlu0 %v3305, 32
    %v3308 = vpop.permute.xlu0 %3307
    %v3310 = vadd.f32 %v3300, %v3308
    %v3311 = vtanh.pop %v3310
    %3313 = vrot.lane.b32.xlu0 %v3311, 64
    %v3314 = vpop.permute.xlu0 %3313
    %v3316 = vmul.f32 %v3298, %v3314
    %3318 = vrot.lane.b32.xlu0 %v3316, 32
    %v3319 = vpop.permute.xlu0 %3318
    %3321 = vst.msk [vmem:[#allocation4] sm:$0x3] %vm374, %v3319
    %v3322 = vld [vmem:[%s2863] sm:$0x3]
    %v3323 = vld [vmem:[%s556] sm:$0x3]
    %v3325 = vsel %vm192, %v3323, 0
    %3327 = vmatprep.subr.mxu0 0.0
    %3328 = vmatpush1.msra.mxu0 %v3058
    %3329 = vmatprep.subr.mxu0 0.0
    %3330 = vmatpush1.msra.mxu0 %v3059
    %3331 = vmatprep.subr.mxu0 0.0
    %3332 = vmatpush1.msra.mxu0 %v3060
    %3333 = vmatprep.subr.mxu0 0.0
    %3334 = vmatpush1.msra.mxu0 %v3061
    %3335 = vmatprep.subr.mxu0 0.0
    %3336 = vmatpush1.msra.mxu0 0.0
    %3337 = vmatprep.subr.mxu0 0.0
    %3338 = vmatpush1.msra.mxu0 0.0
    %3339 = vmatprep.subr.mxu0 0.0
    %3340 = vmatpush1.msra.mxu0 0.0
    %3341 = vmatprep.subr.mxu0 0.0
    %3342 = vmatpush1.msra.mxu0 0.0
    %3343 = vmatprep.subr.mxu0 0.0
    %3344 = vmatpush1.msra.mxu0 0.0
    %3345 = vmatprep.subr.mxu0 0.0
    %3346 = vmatpush1.msra.mxu0 0.0
    %3347 = vmatprep.subr.mxu0 0.0
    %3348 = vmatpush1.msra.mxu0 0.0
    %3349 = vmatprep.subr.mxu0 0.0
    %3350 = vmatpush1.msra.mxu0 0.0
    %3351 = vmatprep.subr.mxu0 0.0
    %3352 = vmatpush1.msra.mxu0 0.0
    %3353 = vmatprep.subr.mxu0 0.0
    %3354 = vmatpush1.msra.mxu0 0.0
    %3355 = vmatprep.subr.mxu0 0.0
    %3356 = vmatpush1.msra.mxu0 0.0
    %3357 = vmatprep.subr.mxu0 0.0
    %3358 = vmatpush1.msra.mxu0 0.0
    %3359 = vmatprep.subr.mxu0 0.0
    %3360 = vmatpush1.msra.mxu0 0.0
    %3361 = vmatprep.subr.mxu0 0.0
    %3362 = vmatpush1.msra.mxu0 0.0
    %3363 = vmatprep.subr.mxu0 0.0
    %3364 = vmatpush1.msra.mxu0 0.0
    %3365 = vmatprep.subr.mxu0 0.0
    %3366 = vmatpush1.msra.mxu0 0.0
    %3367 = vmatprep.subr.mxu0 0.0
    %3368 = vmatpush1.msra.mxu0 0.0
    %3369 = vmatprep.subr.mxu0 0.0
    %3370 = vmatpush1.msra.mxu0 0.0
    %3371 = vmatprep.subr.mxu0 0.0
    %3372 = vmatpush1.msra.mxu0 0.0
    %3373 = vmatprep.subr.mxu0 0.0
    %3374 = vmatpush1.msra.mxu0 0.0
    %3375 = vmatprep.subr.mxu0 0.0
    %3376 = vmatpush1.msra.mxu0 0.0
    %3377 = vmatprep.subr.mxu0 0.0
    %3378 = vmatpush1.msra.mxu0 0.0
    %3379 = vmatprep.subr.mxu0 0.0
    %3380 = vmatpush1.msra.mxu0 0.0
    %3381 = vmatprep.subr.mxu0 0.0
    %3382 = vmatpush1.msra.mxu0 0.0
    %3383 = vmatprep.subr.mxu0 0.0
    %3384 = vmatpush1.msra.mxu0 0.0
    %3385 = vmatprep.subr.mxu0 0.0
    %3386 = vmatpush1.msra.mxu0 0.0
    %3387 = vmatprep.subr.mxu0 0.0
    %3388 = vmatpush1.msra.mxu0 0.0
    %3389 = vmatprep.subr.mxu0 0.0
    %3390 = vmatpush1.msra.mxu0 0.0
    %3391 = vmatprep.mubr.f32.mxu0 0.0
    %3392 = vmatmul.mubr.f32.gmra.mrb[0].mxu0 %v3325
    %v3393 = vpop.f32.mrb[0].mxu0
    %v3394 = vadd.f32 0.0, %v3393
    %v3395 = vpop.f32.mrb[0].mxu0
    %3396 = vdwg.mxu0
    %v3398 = vsel %vm192, %v3322, 0
    %3400 = vmatprep.subr.mxu0 0.0
    %3401 = vmatpush1.msra.mxu0 %v3054
    %3402 = vmatprep.subr.mxu0 0.0
    %3403 = vmatpush1.msra.mxu0 %v3055
    %3404 = vmatprep.subr.mxu0 0.0
    %3405 = vmatpush1.msra.mxu0 %v3056
    %3406 = vmatprep.subr.mxu0 0.0
    %3407 = vmatpush1.msra.mxu0 %v3057
    %3408 = vmatprep.subr.mxu0 0.0
    %3409 = vmatpush1.msra.mxu0 0.0
    %3410 = vmatprep.subr.mxu0 0.0
    %3411 = vmatpush1.msra.mxu0 0.0
    %3412 = vmatprep.subr.mxu0 0.0
    %3413 = vmatpush1.msra.mxu0 0.0
    %3414 = vmatprep.subr.mxu0 0.0
    %3415 = vmatpush1.msra.mxu0 0.0
    %3416 = vmatprep.subr.mxu0 0.0
    %3417 = vmatpush1.msra.mxu0 0.0
    %3418 = vmatprep.subr.mxu0 0.0
    %3419 = vmatpush1.msra.mxu0 0.0
    %3420 = vmatprep.subr.mxu0 0.0
    %3421 = vmatpush1.msra.mxu0 0.0
    %3422 = vmatprep.subr.mxu0 0.0
    %3423 = vmatpush1.msra.mxu0 0.0
    %3424 = vmatprep.subr.mxu0 0.0
    %3425 = vmatpush1.msra.mxu0 0.0
    %3426 = vmatprep.subr.mxu0 0.0
    %3427 = vmatpush1.msra.mxu0 0.0
    %3428 = vmatprep.subr.mxu0 0.0
    %3429 = vmatpush1.msra.mxu0 0.0
    %3430 = vmatprep.subr.mxu0 0.0
    %3431 = vmatpush1.msra.mxu0 0.0
    %3432 = vmatprep.subr.mxu0 0.0
    %3433 = vmatpush1.msra.mxu0 0.0
    %3434 = vmatprep.subr.mxu0 0.0
    %3435 = vmatpush1.msra.mxu0 0.0
    %3436 = vmatprep.subr.mxu0 0.0
    %3437 = vmatpush1.msra.mxu0 0.0
    %3438 = vmatprep.subr.mxu0 0.0
    %3439 = vmatpush1.msra.mxu0 0.0
    %3440 = vmatprep.subr.mxu0 0.0
    %3441 = vmatpush1.msra.mxu0 0.0
    %3442 = vmatprep.subr.mxu0 0.0
    %3443 = vmatpush1.msra.mxu0 0.0
    %3444 = vmatprep.subr.mxu0 0.0
    %3445 = vmatpush1.msra.mxu0 0.0
    %3446 = vmatprep.subr.mxu0 0.0
    %3447 = vmatpush1.msra.mxu0 0.0
    %3448 = vmatprep.subr.mxu0 0.0
    %3449 = vmatpush1.msra.mxu0 0.0
    %3450 = vmatprep.subr.mxu0 0.0
    %3451 = vmatpush1.msra.mxu0 0.0
    %3452 = vmatprep.subr.mxu0 0.0
    %3453 = vmatpush1.msra.mxu0 0.0
    %3454 = vmatprep.subr.mxu0 0.0
    %3455 = vmatpush1.msra.mxu0 0.0
    %3456 = vmatprep.subr.mxu0 0.0
    %3457 = vmatpush1.msra.mxu0 0.0
    %3458 = vmatprep.subr.mxu0 0.0
    %3459 = vmatpush1.msra.mxu0 0.0
    %3460 = vmatprep.subr.mxu0 0.0
    %3461 = vmatpush1.msra.mxu0 0.0
    %3462 = vmatprep.subr.mxu0 0.0
    %3463 = vmatpush1.msra.mxu0 0.0
    %3464 = vmatprep.mubr.f32.mxu0 0.0
    %3465 = vmatmul.mubr.f32.gmra.mrb[0].mxu0 %v3398
    %v3466 = vpop.f32.mrb[0].mxu0
    %v3467 = vadd.f32 %v3394, %v3466
    %v3468 = vpop.f32.mrb[0].mxu0
    %3469 = vdwg.mxu0
    %3470 = vmatprep.subr.mxu0 0.0
    %3471 = vmatpush1.msra.mxu0 %v3062
    %3472 = vmatprep.subr.mxu0 0.0
    %3473 = vmatpush1.msra.mxu0 %v3063
    %3474 = vmatprep.subr.mxu0 0.0
    %3475 = vmatpush1.msra.mxu0 %v3064
    %3476 = vmatprep.subr.mxu0 0.0
    %3477 = vmatpush1.msra.mxu0 %v3065
    %3478 = vmatprep.subr.mxu0 0.0
    %3479 = vmatpush1.msra.mxu0 0.0
    %3480 = vmatprep.subr.mxu0 0.0
    %3481 = vmatpush1.msra.mxu0 0.0
    %3482 = vmatprep.subr.mxu0 0.0
    %3483 = vmatpush1.msra.mxu0 0.0
    %3484 = vmatprep.subr.mxu0 0.0
    %3485 = vmatpush1.msra.mxu0 0.0
    %3486 = vmatprep.subr.mxu0 0.0
    %3487 = vmatpush1.msra.mxu0 0.0
    %3488 = vmatprep.subr.mxu0 0.0
    %3489 = vmatpush1.msra.mxu0 0.0
    %3490 = vmatprep.subr.mxu0 0.0
    %3491 = vmatpush1.msra.mxu0 0.0
    %3492 = vmatprep.subr.mxu0 0.0
    %3493 = vmatpush1.msra.mxu0 0.0
    %3494 = vmatprep.subr.mxu0 0.0
    %3495 = vmatpush1.msra.mxu0 0.0
    %3496 = vmatprep.subr.mxu0 0.0
    %3497 = vmatpush1.msra.mxu0 0.0
    %3498 = vmatprep.subr.mxu0 0.0
    %3499 = vmatpush1.msra.mxu0 0.0
    %3500 = vmatprep.subr.mxu0 0.0
    %3501 = vmatpush1.msra.mxu0 0.0
    %3502 = vmatprep.subr.mxu0 0.0
    %3503 = vmatpush1.msra.mxu0 0.0
    %3504 = vmatprep.subr.mxu0 0.0
    %3505 = vmatpush1.msra.mxu0 0.0
    %3506 = vmatprep.subr.mxu0 0.0
    %3507 = vmatpush1.msra.mxu0 0.0
    %3508 = vmatprep.subr.mxu0 0.0
    %3509 = vmatpush1.msra.mxu0 0.0
    %3510 = vmatprep.subr.mxu0 0.0
    %3511 = vmatpush1.msra.mxu0 0.0
    %3512 = vmatprep.subr.mxu0 0.0
    %3513 = vmatpush1.msra.mxu0 0.0
    %3514 = vmatprep.subr.mxu0 0.0
    %3515 = vmatpush1.msra.mxu0 0.0
    %3516 = vmatprep.subr.mxu0 0.0
    %3517 = vmatpush1.msra.mxu0 0.0
    %3518 = vmatprep.subr.mxu0 0.0
    %3519 = vmatpush1.msra.mxu0 0.0
    %3520 = vmatprep.subr.mxu0 0.0
    %3521 = vmatpush1.msra.mxu0 0.0
    %3522 = vmatprep.subr.mxu0 0.0
    %3523 = vmatpush1.msra.mxu0 0.0
    %3524 = vmatprep.subr.mxu0 0.0
    %3525 = vmatpush1.msra.mxu0 0.0
    %3526 = vmatprep.subr.mxu0 0.0
    %3527 = vmatpush1.msra.mxu0 0.0
    %3528 = vmatprep.subr.mxu0 0.0
    %3529 = vmatpush1.msra.mxu0 0.0
    %3530 = vmatprep.subr.mxu0 0.0
    %3531 = vmatpush1.msra.mxu0 0.0
    %3532 = vmatprep.subr.mxu0 0.0
    %3533 = vmatpush1.msra.mxu0 0.0
    %3534 = vmatprep.mubr.f32.mxu0 0.0
    %3535 = vmatmul.mubr.f32.gmra.mrb[0].mxu0 %v194
    %v3536 = vpop.f32.mrb[0].mxu0
    %v3537 = vadd.f32 0.0, %v3536
    %v3538 = vpop.f32.mrb[0].mxu0
    %3539 = vdwg.mxu0
    %v3540 = vadd.f32 %v3467, %v3537
    %v3542 = vlaneseq
    %v3543 = vshrl.u32 %v3542, 7
    %v3544 = vsub.s32 0, %v3543
    %v3545 = vrot.slane %v3066, %v3544
    %v3547 = vadd.f32 %v3540, %v3545
    %v3548 = vxor.u32 %v3547, 2147483648
    %v3549 = vmul.f32 %v3548, 1.442695
    %v3550 = vpow.pop %v3549
    %v3551 = vadd.f32 %v3550, 1.0
    %v3552 = vrcp.pop %v3551
    %v3553 = vmul.f32 1.0, %v3552
    %v3554 = vtanh.pop %v3547
    %v3555 = vmul.f32 %v3553, 0.0
    %3557 = vrot.lane.b32.xlu0 %v3554, 64
    %v3558 = vpop.permute.xlu0 %3557
    %v3560 = vmul.f32 %v3553, %v3558
    %3562 = vrot.lane.b32.xlu0 %v3560, 32
    %v3563 = vpop.permute.xlu0 %3562
    %v3565 = vadd.f32 %v3555, %v3563
    %v3566 = vtanh.pop %v3565
    %3568 = vrot.lane.b32.xlu0 %v3566, 64
    %v3569 = vpop.permute.xlu0 %3568
    %v3571 = vmul.f32 %v3553, %v3569
    %3573 = vrot.lane.b32.xlu0 %v3571, 32
    %v3574 = vpop.permute.xlu0 %3573
    %s3576 = scalar_lea.vmem [#allocation5], 14
    %3577 = vst.msk [vmem:[%s3576] sm:$0x3] %vm374, %v3574
    %v3578 = vld [vmem:[%s734] sm:$0x3]
    %v3579 = vld [vmem:[%s2686] sm:$0x3]
    %v3581 = vsel %vm192, %v3579, 0
    %3583 = vmatprep.subr.mxu0 0.0
    %3584 = vmatpush1.msra.mxu0 %v3045
    %3585 = vmatprep.subr.mxu0 0.0
    %3586 = vmatpush1.msra.mxu0 %v3046
    %3587 = vmatprep.subr.mxu0 0.0
    %3588 = vmatpush1.msra.mxu0 %v3047
    %3589 = vmatprep.subr.mxu0 0.0
    %3590 = vmatpush1.msra.mxu0 %v3048
    %3591 = vmatprep.subr.mxu0 0.0
    %3592 = vmatpush1.msra.mxu0 0.0
    %3593 = vmatprep.subr.mxu0 0.0
    %3594 = vmatpush1.msra.mxu0 0.0
    %3595 = vmatprep.subr.mxu0 0.0
    %3596 = vmatpush1.msra.mxu0 0.0
    %3597 = vmatprep.subr.mxu0 0.0
    %3598 = vmatpush1.msra.mxu0 0.0
    %3599 = vmatprep.subr.mxu0 0.0
    %3600 = vmatpush1.msra.mxu0 0.0
    %3601 = vmatprep.subr.mxu0 0.0
    %3602 = vmatpush1.msra.mxu0 0.0
    %3603 = vmatprep.subr.mxu0 0.0
    %3604 = vmatpush1.msra.mxu0 0.0
    %3605 = vmatprep.subr.mxu0 0.0
    %3606 = vmatpush1.msra.mxu0 0.0
    %3607 = vmatprep.subr.mxu0 0.0
    %3608 = vmatpush1.msra.mxu0 0.0
    %3609 = vmatprep.subr.mxu0 0.0
    %3610 = vmatpush1.msra.mxu0 0.0
    %3611 = vmatprep.subr.mxu0 0.0
    %3612 = vmatpush1.msra.mxu0 0.0
    %3613 = vmatprep.subr.mxu0 0.0
    %3614 = vmatpush1.msra.mxu0 0.0
    %3615 = vmatprep.subr.mxu0 0.0
    %3616 = vmatpush1.msra.mxu0 0.0
    %3617 = vmatprep.subr.mxu0 0.0
    %3618 = vmatpush1.msra.mxu0 0.0
    %3619 = vmatprep.subr.mxu0 0.0
    %3620 = vmatpush1.msra.mxu0 0.0
    %3621 = vmatprep.subr.mxu0 0.0
    %3622 = vmatpush1.msra.mxu0 0.0
    %3623 = vmatprep.subr.mxu0 0.0
    %3624 = vmatpush1.msra.mxu0 0.0
    %3625 = vmatprep.subr.mxu0 0.0
    %3626 = vmatpush1.msra.mxu0 0.0
    %3627 = vmatprep.subr.mxu0 0.0
    %3628 = vmatpush1.msra.mxu0 0.0
    %3629 = vmatprep.subr.mxu0 0.0
    %3630 = vmatpush1.msra.mxu0 0.0
    %3631 = vmatprep.subr.mxu0 0.0
    %3632 = vmatpush1.msra.mxu0 0.0
    %3633 = vmatprep.subr.mxu0 0.0
    %3634 = vmatpush1.msra.mxu0 0.0
    %3635 = vmatprep.subr.mxu0 0.0
    %3636 = vmatpush1.msra.mxu0 0.0
    %3637 = vmatprep.subr.mxu0 0.0
    %3638 = vmatpush1.msra.mxu0 0.0
    %3639 = vmatprep.subr.mxu0 0.0
    %3640 = vmatpush1.msra.mxu0 0.0
    %3641 = vmatprep.subr.mxu0 0.0
    %3642 = vmatpush1.msra.mxu0 0.0
    %3643 = vmatprep.subr.mxu0 0.0
    %3644 = vmatpush1.msra.mxu0 0.0
    %3645 = vmatprep.subr.mxu0 0.0
    %3646 = vmatpush1.msra.mxu0 0.0
    %3647 = vmatprep.mubr.f32.mxu0 0.0
    %3648 = vmatmul.mubr.f32.gmra.mrb[0].mxu0 %v3581
    %v3649 = vpop.f32.mrb[0].mxu0
    %v3650 = vadd.f32 0.0, %v3649
    %v3651 = vpop.f32.mrb[0].mxu0
    %3652 = vdwg.mxu0
    %v3654 = vsel %vm192, %v3578, 0
    %3656 = vmatprep.subr.mxu0 0.0
    %3657 = vmatpush1.msra.mxu0 %v3041
    %3658 = vmatprep.subr.mxu0 0.0
    %3659 = vmatpush1.msra.mxu0 %v3042
    %3660 = vmatprep.subr.mxu0 0.0
    %3661 = vmatpush1.msra.mxu0 %v3043
    %3662 = vmatprep.subr.mxu0 0.0
    %3663 = vmatpush1.msra.mxu0 %v3044
    %3664 = vmatprep.subr.mxu0 0.0
    %3665 = vmatpush1.msra.mxu0 0.0
    %3666 = vmatprep.subr.mxu0 0.0
    %3667 = vmatpush1.msra.mxu0 0.0
    %3668 = vmatprep.subr.mxu0 0.0
    %3669 = vmatpush1.msra.mxu0 0.0
    %3670 = vmatprep.subr.mxu0 0.0
    %3671 = vmatpush1.msra.mxu0 0.0
    %3672 = vmatprep.subr.mxu0 0.0
    %3673 = vmatpush1.msra.mxu0 0.0
    %3674 = vmatprep.subr.mxu0 0.0
    %3675 = vmatpush1.msra.mxu0 0.0
    %3676 = vmatprep.subr.mxu0 0.0
    %3677 = vmatpush1.msra.mxu0 0.0
    %3678 = vmatprep.subr.mxu0 0.0
    %3679 = vmatpush1.msra.mxu0 0.0
    %3680 = vmatprep.subr.mxu0 0.0
    %3681 = vmatpush1.msra.mxu0 0.0
    %3682 = vmatprep.subr.mxu0 0.0
    %3683 = vmatpush1.msra.mxu0 0.0
    %3684 = vmatprep.subr.mxu0 0.0
    %3685 = vmatpush1.msra.mxu0 0.0
    %3686 = vmatprep.subr.mxu0 0.0
    %3687 = vmatpush1.msra.mxu0 0.0
    %3688 = vmatprep.subr.mxu0 0.0
    %3689 = vmatpush1.msra.mxu0 0.0
    %3690 = vmatprep.subr.mxu0 0.0
    %3691 = vmatpush1.msra.mxu0 0.0
    %3692 = vmatprep.subr.mxu0 0.0
    %3693 = vmatpush1.msra.mxu0 0.0
    %3694 = vmatprep.subr.mxu0 0.0
    %3695 = vmatpush1.msra.mxu0 0.0
    %3696 = vmatprep.subr.mxu0 0.0
    %3697 = vmatpush1.msra.mxu0 0.0
    %3698 = vmatprep.subr.mxu0 0.0
    %3699 = vmatpush1.msra.mxu0 0.0
    %3700 = vmatprep.subr.mxu0 0.0
    %3701 = vmatpush1.msra.mxu0 0.0
    %3702 = vmatprep.subr.mxu0 0.0
    %3703 = vmatpush1.msra.mxu0 0.0
    %3704 = vmatprep.subr.mxu0 0.0
    %3705 = vmatpush1.msra.mxu0 0.0
    %3706 = vmatprep.subr.mxu0 0.0
    %3707 = vmatpush1.msra.mxu0 0.0
    %3708 = vmatprep.subr.mxu0 0.0
    %3709 = vmatpush1.msra.mxu0 0.0
    %3710 = vmatprep.subr.mxu0 0.0
    %3711 = vmatpush1.msra.mxu0 0.0
    %3712 = vmatprep.subr.mxu0 0.0
    %3713 = vmatpush1.msra.mxu0 0.0
    %3714 = vmatprep.subr.mxu0 0.0
    %3715 = vmatpush1.msra.mxu0 0.0
    %3716 = vmatprep.subr.mxu0 0.0
    %3717 = vmatpush1.msra.mxu0 0.0
    %3718 = vmatprep.subr.mxu0 0.0
    %3719 = vmatpush1.msra.mxu0 0.0
    %3720 = vmatprep.mubr.f32.mxu0 0.0
    %3721 = vmatmul.mubr.f32.gmra.mrb[0].mxu0 %v3654
    %v3722 = vpop.f32.mrb[0].mxu0
    %v3723 = vadd.f32 %v3650, %v3722
    %v3724 = vpop.f32.mrb[0].mxu0
    %3725 = vdwg.mxu0
    %v3726 = vsel %vm192, %v3319, 0
    %3728 = vmatprep.subr.mxu0 0.0
    %3729 = vmatpush1.msra.mxu0 %v3049
    %3730 = vmatprep.subr.mxu0 0.0
    %3731 = vmatpush1.msra.mxu0 %v3050
    %3732 = vmatprep.subr.mxu0 0.0
    %3733 = vmatpush1.msra.mxu0 %v3051
    %3734 = vmatprep.subr.mxu0 0.0
    %3735 = vmatpush1.msra.mxu0 %v3052
    %3736 = vmatprep.subr.mxu0 0.0
    %3737 = vmatpush1.msra.mxu0 0.0
    %3738 = vmatprep.subr.mxu0 0.0
    %3739 = vmatpush1.msra.mxu0 0.0
    %3740 = vmatprep.subr.mxu0 0.0
    %3741 = vmatpush1.msra.mxu0 0.0
    %3742 = vmatprep.subr.mxu0 0.0
    %3743 = vmatpush1.msra.mxu0 0.0
    %3744 = vmatprep.subr.mxu0 0.0
    %3745 = vmatpush1.msra.mxu0 0.0
    %3746 = vmatprep.subr.mxu0 0.0
    %3747 = vmatpush1.msra.mxu0 0.0
    %3748 = vmatprep.subr.mxu0 0.0
    %3749 = vmatpush1.msra.mxu0 0.0
    %3750 = vmatprep.subr.mxu0 0.0
    %3751 = vmatpush1.msra.mxu0 0.0
    %3752 = vmatprep.subr.mxu0 0.0
    %3753 = vmatpush1.msra.mxu0 0.0
    %3754 = vmatprep.subr.mxu0 0.0
    %3755 = vmatpush1.msra.mxu0 0.0
    %3756 = vmatprep.subr.mxu0 0.0
    %3757 = vmatpush1.msra.mxu0 0.0
    %3758 = vmatprep.subr.mxu0 0.0
    %3759 = vmatpush1.msra.mxu0 0.0
    %3760 = vmatprep.subr.mxu0 0.0
    %3761 = vmatpush1.msra.mxu0 0.0
    %3762 = vmatprep.subr.mxu0 0.0
    %3763 = vmatpush1.msra.mxu0 0.0
    %3764 = vmatprep.subr.mxu0 0.0
    %3765 = vmatpush1.msra.mxu0 0.0
    %3766 = vmatprep.subr.mxu0 0.0
    %3767 = vmatpush1.msra.mxu0 0.0
    %3768 = vmatprep.subr.mxu0 0.0
    %3769 = vmatpush1.msra.mxu0 0.0
    %3770 = vmatprep.subr.mxu0 0.0
    %3771 = vmatpush1.msra.mxu0 0.0
    %3772 = vmatprep.subr.mxu0 0.0
    %3773 = vmatpush1.msra.mxu0 0.0
    %3774 = vmatprep.subr.mxu0 0.0
    %3775 = vmatpush1.msra.mxu0 0.0
    %3776 = vmatprep.subr.mxu0 0.0
    %3777 = vmatpush1.msra.mxu0 0.0
    %3778 = vmatprep.subr.mxu0 0.0
    %3779 = vmatpush1.msra.mxu0 0.0
    %3780 = vmatprep.subr.mxu0 0.0
    %3781 = vmatpush1.msra.mxu0 0.0
    %3782 = vmatprep.subr.mxu0 0.0
    %3783 = vmatpush1.msra.mxu0 0.0
    %3784 = vmatprep.subr.mxu0 0.0
    %3785 = vmatpush1.msra.mxu0 0.0
    %3786 = vmatprep.subr.mxu0 0.0
    %3787 = vmatpush1.msra.mxu0 0.0
    %3788 = vmatprep.subr.mxu0 0.0
    %3789 = vmatpush1.msra.mxu0 0.0
    %3790 = vmatprep.subr.mxu0 0.0
    %3791 = vmatpush1.msra.mxu0 0.0
    %3792 = vmatprep.mubr.f32.mxu0 0.0
    %3793 = vmatmul.mubr.f32.gmra.mrb[0].mxu0 %v3726
    %v3794 = vpop.f32.mrb[0].mxu0
    %v3795 = vadd.f32 0.0, %v3794
    %v3796 = vpop.f32.mrb[0].mxu0
    %3797 = vdwg.mxu0
    %v3798 = vadd.f32 %v3723, %v3795
    %v3799 = vadd.f32 %v3798, %v3290
    %v3800 = vxor.u32 %v3799, 2147483648
    %v3801 = vmul.f32 %v3800, 1.442695
    %v3802 = vpow.pop %v3801
    %v3803 = vadd.f32 %v3802, 1.0
    %v3804 = vrcp.pop %v3803
    %v3805 = vmul.f32 1.0, %v3804
    %v3806 = vtanh.pop %v3799
    %v3807 = vmul.f32 %v3805, %v3310
    %3809 = vrot.lane.b32.xlu0 %v3806, 64
    %v3810 = vpop.permute.xlu0 %3809
    %v3812 = vmul.f32 %v3805, %v3810
    %3814 = vrot.lane.b32.xlu0 %v3812, 32
    %v3815 = vpop.permute.xlu0 %3814
    %v3817 = vadd.f32 %v3807, %v3815
    %v3818 = vtanh.pop %v3817
    %3820 = vrot.lane.b32.xlu0 %v3818, 64
    %v3821 = vpop.permute.xlu0 %3820
    %v3823 = vmul.f32 %v3805, %v3821
    %3825 = vrot.lane.b32.xlu0 %v3823, 32
    %v3826 = vpop.permute.xlu0 %3825
    %s3828 = scalar_lea.vmem [#allocation4], 2
    %3829 = vst.msk [vmem:[%s3828] sm:$0x3] %vm374, %v3826
    %v3830 = vld [vmem:[%s2509] sm:$0x3]
    %v3831 = vld [vmem:[%s912] sm:$0x3]
    %v3833 = vsel %vm192, %v3831, 0
    %3835 = vmatprep.subr.mxu0 0.0
    %3836 = vmatpush1.msra.mxu0 %v3058
    %3837 = vmatprep.subr.mxu0 0.0
    %3838 = vmatpush1.msra.mxu0 %v3059
    %3839 = vmatprep.subr.mxu0 0.0
    %3840 = vmatpush1.msra.mxu0 %v3060
    %3841 = vmatprep.subr.mxu0 0.0
    %3842 = vmatpush1.msra.mxu0 %v3061
    %3843 = vmatprep.subr.mxu0 0.0
    %3844 = vmatpush1.msra.mxu0 0.0
    %3845 = vmatprep.subr.mxu0 0.0
    %3846 = vmatpush1.msra.mxu0 0.0
    %3847 = vmatprep.subr.mxu0 0.0
    %3848 = vmatpush1.msra.mxu0 0.0
    %3849 = vmatprep.subr.mxu0 0.0
    %3850 = vmatpush1.msra.mxu0 0.0
    %3851 = vmatprep.subr.mxu0 0.0
    %3852 = vmatpush1.msra.mxu0 0.0
    %3853 = vmatprep.subr.mxu0 0.0
    %3854 = vmatpush1.msra.mxu0 0.0
    %3855 = vmatprep.subr.mxu0 0.0
    %3856 = vmatpush1.msra.mxu0 0.0
    %3857 = vmatprep.subr.mxu0 0.0
    %3858 = vmatpush1.msra.mxu0 0.0
    %3859 = vmatprep.subr.mxu0 0.0
    %3860 = vmatpush1.msra.mxu0 0.0
    %3861 = vmatprep.subr.mxu0 0.0
    %3862 = vmatpush1.msra.mxu0 0.0
    %3863 = vmatprep.subr.mxu0 0.0
    %3864 = vmatpush1.msra.mxu0 0.0
    %3865 = vmatprep.subr.mxu0 0.0
    %3866 = vmatpush1.msra.mxu0 0.0
    %3867 = vmatprep.subr.mxu0 0.0
    %3868 = vmatpush1.msra.mxu0 0.0
    %3869 = vmatprep.subr.mxu0 0.0
    %3870 = vmatpush1.msra.mxu0 0.0
    %3871 = vmatprep.subr.mxu0 0.0
    %3872 = vmatpush1.msra.mxu0 0.0
    %3873 = vmatprep.subr.mxu0 0.0
    %3874 = vmatpush1.msra.mxu0 0.0
    %3875 = vmatprep.subr.mxu0 0.0
    %3876 = vmatpush1.msra.mxu0 0.0
    %3877 = vmatprep.subr.mxu0 0.0
    %3878 = vmatpush1.msra.mxu0 0.0
    %3879 = vmatprep.subr.mxu0 0.0
    %3880 = vmatpush1.msra.mxu0 0.0
    %3881 = vmatprep.subr.mxu0 0.0
    %3882 = vmatpush1.msra.mxu0 0.0
    %3883 = vmatprep.subr.mxu0 0.0
    %3884 = vmatpush1.msra.mxu0 0.0
    %3885 = vmatprep.subr.mxu0 0.0
    %3886 = vmatpush1.msra.mxu0 0.0
    %3887 = vmatprep.subr.mxu0 0.0
    %3888 = vmatpush1.msra.mxu0 0.0
    %3889 = vmatprep.subr.mxu0 0.0
    %3890 = vmatpush1.msra.mxu0 0.0
    %3891 = vmatprep.subr.mxu0 0.0
    %3892 = vmatpush1.msra.mxu0 0.0
    %3893 = vmatprep.subr.mxu0 0.0
    %3894 = vmatpush1.msra.mxu0 0.0
    %3895 = vmatprep.subr.mxu0 0.0
    %3896 = vmatpush1.msra.mxu0 0.0
    %3897 = vmatprep.subr.mxu0 0.0
    %3898 = vmatpush1.msra.mxu0 0.0
    %3899 = vmatprep.mubr.f32.mxu0 0.0
    %3900 = vmatmul.mubr.f32.gmra.mrb[0].mxu0 %v3833
    %v3901 = vpop.f32.mrb[0].mxu0
    %v3902 = vadd.f32 0.0, %v3901
    %v3903 = vpop.f32.mrb[0].mxu0
    %3904 = vdwg.mxu0
    %v3906 = vsel %vm192, %v3830, 0
    %3908 = vmatprep.subr.mxu0 0.0
    %3909 = vmatpush1.msra.mxu0 %v3054
    %3910 = vmatprep.subr.mxu0 0.0
    %3911 = vmatpush1.msra.mxu0 %v3055
    %3912 = vmatprep.subr.mxu0 0.0
    %3913 = vmatpush1.msra.mxu0 %v3056
    %3914 = vmatprep.subr.mxu0 0.0
    %3915 = vmatpush1.msra.mxu0 %v3057
    %3916 = vmatprep.subr.mxu0 0.0
    %3917 = vmatpush1.msra.mxu0 0.0
    %3918 = vmatprep.subr.mxu0 0.0
    %3919 = vmatpush1.msra.mxu0 0.0
    %3920 = vmatprep.subr.mxu0 0.0
    %3921 = vmatpush1.msra.mxu0 0.0
    %3922 = vmatprep.subr.mxu0 0.0
    %3923 = vmatpush1.msra.mxu0 0.0
    %3924 = vmatprep.subr.mxu0 0.0
    %3925 = vmatpush1.msra.mxu0 0.0
    %3926 = vmatprep.subr.mxu0 0.0
    %3927 = vmatpush1.msra.mxu0 0.0
    %3928 = vmatprep.subr.mxu0 0.0
    %3929 = vmatpush1.msra.mxu0 0.0
    %3930 = vmatprep.subr.mxu0 0.0
    %3931 = vmatpush1.msra.mxu0 0.0
    %3932 = vmatprep.subr.mxu0 0.0
    %3933 = vmatpush1.msra.mxu0 0.0
    %3934 = vmatprep.subr.mxu0 0.0
    %3935 = vmatpush1.msra.mxu0 0.0
    %3936 = vmatprep.subr.mxu0 0.0
    %3937 = vmatpush1.msra.mxu0 0.0
    %3938 = vmatprep.subr.mxu0 0.0
    %3939 = vmatpush1.msra.mxu0 0.0
    %3940 = vmatprep.subr.mxu0 0.0
    %3941 = vmatpush1.msra.mxu0 0.0
    %3942 = vmatprep.subr.mxu0 0.0
    %3943 = vmatpush1.msra.mxu0 0.0
    %3944 = vmatprep.subr.mxu0 0.0
    %3945 = vmatpush1.msra.mxu0 0.0
    %3946 = vmatprep.subr.mxu0 0.0
    %3947 = vmatpush1.msra.mxu0 0.0
    %3948 = vmatprep.subr.mxu0 0.0
    %3949 = vmatpush1.msra.mxu0 0.0
    %3950 = vmatprep.subr.mxu0 0.0
    %3951 = vmatpush1.msra.mxu0 0.0
    %3952 = vmatprep.subr.mxu0 0.0
    %3953 = vmatpush1.msra.mxu0 0.0
    %3954 = vmatprep.subr.mxu0 0.0
    %3955 = vmatpush1.msra.mxu0 0.0
    %3956 = vmatprep.subr.mxu0 0.0
    %3957 = vmatpush1.msra.mxu0 0.0
    %3958 = vmatprep.subr.mxu0 0.0
    %3959 = vmatpush1.msra.mxu0 0.0
    %3960 = vmatprep.subr.mxu0 0.0
    %3961 = vmatpush1.msra.mxu0 0.0
    %3962 = vmatprep.subr.mxu0 0.0
    %3963 = vmatpush1.msra.mxu0 0.0
    %3964 = vmatprep.subr.mxu0 0.0
    %3965 = vmatpush1.msra.mxu0 0.0
    %3966 = vmatprep.subr.mxu0 0.0
    %3967 = vmatpush1.msra.mxu0 0.0
    %3968 = vmatprep.subr.mxu0 0.0
    %3969 = vmatpush1.msra.mxu0 0.0
    %3970 = vmatprep.subr.mxu0 0.0
    %3971 = vmatpush1.msra.mxu0 0.0
    %3972 = vmatprep.mubr.f32.mxu0 0.0
    %3973 = vmatmul.mubr.f32.gmra.mrb[0].mxu0 %v3906
    %v3974 = vpop.f32.mrb[0].mxu0
    %v3975 = vadd.f32 %v3902, %v3974
    %v3976 = vpop.f32.mrb[0].mxu0
    %3977 = vdwg.mxu0
    %v3978 = vsel %vm192, %v3574, 0
    %3980 = vmatprep.subr.mxu0 0.0
    %3981 = vmatpush1.msra.mxu0 %v3062
    %3982 = vmatprep.subr.mxu0 0.0
    %3983 = vmatpush1.msra.mxu0 %v3063
    %3984 = vmatprep.subr.mxu0 0.0
    %3985 = vmatpush1.msra.mxu0 %v3064
    %3986 = vmatprep.subr.mxu0 0.0
    %3987 = vmatpush1.msra.mxu0 %v3065
    %3988 = vmatprep.subr.mxu0 0.0
    %3989 = vmatpush1.msra.mxu0 0.0
    %3990 = vmatprep.subr.mxu0 0.0
    %3991 = vmatpush1.msra.mxu0 0.0
    %3992 = vmatprep.subr.mxu0 0.0
    %3993 = vmatpush1.msra.mxu0 0.0
    %3994 = vmatprep.subr.mxu0 0.0
    %3995 = vmatpush1.msra.mxu0 0.0
    %3996 = vmatprep.subr.mxu0 0.0
    %3997 = vmatpush1.msra.mxu0 0.0
    %3998 = vmatprep.subr.mxu0 0.0
    %3999 = vmatpush1.msra.mxu0 0.0
    %4000 = vmatprep.subr.mxu0 0.0
    %4001 = vmatpush1.msra.mxu0 0.0
    %4002 = vmatprep.subr.mxu0 0.0
    %4003 = vmatpush1.msra.mxu0 0.0
    %4004 = vmatprep.subr.mxu0 0.0
    %4005 = vmatpush1.msra.mxu0 0.0
    %4006 = vmatprep.subr.mxu0 0.0
    %4007 = vmatpush1.msra.mxu0 0.0
    %4008 = vmatprep.subr.mxu0 0.0
    %4009 = vmatpush1.msra.mxu0 0.0
    %4010 = vmatprep.subr.mxu0 0.0
    %4011 = vmatpush1.msra.mxu0 0.0
    %4012 = vmatprep.subr.mxu0 0.0
    %4013 = vmatpush1.msra.mxu0 0.0
    %4014 = vmatprep.subr.mxu0 0.0
    %4015 = vmatpush1.msra.mxu0 0.0
    %4016 = vmatprep.subr.mxu0 0.0
    %4017 = vmatpush1.msra.mxu0 0.0
    %4018 = vmatprep.subr.mxu0 0.0
    %4019 = vmatpush1.msra.mxu0 0.0
    %4020 = vmatprep.subr.mxu0 0.0
    %4021 = vmatpush1.msra.mxu0 0.0
    %4022 = vmatprep.subr.mxu0 0.0
    %4023 = vmatpush1.msra.mxu0 0.0
    %4024 = vmatprep.subr.mxu0 0.0
    %4025 = vmatpush1.msra.mxu0 0.0
    %4026 = vmatprep.subr.mxu0 0.0
    %4027 = vmatpush1.msra.mxu0 0.0
    %4028 = vmatprep.subr.mxu0 0.0
    %4029 = vmatpush1.msra.mxu0 0.0
    %4030 = vmatprep.subr.mxu0 0.0
    %4031 = vmatpush1.msra.mxu0 0.0
    %4032 = vmatprep.subr.mxu0 0.0
    %4033 = vmatpush1.msra.mxu0 0.0
    %4034 = vmatprep.subr.mxu0 0.0
    %4035 = vmatpush1.msra.mxu0 0.0
    %4036 = vmatprep.subr.mxu0 0.0
    %4037 = vmatpush1.msra.mxu0 0.0
    %4038 = vmatprep.subr.mxu0 0.0
    %4039 = vmatpush1.msra.mxu0 0.0
    %4040 = vmatprep.subr.mxu0 0.0
    %4041 = vmatpush1.msra.mxu0 0.0
    %4042 = vmatprep.subr.mxu0 0.0
    %4043 = vmatpush1.msra.mxu0 0.0
    %4044 = vmatprep.mubr.f32.mxu0 0.0
    %4045 = vmatmul.mubr.f32.gmra.mrb[0].mxu0 %v3978
    %v4046 = vpop.f32.mrb[0].mxu0
    %v4047 = vadd.f32 0.0, %v4046
    %v4048 = vpop.f32.mrb[0].mxu0
    %4049 = vdwg.mxu0
    %v4050 = vadd.f32 %v3975, %v4047
    %v4051 = vadd.f32 %v4050, %v3545
    %v4052 = vxor.u32 %v4051, 2147483648
    %v4053 = vmul.f32 %v4052, 1.442695
    %v4054 = vpow.pop %v4053
    %v4055 = vadd.f32 %v4054, 1.0
    %v4056 = vrcp.pop %v4055
    %v4057 = vmul.f32 1.0, %v4056
    %v4058 = vtanh.pop %v4051
    %v4059 = vmul.f32 %v4057, %v3565
    %4061 = vrot.lane.b32.xlu0 %v4058, 64
    %v4062 = vpop.permute.xlu0 %4061
    %v4064 = vmul.f32 %v4057, %v4062
    %4066 = vrot.lane.b32.xlu0 %v4064, 32
    %v4067 = vpop.permute.xlu0 %4066
    %v4069 = vadd.f32 %v4059, %v4067
    %v4070 = vtanh.pop %v4069
    %4072 = vrot.lane.b32.xlu0 %v4070, 64
    %v4073 = vpop.permute.xlu0 %4072
    %v4075 = vmul.f32 %v4057, %v4073
    %4077 = vrot.lane.b32.xlu0 %v4075, 32
    %v4078 = vpop.permute.xlu0 %4077
    %s4080 = scalar_lea.vmem [#allocation5], 12
    %4081 = vst.msk [vmem:[%s4080] sm:$0x3] %vm374, %v4078
    %v4082 = vld [vmem:[%s1090] sm:$0x3]
    %v4083 = vld [vmem:[%s2332] sm:$0x3]
    %v4085 = vsel %vm192, %v4083, 0
    %4087 = vmatprep.subr.mxu0 0.0
    %4088 = vmatpush1.msra.mxu0 %v3045
    %4089 = vmatprep.subr.mxu0 0.0
    %4090 = vmatpush1.msra.mxu0 %v3046
    %4091 = vmatprep.subr.mxu0 0.0
    %4092 = vmatpush1.msra.mxu0 %v3047
    %4093 = vmatprep.subr.mxu0 0.0
    %4094 = vmatpush1.msra.mxu0 %v3048
    %4095 = vmatprep.subr.mxu0 0.0
    %4096 = vmatpush1.msra.mxu0 0.0
    %4097 = vmatprep.subr.mxu0 0.0
    %4098 = vmatpush1.msra.mxu0 0.0
    %4099 = vmatprep.subr.mxu0 0.0
    %4100 = vmatpush1.msra.mxu0 0.0
    %4101 = vmatprep.subr.mxu0 0.0
    %4102 = vmatpush1.msra.mxu0 0.0
    %4103 = vmatprep.subr.mxu0 0.0
    %4104 = vmatpush1.msra.mxu0 0.0
    %4105 = vmatprep.subr.mxu0 0.0
    %4106 = vmatpush1.msra.mxu0 0.0
    %4107 = vmatprep.subr.mxu0 0.0
    %4108 = vmatpush1.msra.mxu0 0.0
    %4109 = vmatprep.subr.mxu0 0.0
    %4110 = vmatpush1.msra.mxu0 0.0
    %4111 = vmatprep.subr.mxu0 0.0
    %4112 = vmatpush1.msra.mxu0 0.0
    %4113 = vmatprep.subr.mxu0 0.0
    %4114 = vmatpush1.msra.mxu0 0.0
    %4115 = vmatprep.subr.mxu0 0.0
    %4116 = vmatpush1.msra.mxu0 0.0
    %4117 = vmatprep.subr.mxu0 0.0
    %4118 = vmatpush1.msra.mxu0 0.0
    %4119 = vmatprep.subr.mxu0 0.0
    %4120 = vmatpush1.msra.mxu0 0.0
    %4121 = vmatprep.subr.mxu0 0.0
    %4122 = vmatpush1.msra.mxu0 0.0
    %4123 = vmatprep.subr.mxu0 0.0
    %4124 = vmatpush1.msra.mxu0 0.0
    %4125 = vmatprep.subr.mxu0 0.0
    %4126 = vmatpush1.msra.mxu0 0.0
    %4127 = vmatprep.subr.mxu0 0.0
    %4128 = vmatpush1.msra.mxu0 0.0
    %4129 = vmatprep.subr.mxu0 0.0
    %4130 = vmatpush1.msra.mxu0 0.0
    %4131 = vmatprep.subr.mxu0 0.0
    %4132 = vmatpush1.msra.mxu0 0.0
    %4133 = vmatprep.subr.mxu0 0.0
    %4134 = vmatpush1.msra.mxu0 0.0
    %4135 = vmatprep.subr.mxu0 0.0
    %4136 = vmatpush1.msra.mxu0 0.0
    %4137 = vmatprep.subr.mxu0 0.0
    %4138 = vmatpush1.msra.mxu0 0.0
    %4139 = vmatprep.subr.mxu0 0.0
    %4140 = vmatpush1.msra.mxu0 0.0
    %4141 = vmatprep.subr.mxu0 0.0
    %4142 = vmatpush1.msra.mxu0 0.0
    %4143 = vmatprep.subr.mxu0 0.0
    %4144 = vmatpush1.msra.mxu0 0.0
    %4145 = vmatprep.subr.mxu0 0.0
    %4146 = vmatpush1.msra.mxu0 0.0
    %4147 = vmatprep.subr.mxu0 0.0
    %4148 = vmatpush1.msra.mxu0 0.0
    %4149 = vmatprep.subr.mxu0 0.0
    %4150 = vmatpush1.msra.mxu0 0.0
    %4151 = vmatprep.mubr.f32.mxu0 0.0
    %4152 = vmatmul.mubr.f32.gmra.mrb[0].mxu0 %v4085
    %v4153 = vpop.f32.mrb[0].mxu0
    %v4154 = vadd.f32 0.0, %v4153
    %v4155 = vpop.f32.mrb[0].mxu0
    %4156 = vdwg.mxu0
    %v4158 = vsel %vm192, %v4082, 0
    %4160 = vmatprep.subr.mxu0 0.0
    %4161 = vmatpush1.msra.mxu0 %v3041
    %4162 = vmatprep.subr.mxu0 0.0
    %4163 = vmatpush1.msra.mxu0 %v3042
    %4164 = vmatprep.subr.mxu0 0.0
    %4165 = vmatpush1.msra.mxu0 %v3043
    %4166 = vmatprep.subr.mxu0 0.0
    %4167 = vmatpush1.msra.mxu0 %v3044
    %4168 = vmatprep.subr.mxu0 0.0
    %4169 = vmatpush1.msra.mxu0 0.0
    %4170 = vmatprep.subr.mxu0 0.0
    %4171 = vmatpush1.msra.mxu0 0.0
    %4172 = vmatprep.subr.mxu0 0.0
    %4173 = vmatpush1.msra.mxu0 0.0
    %4174 = vmatprep.subr.mxu0 0.0
    %4175 = vmatpush1.msra.mxu0 0.0
    %4176 = vmatprep.subr.mxu0 0.0
    %4177 = vmatpush1.msra.mxu0 0.0
    %4178 = vmatprep.subr.mxu0 0.0
    %4179 = vmatpush1.msra.mxu0 0.0
    %4180 = vmatprep.subr.mxu0 0.0
    %4181 = vmatpush1.msra.mxu0 0.0
    %4182 = vmatprep.subr.mxu0 0.0
    %4183 = vmatpush1.msra.mxu0 0.0
    %4184 = vmatprep.subr.mxu0 0.0
    %4185 = vmatpush1.msra.mxu0 0.0
    %4186 = vmatprep.subr.mxu0 0.0
    %4187 = vmatpush1.msra.mxu0 0.0
    %4188 = vmatprep.subr.mxu0 0.0
    %4189 = vmatpush1.msra.mxu0 0.0
    %4190 = vmatprep.subr.mxu0 0.0
    %4191 = vmatpush1.msra.mxu0 0.0
    %4192 = vmatprep.subr.mxu0 0.0
    %4193 = vmatpush1.msra.mxu0 0.0
    %4194 = vmatprep.subr.mxu0 0.0
    %4195 = vmatpush1.msra.mxu0 0.0
    %4196 = vmatprep.subr.mxu0 0.0
    %4197 = vmatpush1.msra.mxu0 0.0
    %4198 = vmatprep.subr.mxu0 0.0
    %4199 = vmatpush1.msra.mxu0 0.0
    %4200 = vmatprep.subr.mxu0 0.0
    %4201 = vmatpush1.msra.mxu0 0.0
    %4202 = vmatprep.subr.mxu0 0.0
    %4203 = vmatpush1.msra.mxu0 0.0
    %4204 = vmatprep.subr.mxu0 0.0
    %4205 = vmatpush1.msra.mxu0 0.0
    %4206 = vmatprep.subr.mxu0 0.0
    %4207 = vmatpush1.msra.mxu0 0.0
    %4208 = vmatprep.subr.mxu0 0.0
    %4209 = vmatpush1.msra.mxu0 0.0
    %4210 = vmatprep.subr.mxu0 0.0
    %4211 = vmatpush1.msra.mxu0 0.0
    %4212 = vmatprep.subr.mxu0 0.0
    %4213 = vmatpush1.msra.mxu0 0.0
    %4214 = vmatprep.subr.mxu0 0.0
    %4215 = vmatpush1.msra.mxu0 0.0
    %4216 = vmatprep.subr.mxu0 0.0
    %4217 = vmatpush1.msra.mxu0 0.0
    %4218 = vmatprep.subr.mxu0 0.0
    %4219 = vmatpush1.msra.mxu0 0.0
    %4220 = vmatprep.subr.mxu0 0.0
    %4221 = vmatpush1.msra.mxu0 0.0
    %4222 = vmatprep.subr.mxu0 0.0
    %4223 = vmatpush1.msra.mxu0 0.0
    %4224 = vmatprep.mubr.f32.mxu0 0.0
    %4225 = vmatmul.mubr.f32.gmra.mrb[0].mxu0 %v4158
    %v4226 = vpop.f32.mrb[0].mxu0
    %v4227 = vadd.f32 %v4154, %v4226
    %v4228 = vpop.f32.mrb[0].mxu0
    %4229 = vdwg.mxu0
    %v4230 = vsel %vm192, %v3826, 0
    %4232 = vmatprep.subr.mxu0 0.0
    %4233 = vmatpush1.msra.mxu0 %v3049
    %4234 = vmatprep.subr.mxu0 0.0
    %4235 = vmatpush1.msra.mxu0 %v3050
    %4236 = vmatprep.subr.mxu0 0.0
    %4237 = vmatpush1.msra.mxu0 %v3051
    %4238 = vmatprep.subr.mxu0 0.0
    %4239 = vmatpush1.msra.mxu0 %v3052
    %4240 = vmatprep.subr.mxu0 0.0
    %4241 = vmatpush1.msra.mxu0 0.0
    %4242 = vmatprep.subr.mxu0 0.0
    %4243 = vmatpush1.msra.mxu0 0.0
    %4244 = vmatprep.subr.mxu0 0.0
    %4245 = vmatpush1.msra.mxu0 0.0
    %4246 = vmatprep.subr.mxu0 0.0
    %4247 = vmatpush1.msra.mxu0 0.0
    %4248 = vmatprep.subr.mxu0 0.0
    %4249 = vmatpush1.msra.mxu0 0.0
    %4250 = vmatprep.subr.mxu0 0.0
    %4251 = vmatpush1.msra.mxu0 0.0
    %4252 = vmatprep.subr.mxu0 0.0
    %4253 = vmatpush1.msra.mxu0 0.0
    %4254 = vmatprep.subr.mxu0 0.0
    %4255 = vmatpush1.msra.mxu0 0.0
    %4256 = vmatprep.subr.mxu0 0.0
    %4257 = vmatpush1.msra.mxu0 0.0
    %4258 = vmatprep.subr.mxu0 0.0
    %4259 = vmatpush1.msra.mxu0 0.0
    %4260 = vmatprep.subr.mxu0 0.0
    %4261 = vmatpush1.msra.mxu0 0.0
    %4262 = vmatprep.subr.mxu0 0.0
    %4263 = vmatpush1.msra.mxu0 0.0
    %4264 = vmatprep.subr.mxu0 0.0
    %4265 = vmatpush1.msra.mxu0 0.0
    %4266 = vmatprep.subr.mxu0 0.0
    %4267 = vmatpush1.msra.mxu0 0.0
    %4268 = vmatprep.subr.mxu0 0.0
    %4269 = vmatpush1.msra.mxu0 0.0
    %4270 = vmatprep.subr.mxu0 0.0
    %4271 = vmatpush1.msra.mxu0 0.0
    %4272 = vmatprep.subr.mxu0 0.0
    %4273 = vmatpush1.msra.mxu0 0.0
    %4274 = vmatprep.subr.mxu0 0.0
    %4275 = vmatpush1.msra.mxu0 0.0
    %4276 = vmatprep.subr.mxu0 0.0
    %4277 = vmatpush1.msra.mxu0 0.0
    %4278 = vmatprep.subr.mxu0 0.0
    %4279 = vmatpush1.msra.mxu0 0.0
    %4280 = vmatprep.subr.mxu0 0.0
    %4281 = vmatpush1.msra.mxu0 0.0
    %4282 = vmatprep.subr.mxu0 0.0
    %4283 = vmatpush1.msra.mxu0 0.0
    %4284 = vmatprep.subr.mxu0 0.0
    %4285 = vmatpush1.msra.mxu0 0.0
    %4286 = vmatprep.subr.mxu0 0.0
    %4287 = vmatpush1.msra.mxu0 0.0
    %4288 = vmatprep.subr.mxu0 0.0
    %4289 = vmatpush1.msra.mxu0 0.0
    %4290 = vmatprep.subr.mxu0 0.0
    %4291 = vmatpush1.msra.mxu0 0.0
    %4292 = vmatprep.subr.mxu0 0.0
    %4293 = vmatpush1.msra.mxu0 0.0
    %4294 = vmatprep.subr.mxu0 0.0
    %4295 = vmatpush1.msra.mxu0 0.0
    %4296 = vmatprep.mubr.f32.mxu0 0.0
    %4297 = vmatmul.mubr.f32.gmra.mrb[0].mxu0 %v4230
    %v4298 = vpop.f32.mrb[0].mxu0
    %v4299 = vadd.f32 0.0, %v4298
    %v4300 = vpop.f32.mrb[0].mxu0
    %4301 = vdwg.mxu0
    %v4302 = vadd.f32 %v4227, %v4299
    %v4303 = vadd.f32 %v4302, %v3290
    %v4304 = vxor.u32 %v4303, 2147483648
    %v4305 = vmul.f32 %v4304, 1.442695
    %v4306 = vpow.pop %v4305
    %v4307 = vadd.f32 %v4306, 1.0
    %v4308 = vrcp.pop %v4307
    %v4309 = vmul.f32 1.0, %v4308
    %v4310 = vtanh.pop %v4303
    %v4311 = vmul.f32 %v4309, %v3817
    %4313 = vrot.lane.b32.xlu0 %v4310, 64
    %v4314 = vpop.permute.xlu0 %4313
    %v4316 = vmul.f32 %v4309, %v4314
    %4318 = vrot.lane.b32.xlu0 %v4316, 32
    %v4319 = vpop.permute.xlu0 %4318
    %v4321 = vadd.f32 %v4311, %v4319
    %v4322 = vtanh.pop %v4321
    %4324 = vrot.lane.b32.xlu0 %v4322, 64
    %v4325 = vpop.permute.xlu0 %4324
    %v4327 = vmul.f32 %v4309, %v4325
    %4329 = vrot.lane.b32.xlu0 %v4327, 32
    %v4330 = vpop.permute.xlu0 %4329
    %s4332 = scalar_lea.vmem [#allocation4], 4
    %4333 = vst.msk [vmem:[%s4332] sm:$0x3] %vm374, %v4330
    %v4334 = vld [vmem:[%s2155] sm:$0x3]
    %v4335 = vld [vmem:[%s1268] sm:$0x3]
    %v4337 = vsel %vm192, %v4335, 0
    %4339 = vmatprep.subr.mxu0 0.0
    %4340 = vmatpush1.msra.mxu0 %v3058
    %4341 = vmatprep.subr.mxu0 0.0
    %4342 = vmatpush1.msra.mxu0 %v3059
    %4343 = vmatprep.subr.mxu0 0.0
    %4344 = vmatpush1.msra.mxu0 %v3060
    %4345 = vmatprep.subr.mxu0 0.0
    %4346 = vmatpush1.msra.mxu0 %v3061
    %4347 = vmatprep.subr.mxu0 0.0
    %4348 = vmatpush1.msra.mxu0 0.0
    %4349 = vmatprep.subr.mxu0 0.0
    %4350 = vmatpush1.msra.mxu0 0.0
    %4351 = vmatprep.subr.mxu0 0.0
    %4352 = vmatpush1.msra.mxu0 0.0
    %4353 = vmatprep.subr.mxu0 0.0
    %4354 = vmatpush1.msra.mxu0 0.0
    %4355 = vmatprep.subr.mxu0 0.0
    %4356 = vmatpush1.msra.mxu0 0.0
    %4357 = vmatprep.subr.mxu0 0.0
    %4358 = vmatpush1.msra.mxu0 0.0
    %4359 = vmatprep.subr.mxu0 0.0
    %4360 = vmatpush1.msra.mxu0 0.0
    %4361 = vmatprep.subr.mxu0 0.0
    %4362 = vmatpush1.msra.mxu0 0.0
    %4363 = vmatprep.subr.mxu0 0.0
    %4364 = vmatpush1.msra.mxu0 0.0
    %4365 = vmatprep.subr.mxu0 0.0
    %4366 = vmatpush1.msra.mxu0 0.0
    %4367 = vmatprep.subr.mxu0 0.0
    %4368 = vmatpush1.msra.mxu0 0.0
    %4369 = vmatprep.subr.mxu0 0.0
    %4370 = vmatpush1.msra.mxu0 0.0
    %4371 = vmatprep.subr.mxu0 0.0
    %4372 = vmatpush1.msra.mxu0 0.0
    %4373 = vmatprep.subr.mxu0 0.0
    %4374 = vmatpush1.msra.mxu0 0.0
    %4375 = vmatprep.subr.mxu0 0.0
    %4376 = vmatpush1.msra.mxu0 0.0
    %4377 = vmatprep.subr.mxu0 0.0
    %4378 = vmatpush1.msra.mxu0 0.0
    %4379 = vmatprep.subr.mxu0 0.0
    %4380 = vmatpush1.msra.mxu0 0.0
    %4381 = vmatprep.subr.mxu0 0.0
    %4382 = vmatpush1.msra.mxu0 0.0
    %4383 = vmatprep.subr.mxu0 0.0
    %4384 = vmatpush1.msra.mxu0 0.0
    %4385 = vmatprep.subr.mxu0 0.0
    %4386 = vmatpush1.msra.mxu0 0.0
    %4387 = vmatprep.subr.mxu0 0.0
    %4388 = vmatpush1.msra.mxu0 0.0
    %4389 = vmatprep.subr.mxu0 0.0
    %4390 = vmatpush1.msra.mxu0 0.0
    %4391 = vmatprep.subr.mxu0 0.0
    %4392 = vmatpush1.msra.mxu0 0.0
    %4393 = vmatprep.subr.mxu0 0.0
    %4394 = vmatpush1.msra.mxu0 0.0
    %4395 = vmatprep.subr.mxu0 0.0
    %4396 = vmatpush1.msra.mxu0 0.0
    %4397 = vmatprep.subr.mxu0 0.0
    %4398 = vmatpush1.msra.mxu0 0.0
    %4399 = vmatprep.subr.mxu0 0.0
    %4400 = vmatpush1.msra.mxu0 0.0
    %4401 = vmatprep.subr.mxu0 0.0
    %4402 = vmatpush1.msra.mxu0 0.0
    %4403 = vmatprep.mubr.f32.mxu0 0.0
    %4404 = vmatmul.mubr.f32.gmra.mrb[0].mxu0 %v4337
    %v4405 = vpop.f32.mrb[0].mxu0
    %v4406 = vadd.f32 0.0, %v4405
    %v4407 = vpop.f32.mrb[0].mxu0
    %4408 = vdwg.mxu0
    %v4410 = vsel %vm192, %v4334, 0
    %4412 = vmatprep.subr.mxu0 0.0
    %4413 = vmatpush1.msra.mxu0 %v3054
    %4414 = vmatprep.subr.mxu0 0.0
    %4415 = vmatpush1.msra.mxu0 %v3055
    %4416 = vmatprep.subr.mxu0 0.0
    %4417 = vmatpush1.msra.mxu0 %v3056
    %4418 = vmatprep.subr.mxu0 0.0
    %4419 = vmatpush1.msra.mxu0 %v3057
    %4420 = vmatprep.subr.mxu0 0.0
    %4421 = vmatpush1.msra.mxu0 0.0
    %4422 = vmatprep.subr.mxu0 0.0
    %4423 = vmatpush1.msra.mxu0 0.0
    %4424 = vmatprep.subr.mxu0 0.0
    %4425 = vmatpush1.msra.mxu0 0.0
    %4426 = vmatprep.subr.mxu0 0.0
    %4427 = vmatpush1.msra.mxu0 0.0
    %4428 = vmatprep.subr.mxu0 0.0
    %4429 = vmatpush1.msra.mxu0 0.0
    %4430 = vmatprep.subr.mxu0 0.0
    %4431 = vmatpush1.msra.mxu0 0.0
    %4432 = vmatprep.subr.mxu0 0.0
    %4433 = vmatpush1.msra.mxu0 0.0
    %4434 = vmatprep.subr.mxu0 0.0
    %4435 = vmatpush1.msra.mxu0 0.0
    %4436 = vmatprep.subr.mxu0 0.0
    %4437 = vmatpush1.msra.mxu0 0.0
    %4438 = vmatprep.subr.mxu0 0.0
    %4439 = vmatpush1.msra.mxu0 0.0
    %4440 = vmatprep.subr.mxu0 0.0
    %4441 = vmatpush1.msra.mxu0 0.0
    %4442 = vmatprep.subr.mxu0 0.0
    %4443 = vmatpush1.msra.mxu0 0.0
    %4444 = vmatprep.subr.mxu0 0.0
    %4445 = vmatpush1.msra.mxu0 0.0
    %4446 = vmatprep.subr.mxu0 0.0
    %4447 = vmatpush1.msra.mxu0 0.0
    %4448 = vmatprep.subr.mxu0 0.0
    %4449 = vmatpush1.msra.mxu0 0.0
    %4450 = vmatprep.subr.mxu0 0.0
    %4451 = vmatpush1.msra.mxu0 0.0
    %4452 = vmatprep.subr.mxu0 0.0
    %4453 = vmatpush1.msra.mxu0 0.0
    %4454 = vmatprep.subr.mxu0 0.0
    %4455 = vmatpush1.msra.mxu0 0.0
    %4456 = vmatprep.subr.mxu0 0.0
    %4457 = vmatpush1.msra.mxu0 0.0
    %4458 = vmatprep.subr.mxu0 0.0
    %4459 = vmatpush1.msra.mxu0 0.0
    %4460 = vmatprep.subr.mxu0 0.0
    %4461 = vmatpush1.msra.mxu0 0.0
    %4462 = vmatprep.subr.mxu0 0.0
    %4463 = vmatpush1.msra.mxu0 0.0
    %4464 = vmatprep.subr.mxu0 0.0
    %4465 = vmatpush1.msra.mxu0 0.0
    %4466 = vmatprep.subr.mxu0 0.0
    %4467 = vmatpush1.msra.mxu0 0.0
    %4468 = vmatprep.subr.mxu0 0.0
    %4469 = vmatpush1.msra.mxu0 0.0
    %4470 = vmatprep.subr.mxu0 0.0
    %4471 = vmatpush1.msra.mxu0 0.0
    %4472 = vmatprep.subr.mxu0 0.0
    %4473 = vmatpush1.msra.mxu0 0.0
    %4474 = vmatprep.subr.mxu0 0.0
    %4475 = vmatpush1.msra.mxu0 0.0
    %4476 = vmatprep.mubr.f32.mxu0 0.0
    %4477 = vmatmul.mubr.f32.gmra.mrb[0].mxu0 %v4410
    %v4478 = vpop.f32.mrb[0].mxu0
    %v4479 = vadd.f32 %v4406, %v4478
    %v4480 = vpop.f32.mrb[0].mxu0
    %4481 = vdwg.mxu0
    %v4482 = vsel %vm192, %v4078, 0
    %4484 = vmatprep.subr.mxu0 0.0
    %4485 = vmatpush1.msra.mxu0 %v3062
    %4486 = vmatprep.subr.mxu0 0.0
    %4487 = vmatpush1.msra.mxu0 %v3063
    %4488 = vmatprep.subr.mxu0 0.0
    %4489 = vmatpush1.msra.mxu0 %v3064
    %4490 = vmatprep.subr.mxu0 0.0
    %4491 = vmatpush1.msra.mxu0 %v3065
    %4492 = vmatprep.subr.mxu0 0.0
    %4493 = vmatpush1.msra.mxu0 0.0
    %4494 = vmatprep.subr.mxu0 0.0
    %4495 = vmatpush1.msra.mxu0 0.0
    %4496 = vmatprep.subr.mxu0 0.0
    %4497 = vmatpush1.msra.mxu0 0.0
    %4498 = vmatprep.subr.mxu0 0.0
    %4499 = vmatpush1.msra.mxu0 0.0
    %4500 = vmatprep.subr.mxu0 0.0
    %4501 = vmatpush1.msra.mxu0 0.0
    %4502 = vmatprep.subr.mxu0 0.0
    %4503 = vmatpush1.msra.mxu0 0.0
    %4504 = vmatprep.subr.mxu0 0.0
    %4505 = vmatpush1.msra.mxu0 0.0
    %4506 = vmatprep.subr.mxu0 0.0
    %4507 = vmatpush1.msra.mxu0 0.0
    %4508 = vmatprep.subr.mxu0 0.0
    %4509 = vmatpush1.msra.mxu0 0.0
    %4510 = vmatprep.subr.mxu0 0.0
    %4511 = vmatpush1.msra.mxu0 0.0
    %4512 = vmatprep.subr.mxu0 0.0
    %4513 = vmatpush1.msra.mxu0 0.0
    %4514 = vmatprep.subr.mxu0 0.0
    %4515 = vmatpush1.msra.mxu0 0.0
    %4516 = vmatprep.subr.mxu0 0.0
    %4517 = vmatpush1.msra.mxu0 0.0
    %4518 = vmatprep.subr.mxu0 0.0
    %4519 = vmatpush1.msra.mxu0 0.0
    %4520 = vmatprep.subr.mxu0 0.0
    %4521 = vmatpush1.msra.mxu0 0.0
    %4522 = vmatprep.subr.mxu0 0.0
    %4523 = vmatpush1.msra.mxu0 0.0
    %4524 = vmatprep.subr.mxu0 0.0
    %4525 = vmatpush1.msra.mxu0 0.0
    %4526 = vmatprep.subr.mxu0 0.0
    %4527 = vmatpush1.msra.mxu0 0.0
    %4528 = vmatprep.subr.mxu0 0.0
    %4529 = vmatpush1.msra.mxu0 0.0
    %4530 = vmatprep.subr.mxu0 0.0
    %4531 = vmatpush1.msra.mxu0 0.0
    %4532 = vmatprep.subr.mxu0 0.0
    %4533 = vmatpush1.msra.mxu0 0.0
    %4534 = vmatprep.subr.mxu0 0.0
    %4535 = vmatpush1.msra.mxu0 0.0
    %4536 = vmatprep.subr.mxu0 0.0
    %4537 = vmatpush1.msra.mxu0 0.0
    %4538 = vmatprep.subr.mxu0 0.0
    %4539 = vmatpush1.msra.mxu0 0.0
    %4540 = vmatprep.subr.mxu0 0.0
    %4541 = vmatpush1.msra.mxu0 0.0
    %4542 = vmatprep.subr.mxu0 0.0
    %4543 = vmatpush1.msra.mxu0 0.0
    %4544 = vmatprep.subr.mxu0 0.0
    %4545 = vmatpush1.msra.mxu0 0.0
    %4546 = vmatprep.subr.mxu0 0.0
    %4547 = vmatpush1.msra.mxu0 0.0
    %4548 = vmatprep.mubr.f32.mxu0 0.0
    %4549 = vmatmul.mubr.f32.gmra.mrb[0].mxu0 %v4482
    %v4550 = vpop.f32.mrb[0].mxu0
    %v4551 = vadd.f32 0.0, %v4550
    %v4552 = vpop.f32.mrb[0].mxu0
    %4553 = vdwg.mxu0
    %v4554 = vadd.f32 %v4479, %v4551
    %v4555 = vadd.f32 %v4554, %v3545
    %v4556 = vxor.u32 %v4555, 2147483648
    %v4557 = vmul.f32 %v4556, 1.442695
    %v4558 = vpow.pop %v4557
    %v4559 = vadd.f32 %v4558, 1.0
    %v4560 = vrcp.pop %v4559
    %v4561 = vmul.f32 1.0, %v4560
    %v4562 = vtanh.pop %v4555
    %v4563 = vmul.f32 %v4561, %v4069
    %4565 = vrot.lane.b32.xlu0 %v4562, 64
    %v4566 = vpop.permute.xlu0 %4565
    %v4568 = vmul.f32 %v4561, %v4566
    %4570 = vrot.lane.b32.xlu0 %v4568, 32
    %v4571 = vpop.permute.xlu0 %4570
    %v4573 = vadd.f32 %v4563, %v4571
    %v4574 = vtanh.pop %v4573
    %4576 = vrot.lane.b32.xlu0 %v4574, 64
    %v4577 = vpop.permute.xlu0 %4576
    %v4579 = vmul.f32 %v4561, %v4577
    %4581 = vrot.lane.b32.xlu0 %v4579, 32
    %v4582 = vpop.permute.xlu0 %4581
    %s4584 = scalar_lea.vmem [#allocation5], 10
    %4585 = vst.msk [vmem:[%s4584] sm:$0x3] %vm374, %v4582
    %v4586 = vld [vmem:[%s1446] sm:$0x3]
    %v4587 = vld [vmem:[%s1978] sm:$0x3]
    %v4589 = vsel %vm192, %v4587, 0
    %4591 = vmatprep.subr.mxu0 0.0
    %4592 = vmatpush1.msra.mxu0 %v3045
    %4593 = vmatprep.subr.mxu0 0.0
    %4594 = vmatpush1.msra.mxu0 %v3046
    %4595 = vmatprep.subr.mxu0 0.0
    %4596 = vmatpush1.msra.mxu0 %v3047
    %4597 = vmatprep.subr.mxu0 0.0
    %4598 = vmatpush1.msra.mxu0 %v3048
    %4599 = vmatprep.subr.mxu0 0.0
    %4600 = vmatpush1.msra.mxu0 0.0
    %4601 = vmatprep.subr.mxu0 0.0
    %4602 = vmatpush1.msra.mxu0 0.0
    %4603 = vmatprep.subr.mxu0 0.0
    %4604 = vmatpush1.msra.mxu0 0.0
    %4605 = vmatprep.subr.mxu0 0.0
    %4606 = vmatpush1.msra.mxu0 0.0
    %4607 = vmatprep.subr.mxu0 0.0
    %4608 = vmatpush1.msra.mxu0 0.0
    %4609 = vmatprep.subr.mxu0 0.0
    %4610 = vmatpush1.msra.mxu0 0.0
    %4611 = vmatprep.subr.mxu0 0.0
    %4612 = vmatpush1.msra.mxu0 0.0
    %4613 = vmatprep.subr.mxu0 0.0
    %4614 = vmatpush1.msra.mxu0 0.0
    %4615 = vmatprep.subr.mxu0 0.0
    %4616 = vmatpush1.msra.mxu0 0.0
    %4617 = vmatprep.subr.mxu0 0.0
    %4618 = vmatpush1.msra.mxu0 0.0
    %4619 = vmatprep.subr.mxu0 0.0
    %4620 = vmatpush1.msra.mxu0 0.0
    %4621 = vmatprep.subr.mxu0 0.0
    %4622 = vmatpush1.msra.mxu0 0.0
    %4623 = vmatprep.subr.mxu0 0.0
    %4624 = vmatpush1.msra.mxu0 0.0
    %4625 = vmatprep.subr.mxu0 0.0
    %4626 = vmatpush1.msra.mxu0 0.0
    %4627 = vmatprep.subr.mxu0 0.0
    %4628 = vmatpush1.msra.mxu0 0.0
    %4629 = vmatprep.subr.mxu0 0.0
    %4630 = vmatpush1.msra.mxu0 0.0
    %4631 = vmatprep.subr.mxu0 0.0
    %4632 = vmatpush1.msra.mxu0 0.0
    %4633 = vmatprep.subr.mxu0 0.0
    %4634 = vmatpush1.msra.mxu0 0.0
    %4635 = vmatprep.subr.mxu0 0.0
    %4636 = vmatpush1.msra.mxu0 0.0
    %4637 = vmatprep.subr.mxu0 0.0
    %4638 = vmatpush1.msra.mxu0 0.0
    %4639 = vmatprep.subr.mxu0 0.0
    %4640 = vmatpush1.msra.mxu0 0.0
    %4641 = vmatprep.subr.mxu0 0.0
    %4642 = vmatpush1.msra.mxu0 0.0
    %4643 = vmatprep.subr.mxu0 0.0
    %4644 = vmatpush1.msra.mxu0 0.0
    %4645 = vmatprep.subr.mxu0 0.0
    %4646 = vmatpush1.msra.mxu0 0.0
    %4647 = vmatprep.subr.mxu0 0.0
    %4648 = vmatpush1.msra.mxu0 0.0
    %4649 = vmatprep.subr.mxu0 0.0
    %4650 = vmatpush1.msra.mxu0 0.0
    %4651 = vmatprep.subr.mxu0 0.0
    %4652 = vmatpush1.msra.mxu0 0.0
    %4653 = vmatprep.subr.mxu0 0.0
    %4654 = vmatpush1.msra.mxu0 0.0
    %4655 = vmatprep.mubr.f32.mxu0 0.0
    %4656 = vmatmul.mubr.f32.gmra.mrb[0].mxu0 %v4589
    %v4657 = vpop.f32.mrb[0].mxu0
    %v4658 = vadd.f32 0.0, %v4657
    %v4659 = vpop.f32.mrb[0].mxu0
    %4660 = vdwg.mxu0
    %v4662 = vsel %vm192, %v4586, 0
    %4664 = vmatprep.subr.mxu0 0.0
    %4665 = vmatpush1.msra.mxu0 %v3041
    %4666 = vmatprep.subr.mxu0 0.0
    %4667 = vmatpush1.msra.mxu0 %v3042
    %4668 = vmatprep.subr.mxu0 0.0
    %4669 = vmatpush1.msra.mxu0 %v3043
    %4670 = vmatprep.subr.mxu0 0.0
    %4671 = vmatpush1.msra.mxu0 %v3044
    %4672 = vmatprep.subr.mxu0 0.0
    %4673 = vmatpush1.msra.mxu0 0.0
    %4674 = vmatprep.subr.mxu0 0.0
    %4675 = vmatpush1.msra.mxu0 0.0
    %4676 = vmatprep.subr.mxu0 0.0
    %4677 = vmatpush1.msra.mxu0 0.0
    %4678 = vmatprep.subr.mxu0 0.0
    %4679 = vmatpush1.msra.mxu0 0.0
    %4680 = vmatprep.subr.mxu0 0.0
    %4681 = vmatpush1.msra.mxu0 0.0
    %4682 = vmatprep.subr.mxu0 0.0
    %4683 = vmatpush1.msra.mxu0 0.0
    %4684 = vmatprep.subr.mxu0 0.0
    %4685 = vmatpush1.msra.mxu0 0.0
    %4686 = vmatprep.subr.mxu0 0.0
    %4687 = vmatpush1.msra.mxu0 0.0
    %4688 = vmatprep.subr.mxu0 0.0
    %4689 = vmatpush1.msra.mxu0 0.0
    %4690 = vmatprep.subr.mxu0 0.0
    %4691 = vmatpush1.msra.mxu0 0.0
    %4692 = vmatprep.subr.mxu0 0.0
    %4693 = vmatpush1.msra.mxu0 0.0
    %4694 = vmatprep.subr.mxu0 0.0
    %4695 = vmatpush1.msra.mxu0 0.0
    %4696 = vmatprep.subr.mxu0 0.0
    %4697 = vmatpush1.msra.mxu0 0.0
    %4698 = vmatprep.subr.mxu0 0.0
    %4699 = vmatpush1.msra.mxu0 0.0
    %4700 = vmatprep.subr.mxu0 0.0
    %4701 = vmatpush1.msra.mxu0 0.0
    %4702 = vmatprep.subr.mxu0 0.0
    %4703 = vmatpush1.msra.mxu0 0.0
    %4704 = vmatprep.subr.mxu0 0.0
    %4705 = vmatpush1.msra.mxu0 0.0
    %4706 = vmatprep.subr.mxu0 0.0
    %4707 = vmatpush1.msra.mxu0 0.0
    %4708 = vmatprep.subr.mxu0 0.0
    %4709 = vmatpush1.msra.mxu0 0.0
    %4710 = vmatprep.subr.mxu0 0.0
    %4711 = vmatpush1.msra.mxu0 0.0
    %4712 = vmatprep.subr.mxu0 0.0
    %4713 = vmatpush1.msra.mxu0 0.0
    %4714 = vmatprep.subr.mxu0 0.0
    %4715 = vmatpush1.msra.mxu0 0.0
    %4716 = vmatprep.subr.mxu0 0.0
    %4717 = vmatpush1.msra.mxu0 0.0
    %4718 = vmatprep.subr.mxu0 0.0
    %4719 = vmatpush1.msra.mxu0 0.0
    %4720 = vmatprep.subr.mxu0 0.0
    %4721 = vmatpush1.msra.mxu0 0.0
    %4722 = vmatprep.subr.mxu0 0.0
    %4723 = vmatpush1.msra.mxu0 0.0
    %4724 = vmatprep.subr.mxu0 0.0
    %4725 = vmatpush1.msra.mxu0 0.0
    %4726 = vmatprep.subr.mxu0 0.0
    %4727 = vmatpush1.msra.mxu0 0.0
    %4728 = vmatprep.mubr.f32.mxu0 0.0
    %4729 = vmatmul.mubr.f32.gmra.mrb[0].mxu0 %v4662
    %v4730 = vpop.f32.mrb[0].mxu0
    %v4731 = vadd.f32 %v4658, %v4730
    %v4732 = vpop.f32.mrb[0].mxu0
    %4733 = vdwg.mxu0
    %v4734 = vsel %vm192, %v4330, 0
    %4736 = vmatprep.subr.mxu0 0.0
    %4737 = vmatpush1.msra.mxu0 %v3049
    %4738 = vmatprep.subr.mxu0 0.0
    %4739 = vmatpush1.msra.mxu0 %v3050
    %4740 = vmatprep.subr.mxu0 0.0
    %4741 = vmatpush1.msra.mxu0 %v3051
    %4742 = vmatprep.subr.mxu0 0.0
    %4743 = vmatpush1.msra.mxu0 %v3052
    %4744 = vmatprep.subr.mxu0 0.0
    %4745 = vmatpush1.msra.mxu0 0.0
    %4746 = vmatprep.subr.mxu0 0.0
    %4747 = vmatpush1.msra.mxu0 0.0
    %4748 = vmatprep.subr.mxu0 0.0
    %4749 = vmatpush1.msra.mxu0 0.0
    %4750 = vmatprep.subr.mxu0 0.0
    %4751 = vmatpush1.msra.mxu0 0.0
    %4752 = vmatprep.subr.mxu0 0.0
    %4753 = vmatpush1.msra.mxu0 0.0
    %4754 = vmatprep.subr.mxu0 0.0
    %4755 = vmatpush1.msra.mxu0 0.0
    %4756 = vmatprep.subr.mxu0 0.0
    %4757 = vmatpush1.msra.mxu0 0.0
    %4758 = vmatprep.subr.mxu0 0.0
    %4759 = vmatpush1.msra.mxu0 0.0
    %4760 = vmatprep.subr.mxu0 0.0
    %4761 = vmatpush1.msra.mxu0 0.0
    %4762 = vmatprep.subr.mxu0 0.0
    %4763 = vmatpush1.msra.mxu0 0.0
    %4764 = vmatprep.subr.mxu0 0.0
    %4765 = vmatpush1.msra.mxu0 0.0
    %4766 = vmatprep.subr.mxu0 0.0
    %4767 = vmatpush1.msra.mxu0 0.0
    %4768 = vmatprep.subr.mxu0 0.0
    %4769 = vmatpush1.msra.mxu0 0.0
    %4770 = vmatprep.subr.mxu0 0.0
    %4771 = vmatpush1.msra.mxu0 0.0
    %4772 = vmatprep.subr.mxu0 0.0
    %4773 = vmatpush1.msra.mxu0 0.0
    %4774 = vmatprep.subr.mxu0 0.0
    %4775 = vmatpush1.msra.mxu0 0.0
    %4776 = vmatprep.subr.mxu0 0.0
    %4777 = vmatpush1.msra.mxu0 0.0
    %4778 = vmatprep.subr.mxu0 0.0
    %4779 = vmatpush1.msra.mxu0 0.0
    %4780 = vmatprep.subr.mxu0 0.0
    %4781 = vmatpush1.msra.mxu0 0.0
    %4782 = vmatprep.subr.mxu0 0.0
    %4783 = vmatpush1.msra.mxu0 0.0
    %4784 = vmatprep.subr.mxu0 0.0
    %4785 = vmatpush1.msra.mxu0 0.0
    %4786 = vmatprep.subr.mxu0 0.0
    %4787 = vmatpush1.msra.mxu0 0.0
    %4788 = vmatprep.subr.mxu0 0.0
    %4789 = vmatpush1.msra.mxu0 0.0
    %4790 = vmatprep.subr.mxu0 0.0
    %4791 = vmatpush1.msra.mxu0 0.0
    %4792 = vmatprep.subr.mxu0 0.0
    %4793 = vmatpush1.msra.mxu0 0.0
    %4794 = vmatprep.subr.mxu0 0.0
    %4795 = vmatpush1.msra.mxu0 0.0
    %4796 = vmatprep.subr.mxu0 0.0
    %4797 = vmatpush1.msra.mxu0 0.0
    %4798 = vmatprep.subr.mxu0 0.0
    %4799 = vmatpush1.msra.mxu0 0.0
    %4800 = vmatprep.mubr.f32.mxu0 0.0
    %4801 = vmatmul.mubr.f32.gmra.mrb[0].mxu0 %v4734
    %v4802 = vpop.f32.mrb[0].mxu0
    %v4803 = vadd.f32 0.0, %v4802
    %v4804 = vpop.f32.mrb[0].mxu0
    %4805 = vdwg.mxu0
    %v4806 = vadd.f32 %v4731, %v4803
    %v4807 = vadd.f32 %v4806, %v3290
    %v4808 = vxor.u32 %v4807, 2147483648
    %v4809 = vmul.f32 %v4808, 1.442695
    %v4810 = vpow.pop %v4809
    %v4811 = vadd.f32 %v4810, 1.0
    %v4812 = vrcp.pop %v4811
    %v4813 = vmul.f32 1.0, %v4812
    %v4814 = vtanh.pop %v4807
    %v4815 = vmul.f32 %v4813, %v4321
    %4817 = vrot.lane.b32.xlu0 %v4814, 64
    %v4818 = vpop.permute.xlu0 %4817
    %v4820 = vmul.f32 %v4813, %v4818
    %4822 = vrot.lane.b32.xlu0 %v4820, 32
    %v4823 = vpop.permute.xlu0 %4822
    %v4825 = vadd.f32 %v4815, %v4823
    %v4826 = vtanh.pop %v4825
    %4828 = vrot.lane.b32.xlu0 %v4826, 64
    %v4829 = vpop.permute.xlu0 %4828
    %v4831 = vmul.f32 %v4813, %v4829
    %4833 = vrot.lane.b32.xlu0 %v4831, 32
    %v4834 = vpop.permute.xlu0 %4833
    %s4836 = scalar_lea.vmem [#allocation4], 6
    %4837 = vst.msk [vmem:[%s4836] sm:$0x3] %vm374, %v4834
    %v4838 = vld [vmem:[%s1801] sm:$0x3]
    %v4839 = vld [vmem:[%s1624] sm:$0x3]
    %v4841 = vsel %vm192, %v4839, 0
    %4843 = vmatprep.subr.mxu0 0.0
    %4844 = vmatpush1.msra.mxu0 %v3058
    %4845 = vmatprep.subr.mxu0 0.0
    %4846 = vmatpush1.msra.mxu0 %v3059
    %4847 = vmatprep.subr.mxu0 0.0
    %4848 = vmatpush1.msra.mxu0 %v3060
    %4849 = vmatprep.subr.mxu0 0.0
    %4850 = vmatpush1.msra.mxu0 %v3061
    %4851 = vmatprep.subr.mxu0 0.0
    %4852 = vmatpush1.msra.mxu0 0.0
    %4853 = vmatprep.subr.mxu0 0.0
    %4854 = vmatpush1.msra.mxu0 0.0
    %4855 = vmatprep.subr.mxu0 0.0
    %4856 = vmatpush1.msra.mxu0 0.0
    %4857 = vmatprep.subr.mxu0 0.0
    %4858 = vmatpush1.msra.mxu0 0.0
    %4859 = vmatprep.subr.mxu0 0.0
    %4860 = vmatpush1.msra.mxu0 0.0
    %4861 = vmatprep.subr.mxu0 0.0
    %4862 = vmatpush1.msra.mxu0 0.0
    %4863 = vmatprep.subr.mxu0 0.0
    %4864 = vmatpush1.msra.mxu0 0.0
    %4865 = vmatprep.subr.mxu0 0.0
    %4866 = vmatpush1.msra.mxu0 0.0
    %4867 = vmatprep.subr.mxu0 0.0
    %4868 = vmatpush1.msra.mxu0 0.0
    %4869 = vmatprep.subr.mxu0 0.0
    %4870 = vmatpush1.msra.mxu0 0.0
    %4871 = vmatprep.subr.mxu0 0.0
    %4872 = vmatpush1.msra.mxu0 0.0
    %4873 = vmatprep.subr.mxu0 0.0
    %4874 = vmatpush1.msra.mxu0 0.0
    %4875 = vmatprep.subr.mxu0 0.0
    %4876 = vmatpush1.msra.mxu0 0.0
    %4877 = vmatprep.subr.mxu0 0.0
    %4878 = vmatpush1.msra.mxu0 0.0
    %4879 = vmatprep.subr.mxu0 0.0
    %4880 = vmatpush1.msra.mxu0 0.0
    %4881 = vmatprep.subr.mxu0 0.0
    %4882 = vmatpush1.msra.mxu0 0.0
    %4883 = vmatprep.subr.mxu0 0.0
    %4884 = vmatpush1.msra.mxu0 0.0
    %4885 = vmatprep.subr.mxu0 0.0
    %4886 = vmatpush1.msra.mxu0 0.0
    %4887 = vmatprep.subr.mxu0 0.0
    %4888 = vmatpush1.msra.mxu0 0.0
    %4889 = vmatprep.subr.mxu0 0.0
    %4890 = vmatpush1.msra.mxu0 0.0
    %4891 = vmatprep.subr.mxu0 0.0
    %4892 = vmatpush1.msra.mxu0 0.0
    %4893 = vmatprep.subr.mxu0 0.0
    %4894 = vmatpush1.msra.mxu0 0.0
    %4895 = vmatprep.subr.mxu0 0.0
    %4896 = vmatpush1.msra.mxu0 0.0
    %4897 = vmatprep.subr.mxu0 0.0
    %4898 = vmatpush1.msra.mxu0 0.0
    %4899 = vmatprep.subr.mxu0 0.0
    %4900 = vmatpush1.msra.mxu0 0.0
    %4901 = vmatprep.subr.mxu0 0.0
    %4902 = vmatpush1.msra.mxu0 0.0
    %4903 = vmatprep.subr.mxu0 0.0
    %4904 = vmatpush1.msra.mxu0 0.0
    %4905 = vmatprep.subr.mxu0 0.0
    %4906 = vmatpush1.msra.mxu0 0.0
    %4907 = vmatprep.mubr.f32.mxu0 0.0
    %4908 = vmatmul.mubr.f32.gmra.mrb[0].mxu0 %v4841
    %v4909 = vpop.f32.mrb[0].mxu0
    %v4910 = vadd.f32 0.0, %v4909
    %v4911 = vpop.f32.mrb[0].mxu0
    %4912 = vdwg.mxu0
    %v4914 = vsel %vm192, %v4838, 0
    %4916 = vmatprep.subr.mxu0 0.0
    %4917 = vmatpush1.msra.mxu0 %v3054
    %4918 = vmatprep.subr.mxu0 0.0
    %4919 = vmatpush1.msra.mxu0 %v3055
    %4920 = vmatprep.subr.mxu0 0.0
    %4921 = vmatpush1.msra.mxu0 %v3056
    %4922 = vmatprep.subr.mxu0 0.0
    %4923 = vmatpush1.msra.mxu0 %v3057
    %4924 = vmatprep.subr.mxu0 0.0
    %4925 = vmatpush1.msra.mxu0 0.0
    %4926 = vmatprep.subr.mxu0 0.0
    %4927 = vmatpush1.msra.mxu0 0.0
    %4928 = vmatprep.subr.mxu0 0.0
    %4929 = vmatpush1.msra.mxu0 0.0
    %4930 = vmatprep.subr.mxu0 0.0
    %4931 = vmatpush1.msra.mxu0 0.0
    %4932 = vmatprep.subr.mxu0 0.0
    %4933 = vmatpush1.msra.mxu0 0.0
    %4934 = vmatprep.subr.mxu0 0.0
    %4935 = vmatpush1.msra.mxu0 0.0
    %4936 = vmatprep.subr.mxu0 0.0
    %4937 = vmatpush1.msra.mxu0 0.0
    %4938 = vmatprep.subr.mxu0 0.0
    %4939 = vmatpush1.msra.mxu0 0.0
    %4940 = vmatprep.subr.mxu0 0.0
    %4941 = vmatpush1.msra.mxu0 0.0
    %4942 = vmatprep.subr.mxu0 0.0
    %4943 = vmatpush1.msra.mxu0 0.0
    %4944 = vmatprep.subr.mxu0 0.0
    %4945 = vmatpush1.msra.mxu0 0.0
    %4946 = vmatprep.subr.mxu0 0.0
    %4947 = vmatpush1.msra.mxu0 0.0
    %4948 = vmatprep.subr.mxu0 0.0
    %4949 = vmatpush1.msra.mxu0 0.0
    %4950 = vmatprep.subr.mxu0 0.0
    %4951 = vmatpush1.msra.mxu0 0.0
    %4952 = vmatprep.subr.mxu0 0.0
    %4953 = vmatpush1.msra.mxu0 0.0
    %4954 = vmatprep.subr.mxu0 0.0
    %4955 = vmatpush1.msra.mxu0 0.0
    %4956 = vmatprep.subr.mxu0 0.0
    %4957 = vmatpush1.msra.mxu0 0.0
    %4958 = vmatprep.subr.mxu0 0.0
    %4959 = vmatpush1.msra.mxu0 0.0
    %4960 = vmatprep.subr.mxu0 0.0
    %4961 = vmatpush1.msra.mxu0 0.0
    %4962 = vmatprep.subr.mxu0 0.0
    %4963 = vmatpush1.msra.mxu0 0.0
    %4964 = vmatprep.subr.mxu0 0.0
    %4965 = vmatpush1.msra.mxu0 0.0
    %4966 = vmatprep.subr.mxu0 0.0
    %4967 = vmatpush1.msra.mxu0 0.0
    %4968 = vmatprep.subr.mxu0 0.0
    %4969 = vmatpush1.msra.mxu0 0.0
    %4970 = vmatprep.subr.mxu0 0.0
    %4971 = vmatpush1.msra.mxu0 0.0
    %4972 = vmatprep.subr.mxu0 0.0
    %4973 = vmatpush1.msra.mxu0 0.0
    %4974 = vmatprep.subr.mxu0 0.0
    %4975 = vmatpush1.msra.mxu0 0.0
    %4976 = vmatprep.subr.mxu0 0.0
    %4977 = vmatpush1.msra.mxu0 0.0
    %4978 = vmatprep.subr.mxu0 0.0
    %4979 = vmatpush1.msra.mxu0 0.0
    %4980 = vmatprep.mubr.f32.mxu0 0.0
    %4981 = vmatmul.mubr.f32.gmra.mrb[0].mxu0 %v4914
    %v4982 = vpop.f32.mrb[0].mxu0
    %v4983 = vadd.f32 %v4910, %v4982
    %v4984 = vpop.f32.mrb[0].mxu0
    %4985 = vdwg.mxu0
    %v4986 = vsel %vm192, %v4582, 0
    %4988 = vmatprep.subr.mxu0 0.0
    %4989 = vmatpush1.msra.mxu0 %v3062
    %4990 = vmatprep.subr.mxu0 0.0
    %4991 = vmatpush1.msra.mxu0 %v3063
    %4992 = vmatprep.subr.mxu0 0.0
    %4993 = vmatpush1.msra.mxu0 %v3064
    %4994 = vmatprep.subr.mxu0 0.0
    %4995 = vmatpush1.msra.mxu0 %v3065
    %4996 = vmatprep.subr.mxu0 0.0
    %4997 = vmatpush1.msra.mxu0 0.0
    %4998 = vmatprep.subr.mxu0 0.0
    %4999 = vmatpush1.msra.mxu0 0.0
    %5000 = vmatprep.subr.mxu0 0.0
    %5001 = vmatpush1.msra.mxu0 0.0
    %5002 = vmatprep.subr.mxu0 0.0
    %5003 = vmatpush1.msra.mxu0 0.0
    %5004 = vmatprep.subr.mxu0 0.0
    %5005 = vmatpush1.msra.mxu0 0.0
    %5006 = vmatprep.subr.mxu0 0.0
    %5007 = vmatpush1.msra.mxu0 0.0
    %5008 = vmatprep.subr.mxu0 0.0
    %5009 = vmatpush1.msra.mxu0 0.0
    %5010 = vmatprep.subr.mxu0 0.0
    %5011 = vmatpush1.msra.mxu0 0.0
    %5012 = vmatprep.subr.mxu0 0.0
    %5013 = vmatpush1.msra.mxu0 0.0
    %5014 = vmatprep.subr.mxu0 0.0
    %5015 = vmatpush1.msra.mxu0 0.0
    %5016 = vmatprep.subr.mxu0 0.0
    %5017 = vmatpush1.msra.mxu0 0.0
    %5018 = vmatprep.subr.mxu0 0.0
    %5019 = vmatpush1.msra.mxu0 0.0
    %5020 = vmatprep.subr.mxu0 0.0
    %5021 = vmatpush1.msra.mxu0 0.0
    %5022 = vmatprep.subr.mxu0 0.0
    %5023 = vmatpush1.msra.mxu0 0.0
    %5024 = vmatprep.subr.mxu0 0.0
    %5025 = vmatpush1.msra.mxu0 0.0
    %5026 = vmatprep.subr.mxu0 0.0
    %5027 = vmatpush1.msra.mxu0 0.0
    %5028 = vmatprep.subr.mxu0 0.0
    %5029 = vmatpush1.msra.mxu0 0.0
    %5030 = vmatprep.subr.mxu0 0.0
    %5031 = vmatpush1.msra.mxu0 0.0
    %5032 = vmatprep.subr.mxu0 0.0
    %5033 = vmatpush1.msra.mxu0 0.0
    %5034 = vmatprep.subr.mxu0 0.0
    %5035 = vmatpush1.msra.mxu0 0.0
    %5036 = vmatprep.subr.mxu0 0.0
    %5037 = vmatpush1.msra.mxu0 0.0
    %5038 = vmatprep.subr.mxu0 0.0
    %5039 = vmatpush1.msra.mxu0 0.0
    %5040 = vmatprep.subr.mxu0 0.0
    %5041 = vmatpush1.msra.mxu0 0.0
    %5042 = vmatprep.subr.mxu0 0.0
    %5043 = vmatpush1.msra.mxu0 0.0
    %5044 = vmatprep.subr.mxu0 0.0
    %5045 = vmatpush1.msra.mxu0 0.0
    %5046 = vmatprep.subr.mxu0 0.0
    %5047 = vmatpush1.msra.mxu0 0.0
    %5048 = vmatprep.subr.mxu0 0.0
    %5049 = vmatpush1.msra.mxu0 0.0
    %5050 = vmatprep.subr.mxu0 0.0
    %5051 = vmatpush1.msra.mxu0 0.0
    %5052 = vmatprep.mubr.f32.mxu0 0.0
    %5053 = vmatmul.mubr.f32.gmra.mrb[0].mxu0 %v4986
    %v5054 = vpop.f32.mrb[0].mxu0
    %v5055 = vadd.f32 0.0, %v5054
    %v5056 = vpop.f32.mrb[0].mxu0
    %5057 = vdwg.mxu0
    %v5058 = vadd.f32 %v4983, %v5055
    %v5059 = vadd.f32 %v5058, %v3545
    %v5060 = vxor.u32 %v5059, 2147483648
    %v5061 = vmul.f32 %v5060, 1.442695
    %v5062 = vpow.pop %v5061
    %v5063 = vadd.f32 %v5062, 1.0
    %v5064 = vrcp.pop %v5063
    %v5065 = vmul.f32 1.0, %v5064
    %v5066 = vtanh.pop %v5059
    %v5067 = vmul.f32 %v5065, %v4573
    %5069 = vrot.lane.b32.xlu0 %v5066, 64
    %v5070 = vpop.permute.xlu0 %5069
    %v5072 = vmul.f32 %v5065, %v5070
    %5074 = vrot.lane.b32.xlu0 %v5072, 32
    %v5075 = vpop.permute.xlu0 %5074
    %v5077 = vadd.f32 %v5067, %v5075
    %v5078 = vtanh.pop %v5077
    %5080 = vrot.lane.b32.xlu0 %v5078, 64
    %v5081 = vpop.permute.xlu0 %5080
    %v5083 = vmul.f32 %v5065, %v5081
    %5085 = vrot.lane.b32.xlu0 %v5083, 32
    %v5086 = vpop.permute.xlu0 %5085
    %s5088 = scalar_lea.vmem [#allocation5], 8
    %5089 = vst.msk [vmem:[%s5088] sm:$0x3] %vm374, %v5086
    %v5090 = vld [vmem:[%s1801] sm:$0x3]
    %v5091 = vld [vmem:[%s1624] sm:$0x3]
    %v5093 = vsel %vm192, %v5091, 0
    %5095 = vmatprep.subr.mxu0 0.0
    %5096 = vmatpush1.msra.mxu0 %v3045
    %5097 = vmatprep.subr.mxu0 0.0
    %5098 = vmatpush1.msra.mxu0 %v3046
    %5099 = vmatprep.subr.mxu0 0.0
    %5100 = vmatpush1.msra.mxu0 %v3047
    %5101 = vmatprep.subr.mxu0 0.0
    %5102 = vmatpush1.msra.mxu0 %v3048
    %5103 = vmatprep.subr.mxu0 0.0
    %5104 = vmatpush1.msra.mxu0 0.0
    %5105 = vmatprep.subr.mxu0 0.0
    %5106 = vmatpush1.msra.mxu0 0.0
    %5107 = vmatprep.subr.mxu0 0.0
    %5108 = vmatpush1.msra.mxu0 0.0
    %5109 = vmatprep.subr.mxu0 0.0
    %5110 = vmatpush1.msra.mxu0 0.0
    %5111 = vmatprep.subr.mxu0 0.0
    %5112 = vmatpush1.msra.mxu0 0.0
    %5113 = vmatprep.subr.mxu0 0.0
    %5114 = vmatpush1.msra.mxu0 0.0
    %5115 = vmatprep.subr.mxu0 0.0
    %5116 = vmatpush1.msra.mxu0 0.0
    %5117 = vmatprep.subr.mxu0 0.0
    %5118 = vmatpush1.msra.mxu0 0.0
    %5119 = vmatprep.subr.mxu0 0.0
    %5120 = vmatpush1.msra.mxu0 0.0
    %5121 = vmatprep.subr.mxu0 0.0
    %5122 = vmatpush1.msra.mxu0 0.0
    %5123 = vmatprep.subr.mxu0 0.0
    %5124 = vmatpush1.msra.mxu0 0.0
    %5125 = vmatprep.subr.mxu0 0.0
    %5126 = vmatpush1.msra.mxu0 0.0
    %5127 = vmatprep.subr.mxu0 0.0
    %5128 = vmatpush1.msra.mxu0 0.0
    %5129 = vmatprep.subr.mxu0 0.0
    %5130 = vmatpush1.msra.mxu0 0.0
    %5131 = vmatprep.subr.mxu0 0.0
    %5132 = vmatpush1.msra.mxu0 0.0
    %5133 = vmatprep.subr.mxu0 0.0
    %5134 = vmatpush1.msra.mxu0 0.0
    %5135 = vmatprep.subr.mxu0 0.0
    %5136 = vmatpush1.msra.mxu0 0.0
    %5137 = vmatprep.subr.mxu0 0.0
    %5138 = vmatpush1.msra.mxu0 0.0
    %5139 = vmatprep.subr.mxu0 0.0
    %5140 = vmatpush1.msra.mxu0 0.0
    %5141 = vmatprep.subr.mxu0 0.0
    %5142 = vmatpush1.msra.mxu0 0.0
    %5143 = vmatprep.subr.mxu0 0.0
    %5144 = vmatpush1.msra.mxu0 0.0
    %5145 = vmatprep.subr.mxu0 0.0
    %5146 = vmatpush1.msra.mxu0 0.0
    %5147 = vmatprep.subr.mxu0 0.0
    %5148 = vmatpush1.msra.mxu0 0.0
    %5149 = vmatprep.subr.mxu0 0.0
    %5150 = vmatpush1.msra.mxu0 0.0
    %5151 = vmatprep.subr.mxu0 0.0
    %5152 = vmatpush1.msra.mxu0 0.0
    %5153 = vmatprep.subr.mxu0 0.0
    %5154 = vmatpush1.msra.mxu0 0.0
    %5155 = vmatprep.subr.mxu0 0.0
    %5156 = vmatpush1.msra.mxu0 0.0
    %5157 = vmatprep.subr.mxu0 0.0
    %5158 = vmatpush1.msra.mxu0 0.0
    %5159 = vmatprep.mubr.f32.mxu0 0.0
    %5160 = vmatmul.mubr.f32.gmra.mrb[0].mxu0 %v5093
    %v5161 = vpop.f32.mrb[0].mxu0
    %v5162 = vadd.f32 0.0, %v5161
    %v5163 = vpop.f32.mrb[0].mxu0
    %5164 = vdwg.mxu0
    %v5166 = vsel %vm192, %v5090, 0
    %5168 = vmatprep.subr.mxu0 0.0
    %5169 = vmatpush1.msra.mxu0 %v3041
    %5170 = vmatprep.subr.mxu0 0.0
    %5171 = vmatpush1.msra.mxu0 %v3042
    %5172 = vmatprep.subr.mxu0 0.0
    %5173 = vmatpush1.msra.mxu0 %v3043
    %5174 = vmatprep.subr.mxu0 0.0
    %5175 = vmatpush1.msra.mxu0 %v3044
    %5176 = vmatprep.subr.mxu0 0.0
    %5177 = vmatpush1.msra.mxu0 0.0
    %5178 = vmatprep.subr.mxu0 0.0
    %5179 = vmatpush1.msra.mxu0 0.0
    %5180 = vmatprep.subr.mxu0 0.0
    %5181 = vmatpush1.msra.mxu0 0.0
    %5182 = vmatprep.subr.mxu0 0.0
    %5183 = vmatpush1.msra.mxu0 0.0
    %5184 = vmatprep.subr.mxu0 0.0
    %5185 = vmatpush1.msra.mxu0 0.0
    %5186 = vmatprep.subr.mxu0 0.0
    %5187 = vmatpush1.msra.mxu0 0.0
    %5188 = vmatprep.subr.mxu0 0.0
    %5189 = vmatpush1.msra.mxu0 0.0
    %5190 = vmatprep.subr.mxu0 0.0
    %5191 = vmatpush1.msra.mxu0 0.0
    %5192 = vmatprep.subr.mxu0 0.0
    %5193 = vmatpush1.msra.mxu0 0.0
    %5194 = vmatprep.subr.mxu0 0.0
    %5195 = vmatpush1.msra.mxu0 0.0
    %5196 = vmatprep.subr.mxu0 0.0
    %5197 = vmatpush1.msra.mxu0 0.0
    %5198 = vmatprep.subr.mxu0 0.0
    %5199 = vmatpush1.msra.mxu0 0.0
    %5200 = vmatprep.subr.mxu0 0.0
    %5201 = vmatpush1.msra.mxu0 0.0
    %5202 = vmatprep.subr.mxu0 0.0
    %5203 = vmatpush1.msra.mxu0 0.0
    %5204 = vmatprep.subr.mxu0 0.0
    %5205 = vmatpush1.msra.mxu0 0.0
    %5206 = vmatprep.subr.mxu0 0.0
    %5207 = vmatpush1.msra.mxu0 0.0
    %5208 = vmatprep.subr.mxu0 0.0
    %5209 = vmatpush1.msra.mxu0 0.0
    %5210 = vmatprep.subr.mxu0 0.0
    %5211 = vmatpush1.msra.mxu0 0.0
    %5212 = vmatprep.subr.mxu0 0.0
    %5213 = vmatpush1.msra.mxu0 0.0
    %5214 = vmatprep.subr.mxu0 0.0
    %5215 = vmatpush1.msra.mxu0 0.0
    %5216 = vmatprep.subr.mxu0 0.0
    %5217 = vmatpush1.msra.mxu0 0.0
    %5218 = vmatprep.subr.mxu0 0.0
    %5219 = vmatpush1.msra.mxu0 0.0
    %5220 = vmatprep.subr.mxu0 0.0
    %5221 = vmatpush1.msra.mxu0 0.0
    %5222 = vmatprep.subr.mxu0 0.0
    %5223 = vmatpush1.msra.mxu0 0.0
    %5224 = vmatprep.subr.mxu0 0.0
    %5225 = vmatpush1.msra.mxu0 0.0
    %5226 = vmatprep.subr.mxu0 0.0
    %5227 = vmatpush1.msra.mxu0 0.0
    %5228 = vmatprep.subr.mxu0 0.0
    %5229 = vmatpush1.msra.mxu0 0.0
    %5230 = vmatprep.subr.mxu0 0.0
    %5231 = vmatpush1.msra.mxu0 0.0
    %5232 = vmatprep.mubr.f32.mxu0 0.0
    %5233 = vmatmul.mubr.f32.gmra.mrb[0].mxu0 %v5166
    %v5234 = vpop.f32.mrb[0].mxu0
    %v5235 = vadd.f32 %v5162, %v5234
    %v5236 = vpop.f32.mrb[0].mxu0
    %5237 = vdwg.mxu0
    %v5238 = vsel %vm192, %v4834, 0
    %5240 = vmatprep.subr.mxu0 0.0
    %5241 = vmatpush1.msra.mxu0 %v3049
    %5242 = vmatprep.subr.mxu0 0.0
    %5243 = vmatpush1.msra.mxu0 %v3050
    %5244 = vmatprep.subr.mxu0 0.0
    %5245 = vmatpush1.msra.mxu0 %v3051
    %5246 = vmatprep.subr.mxu0 0.0
    %5247 = vmatpush1.msra.mxu0 %v3052
    %5248 = vmatprep.subr.mxu0 0.0
    %5249 = vmatpush1.msra.mxu0 0.0
    %5250 = vmatprep.subr.mxu0 0.0
    %5251 = vmatpush1.msra.mxu0 0.0
    %5252 = vmatprep.subr.mxu0 0.0
    %5253 = vmatpush1.msra.mxu0 0.0
    %5254 = vmatprep.subr.mxu0 0.0
    %5255 = vmatpush1.msra.mxu0 0.0
    %5256 = vmatprep.subr.mxu0 0.0
    %5257 = vmatpush1.msra.mxu0 0.0
    %5258 = vmatprep.subr.mxu0 0.0
    %5259 = vmatpush1.msra.mxu0 0.0
    %5260 = vmatprep.subr.mxu0 0.0
    %5261 = vmatpush1.msra.mxu0 0.0
    %5262 = vmatprep.subr.mxu0 0.0
    %5263 = vmatpush1.msra.mxu0 0.0
    %5264 = vmatprep.subr.mxu0 0.0
    %5265 = vmatpush1.msra.mxu0 0.0
    %5266 = vmatprep.subr.mxu0 0.0
    %5267 = vmatpush1.msra.mxu0 0.0
    %5268 = vmatprep.subr.mxu0 0.0
    %5269 = vmatpush1.msra.mxu0 0.0
    %5270 = vmatprep.subr.mxu0 0.0
    %5271 = vmatpush1.msra.mxu0 0.0
    %5272 = vmatprep.subr.mxu0 0.0
    %5273 = vmatpush1.msra.mxu0 0.0
    %5274 = vmatprep.subr.mxu0 0.0
    %5275 = vmatpush1.msra.mxu0 0.0
    %5276 = vmatprep.subr.mxu0 0.0
    %5277 = vmatpush1.msra.mxu0 0.0
    %5278 = vmatprep.subr.mxu0 0.0
    %5279 = vmatpush1.msra.mxu0 0.0
    %5280 = vmatprep.subr.mxu0 0.0
    %5281 = vmatpush1.msra.mxu0 0.0
    %5282 = vmatprep.subr.mxu0 0.0
    %5283 = vmatpush1.msra.mxu0 0.0
    %5284 = vmatprep.subr.mxu0 0.0
    %5285 = vmatpush1.msra.mxu0 0.0
    %5286 = vmatprep.subr.mxu0 0.0
    %5287 = vmatpush1.msra.mxu0 0.0
    %5288 = vmatprep.subr.mxu0 0.0
    %5289 = vmatpush1.msra.mxu0 0.0
    %5290 = vmatprep.subr.mxu0 0.0
    %5291 = vmatpush1.msra.mxu0 0.0
    %5292 = vmatprep.subr.mxu0 0.0
    %5293 = vmatpush1.msra.mxu0 0.0
    %5294 = vmatprep.subr.mxu0 0.0
    %5295 = vmatpush1.msra.mxu0 0.0
    %5296 = vmatprep.subr.mxu0 0.0
    %5297 = vmatpush1.msra.mxu0 0.0
    %5298 = vmatprep.subr.mxu0 0.0
    %5299 = vmatpush1.msra.mxu0 0.0
    %5300 = vmatprep.subr.mxu0 0.0
    %5301 = vmatpush1.msra.mxu0 0.0
    %5302 = vmatprep.subr.mxu0 0.0
    %5303 = vmatpush1.msra.mxu0 0.0
    %5304 = vmatprep.mubr.f32.mxu0 0.0
    %5305 = vmatmul.mubr.f32.gmra.mrb[0].mxu0 %v5238
    %v5306 = vpop.f32.mrb[0].mxu0
    %v5307 = vadd.f32 0.0, %v5306
    %v5308 = vpop.f32.mrb[0].mxu0
    %5309 = vdwg.mxu0
    %v5310 = vadd.f32 %v5235, %v5307
    %v5311 = vadd.f32 %v5310, %v3290
    %v5312 = vxor.u32 %v5311, 2147483648
    %v5313 = vmul.f32 %v5312, 1.442695
    %v5314 = vpow.pop %v5313
    %v5315 = vadd.f32 %v5314, 1.0
    %v5316 = vrcp.pop %v5315
    %v5317 = vmul.f32 1.0, %v5316
    %v5318 = vtanh.pop %v5311
    %v5319 = vmul.f32 %v5317, %v4825
    %5321 = vrot.lane.b32.xlu0 %v5318, 64
    %v5322 = vpop.permute.xlu0 %5321
    %v5324 = vmul.f32 %v5317, %v5322
    %5326 = vrot.lane.b32.xlu0 %v5324, 32
    %v5327 = vpop.permute.xlu0 %5326
    %v5329 = vadd.f32 %v5319, %v5327
    %v5330 = vtanh.pop %v5329
    %5332 = vrot.lane.b32.xlu0 %v5330, 64
    %v5333 = vpop.permute.xlu0 %5332
    %v5335 = vmul.f32 %v5317, %v5333
    %5337 = vrot.lane.b32.xlu0 %v5335, 32
    %v5338 = vpop.permute.xlu0 %5337
    %s5340 = scalar_lea.vmem [#allocation4], 8
    %5341 = vst.msk [vmem:[%s5340] sm:$0x3] %vm374, %v5338
    %v5342 = vld [vmem:[%s1446] sm:$0x3]
    %v5343 = vld [vmem:[%s1978] sm:$0x3]
    %v5345 = vsel %vm192, %v5343, 0
    %5347 = vmatprep.subr.mxu0 0.0
    %5348 = vmatpush1.msra.mxu0 %v3058
    %5349 = vmatprep.subr.mxu0 0.0
    %5350 = vmatpush1.msra.mxu0 %v3059
    %5351 = vmatprep.subr.mxu0 0.0
    %5352 = vmatpush1.msra.mxu0 %v3060
    %5353 = vmatprep.subr.mxu0 0.0
    %5354 = vmatpush1.msra.mxu0 %v3061
    %5355 = vmatprep.subr.mxu0 0.0
    %5356 = vmatpush1.msra.mxu0 0.0
    %5357 = vmatprep.subr.mxu0 0.0
    %5358 = vmatpush1.msra.mxu0 0.0
    %5359 = vmatprep.subr.mxu0 0.0
    %5360 = vmatpush1.msra.mxu0 0.0
    %5361 = vmatprep.subr.mxu0 0.0
    %5362 = vmatpush1.msra.mxu0 0.0
    %5363 = vmatprep.subr.mxu0 0.0
    %5364 = vmatpush1.msra.mxu0 0.0
    %5365 = vmatprep.subr.mxu0 0.0
    %5366 = vmatpush1.msra.mxu0 0.0
    %5367 = vmatprep.subr.mxu0 0.0
    %5368 = vmatpush1.msra.mxu0 0.0
    %5369 = vmatprep.subr.mxu0 0.0
    %5370 = vmatpush1.msra.mxu0 0.0
    %5371 = vmatprep.subr.mxu0 0.0
    %5372 = vmatpush1.msra.mxu0 0.0
    %5373 = vmatprep.subr.mxu0 0.0
    %5374 = vmatpush1.msra.mxu0 0.0
    %5375 = vmatprep.subr.mxu0 0.0
    %5376 = vmatpush1.msra.mxu0 0.0
    %5377 = vmatprep.subr.mxu0 0.0
    %5378 = vmatpush1.msra.mxu0 0.0
    %5379 = vmatprep.subr.mxu0 0.0
    %5380 = vmatpush1.msra.mxu0 0.0
    %5381 = vmatprep.subr.mxu0 0.0
    %5382 = vmatpush1.msra.mxu0 0.0
    %5383 = vmatprep.subr.mxu0 0.0
    %5384 = vmatpush1.msra.mxu0 0.0
    %5385 = vmatprep.subr.mxu0 0.0
    %5386 = vmatpush1.msra.mxu0 0.0
    %5387 = vmatprep.subr.mxu0 0.0
    %5388 = vmatpush1.msra.mxu0 0.0
    %5389 = vmatprep.subr.mxu0 0.0
    %5390 = vmatpush1.msra.mxu0 0.0
    %5391 = vmatprep.subr.mxu0 0.0
    %5392 = vmatpush1.msra.mxu0 0.0
    %5393 = vmatprep.subr.mxu0 0.0
    %5394 = vmatpush1.msra.mxu0 0.0
    %5395 = vmatprep.subr.mxu0 0.0
    %5396 = vmatpush1.msra.mxu0 0.0
    %5397 = vmatprep.subr.mxu0 0.0
    %5398 = vmatpush1.msra.mxu0 0.0
    %5399 = vmatprep.subr.mxu0 0.0
    %5400 = vmatpush1.msra.mxu0 0.0
    %5401 = vmatprep.subr.mxu0 0.0
    %5402 = vmatpush1.msra.mxu0 0.0
    %5403 = vmatprep.subr.mxu0 0.0
    %5404 = vmatpush1.msra.mxu0 0.0
    %5405 = vmatprep.subr.mxu0 0.0
    %5406 = vmatpush1.msra.mxu0 0.0
    %5407 = vmatprep.subr.mxu0 0.0
    %5408 = vmatpush1.msra.mxu0 0.0
    %5409 = vmatprep.subr.mxu0 0.0
    %5410 = vmatpush1.msra.mxu0 0.0
    %5411 = vmatprep.mubr.f32.mxu0 0.0
    %5412 = vmatmul.mubr.f32.gmra.mrb[0].mxu0 %v5345
    %v5413 = vpop.f32.mrb[0].mxu0
    %v5414 = vadd.f32 0.0, %v5413
    %v5415 = vpop.f32.mrb[0].mxu0
    %5416 = vdwg.mxu0
    %v5418 = vsel %vm192, %v5342, 0
    %5420 = vmatprep.subr.mxu0 0.0
    %5421 = vmatpush1.msra.mxu0 %v3054
    %5422 = vmatprep.subr.mxu0 0.0
    %5423 = vmatpush1.msra.mxu0 %v3055
    %5424 = vmatprep.subr.mxu0 0.0
    %5425 = vmatpush1.msra.mxu0 %v3056
    %5426 = vmatprep.subr.mxu0 0.0
    %5427 = vmatpush1.msra.mxu0 %v3057
    %5428 = vmatprep.subr.mxu0 0.0
    %5429 = vmatpush1.msra.mxu0 0.0
    %5430 = vmatprep.subr.mxu0 0.0
    %5431 = vmatpush1.msra.mxu0 0.0
    %5432 = vmatprep.subr.mxu0 0.0
    %5433 = vmatpush1.msra.mxu0 0.0
    %5434 = vmatprep.subr.mxu0 0.0
    %5435 = vmatpush1.msra.mxu0 0.0
    %5436 = vmatprep.subr.mxu0 0.0
    %5437 = vmatpush1.msra.mxu0 0.0
    %5438 = vmatprep.subr.mxu0 0.0
    %5439 = vmatpush1.msra.mxu0 0.0
    %5440 = vmatprep.subr.mxu0 0.0
    %5441 = vmatpush1.msra.mxu0 0.0
    %5442 = vmatprep.subr.mxu0 0.0
    %5443 = vmatpush1.msra.mxu0 0.0
    %5444 = vmatprep.subr.mxu0 0.0
    %5445 = vmatpush1.msra.mxu0 0.0
    %5446 = vmatprep.subr.mxu0 0.0
    %5447 = vmatpush1.msra.mxu0 0.0
    %5448 = vmatprep.subr.mxu0 0.0
    %5449 = vmatpush1.msra.mxu0 0.0
    %5450 = vmatprep.subr.mxu0 0.0
    %5451 = vmatpush1.msra.mxu0 0.0
    %5452 = vmatprep.subr.mxu0 0.0
    %5453 = vmatpush1.msra.mxu0 0.0
    %5454 = vmatprep.subr.mxu0 0.0
    %5455 = vmatpush1.msra.mxu0 0.0
    %5456 = vmatprep.subr.mxu0 0.0
    %5457 = vmatpush1.msra.mxu0 0.0
    %5458 = vmatprep.subr.mxu0 0.0
    %5459 = vmatpush1.msra.mxu0 0.0
    %5460 = vmatprep.subr.mxu0 0.0
    %5461 = vmatpush1.msra.mxu0 0.0
    %5462 = vmatprep.subr.mxu0 0.0
    %5463 = vmatpush1.msra.mxu0 0.0
    %5464 = vmatprep.subr.mxu0 0.0
    %5465 = vmatpush1.msra.mxu0 0.0
    %5466 = vmatprep.subr.mxu0 0.0
    %5467 = vmatpush1.msra.mxu0 0.0
    %5468 = vmatprep.subr.mxu0 0.0
    %5469 = vmatpush1.msra.mxu0 0.0
    %5470 = vmatprep.subr.mxu0 0.0
    %5471 = vmatpush1.msra.mxu0 0.0
    %5472 = vmatprep.subr.mxu0 0.0
    %5473 = vmatpush1.msra.mxu0 0.0
    %5474 = vmatprep.subr.mxu0 0.0
    %5475 = vmatpush1.msra.mxu0 0.0
    %5476 = vmatprep.subr.mxu0 0.0
    %5477 = vmatpush1.msra.mxu0 0.0
    %5478 = vmatprep.subr.mxu0 0.0
    %5479 = vmatpush1.msra.mxu0 0.0
    %5480 = vmatprep.subr.mxu0 0.0
    %5481 = vmatpush1.msra.mxu0 0.0
    %5482 = vmatprep.subr.mxu0 0.0
    %5483 = vmatpush1.msra.mxu0 0.0
    %5484 = vmatprep.mubr.f32.mxu0 0.0
    %5485 = vmatmul.mubr.f32.gmra.mrb[0].mxu0 %v5418
    %v5486 = vpop.f32.mrb[0].mxu0
    %v5487 = vadd.f32 %v5414, %v5486
    %v5488 = vpop.f32.mrb[0].mxu0
    %5489 = vdwg.mxu0
    %v5490 = vsel %vm192, %v5086, 0
    %5492 = vmatprep.subr.mxu0 0.0
    %5493 = vmatpush1.msra.mxu0 %v3062
    %5494 = vmatprep.subr.mxu0 0.0
    %5495 = vmatpush1.msra.mxu0 %v3063
    %5496 = vmatprep.subr.mxu0 0.0
    %5497 = vmatpush1.msra.mxu0 %v3064
    %5498 = vmatprep.subr.mxu0 0.0
    %5499 = vmatpush1.msra.mxu0 %v3065
    %5500 = vmatprep.subr.mxu0 0.0
    %5501 = vmatpush1.msra.mxu0 0.0
    %5502 = vmatprep.subr.mxu0 0.0
    %5503 = vmatpush1.msra.mxu0 0.0
    %5504 = vmatprep.subr.mxu0 0.0
    %5505 = vmatpush1.msra.mxu0 0.0
    %5506 = vmatprep.subr.mxu0 0.0
    %5507 = vmatpush1.msra.mxu0 0.0
    %5508 = vmatprep.subr.mxu0 0.0
    %5509 = vmatpush1.msra.mxu0 0.0
    %5510 = vmatprep.subr.mxu0 0.0
    %5511 = vmatpush1.msra.mxu0 0.0
    %5512 = vmatprep.subr.mxu0 0.0
    %5513 = vmatpush1.msra.mxu0 0.0
    %5514 = vmatprep.subr.mxu0 0.0
    %5515 = vmatpush1.msra.mxu0 0.0
    %5516 = vmatprep.subr.mxu0 0.0
    %5517 = vmatpush1.msra.mxu0 0.0
    %5518 = vmatprep.subr.mxu0 0.0
    %5519 = vmatpush1.msra.mxu0 0.0
    %5520 = vmatprep.subr.mxu0 0.0
    %5521 = vmatpush1.msra.mxu0 0.0
    %5522 = vmatprep.subr.mxu0 0.0
    %5523 = vmatpush1.msra.mxu0 0.0
    %5524 = vmatprep.subr.mxu0 0.0
    %5525 = vmatpush1.msra.mxu0 0.0
    %5526 = vmatprep.subr.mxu0 0.0
    %5527 = vmatpush1.msra.mxu0 0.0
    %5528 = vmatprep.subr.mxu0 0.0
    %5529 = vmatpush1.msra.mxu0 0.0
    %5530 = vmatprep.subr.mxu0 0.0
    %5531 = vmatpush1.msra.mxu0 0.0
    %5532 = vmatprep.subr.mxu0 0.0
    %5533 = vmatpush1.msra.mxu0 0.0
    %5534 = vmatprep.subr.mxu0 0.0
    %5535 = vmatpush1.msra.mxu0 0.0
    %5536 = vmatprep.subr.mxu0 0.0
    %5537 = vmatpush1.msra.mxu0 0.0
    %5538 = vmatprep.subr.mxu0 0.0
    %5539 = vmatpush1.msra.mxu0 0.0
    %5540 = vmatprep.subr.mxu0 0.0
    %5541 = vmatpush1.msra.mxu0 0.0
    %5542 = vmatprep.subr.mxu0 0.0
    %5543 = vmatpush1.msra.mxu0 0.0
    %5544 = vmatprep.subr.mxu0 0.0
    %5545 = vmatpush1.msra.mxu0 0.0
    %5546 = vmatprep.subr.mxu0 0.0
    %5547 = vmatpush1.msra.mxu0 0.0
    %5548 = vmatprep.subr.mxu0 0.0
    %5549 = vmatpush1.msra.mxu0 0.0
    %5550 = vmatprep.subr.mxu0 0.0
    %5551 = vmatpush1.msra.mxu0 0.0
    %5552 = vmatprep.subr.mxu0 0.0
    %5553 = vmatpush1.msra.mxu0 0.0
    %5554 = vmatprep.subr.mxu0 0.0
    %5555 = vmatpush1.msra.mxu0 0.0
    %5556 = vmatprep.mubr.f32.mxu0 0.0
    %5557 = vmatmul.mubr.f32.gmra.mrb[0].mxu0 %v5490
    %v5558 = vpop.f32.mrb[0].mxu0
    %v5559 = vadd.f32 0.0, %v5558
    %v5560 = vpop.f32.mrb[0].mxu0
    %5561 = vdwg.mxu0
    %v5562 = vadd.f32 %v5487, %v5559
    %v5563 = vadd.f32 %v5562, %v3545
    %v5564 = vxor.u32 %v5563, 2147483648
    %v5565 = vmul.f32 %v5564, 1.442695
    %v5566 = vpow.pop %v5565
    %v5567 = vadd.f32 %v5566, 1.0
    %v5568 = vrcp.pop %v5567
    %v5569 = vmul.f32 1.0, %v5568
    %v5570 = vtanh.pop %v5563
    %v5571 = vmul.f32 %v5569, %v5077
    %5573 = vrot.lane.b32.xlu0 %v5570, 64
    %v5574 = vpop.permute.xlu0 %5573
    %v5576 = vmul.f32 %v5569, %v5574
    %5578 = vrot.lane.b32.xlu0 %v5576, 32
    %v5579 = vpop.permute.xlu0 %5578
    %v5581 = vadd.f32 %v5571, %v5579
    %v5582 = vtanh.pop %v5581
    %5584 = vrot.lane.b32.xlu0 %v5582, 64
    %v5585 = vpop.permute.xlu0 %5584
    %v5587 = vmul.f32 %v5569, %v5585
    %5589 = vrot.lane.b32.xlu0 %v5587, 32
    %v5590 = vpop.permute.xlu0 %5589
    %s5592 = scalar_lea.vmem [#allocation5], 6
    %5593 = vst.msk [vmem:[%s5592] sm:$0x3] %vm374, %v5590
    %v5594 = vld [vmem:[%s2155] sm:$0x3]
    %v5595 = vld [vmem:[%s1268] sm:$0x3]
    %v5597 = vsel %vm192, %v5595, 0
    %5599 = vmatprep.subr.mxu0 0.0
    %5600 = vmatpush1.msra.mxu0 %v3045
    %5601 = vmatprep.subr.mxu0 0.0
    %5602 = vmatpush1.msra.mxu0 %v3046
    %5603 = vmatprep.subr.mxu0 0.0
    %5604 = vmatpush1.msra.mxu0 %v3047
    %5605 = vmatprep.subr.mxu0 0.0
    %5606 = vmatpush1.msra.mxu0 %v3048
    %5607 = vmatprep.subr.mxu0 0.0
    %5608 = vmatpush1.msra.mxu0 0.0
    %5609 = vmatprep.subr.mxu0 0.0
    %5610 = vmatpush1.msra.mxu0 0.0
    %5611 = vmatprep.subr.mxu0 0.0
    %5612 = vmatpush1.msra.mxu0 0.0
    %5613 = vmatprep.subr.mxu0 0.0
    %5614 = vmatpush1.msra.mxu0 0.0
    %5615 = vmatprep.subr.mxu0 0.0
    %5616 = vmatpush1.msra.mxu0 0.0
    %5617 = vmatprep.subr.mxu0 0.0
    %5618 = vmatpush1.msra.mxu0 0.0
    %5619 = vmatprep.subr.mxu0 0.0
    %5620 = vmatpush1.msra.mxu0 0.0
    %5621 = vmatprep.subr.mxu0 0.0
    %5622 = vmatpush1.msra.mxu0 0.0
    %5623 = vmatprep.subr.mxu0 0.0
    %5624 = vmatpush1.msra.mxu0 0.0
    %5625 = vmatprep.subr.mxu0 0.0
    %5626 = vmatpush1.msra.mxu0 0.0
    %5627 = vmatprep.subr.mxu0 0.0
    %5628 = vmatpush1.msra.mxu0 0.0
    %5629 = vmatprep.subr.mxu0 0.0
    %5630 = vmatpush1.msra.mxu0 0.0
    %5631 = vmatprep.subr.mxu0 0.0
    %5632 = vmatpush1.msra.mxu0 0.0
    %5633 = vmatprep.subr.mxu0 0.0
    %5634 = vmatpush1.msra.mxu0 0.0
    %5635 = vmatprep.subr.mxu0 0.0
    %5636 = vmatpush1.msra.mxu0 0.0
    %5637 = vmatprep.subr.mxu0 0.0
    %5638 = vmatpush1.msra.mxu0 0.0
    %5639 = vmatprep.subr.mxu0 0.0
    %5640 = vmatpush1.msra.mxu0 0.0
    %5641 = vmatprep.subr.mxu0 0.0
    %5642 = vmatpush1.msra.mxu0 0.0
    %5643 = vmatprep.subr.mxu0 0.0
    %5644 = vmatpush1.msra.mxu0 0.0
    %5645 = vmatprep.subr.mxu0 0.0
    %5646 = vmatpush1.msra.mxu0 0.0
    %5647 = vmatprep.subr.mxu0 0.0
    %5648 = vmatpush1.msra.mxu0 0.0
    %5649 = vmatprep.subr.mxu0 0.0
    %5650 = vmatpush1.msra.mxu0 0.0
    %5651 = vmatprep.subr.mxu0 0.0
    %5652 = vmatpush1.msra.mxu0 0.0
    %5653 = vmatprep.subr.mxu0 0.0
    %5654 = vmatpush1.msra.mxu0 0.0
    %5655 = vmatprep.subr.mxu0 0.0
    %5656 = vmatpush1.msra.mxu0 0.0
    %5657 = vmatprep.subr.mxu0 0.0
    %5658 = vmatpush1.msra.mxu0 0.0
    %5659 = vmatprep.subr.mxu0 0.0
    %5660 = vmatpush1.msra.mxu0 0.0
    %5661 = vmatprep.subr.mxu0 0.0
    %5662 = vmatpush1.msra.mxu0 0.0
    %5663 = vmatprep.mubr.f32.mxu0 0.0
    %5664 = vmatmul.mubr.f32.gmra.mrb[0].mxu0 %v5597
    %v5665 = vpop.f32.mrb[0].mxu0
    %v5666 = vadd.f32 0.0, %v5665
    %v5667 = vpop.f32.mrb[0].mxu0
    %5668 = vdwg.mxu0
    %v5670 = vsel %vm192, %v5594, 0
    %5672 = vmatprep.subr.mxu0 0.0
    %5673 = vmatpush1.msra.mxu0 %v3041
    %5674 = vmatprep.subr.mxu0 0.0
    %5675 = vmatpush1.msra.mxu0 %v3042
    %5676 = vmatprep.subr.mxu0 0.0
    %5677 = vmatpush1.msra.mxu0 %v3043
    %5678 = vmatprep.subr.mxu0 0.0
    %5679 = vmatpush1.msra.mxu0 %v3044
    %5680 = vmatprep.subr.mxu0 0.0
    %5681 = vmatpush1.msra.mxu0 0.0
    %5682 = vmatprep.subr.mxu0 0.0
    %5683 = vmatpush1.msra.mxu0 0.0
    %5684 = vmatprep.subr.mxu0 0.0
    %5685 = vmatpush1.msra.mxu0 0.0
    %5686 = vmatprep.subr.mxu0 0.0
    %5687 = vmatpush1.msra.mxu0 0.0
    %5688 = vmatprep.subr.mxu0 0.0
    %5689 = vmatpush1.msra.mxu0 0.0
    %5690 = vmatprep.subr.mxu0 0.0
    %5691 = vmatpush1.msra.mxu0 0.0
    %5692 = vmatprep.subr.mxu0 0.0
    %5693 = vmatpush1.msra.mxu0 0.0
    %5694 = vmatprep.subr.mxu0 0.0
    %5695 = vmatpush1.msra.mxu0 0.0
    %5696 = vmatprep.subr.mxu0 0.0
    %5697 = vmatpush1.msra.mxu0 0.0
    %5698 = vmatprep.subr.mxu0 0.0
    %5699 = vmatpush1.msra.mxu0 0.0
    %5700 = vmatprep.subr.mxu0 0.0
    %5701 = vmatpush1.msra.mxu0 0.0
    %5702 = vmatprep.subr.mxu0 0.0
    %5703 = vmatpush1.msra.mxu0 0.0
    %5704 = vmatprep.subr.mxu0 0.0
    %5705 = vmatpush1.msra.mxu0 0.0
    %5706 = vmatprep.subr.mxu0 0.0
    %5707 = vmatpush1.msra.mxu0 0.0
    %5708 = vmatprep.subr.mxu0 0.0
    %5709 = vmatpush1.msra.mxu0 0.0
    %5710 = vmatprep.subr.mxu0 0.0
    %5711 = vmatpush1.msra.mxu0 0.0
    %5712 = vmatprep.subr.mxu0 0.0
    %5713 = vmatpush1.msra.mxu0 0.0
    %5714 = vmatprep.subr.mxu0 0.0
    %5715 = vmatpush1.msra.mxu0 0.0
    %5716 = vmatprep.subr.mxu0 0.0
    %5717 = vmatpush1.msra.mxu0 0.0
    %5718 = vmatprep.subr.mxu0 0.0
    %5719 = vmatpush1.msra.mxu0 0.0
    %5720 = vmatprep.subr.mxu0 0.0
    %5721 = vmatpush1.msra.mxu0 0.0
    %5722 = vmatprep.subr.mxu0 0.0
    %5723 = vmatpush1.msra.mxu0 0.0
    %5724 = vmatprep.subr.mxu0 0.0
    %5725 = vmatpush1.msra.mxu0 0.0
    %5726 = vmatprep.subr.mxu0 0.0
    %5727 = vmatpush1.msra.mxu0 0.0
    %5728 = vmatprep.subr.mxu0 0.0
    %5729 = vmatpush1.msra.mxu0 0.0
    %5730 = vmatprep.subr.mxu0 0.0
    %5731 = vmatpush1.msra.mxu0 0.0
    %5732 = vmatprep.subr.mxu0 0.0
    %5733 = vmatpush1.msra.mxu0 0.0
    %5734 = vmatprep.subr.mxu0 0.0
    %5735 = vmatpush1.msra.mxu0 0.0
    %5736 = vmatprep.mubr.f32.mxu0 0.0
    %5737 = vmatmul.mubr.f32.gmra.mrb[0].mxu0 %v5670
    %v5738 = vpop.f32.mrb[0].mxu0
    %v5739 = vadd.f32 %v5666, %v5738
    %v5740 = vpop.f32.mrb[0].mxu0
    %5741 = vdwg.mxu0
    %v5742 = vsel %vm192, %v5338, 0
    %5744 = vmatprep.subr.mxu0 0.0
    %5745 = vmatpush1.msra.mxu0 %v3049
    %5746 = vmatprep.subr.mxu0 0.0
    %5747 = vmatpush1.msra.mxu0 %v3050
    %5748 = vmatprep.subr.mxu0 0.0
    %5749 = vmatpush1.msra.mxu0 %v3051
    %5750 = vmatprep.subr.mxu0 0.0
    %5751 = vmatpush1.msra.mxu0 %v3052
    %5752 = vmatprep.subr.mxu0 0.0
    %5753 = vmatpush1.msra.mxu0 0.0
    %5754 = vmatprep.subr.mxu0 0.0
    %5755 = vmatpush1.msra.mxu0 0.0
    %5756 = vmatprep.subr.mxu0 0.0
    %5757 = vmatpush1.msra.mxu0 0.0
    %5758 = vmatprep.subr.mxu0 0.0
    %5759 = vmatpush1.msra.mxu0 0.0
    %5760 = vmatprep.subr.mxu0 0.0
    %5761 = vmatpush1.msra.mxu0 0.0
    %5762 = vmatprep.subr.mxu0 0.0
    %5763 = vmatpush1.msra.mxu0 0.0
    %5764 = vmatprep.subr.mxu0 0.0
    %5765 = vmatpush1.msra.mxu0 0.0
    %5766 = vmatprep.subr.mxu0 0.0
    %5767 = vmatpush1.msra.mxu0 0.0
    %5768 = vmatprep.subr.mxu0 0.0
    %5769 = vmatpush1.msra.mxu0 0.0
    %5770 = vmatprep.subr.mxu0 0.0
    %5771 = vmatpush1.msra.mxu0 0.0
    %5772 = vmatprep.subr.mxu0 0.0
    %5773 = vmatpush1.msra.mxu0 0.0
    %5774 = vmatprep.subr.mxu0 0.0
    %5775 = vmatpush1.msra.mxu0 0.0
    %5776 = vmatprep.subr.mxu0 0.0
    %5777 = vmatpush1.msra.mxu0 0.0
    %5778 = vmatprep.subr.mxu0 0.0
    %5779 = vmatpush1.msra.mxu0 0.0
    %5780 = vmatprep.subr.mxu0 0.0
    %5781 = vmatpush1.msra.mxu0 0.0
    %5782 = vmatprep.subr.mxu0 0.0
    %5783 = vmatpush1.msra.mxu0 0.0
    %5784 = vmatprep.subr.mxu0 0.0
    %5785 = vmatpush1.msra.mxu0 0.0
    %5786 = vmatprep.subr.mxu0 0.0
    %5787 = vmatpush1.msra.mxu0 0.0
    %5788 = vmatprep.subr.mxu0 0.0
    %5789 = vmatpush1.msra.mxu0 0.0
    %5790 = vmatprep.subr.mxu0 0.0
    %5791 = vmatpush1.msra.mxu0 0.0
    %5792 = vmatprep.subr.mxu0 0.0
    %5793 = vmatpush1.msra.mxu0 0.0
    %5794 = vmatprep.subr.mxu0 0.0
    %5795 = vmatpush1.msra.mxu0 0.0
    %5796 = vmatprep.subr.mxu0 0.0
    %5797 = vmatpush1.msra.mxu0 0.0
    %5798 = vmatprep.subr.mxu0 0.0
    %5799 = vmatpush1.msra.mxu0 0.0
    %5800 = vmatprep.subr.mxu0 0.0
    %5801 = vmatpush1.msra.mxu0 0.0
    %5802 = vmatprep.subr.mxu0 0.0
    %5803 = vmatpush1.msra.mxu0 0.0
    %5804 = vmatprep.subr.mxu0 0.0
    %5805 = vmatpush1.msra.mxu0 0.0
    %5806 = vmatprep.subr.mxu0 0.0
    %5807 = vmatpush1.msra.mxu0 0.0
    %5808 = vmatprep.mubr.f32.mxu0 0.0
    %5809 = vmatmul.mubr.f32.gmra.mrb[0].mxu0 %v5742
    %v5810 = vpop.f32.mrb[0].mxu0
    %v5811 = vadd.f32 0.0, %v5810
    %v5812 = vpop.f32.mrb[0].mxu0
    %5813 = vdwg.mxu0
    %v5814 = vadd.f32 %v5739, %v5811
    %v5815 = vadd.f32 %v5814, %v3290
    %v5816 = vxor.u32 %v5815, 2147483648
    %v5817 = vmul.f32 %v5816, 1.442695
    %v5818 = vpow.pop %v5817
    %v5819 = vadd.f32 %v5818, 1.0
    %v5820 = vrcp.pop %v5819
    %v5821 = vmul.f32 1.0, %v5820
    %v5822 = vtanh.pop %v5815
    %v5823 = vmul.f32 %v5821, %v5329
    %5825 = vrot.lane.b32.xlu0 %v5822, 64
    %v5826 = vpop.permute.xlu0 %5825
    %v5828 = vmul.f32 %v5821, %v5826
    %5830 = vrot.lane.b32.xlu0 %v5828, 32
    %v5831 = vpop.permute.xlu0 %5830
    %v5833 = vadd.f32 %v5823, %v5831
    %v5834 = vtanh.pop %v5833
    %5836 = vrot.lane.b32.xlu0 %v5834, 64
    %v5837 = vpop.permute.xlu0 %5836
    %v5839 = vmul.f32 %v5821, %v5837
    %5841 = vrot.lane.b32.xlu0 %v5839, 32
    %v5842 = vpop.permute.xlu0 %5841
    %s5844 = scalar_lea.vmem [#allocation4], 10
    %5845 = vst.msk [vmem:[%s5844] sm:$0x3] %vm374, %v5842
    %v5846 = vld [vmem:[%s1090] sm:$0x3]
    %v5847 = vld [vmem:[%s2332] sm:$0x3]
    %v5849 = vsel %vm192, %v5847, 0
    %5851 = vmatprep.subr.mxu0 0.0
    %5852 = vmatpush1.msra.mxu0 %v3058
    %5853 = vmatprep.subr.mxu0 0.0
    %5854 = vmatpush1.msra.mxu0 %v3059
    %5855 = vmatprep.subr.mxu0 0.0
    %5856 = vmatpush1.msra.mxu0 %v3060
    %5857 = vmatprep.subr.mxu0 0.0
    %5858 = vmatpush1.msra.mxu0 %v3061
    %5859 = vmatprep.subr.mxu0 0.0
    %5860 = vmatpush1.msra.mxu0 0.0
    %5861 = vmatprep.subr.mxu0 0.0
    %5862 = vmatpush1.msra.mxu0 0.0
    %5863 = vmatprep.subr.mxu0 0.0
    %5864 = vmatpush1.msra.mxu0 0.0
    %5865 = vmatprep.subr.mxu0 0.0
    %5866 = vmatpush1.msra.mxu0 0.0
    %5867 = vmatprep.subr.mxu0 0.0
    %5868 = vmatpush1.msra.mxu0 0.0
    %5869 = vmatprep.subr.mxu0 0.0
    %5870 = vmatpush1.msra.mxu0 0.0
    %5871 = vmatprep.subr.mxu0 0.0
    %5872 = vmatpush1.msra.mxu0 0.0
    %5873 = vmatprep.subr.mxu0 0.0
    %5874 = vmatpush1.msra.mxu0 0.0
    %5875 = vmatprep.subr.mxu0 0.0
    %5876 = vmatpush1.msra.mxu0 0.0
    %5877 = vmatprep.subr.mxu0 0.0
    %5878 = vmatpush1.msra.mxu0 0.0
    %5879 = vmatprep.subr.mxu0 0.0
    %5880 = vmatpush1.msra.mxu0 0.0
    %5881 = vmatprep.subr.mxu0 0.0
    %5882 = vmatpush1.msra.mxu0 0.0
    %5883 = vmatprep.subr.mxu0 0.0
    %5884 = vmatpush1.msra.mxu0 0.0
    %5885 = vmatprep.subr.mxu0 0.0
    %5886 = vmatpush1.msra.mxu0 0.0
    %5887 = vmatprep.subr.mxu0 0.0
    %5888 = vmatpush1.msra.mxu0 0.0
    %5889 = vmatprep.subr.mxu0 0.0
    %5890 = vmatpush1.msra.mxu0 0.0
    %5891 = vmatprep.subr.mxu0 0.0
    %5892 = vmatpush1.msra.mxu0 0.0
    %5893 = vmatprep.subr.mxu0 0.0
    %5894 = vmatpush1.msra.mxu0 0.0
    %5895 = vmatprep.subr.mxu0 0.0
    %5896 = vmatpush1.msra.mxu0 0.0
    %5897 = vmatprep.subr.mxu0 0.0
    %5898 = vmatpush1.msra.mxu0 0.0
    %5899 = vmatprep.subr.mxu0 0.0
    %5900 = vmatpush1.msra.mxu0 0.0
    %5901 = vmatprep.subr.mxu0 0.0
    %5902 = vmatpush1.msra.mxu0 0.0
    %5903 = vmatprep.subr.mxu0 0.0
    %5904 = vmatpush1.msra.mxu0 0.0
    %5905 = vmatprep.subr.mxu0 0.0
    %5906 = vmatpush1.msra.mxu0 0.0
    %5907 = vmatprep.subr.mxu0 0.0
    %5908 = vmatpush1.msra.mxu0 0.0
    %5909 = vmatprep.subr.mxu0 0.0
    %5910 = vmatpush1.msra.mxu0 0.0
    %5911 = vmatprep.subr.mxu0 0.0
    %5912 = vmatpush1.msra.mxu0 0.0
    %5913 = vmatprep.subr.mxu0 0.0
    %5914 = vmatpush1.msra.mxu0 0.0
    %5915 = vmatprep.mubr.f32.mxu0 0.0
    %5916 = vmatmul.mubr.f32.gmra.mrb[0].mxu0 %v5849
    %v5917 = vpop.f32.mrb[0].mxu0
    %v5918 = vadd.f32 0.0, %v5917
    %v5919 = vpop.f32.mrb[0].mxu0
    %5920 = vdwg.mxu0
    %v5922 = vsel %vm192, %v5846, 0
    %5924 = vmatprep.subr.mxu0 0.0
    %5925 = vmatpush1.msra.mxu0 %v3054
    %5926 = vmatprep.subr.mxu0 0.0
    %5927 = vmatpush1.msra.mxu0 %v3055
    %5928 = vmatprep.subr.mxu0 0.0
    %5929 = vmatpush1.msra.mxu0 %v3056
    %5930 = vmatprep.subr.mxu0 0.0
    %5931 = vmatpush1.msra.mxu0 %v3057
    %5932 = vmatprep.subr.mxu0 0.0
    %5933 = vmatpush1.msra.mxu0 0.0
    %5934 = vmatprep.subr.mxu0 0.0
    %5935 = vmatpush1.msra.mxu0 0.0
    %5936 = vmatprep.subr.mxu0 0.0
    %5937 = vmatpush1.msra.mxu0 0.0
    %5938 = vmatprep.subr.mxu0 0.0
    %5939 = vmatpush1.msra.mxu0 0.0
    %5940 = vmatprep.subr.mxu0 0.0
    %5941 = vmatpush1.msra.mxu0 0.0
    %5942 = vmatprep.subr.mxu0 0.0
    %5943 = vmatpush1.msra.mxu0 0.0
    %5944 = vmatprep.subr.mxu0 0.0
    %5945 = vmatpush1.msra.mxu0 0.0
    %5946 = vmatprep.subr.mxu0 0.0
    %5947 = vmatpush1.msra.mxu0 0.0
    %5948 = vmatprep.subr.mxu0 0.0
    %5949 = vmatpush1.msra.mxu0 0.0
    %5950 = vmatprep.subr.mxu0 0.0
    %5951 = vmatpush1.msra.mxu0 0.0
    %5952 = vmatprep.subr.mxu0 0.0
    %5953 = vmatpush1.msra.mxu0 0.0
    %5954 = vmatprep.subr.mxu0 0.0
    %5955 = vmatpush1.msra.mxu0 0.0
    %5956 = vmatprep.subr.mxu0 0.0
    %5957 = vmatpush1.msra.mxu0 0.0
    %5958 = vmatprep.subr.mxu0 0.0
    %5959 = vmatpush1.msra.mxu0 0.0
    %5960 = vmatprep.subr.mxu0 0.0
    %5961 = vmatpush1.msra.mxu0 0.0
    %5962 = vmatprep.subr.mxu0 0.0
    %5963 = vmatpush1.msra.mxu0 0.0
    %5964 = vmatprep.subr.mxu0 0.0
    %5965 = vmatpush1.msra.mxu0 0.0
    %5966 = vmatprep.subr.mxu0 0.0
    %5967 = vmatpush1.msra.mxu0 0.0
    %5968 = vmatprep.subr.mxu0 0.0
    %5969 = vmatpush1.msra.mxu0 0.0
    %5970 = vmatprep.subr.mxu0 0.0
    %5971 = vmatpush1.msra.mxu0 0.0
    %5972 = vmatprep.subr.mxu0 0.0
    %5973 = vmatpush1.msra.mxu0 0.0
    %5974 = vmatprep.subr.mxu0 0.0
    %5975 = vmatpush1.msra.mxu0 0.0
    %5976 = vmatprep.subr.mxu0 0.0
    %5977 = vmatpush1.msra.mxu0 0.0
    %5978 = vmatprep.subr.mxu0 0.0
    %5979 = vmatpush1.msra.mxu0 0.0
    %5980 = vmatprep.subr.mxu0 0.0
    %5981 = vmatpush1.msra.mxu0 0.0
    %5982 = vmatprep.subr.mxu0 0.0
    %5983 = vmatpush1.msra.mxu0 0.0
    %5984 = vmatprep.subr.mxu0 0.0
    %5985 = vmatpush1.msra.mxu0 0.0
    %5986 = vmatprep.subr.mxu0 0.0
    %5987 = vmatpush1.msra.mxu0 0.0
    %5988 = vmatprep.mubr.f32.mxu0 0.0
    %5989 = vmatmul.mubr.f32.gmra.mrb[0].mxu0 %v5922
    %v5990 = vpop.f32.mrb[0].mxu0
    %v5991 = vadd.f32 %v5918, %v5990
    %v5992 = vpop.f32.mrb[0].mxu0
    %5993 = vdwg.mxu0
    %v5994 = vsel %vm192, %v5590, 0
    %5996 = vmatprep.subr.mxu0 0.0
    %5997 = vmatpush1.msra.mxu0 %v3062
    %5998 = vmatprep.subr.mxu0 0.0
    %5999 = vmatpush1.msra.mxu0 %v3063
    %6000 = vmatprep.subr.mxu0 0.0
    %6001 = vmatpush1.msra.mxu0 %v3064
    %6002 = vmatprep.subr.mxu0 0.0
    %6003 = vmatpush1.msra.mxu0 %v3065
    %6004 = vmatprep.subr.mxu0 0.0
    %6005 = vmatpush1.msra.mxu0 0.0
    %6006 = vmatprep.subr.mxu0 0.0
    %6007 = vmatpush1.msra.mxu0 0.0
    %6008 = vmatprep.subr.mxu0 0.0
    %6009 = vmatpush1.msra.mxu0 0.0
    %6010 = vmatprep.subr.mxu0 0.0
    %6011 = vmatpush1.msra.mxu0 0.0
    %6012 = vmatprep.subr.mxu0 0.0
    %6013 = vmatpush1.msra.mxu0 0.0
    %6014 = vmatprep.subr.mxu0 0.0
    %6015 = vmatpush1.msra.mxu0 0.0
    %6016 = vmatprep.subr.mxu0 0.0
    %6017 = vmatpush1.msra.mxu0 0.0
    %6018 = vmatprep.subr.mxu0 0.0
    %6019 = vmatpush1.msra.mxu0 0.0
    %6020 = vmatprep.subr.mxu0 0.0
    %6021 = vmatpush1.msra.mxu0 0.0
    %6022 = vmatprep.subr.mxu0 0.0
    %6023 = vmatpush1.msra.mxu0 0.0
    %6024 = vmatprep.subr.mxu0 0.0
    %6025 = vmatpush1.msra.mxu0 0.0
    %6026 = vmatprep.subr.mxu0 0.0
    %6027 = vmatpush1.msra.mxu0 0.0
    %6028 = vmatprep.subr.mxu0 0.0
    %6029 = vmatpush1.msra.mxu0 0.0
    %6030 = vmatprep.subr.mxu0 0.0
    %6031 = vmatpush1.msra.mxu0 0.0
    %6032 = vmatprep.subr.mxu0 0.0
    %6033 = vmatpush1.msra.mxu0 0.0
    %6034 = vmatprep.subr.mxu0 0.0
    %6035 = vmatpush1.msra.mxu0 0.0
    %6036 = vmatprep.subr.mxu0 0.0
    %6037 = vmatpush1.msra.mxu0 0.0
    %6038 = vmatprep.subr.mxu0 0.0
    %6039 = vmatpush1.msra.mxu0 0.0
    %6040 = vmatprep.subr.mxu0 0.0
    %6041 = vmatpush1.msra.mxu0 0.0
    %6042 = vmatprep.subr.mxu0 0.0
    %6043 = vmatpush1.msra.mxu0 0.0
    %6044 = vmatprep.subr.mxu0 0.0
    %6045 = vmatpush1.msra.mxu0 0.0
    %6046 = vmatprep.subr.mxu0 0.0
    %6047 = vmatpush1.msra.mxu0 0.0
    %6048 = vmatprep.subr.mxu0 0.0
    %6049 = vmatpush1.msra.mxu0 0.0
    %6050 = vmatprep.subr.mxu0 0.0
    %6051 = vmatpush1.msra.mxu0 0.0
    %6052 = vmatprep.subr.mxu0 0.0
    %6053 = vmatpush1.msra.mxu0 0.0
    %6054 = vmatprep.subr.mxu0 0.0
    %6055 = vmatpush1.msra.mxu0 0.0
    %6056 = vmatprep.subr.mxu0 0.0
    %6057 = vmatpush1.msra.mxu0 0.0
    %6058 = vmatprep.subr.mxu0 0.0
    %6059 = vmatpush1.msra.mxu0 0.0
    %6060 = vmatprep.mubr.f32.mxu0 0.0
    %6061 = vmatmul.mubr.f32.gmra.mrb[0].mxu0 %v5994
    %v6062 = vpop.f32.mrb[0].mxu0
    %v6063 = vadd.f32 0.0, %v6062
    %v6064 = vpop.f32.mrb[0].mxu0
    %6065 = vdwg.mxu0
    %v6066 = vadd.f32 %v5991, %v6063
    %v6067 = vadd.f32 %v6066, %v3545
    %v6068 = vxor.u32 %v6067, 2147483648
    %v6069 = vmul.f32 %v6068, 1.442695
    %v6070 = vpow.pop %v6069
    %v6071 = vadd.f32 %v6070, 1.0
    %v6072 = vrcp.pop %v6071
    %v6073 = vmul.f32 1.0, %v6072
    %v6074 = vtanh.pop %v6067
    %v6075 = vmul.f32 %v6073, %v5581
    %6077 = vrot.lane.b32.xlu0 %v6074, 64
    %v6078 = vpop.permute.xlu0 %6077
    %v6080 = vmul.f32 %v6073, %v6078
    %6082 = vrot.lane.b32.xlu0 %v6080, 32
    %v6083 = vpop.permute.xlu0 %6082
    %v6085 = vadd.f32 %v6075, %v6083
    %v6086 = vtanh.pop %v6085
    %6088 = vrot.lane.b32.xlu0 %v6086, 64
    %v6089 = vpop.permute.xlu0 %6088
    %v6091 = vmul.f32 %v6073, %v6089
    %6093 = vrot.lane.b32.xlu0 %v6091, 32
    %v6094 = vpop.permute.xlu0 %6093
    %s6096 = scalar_lea.vmem [#allocation5], 4
    %6097 = vst.msk [vmem:[%s6096] sm:$0x3] %vm374, %v6094
    %v6098 = vld [vmem:[%s2509] sm:$0x3]
    %v6099 = vld [vmem:[%s912] sm:$0x3]
    %v6101 = vsel %vm192, %v6099, 0
    %6103 = vmatprep.subr.mxu0 0.0
    %6104 = vmatpush1.msra.mxu0 %v3045
    %6105 = vmatprep.subr.mxu0 0.0
    %6106 = vmatpush1.msra.mxu0 %v3046
    %6107 = vmatprep.subr.mxu0 0.0
    %6108 = vmatpush1.msra.mxu0 %v3047
    %6109 = vmatprep.subr.mxu0 0.0
    %6110 = vmatpush1.msra.mxu0 %v3048
    %6111 = vmatprep.subr.mxu0 0.0
    %6112 = vmatpush1.msra.mxu0 0.0
    %6113 = vmatprep.subr.mxu0 0.0
    %6114 = vmatpush1.msra.mxu0 0.0
    %6115 = vmatprep.subr.mxu0 0.0
    %6116 = vmatpush1.msra.mxu0 0.0
    %6117 = vmatprep.subr.mxu0 0.0
    %6118 = vmatpush1.msra.mxu0 0.0
    %6119 = vmatprep.subr.mxu0 0.0
    %6120 = vmatpush1.msra.mxu0 0.0
    %6121 = vmatprep.subr.mxu0 0.0
    %6122 = vmatpush1.msra.mxu0 0.0
    %6123 = vmatprep.subr.mxu0 0.0
    %6124 = vmatpush1.msra.mxu0 0.0
    %6125 = vmatprep.subr.mxu0 0.0
    %6126 = vmatpush1.msra.mxu0 0.0
    %6127 = vmatprep.subr.mxu0 0.0
    %6128 = vmatpush1.msra.mxu0 0.0
    %6129 = vmatprep.subr.mxu0 0.0
    %6130 = vmatpush1.msra.mxu0 0.0
    %6131 = vmatprep.subr.mxu0 0.0
    %6132 = vmatpush1.msra.mxu0 0.0
    %6133 = vmatprep.subr.mxu0 0.0
    %6134 = vmatpush1.msra.mxu0 0.0
    %6135 = vmatprep.subr.mxu0 0.0
    %6136 = vmatpush1.msra.mxu0 0.0
    %6137 = vmatprep.subr.mxu0 0.0
    %6138 = vmatpush1.msra.mxu0 0.0
    %6139 = vmatprep.subr.mxu0 0.0
    %6140 = vmatpush1.msra.mxu0 0.0
    %6141 = vmatprep.subr.mxu0 0.0
    %6142 = vmatpush1.msra.mxu0 0.0
    %6143 = vmatprep.subr.mxu0 0.0
    %6144 = vmatpush1.msra.mxu0 0.0
    %6145 = vmatprep.subr.mxu0 0.0
    %6146 = vmatpush1.msra.mxu0 0.0
    %6147 = vmatprep.subr.mxu0 0.0
    %6148 = vmatpush1.msra.mxu0 0.0
    %6149 = vmatprep.subr.mxu0 0.0
    %6150 = vmatpush1.msra.mxu0 0.0
    %6151 = vmatprep.subr.mxu0 0.0
    %6152 = vmatpush1.msra.mxu0 0.0
    %6153 = vmatprep.subr.mxu0 0.0
    %6154 = vmatpush1.msra.mxu0 0.0
    %6155 = vmatprep.subr.mxu0 0.0
    %6156 = vmatpush1.msra.mxu0 0.0
    %6157 = vmatprep.subr.mxu0 0.0
    %6158 = vmatpush1.msra.mxu0 0.0
    %6159 = vmatprep.subr.mxu0 0.0
    %6160 = vmatpush1.msra.mxu0 0.0
    %6161 = vmatprep.subr.mxu0 0.0
    %6162 = vmatpush1.msra.mxu0 0.0
    %6163 = vmatprep.subr.mxu0 0.0
    %6164 = vmatpush1.msra.mxu0 0.0
    %6165 = vmatprep.subr.mxu0 0.0
    %6166 = vmatpush1.msra.mxu0 0.0
    %6167 = vmatprep.mubr.f32.mxu0 0.0
    %6168 = vmatmul.mubr.f32.gmra.mrb[0].mxu0 %v6101
    %v6169 = vpop.f32.mrb[0].mxu0
    %v6170 = vadd.f32 0.0, %v6169
    %v6171 = vpop.f32.mrb[0].mxu0
    %6172 = vdwg.mxu0
    %v6174 = vsel %vm192, %v6098, 0
    %6176 = vmatprep.subr.mxu0 0.0
    %6177 = vmatpush1.msra.mxu0 %v3041
    %6178 = vmatprep.subr.mxu0 0.0
    %6179 = vmatpush1.msra.mxu0 %v3042
    %6180 = vmatprep.subr.mxu0 0.0
    %6181 = vmatpush1.msra.mxu0 %v3043
    %6182 = vmatprep.subr.mxu0 0.0
    %6183 = vmatpush1.msra.mxu0 %v3044
    %6184 = vmatprep.subr.mxu0 0.0
    %6185 = vmatpush1.msra.mxu0 0.0
    %6186 = vmatprep.subr.mxu0 0.0
    %6187 = vmatpush1.msra.mxu0 0.0
    %6188 = vmatprep.subr.mxu0 0.0
    %6189 = vmatpush1.msra.mxu0 0.0
    %6190 = vmatprep.subr.mxu0 0.0
    %6191 = vmatpush1.msra.mxu0 0.0
    %6192 = vmatprep.subr.mxu0 0.0
    %6193 = vmatpush1.msra.mxu0 0.0
    %6194 = vmatprep.subr.mxu0 0.0
    %6195 = vmatpush1.msra.mxu0 0.0
    %6196 = vmatprep.subr.mxu0 0.0
    %6197 = vmatpush1.msra.mxu0 0.0
    %6198 = vmatprep.subr.mxu0 0.0
    %6199 = vmatpush1.msra.mxu0 0.0
    %6200 = vmatprep.subr.mxu0 0.0
    %6201 = vmatpush1.msra.mxu0 0.0
    %6202 = vmatprep.subr.mxu0 0.0
    %6203 = vmatpush1.msra.mxu0 0.0
    %6204 = vmatprep.subr.mxu0 0.0
    %6205 = vmatpush1.msra.mxu0 0.0
    %6206 = vmatprep.subr.mxu0 0.0
    %6207 = vmatpush1.msra.mxu0 0.0
    %6208 = vmatprep.subr.mxu0 0.0
    %6209 = vmatpush1.msra.mxu0 0.0
    %6210 = vmatprep.subr.mxu0 0.0
    %6211 = vmatpush1.msra.mxu0 0.0
    %6212 = vmatprep.subr.mxu0 0.0
    %6213 = vmatpush1.msra.mxu0 0.0
    %6214 = vmatprep.subr.mxu0 0.0
    %6215 = vmatpush1.msra.mxu0 0.0
    %6216 = vmatprep.subr.mxu0 0.0
    %6217 = vmatpush1.msra.mxu0 0.0
    %6218 = vmatprep.subr.mxu0 0.0
    %6219 = vmatpush1.msra.mxu0 0.0
    %6220 = vmatprep.subr.mxu0 0.0
    %6221 = vmatpush1.msra.mxu0 0.0
    %6222 = vmatprep.subr.mxu0 0.0
    %6223 = vmatpush1.msra.mxu0 0.0
    %6224 = vmatprep.subr.mxu0 0.0
    %6225 = vmatpush1.msra.mxu0 0.0
    %6226 = vmatprep.subr.mxu0 0.0
    %6227 = vmatpush1.msra.mxu0 0.0
    %6228 = vmatprep.subr.mxu0 0.0
    %6229 = vmatpush1.msra.mxu0 0.0
    %6230 = vmatprep.subr.mxu0 0.0
    %6231 = vmatpush1.msra.mxu0 0.0
    %6232 = vmatprep.subr.mxu0 0.0
    %6233 = vmatpush1.msra.mxu0 0.0
    %6234 = vmatprep.subr.mxu0 0.0
    %6235 = vmatpush1.msra.mxu0 0.0
    %6236 = vmatprep.subr.mxu0 0.0
    %6237 = vmatpush1.msra.mxu0 0.0
    %6238 = vmatprep.subr.mxu0 0.0
    %6239 = vmatpush1.msra.mxu0 0.0
    %6240 = vmatprep.mubr.f32.mxu0 0.0
    %6241 = vmatmul.mubr.f32.gmra.mrb[0].mxu0 %v6174
    %v6242 = vpop.f32.mrb[0].mxu0
    %v6243 = vadd.f32 %v6170, %v6242
    %v6244 = vpop.f32.mrb[0].mxu0
    %6245 = vdwg.mxu0
    %v6246 = vsel %vm192, %v5842, 0
    %6248 = vmatprep.subr.mxu0 0.0
    %6249 = vmatpush1.msra.mxu0 %v3049
    %6250 = vmatprep.subr.mxu0 0.0
    %6251 = vmatpush1.msra.mxu0 %v3050
    %6252 = vmatprep.subr.mxu0 0.0
    %6253 = vmatpush1.msra.mxu0 %v3051
    %6254 = vmatprep.subr.mxu0 0.0
    %6255 = vmatpush1.msra.mxu0 %v3052
    %6256 = vmatprep.subr.mxu0 0.0
    %6257 = vmatpush1.msra.mxu0 0.0
    %6258 = vmatprep.subr.mxu0 0.0
    %6259 = vmatpush1.msra.mxu0 0.0
    %6260 = vmatprep.subr.mxu0 0.0
    %6261 = vmatpush1.msra.mxu0 0.0
    %6262 = vmatprep.subr.mxu0 0.0
    %6263 = vmatpush1.msra.mxu0 0.0
    %6264 = vmatprep.subr.mxu0 0.0
    %6265 = vmatpush1.msra.mxu0 0.0
    %6266 = vmatprep.subr.mxu0 0.0
    %6267 = vmatpush1.msra.mxu0 0.0
    %6268 = vmatprep.subr.mxu0 0.0
    %6269 = vmatpush1.msra.mxu0 0.0
    %6270 = vmatprep.subr.mxu0 0.0
    %6271 = vmatpush1.msra.mxu0 0.0
    %6272 = vmatprep.subr.mxu0 0.0
    %6273 = vmatpush1.msra.mxu0 0.0
    %6274 = vmatprep.subr.mxu0 0.0
    %6275 = vmatpush1.msra.mxu0 0.0
    %6276 = vmatprep.subr.mxu0 0.0
    %6277 = vmatpush1.msra.mxu0 0.0
    %6278 = vmatprep.subr.mxu0 0.0
    %6279 = vmatpush1.msra.mxu0 0.0
    %6280 = vmatprep.subr.mxu0 0.0
    %6281 = vmatpush1.msra.mxu0 0.0
    %6282 = vmatprep.subr.mxu0 0.0
    %6283 = vmatpush1.msra.mxu0 0.0
    %6284 = vmatprep.subr.mxu0 0.0
    %6285 = vmatpush1.msra.mxu0 0.0
    %6286 = vmatprep.subr.mxu0 0.0
    %6287 = vmatpush1.msra.mxu0 0.0
    %6288 = vmatprep.subr.mxu0 0.0
    %6289 = vmatpush1.msra.mxu0 0.0
    %6290 = vmatprep.subr.mxu0 0.0
    %6291 = vmatpush1.msra.mxu0 0.0
    %6292 = vmatprep.subr.mxu0 0.0
    %6293 = vmatpush1.msra.mxu0 0.0
    %6294 = vmatprep.subr.mxu0 0.0
    %6295 = vmatpush1.msra.mxu0 0.0
    %6296 = vmatprep.subr.mxu0 0.0
    %6297 = vmatpush1.msra.mxu0 0.0
    %6298 = vmatprep.subr.mxu0 0.0
    %6299 = vmatpush1.msra.mxu0 0.0
    %6300 = vmatprep.subr.mxu0 0.0
    %6301 = vmatpush1.msra.mxu0 0.0
    %6302 = vmatprep.subr.mxu0 0.0
    %6303 = vmatpush1.msra.mxu0 0.0
    %6304 = vmatprep.subr.mxu0 0.0
    %6305 = vmatpush1.msra.mxu0 0.0
    %6306 = vmatprep.subr.mxu0 0.0
    %6307 = vmatpush1.msra.mxu0 0.0
    %6308 = vmatprep.subr.mxu0 0.0
    %6309 = vmatpush1.msra.mxu0 0.0
    %6310 = vmatprep.subr.mxu0 0.0
    %6311 = vmatpush1.msra.mxu0 0.0
    %6312 = vmatprep.mubr.f32.mxu0 0.0
    %6313 = vmatmul.mubr.f32.gmra.mrb[0].mxu0 %v6246
    %v6314 = vpop.f32.mrb[0].mxu0
    %v6315 = vadd.f32 0.0, %v6314
    %v6316 = vpop.f32.mrb[0].mxu0
    %6317 = vdwg.mxu0
    %v6318 = vadd.f32 %v6243, %v6315
    %v6319 = vadd.f32 %v6318, %v3290
    %v6320 = vxor.u32 %v6319, 2147483648
    %v6321 = vmul.f32 %v6320, 1.442695
    %v6322 = vpow.pop %v6321
    %v6323 = vadd.f32 %v6322, 1.0
    %v6324 = vrcp.pop %v6323
    %v6325 = vmul.f32 1.0, %v6324
    %v6326 = vtanh.pop %v6319
    %v6327 = vmul.f32 %v6325, %v5833
    %6329 = vrot.lane.b32.xlu0 %v6326, 64
    %v6330 = vpop.permute.xlu0 %6329
    %v6332 = vmul.f32 %v6325, %v6330
    %6334 = vrot.lane.b32.xlu0 %v6332, 32
    %v6335 = vpop.permute.xlu0 %6334
    %v6337 = vadd.f32 %v6327, %v6335
    %v6338 = vtanh.pop %v6337
    %6340 = vrot.lane.b32.xlu0 %v6338, 64
    %v6341 = vpop.permute.xlu0 %6340
    %v6343 = vmul.f32 %v6325, %v6341
    %6345 = vrot.lane.b32.xlu0 %v6343, 32
    %v6346 = vpop.permute.xlu0 %6345
    %s6348 = scalar_lea.vmem [#allocation4], 12
    %6349 = vst.msk [vmem:[%s6348] sm:$0x3] %vm374, %v6346
    %v6350 = vld [vmem:[%s734] sm:$0x3]
    %v6351 = vld [vmem:[%s2686] sm:$0x3]
    %v6353 = vsel %vm192, %v6351, 0
    %6355 = vmatprep.subr.mxu0 0.0
    %6356 = vmatpush1.msra.mxu0 %v3058
    %6357 = vmatprep.subr.mxu0 0.0
    %6358 = vmatpush1.msra.mxu0 %v3059
    %6359 = vmatprep.subr.mxu0 0.0
    %6360 = vmatpush1.msra.mxu0 %v3060
    %6361 = vmatprep.subr.mxu0 0.0
    %6362 = vmatpush1.msra.mxu0 %v3061
    %6363 = vmatprep.subr.mxu0 0.0
    %6364 = vmatpush1.msra.mxu0 0.0
    %6365 = vmatprep.subr.mxu0 0.0
    %6366 = vmatpush1.msra.mxu0 0.0
    %6367 = vmatprep.subr.mxu0 0.0
    %6368 = vmatpush1.msra.mxu0 0.0
    %6369 = vmatprep.subr.mxu0 0.0
    %6370 = vmatpush1.msra.mxu0 0.0
    %6371 = vmatprep.subr.mxu0 0.0
    %6372 = vmatpush1.msra.mxu0 0.0
    %6373 = vmatprep.subr.mxu0 0.0
    %6374 = vmatpush1.msra.mxu0 0.0
    %6375 = vmatprep.subr.mxu0 0.0
    %6376 = vmatpush1.msra.mxu0 0.0
    %6377 = vmatprep.subr.mxu0 0.0
    %6378 = vmatpush1.msra.mxu0 0.0
    %6379 = vmatprep.subr.mxu0 0.0
    %6380 = vmatpush1.msra.mxu0 0.0
    %6381 = vmatprep.subr.mxu0 0.0
    %6382 = vmatpush1.msra.mxu0 0.0
    %6383 = vmatprep.subr.mxu0 0.0
    %6384 = vmatpush1.msra.mxu0 0.0
    %6385 = vmatprep.subr.mxu0 0.0
    %6386 = vmatpush1.msra.mxu0 0.0
    %6387 = vmatprep.subr.mxu0 0.0
    %6388 = vmatpush1.msra.mxu0 0.0
    %6389 = vmatprep.subr.mxu0 0.0
    %6390 = vmatpush1.msra.mxu0 0.0
    %6391 = vmatprep.subr.mxu0 0.0
    %6392 = vmatpush1.msra.mxu0 0.0
    %6393 = vmatprep.subr.mxu0 0.0
    %6394 = vmatpush1.msra.mxu0 0.0
    %6395 = vmatprep.subr.mxu0 0.0
    %6396 = vmatpush1.msra.mxu0 0.0
    %6397 = vmatprep.subr.mxu0 0.0
    %6398 = vmatpush1.msra.mxu0 0.0
    %6399 = vmatprep.subr.mxu0 0.0
    %6400 = vmatpush1.msra.mxu0 0.0
    %6401 = vmatprep.subr.mxu0 0.0
    %6402 = vmatpush1.msra.mxu0 0.0
    %6403 = vmatprep.subr.mxu0 0.0
    %6404 = vmatpush1.msra.mxu0 0.0
    %6405 = vmatprep.subr.mxu0 0.0
    %6406 = vmatpush1.msra.mxu0 0.0
    %6407 = vmatprep.subr.mxu0 0.0
    %6408 = vmatpush1.msra.mxu0 0.0
    %6409 = vmatprep.subr.mxu0 0.0
    %6410 = vmatpush1.msra.mxu0 0.0
    %6411 = vmatprep.subr.mxu0 0.0
    %6412 = vmatpush1.msra.mxu0 0.0
    %6413 = vmatprep.subr.mxu0 0.0
    %6414 = vmatpush1.msra.mxu0 0.0
    %6415 = vmatprep.subr.mxu0 0.0
    %6416 = vmatpush1.msra.mxu0 0.0
    %6417 = vmatprep.subr.mxu0 0.0
    %6418 = vmatpush1.msra.mxu0 0.0
    %6419 = vmatprep.mubr.f32.mxu0 0.0
    %6420 = vmatmul.mubr.f32.gmra.mrb[0].mxu0 %v6353
    %v6421 = vpop.f32.mrb[0].mxu0
    %v6422 = vadd.f32 0.0, %v6421
    %v6423 = vpop.f32.mrb[0].mxu0
    %6424 = vdwg.mxu0
    %v6426 = vsel %vm192, %v6350, 0
    %6428 = vmatprep.subr.mxu0 0.0
    %6429 = vmatpush1.msra.mxu0 %v3054
    %6430 = vmatprep.subr.mxu0 0.0
    %6431 = vmatpush1.msra.mxu0 %v3055
    %6432 = vmatprep.subr.mxu0 0.0
    %6433 = vmatpush1.msra.mxu0 %v3056
    %6434 = vmatprep.subr.mxu0 0.0
    %6435 = vmatpush1.msra.mxu0 %v3057
    %6436 = vmatprep.subr.mxu0 0.0
    %6437 = vmatpush1.msra.mxu0 0.0
    %6438 = vmatprep.subr.mxu0 0.0
    %6439 = vmatpush1.msra.mxu0 0.0
    %6440 = vmatprep.subr.mxu0 0.0
    %6441 = vmatpush1.msra.mxu0 0.0
    %6442 = vmatprep.subr.mxu0 0.0
    %6443 = vmatpush1.msra.mxu0 0.0
    %6444 = vmatprep.subr.mxu0 0.0
    %6445 = vmatpush1.msra.mxu0 0.0
    %6446 = vmatprep.subr.mxu0 0.0
    %6447 = vmatpush1.msra.mxu0 0.0
    %6448 = vmatprep.subr.mxu0 0.0
    %6449 = vmatpush1.msra.mxu0 0.0
    %6450 = vmatprep.subr.mxu0 0.0
    %6451 = vmatpush1.msra.mxu0 0.0
    %6452 = vmatprep.subr.mxu0 0.0
    %6453 = vmatpush1.msra.mxu0 0.0
    %6454 = vmatprep.subr.mxu0 0.0
    %6455 = vmatpush1.msra.mxu0 0.0
    %6456 = vmatprep.subr.mxu0 0.0
    %6457 = vmatpush1.msra.mxu0 0.0
    %6458 = vmatprep.subr.mxu0 0.0
    %6459 = vmatpush1.msra.mxu0 0.0
    %6460 = vmatprep.subr.mxu0 0.0
    %6461 = vmatpush1.msra.mxu0 0.0
    %6462 = vmatprep.subr.mxu0 0.0
    %6463 = vmatpush1.msra.mxu0 0.0
    %6464 = vmatprep.subr.mxu0 0.0
    %6465 = vmatpush1.msra.mxu0 0.0
    %6466 = vmatprep.subr.mxu0 0.0
    %6467 = vmatpush1.msra.mxu0 0.0
    %6468 = vmatprep.subr.mxu0 0.0
    %6469 = vmatpush1.msra.mxu0 0.0
    %6470 = vmatprep.subr.mxu0 0.0
    %6471 = vmatpush1.msra.mxu0 0.0
    %6472 = vmatprep.subr.mxu0 0.0
    %6473 = vmatpush1.msra.mxu0 0.0
    %6474 = vmatprep.subr.mxu0 0.0
    %6475 = vmatpush1.msra.mxu0 0.0
    %6476 = vmatprep.subr.mxu0 0.0
    %6477 = vmatpush1.msra.mxu0 0.0
    %6478 = vmatprep.subr.mxu0 0.0
    %6479 = vmatpush1.msra.mxu0 0.0
    %6480 = vmatprep.subr.mxu0 0.0
    %6481 = vmatpush1.msra.mxu0 0.0
    %6482 = vmatprep.subr.mxu0 0.0
    %6483 = vmatpush1.msra.mxu0 0.0
    %6484 = vmatprep.subr.mxu0 0.0
    %6485 = vmatpush1.msra.mxu0 0.0
    %6486 = vmatprep.subr.mxu0 0.0
    %6487 = vmatpush1.msra.mxu0 0.0
    %6488 = vmatprep.subr.mxu0 0.0
    %6489 = vmatpush1.msra.mxu0 0.0
    %6490 = vmatprep.subr.mxu0 0.0
    %6491 = vmatpush1.msra.mxu0 0.0
    %6492 = vmatprep.mubr.f32.mxu0 0.0
    %6493 = vmatmul.mubr.f32.gmra.mrb[0].mxu0 %v6426
    %v6494 = vpop.f32.mrb[0].mxu0
    %v6495 = vadd.f32 %v6422, %v6494
    %v6496 = vpop.f32.mrb[0].mxu0
    %6497 = vdwg.mxu0
    %v6498 = vsel %vm192, %v6094, 0
    %6500 = vmatprep.subr.mxu0 0.0
    %6501 = vmatpush1.msra.mxu0 %v3062
    %6502 = vmatprep.subr.mxu0 0.0
    %6503 = vmatpush1.msra.mxu0 %v3063
    %6504 = vmatprep.subr.mxu0 0.0
    %6505 = vmatpush1.msra.mxu0 %v3064
    %6506 = vmatprep.subr.mxu0 0.0
    %6507 = vmatpush1.msra.mxu0 %v3065
    %6508 = vmatprep.subr.mxu0 0.0
    %6509 = vmatpush1.msra.mxu0 0.0
    %6510 = vmatprep.subr.mxu0 0.0
    %6511 = vmatpush1.msra.mxu0 0.0
    %6512 = vmatprep.subr.mxu0 0.0
    %6513 = vmatpush1.msra.mxu0 0.0
    %6514 = vmatprep.subr.mxu0 0.0
    %6515 = vmatpush1.msra.mxu0 0.0
    %6516 = vmatprep.subr.mxu0 0.0
    %6517 = vmatpush1.msra.mxu0 0.0
    %6518 = vmatprep.subr.mxu0 0.0
    %6519 = vmatpush1.msra.mxu0 0.0
    %6520 = vmatprep.subr.mxu0 0.0
    %6521 = vmatpush1.msra.mxu0 0.0
    %6522 = vmatprep.subr.mxu0 0.0
    %6523 = vmatpush1.msra.mxu0 0.0
    %6524 = vmatprep.subr.mxu0 0.0
    %6525 = vmatpush1.msra.mxu0 0.0
    %6526 = vmatprep.subr.mxu0 0.0
    %6527 = vmatpush1.msra.mxu0 0.0
    %6528 = vmatprep.subr.mxu0 0.0
    %6529 = vmatpush1.msra.mxu0 0.0
    %6530 = vmatprep.subr.mxu0 0.0
    %6531 = vmatpush1.msra.mxu0 0.0
    %6532 = vmatprep.subr.mxu0 0.0
    %6533 = vmatpush1.msra.mxu0 0.0
    %6534 = vmatprep.subr.mxu0 0.0
    %6535 = vmatpush1.msra.mxu0 0.0
    %6536 = vmatprep.subr.mxu0 0.0
    %6537 = vmatpush1.msra.mxu0 0.0
    %6538 = vmatprep.subr.mxu0 0.0
    %6539 = vmatpush1.msra.mxu0 0.0
    %6540 = vmatprep.subr.mxu0 0.0
    %6541 = vmatpush1.msra.mxu0 0.0
    %6542 = vmatprep.subr.mxu0 0.0
    %6543 = vmatpush1.msra.mxu0 0.0
    %6544 = vmatprep.subr.mxu0 0.0
    %6545 = vmatpush1.msra.mxu0 0.0
    %6546 = vmatprep.subr.mxu0 0.0
    %6547 = vmatpush1.msra.mxu0 0.0
    %6548 = vmatprep.subr.mxu0 0.0
    %6549 = vmatpush1.msra.mxu0 0.0
    %6550 = vmatprep.subr.mxu0 0.0
    %6551 = vmatpush1.msra.mxu0 0.0
    %6552 = vmatprep.subr.mxu0 0.0
    %6553 = vmatpush1.msra.mxu0 0.0
    %6554 = vmatprep.subr.mxu0 0.0
    %6555 = vmatpush1.msra.mxu0 0.0
    %6556 = vmatprep.subr.mxu0 0.0
    %6557 = vmatpush1.msra.mxu0 0.0
    %6558 = vmatprep.subr.mxu0 0.0
    %6559 = vmatpush1.msra.mxu0 0.0
    %6560 = vmatprep.subr.mxu0 0.0
    %6561 = vmatpush1.msra.mxu0 0.0
    %6562 = vmatprep.subr.mxu0 0.0
    %6563 = vmatpush1.msra.mxu0 0.0
    %6564 = vmatprep.mubr.f32.mxu0 0.0
    %6565 = vmatmul.mubr.f32.gmra.mrb[0].mxu0 %v6498
    %v6566 = vpop.f32.mrb[0].mxu0
    %v6567 = vadd.f32 0.0, %v6566
    %v6568 = vpop.f32.mrb[0].mxu0
    %6569 = vdwg.mxu0
    %v6570 = vadd.f32 %v6495, %v6567
    %v6571 = vadd.f32 %v6570, %v3545
    %v6572 = vxor.u32 %v6571, 2147483648
    %v6573 = vmul.f32 %v6572, 1.442695
    %v6574 = vpow.pop %v6573
    %v6575 = vadd.f32 %v6574, 1.0
    %v6576 = vrcp.pop %v6575
    %v6577 = vmul.f32 1.0, %v6576
    %v6578 = vtanh.pop %v6571
    %v6579 = vmul.f32 %v6577, %v6085
    %6581 = vrot.lane.b32.xlu0 %v6578, 64
    %v6582 = vpop.permute.xlu0 %6581
    %v6584 = vmul.f32 %v6577, %v6582
    %6586 = vrot.lane.b32.xlu0 %v6584, 32
    %v6587 = vpop.permute.xlu0 %6586
    %v6589 = vadd.f32 %v6579, %v6587
    %v6590 = vtanh.pop %v6589
    %6592 = vrot.lane.b32.xlu0 %v6590, 64
    %v6593 = vpop.permute.xlu0 %6592
    %v6595 = vmul.f32 %v6577, %v6593
    %6597 = vrot.lane.b32.xlu0 %v6595, 32
    %v6598 = vpop.permute.xlu0 %6597
    %s6600 = scalar_lea.vmem [#allocation5], 2
    %6601 = vst.msk [vmem:[%s6600] sm:$0x3] %vm374, %v6598
    %v6602 = vld [vmem:[%s2863] sm:$0x3]
    %v6603 = vld [vmem:[%s556] sm:$0x3]
    %v6605 = vsel %vm192, %v6603, 0
    %6607 = vmatprep.subr.mxu0 0.0
    %6608 = vmatpush1.msra.mxu0 %v3045
    %6609 = vmatprep.subr.mxu0 0.0
    %6610 = vmatpush1.msra.mxu0 %v3046
    %6611 = vmatprep.subr.mxu0 0.0
    %6612 = vmatpush1.msra.mxu0 %v3047
    %6613 = vmatprep.subr.mxu0 0.0
    %6614 = vmatpush1.msra.mxu0 %v3048
    %6615 = vmatprep.subr.mxu0 0.0
    %6616 = vmatpush1.msra.mxu0 0.0
    %6617 = vmatprep.subr.mxu0 0.0
    %6618 = vmatpush1.msra.mxu0 0.0
    %6619 = vmatprep.subr.mxu0 0.0
    %6620 = vmatpush1.msra.mxu0 0.0
    %6621 = vmatprep.subr.mxu0 0.0
    %6622 = vmatpush1.msra.mxu0 0.0
    %6623 = vmatprep.subr.mxu0 0.0
    %6624 = vmatpush1.msra.mxu0 0.0
    %6625 = vmatprep.subr.mxu0 0.0
    %6626 = vmatpush1.msra.mxu0 0.0
    %6627 = vmatprep.subr.mxu0 0.0
    %6628 = vmatpush1.msra.mxu0 0.0
    %6629 = vmatprep.subr.mxu0 0.0
    %6630 = vmatpush1.msra.mxu0 0.0
    %6631 = vmatprep.subr.mxu0 0.0
    %6632 = vmatpush1.msra.mxu0 0.0
    %6633 = vmatprep.subr.mxu0 0.0
    %6634 = vmatpush1.msra.mxu0 0.0
    %6635 = vmatprep.subr.mxu0 0.0
    %6636 = vmatpush1.msra.mxu0 0.0
    %6637 = vmatprep.subr.mxu0 0.0
    %6638 = vmatpush1.msra.mxu0 0.0
    %6639 = vmatprep.subr.mxu0 0.0
    %6640 = vmatpush1.msra.mxu0 0.0
    %6641 = vmatprep.subr.mxu0 0.0
    %6642 = vmatpush1.msra.mxu0 0.0
    %6643 = vmatprep.subr.mxu0 0.0
    %6644 = vmatpush1.msra.mxu0 0.0
    %6645 = vmatprep.subr.mxu0 0.0
    %6646 = vmatpush1.msra.mxu0 0.0
    %6647 = vmatprep.subr.mxu0 0.0
    %6648 = vmatpush1.msra.mxu0 0.0
    %6649 = vmatprep.subr.mxu0 0.0
    %6650 = vmatpush1.msra.mxu0 0.0
    %6651 = vmatprep.subr.mxu0 0.0
    %6652 = vmatpush1.msra.mxu0 0.0
    %6653 = vmatprep.subr.mxu0 0.0
    %6654 = vmatpush1.msra.mxu0 0.0
    %6655 = vmatprep.subr.mxu0 0.0
    %6656 = vmatpush1.msra.mxu0 0.0
    %6657 = vmatprep.subr.mxu0 0.0
    %6658 = vmatpush1.msra.mxu0 0.0
    %6659 = vmatprep.subr.mxu0 0.0
    %6660 = vmatpush1.msra.mxu0 0.0
    %6661 = vmatprep.subr.mxu0 0.0
    %6662 = vmatpush1.msra.mxu0 0.0
    %6663 = vmatprep.subr.mxu0 0.0
    %6664 = vmatpush1.msra.mxu0 0.0
    %6665 = vmatprep.subr.mxu0 0.0
    %6666 = vmatpush1.msra.mxu0 0.0
    %6667 = vmatprep.subr.mxu0 0.0
    %6668 = vmatpush1.msra.mxu0 0.0
    %6669 = vmatprep.subr.mxu0 0.0
    %6670 = vmatpush1.msra.mxu0 0.0
    %6671 = vmatprep.mubr.f32.mxu0 0.0
    %6672 = vmatmul.mubr.f32.gmra.mrb[0].mxu0 %v6605
    %v6673 = vpop.f32.mrb[0].mxu0
    %v6674 = vadd.f32 0.0, %v6673
    %v6675 = vpop.f32.mrb[0].mxu0
    %6676 = vdwg.mxu0
    %v6678 = vsel %vm192, %v6602, 0
    %6680 = vmatprep.subr.mxu0 0.0
    %6681 = vmatpush1.msra.mxu0 %v3041
    %6682 = vmatprep.subr.mxu0 0.0
    %6683 = vmatpush1.msra.mxu0 %v3042
    %6684 = vmatprep.subr.mxu0 0.0
    %6685 = vmatpush1.msra.mxu0 %v3043
    %6686 = vmatprep.subr.mxu0 0.0
    %6687 = vmatpush1.msra.mxu0 %v3044
    %6688 = vmatprep.subr.mxu0 0.0
    %6689 = vmatpush1.msra.mxu0 0.0
    %6690 = vmatprep.subr.mxu0 0.0
    %6691 = vmatpush1.msra.mxu0 0.0
    %6692 = vmatprep.subr.mxu0 0.0
    %6693 = vmatpush1.msra.mxu0 0.0
    %6694 = vmatprep.subr.mxu0 0.0
    %6695 = vmatpush1.msra.mxu0 0.0
    %6696 = vmatprep.subr.mxu0 0.0
    %6697 = vmatpush1.msra.mxu0 0.0
    %6698 = vmatprep.subr.mxu0 0.0
    %6699 = vmatpush1.msra.mxu0 0.0
    %6700 = vmatprep.subr.mxu0 0.0
    %6701 = vmatpush1.msra.mxu0 0.0
    %6702 = vmatprep.subr.mxu0 0.0
    %6703 = vmatpush1.msra.mxu0 0.0
    %6704 = vmatprep.subr.mxu0 0.0
    %6705 = vmatpush1.msra.mxu0 0.0
    %6706 = vmatprep.subr.mxu0 0.0
    %6707 = vmatpush1.msra.mxu0 0.0
    %6708 = vmatprep.subr.mxu0 0.0
    %6709 = vmatpush1.msra.mxu0 0.0
    %6710 = vmatprep.subr.mxu0 0.0
    %6711 = vmatpush1.msra.mxu0 0.0
    %6712 = vmatprep.subr.mxu0 0.0
    %6713 = vmatpush1.msra.mxu0 0.0
    %6714 = vmatprep.subr.mxu0 0.0
    %6715 = vmatpush1.msra.mxu0 0.0
    %6716 = vmatprep.subr.mxu0 0.0
    %6717 = vmatpush1.msra.mxu0 0.0
    %6718 = vmatprep.subr.mxu0 0.0
    %6719 = vmatpush1.msra.mxu0 0.0
    %6720 = vmatprep.subr.mxu0 0.0
    %6721 = vmatpush1.msra.mxu0 0.0
    %6722 = vmatprep.subr.mxu0 0.0
    %6723 = vmatpush1.msra.mxu0 0.0
    %6724 = vmatprep.subr.mxu0 0.0
    %6725 = vmatpush1.msra.mxu0 0.0
    %6726 = vmatprep.subr.mxu0 0.0
    %6727 = vmatpush1.msra.mxu0 0.0
    %6728 = vmatprep.subr.mxu0 0.0
    %6729 = vmatpush1.msra.mxu0 0.0
    %6730 = vmatprep.subr.mxu0 0.0
    %6731 = vmatpush1.msra.mxu0 0.0
    %6732 = vmatprep.subr.mxu0 0.0
    %6733 = vmatpush1.msra.mxu0 0.0
    %6734 = vmatprep.subr.mxu0 0.0
    %6735 = vmatpush1.msra.mxu0 0.0
    %6736 = vmatprep.subr.mxu0 0.0
    %6737 = vmatpush1.msra.mxu0 0.0
    %6738 = vmatprep.subr.mxu0 0.0
    %6739 = vmatpush1.msra.mxu0 0.0
    %6740 = vmatprep.subr.mxu0 0.0
    %6741 = vmatpush1.msra.mxu0 0.0
    %6742 = vmatprep.subr.mxu0 0.0
    %6743 = vmatpush1.msra.mxu0 0.0
    %6744 = vmatprep.mubr.f32.mxu0 0.0
    %6745 = vmatmul.mubr.f32.gmra.mrb[0].mxu0 %v6678
    %v6746 = vpop.f32.mrb[0].mxu0
    %v6747 = vadd.f32 %v6674, %v6746
    %v6748 = vpop.f32.mrb[0].mxu0
    %6749 = vdwg.mxu0
    %v6750 = vsel %vm192, %v6346, 0
    %6752 = vmatprep.subr.mxu0 0.0
    %6753 = vmatpush1.msra.mxu0 %v3049
    %6754 = vmatprep.subr.mxu0 0.0
    %6755 = vmatpush1.msra.mxu0 %v3050
    %6756 = vmatprep.subr.mxu0 0.0
    %6757 = vmatpush1.msra.mxu0 %v3051
    %6758 = vmatprep.subr.mxu0 0.0
    %6759 = vmatpush1.msra.mxu0 %v3052
    %6760 = vmatprep.subr.mxu0 0.0
    %6761 = vmatpush1.msra.mxu0 0.0
    %6762 = vmatprep.subr.mxu0 0.0
    %6763 = vmatpush1.msra.mxu0 0.0
    %6764 = vmatprep.subr.mxu0 0.0
    %6765 = vmatpush1.msra.mxu0 0.0
    %6766 = vmatprep.subr.mxu0 0.0
    %6767 = vmatpush1.msra.mxu0 0.0
    %6768 = vmatprep.subr.mxu0 0.0
    %6769 = vmatpush1.msra.mxu0 0.0
    %6770 = vmatprep.subr.mxu0 0.0
    %6771 = vmatpush1.msra.mxu0 0.0
    %6772 = vmatprep.subr.mxu0 0.0
    %6773 = vmatpush1.msra.mxu0 0.0
    %6774 = vmatprep.subr.mxu0 0.0
    %6775 = vmatpush1.msra.mxu0 0.0
    %6776 = vmatprep.subr.mxu0 0.0
    %6777 = vmatpush1.msra.mxu0 0.0
    %6778 = vmatprep.subr.mxu0 0.0
    %6779 = vmatpush1.msra.mxu0 0.0
    %6780 = vmatprep.subr.mxu0 0.0
    %6781 = vmatpush1.msra.mxu0 0.0
    %6782 = vmatprep.subr.mxu0 0.0
    %6783 = vmatpush1.msra.mxu0 0.0
    %6784 = vmatprep.subr.mxu0 0.0
    %6785 = vmatpush1.msra.mxu0 0.0
    %6786 = vmatprep.subr.mxu0 0.0
    %6787 = vmatpush1.msra.mxu0 0.0
    %6788 = vmatprep.subr.mxu0 0.0
    %6789 = vmatpush1.msra.mxu0 0.0
    %6790 = vmatprep.subr.mxu0 0.0
    %6791 = vmatpush1.msra.mxu0 0.0
    %6792 = vmatprep.subr.mxu0 0.0
    %6793 = vmatpush1.msra.mxu0 0.0
    %6794 = vmatprep.subr.mxu0 0.0
    %6795 = vmatpush1.msra.mxu0 0.0
    %6796 = vmatprep.subr.mxu0 0.0
    %6797 = vmatpush1.msra.mxu0 0.0
    %6798 = vmatprep.subr.mxu0 0.0
    %6799 = vmatpush1.msra.mxu0 0.0
    %6800 = vmatprep.subr.mxu0 0.0
    %6801 = vmatpush1.msra.mxu0 0.0
    %6802 = vmatprep.subr.mxu0 0.0
    %6803 = vmatpush1.msra.mxu0 0.0
    %6804 = vmatprep.subr.mxu0 0.0
    %6805 = vmatpush1.msra.mxu0 0.0
    %6806 = vmatprep.subr.mxu0 0.0
    %6807 = vmatpush1.msra.mxu0 0.0
    %6808 = vmatprep.subr.mxu0 0.0
    %6809 = vmatpush1.msra.mxu0 0.0
    %6810 = vmatprep.subr.mxu0 0.0
    %6811 = vmatpush1.msra.mxu0 0.0
    %6812 = vmatprep.subr.mxu0 0.0
    %6813 = vmatpush1.msra.mxu0 0.0
    %6814 = vmatprep.subr.mxu0 0.0
    %6815 = vmatpush1.msra.mxu0 0.0
    %6816 = vmatprep.mubr.f32.mxu0 0.0
    %6817 = vmatmul.mubr.f32.gmra.mrb[0].mxu0 %v6750
    %v6818 = vpop.f32.mrb[0].mxu0
    %v6819 = vadd.f32 0.0, %v6818
    %v6820 = vpop.f32.mrb[0].mxu0
    %6821 = vdwg.mxu0
    %v6822 = vadd.f32 %v6747, %v6819
    %v6823 = vadd.f32 %v6822, %v3290
    %v6824 = vxor.u32 %v6823, 2147483648
    %v6825 = vmul.f32 %v6824, 1.442695
    %v6826 = vpow.pop %v6825
    %v6827 = vadd.f32 %v6826, 1.0
    %v6828 = vrcp.pop %v6827
    %v6829 = vmul.f32 1.0, %v6828
    %v6830 = vtanh.pop %v6823
    %v6831 = vmul.f32 %v6829, %v6337
    %6833 = vrot.lane.b32.xlu0 %v6830, 64
    %v6834 = vpop.permute.xlu0 %6833
    %v6836 = vmul.f32 %v6829, %v6834
    %6838 = vrot.lane.b32.xlu0 %v6836, 32
    %v6839 = vpop.permute.xlu0 %6838
    %v6841 = vadd.f32 %v6831, %v6839
    %v6842 = vtanh.pop %v6841
    %6844 = vrot.lane.b32.xlu0 %v6842, 64
    %v6845 = vpop.permute.xlu0 %6844
    %v6847 = vmul.f32 %v6829, %v6845
    %6849 = vrot.lane.b32.xlu0 %v6847, 32
    %v6850 = vpop.permute.xlu0 %6849
    %s6852 = scalar_lea.vmem [#allocation4], 14
    %6853 = vst.msk [vmem:[%s6852] sm:$0x3] %vm374, %v6850
    %v6854 = vld [vmem:[#allocation2] sm:$0x3]
    %v6855 = vld [vmem:[#allocation3] sm:$0x3]
    %v6857 = vsel %vm192, %v6855, 0
    %6859 = vmatprep.subr.mxu0 0.0
    %6860 = vmatpush1.msra.mxu0 %v3058
    %6861 = vmatprep.subr.mxu0 0.0
    %6862 = vmatpush1.msra.mxu0 %v3059
    %6863 = vmatprep.subr.mxu0 0.0
    %6864 = vmatpush1.msra.mxu0 %v3060
    %6865 = vmatprep.subr.mxu0 0.0
    %6866 = vmatpush1.msra.mxu0 %v3061
    %6867 = vmatprep.subr.mxu0 0.0
    %6868 = vmatpush1.msra.mxu0 0.0
    %6869 = vmatprep.subr.mxu0 0.0
    %6870 = vmatpush1.msra.mxu0 0.0
    %6871 = vmatprep.subr.mxu0 0.0
    %6872 = vmatpush1.msra.mxu0 0.0
    %6873 = vmatprep.subr.mxu0 0.0
    %6874 = vmatpush1.msra.mxu0 0.0
    %6875 = vmatprep.subr.mxu0 0.0
    %6876 = vmatpush1.msra.mxu0 0.0
    %6877 = vmatprep.subr.mxu0 0.0
    %6878 = vmatpush1.msra.mxu0 0.0
    %6879 = vmatprep.subr.mxu0 0.0
    %6880 = vmatpush1.msra.mxu0 0.0
    %6881 = vmatprep.subr.mxu0 0.0
    %6882 = vmatpush1.msra.mxu0 0.0
    %6883 = vmatprep.subr.mxu0 0.0
    %6884 = vmatpush1.msra.mxu0 0.0
    %6885 = vmatprep.subr.mxu0 0.0
    %6886 = vmatpush1.msra.mxu0 0.0
    %6887 = vmatprep.subr.mxu0 0.0
    %6888 = vmatpush1.msra.mxu0 0.0
    %6889 = vmatprep.subr.mxu0 0.0
    %6890 = vmatpush1.msra.mxu0 0.0
    %6891 = vmatprep.subr.mxu0 0.0
    %6892 = vmatpush1.msra.mxu0 0.0
    %6893 = vmatprep.subr.mxu0 0.0
    %6894 = vmatpush1.msra.mxu0 0.0
    %6895 = vmatprep.subr.mxu0 0.0
    %6896 = vmatpush1.msra.mxu0 0.0
    %6897 = vmatprep.subr.mxu0 0.0
    %6898 = vmatpush1.msra.mxu0 0.0
    %6899 = vmatprep.subr.mxu0 0.0
    %6900 = vmatpush1.msra.mxu0 0.0
    %6901 = vmatprep.subr.mxu0 0.0
    %6902 = vmatpush1.msra.mxu0 0.0
    %6903 = vmatprep.subr.mxu0 0.0
    %6904 = vmatpush1.msra.mxu0 0.0
    %6905 = vmatprep.subr.mxu0 0.0
    %6906 = vmatpush1.msra.mxu0 0.0
    %6907 = vmatprep.subr.mxu0 0.0
    %6908 = vmatpush1.msra.mxu0 0.0
    %6909 = vmatprep.subr.mxu0 0.0
    %6910 = vmatpush1.msra.mxu0 0.0
    %6911 = vmatprep.subr.mxu0 0.0
    %6912 = vmatpush1.msra.mxu0 0.0
    %6913 = vmatprep.subr.mxu0 0.0
    %6914 = vmatpush1.msra.mxu0 0.0
    %6915 = vmatprep.subr.mxu0 0.0
    %6916 = vmatpush1.msra.mxu0 0.0
    %6917 = vmatprep.subr.mxu0 0.0
    %6918 = vmatpush1.msra.mxu0 0.0
    %6919 = vmatprep.subr.mxu0 0.0
    %6920 = vmatpush1.msra.mxu0 0.0
    %6921 = vmatprep.subr.mxu0 0.0
    %6922 = vmatpush1.msra.mxu0 0.0
    %6923 = vmatprep.mubr.f32.mxu0 0.0
    %6924 = vmatmul.mubr.f32.gmra.mrb[0].mxu0 %v6857
    %v6925 = vpop.f32.mrb[0].mxu0
    %v6926 = vadd.f32 0.0, %v6925
    %v6927 = vpop.f32.mrb[0].mxu0
    %6928 = vdwg.mxu0
    %v6930 = vsel %vm192, %v6854, 0
    %6932 = vmatprep.subr.mxu0 0.0
    %6933 = vmatpush1.msra.mxu0 %v3054
    %6934 = vmatprep.subr.mxu0 0.0
    %6935 = vmatpush1.msra.mxu0 %v3055
    %6936 = vmatprep.subr.mxu0 0.0
    %6937 = vmatpush1.msra.mxu0 %v3056
    %6938 = vmatprep.subr.mxu0 0.0
    %6939 = vmatpush1.msra.mxu0 %v3057
    %6940 = vmatprep.subr.mxu0 0.0
    %6941 = vmatpush1.msra.mxu0 0.0
    %6942 = vmatprep.subr.mxu0 0.0
    %6943 = vmatpush1.msra.mxu0 0.0
    %6944 = vmatprep.subr.mxu0 0.0
    %6945 = vmatpush1.msra.mxu0 0.0
    %6946 = vmatprep.subr.mxu0 0.0
    %6947 = vmatpush1.msra.mxu0 0.0
    %6948 = vmatprep.subr.mxu0 0.0
    %6949 = vmatpush1.msra.mxu0 0.0
    %6950 = vmatprep.subr.mxu0 0.0
    %6951 = vmatpush1.msra.mxu0 0.0
    %6952 = vmatprep.subr.mxu0 0.0
    %6953 = vmatpush1.msra.mxu0 0.0
    %6954 = vmatprep.subr.mxu0 0.0
    %6955 = vmatpush1.msra.mxu0 0.0
    %6956 = vmatprep.subr.mxu0 0.0
    %6957 = vmatpush1.msra.mxu0 0.0
    %6958 = vmatprep.subr.mxu0 0.0
    %6959 = vmatpush1.msra.mxu0 0.0
    %6960 = vmatprep.subr.mxu0 0.0
    %6961 = vmatpush1.msra.mxu0 0.0
    %6962 = vmatprep.subr.mxu0 0.0
    %6963 = vmatpush1.msra.mxu0 0.0
    %6964 = vmatprep.subr.mxu0 0.0
    %6965 = vmatpush1.msra.mxu0 0.0
    %6966 = vmatprep.subr.mxu0 0.0
    %6967 = vmatpush1.msra.mxu0 0.0
    %6968 = vmatprep.subr.mxu0 0.0
    %6969 = vmatpush1.msra.mxu0 0.0
    %6970 = vmatprep.subr.mxu0 0.0
    %6971 = vmatpush1.msra.mxu0 0.0
    %6972 = vmatprep.subr.mxu0 0.0
    %6973 = vmatpush1.msra.mxu0 0.0
    %6974 = vmatprep.subr.mxu0 0.0
    %6975 = vmatpush1.msra.mxu0 0.0
    %6976 = vmatprep.subr.mxu0 0.0
    %6977 = vmatpush1.msra.mxu0 0.0
    %6978 = vmatprep.subr.mxu0 0.0
    %6979 = vmatpush1.msra.mxu0 0.0
    %6980 = vmatprep.subr.mxu0 0.0
    %6981 = vmatpush1.msra.mxu0 0.0
    %6982 = vmatprep.subr.mxu0 0.0
    %6983 = vmatpush1.msra.mxu0 0.0
    %6984 = vmatprep.subr.mxu0 0.0
    %6985 = vmatpush1.msra.mxu0 0.0
    %6986 = vmatprep.subr.mxu0 0.0
    %6987 = vmatpush1.msra.mxu0 0.0
    %6988 = vmatprep.subr.mxu0 0.0
    %6989 = vmatpush1.msra.mxu0 0.0
    %6990 = vmatprep.subr.mxu0 0.0
    %6991 = vmatpush1.msra.mxu0 0.0
    %6992 = vmatprep.subr.mxu0 0.0
    %6993 = vmatpush1.msra.mxu0 0.0
    %6994 = vmatprep.subr.mxu0 0.0
    %6995 = vmatpush1.msra.mxu0 0.0
    %6996 = vmatprep.mubr.f32.mxu0 0.0
    %6997 = vmatmul.mubr.f32.gmra.mrb[0].mxu0 %v6930
    %v6998 = vpop.f32.mrb[0].mxu0
    %v6999 = vadd.f32 %v6926, %v6998
    %v7000 = vpop.f32.mrb[0].mxu0
    %7001 = vdwg.mxu0
    %v7002 = vsel %vm192, %v6598, 0
    %7004 = vmatprep.subr.mxu0 0.0
    %7005 = vmatpush1.msra.mxu0 %v3062
    %7006 = vmatprep.subr.mxu0 0.0
    %7007 = vmatpush1.msra.mxu0 %v3063
    %7008 = vmatprep.subr.mxu0 0.0
    %7009 = vmatpush1.msra.mxu0 %v3064
    %7010 = vmatprep.subr.mxu0 0.0
    %7011 = vmatpush1.msra.mxu0 %v3065
    %7012 = vmatprep.subr.mxu0 0.0
    %7013 = vmatpush1.msra.mxu0 0.0
    %7014 = vmatprep.subr.mxu0 0.0
    %7015 = vmatpush1.msra.mxu0 0.0
    %7016 = vmatprep.subr.mxu0 0.0
    %7017 = vmatpush1.msra.mxu0 0.0
    %7018 = vmatprep.subr.mxu0 0.0
    %7019 = vmatpush1.msra.mxu0 0.0
    %7020 = vmatprep.subr.mxu0 0.0
    %7021 = vmatpush1.msra.mxu0 0.0
    %7022 = vmatprep.subr.mxu0 0.0
    %7023 = vmatpush1.msra.mxu0 0.0
    %7024 = vmatprep.subr.mxu0 0.0
    %7025 = vmatpush1.msra.mxu0 0.0
    %7026 = vmatprep.subr.mxu0 0.0
    %7027 = vmatpush1.msra.mxu0 0.0
    %7028 = vmatprep.subr.mxu0 0.0
    %7029 = vmatpush1.msra.mxu0 0.0
    %7030 = vmatprep.subr.mxu0 0.0
    %7031 = vmatpush1.msra.mxu0 0.0
    %7032 = vmatprep.subr.mxu0 0.0
    %7033 = vmatpush1.msra.mxu0 0.0
    %7034 = vmatprep.subr.mxu0 0.0
    %7035 = vmatpush1.msra.mxu0 0.0
    %7036 = vmatprep.subr.mxu0 0.0
    %7037 = vmatpush1.msra.mxu0 0.0
    %7038 = vmatprep.subr.mxu0 0.0
    %7039 = vmatpush1.msra.mxu0 0.0
    %7040 = vmatprep.subr.mxu0 0.0
    %7041 = vmatpush1.msra.mxu0 0.0
    %7042 = vmatprep.subr.mxu0 0.0
    %7043 = vmatpush1.msra.mxu0 0.0
    %7044 = vmatprep.subr.mxu0 0.0
    %7045 = vmatpush1.msra.mxu0 0.0
    %7046 = vmatprep.subr.mxu0 0.0
    %7047 = vmatpush1.msra.mxu0 0.0
    %7048 = vmatprep.subr.mxu0 0.0
    %7049 = vmatpush1.msra.mxu0 0.0
    %7050 = vmatprep.subr.mxu0 0.0
    %7051 = vmatpush1.msra.mxu0 0.0
    %7052 = vmatprep.subr.mxu0 0.0
    %7053 = vmatpush1.msra.mxu0 0.0
    %7054 = vmatprep.subr.mxu0 0.0
    %7055 = vmatpush1.msra.mxu0 0.0
    %7056 = vmatprep.subr.mxu0 0.0
    %7057 = vmatpush1.msra.mxu0 0.0
    %7058 = vmatprep.subr.mxu0 0.0
    %7059 = vmatpush1.msra.mxu0 0.0
    %7060 = vmatprep.subr.mxu0 0.0
    %7061 = vmatpush1.msra.mxu0 0.0
    %7062 = vmatprep.subr.mxu0 0.0
    %7063 = vmatpush1.msra.mxu0 0.0
    %7064 = vmatprep.subr.mxu0 0.0
    %7065 = vmatpush1.msra.mxu0 0.0
    %7066 = vmatprep.subr.mxu0 0.0
    %7067 = vmatpush1.msra.mxu0 0.0
    %7068 = vmatprep.mubr.f32.mxu0 0.0
    %7069 = vmatmul.mubr.f32.gmra.mrb[0].mxu0 %v7002
    %v7070 = vpop.f32.mrb[0].mxu0
    %v7071 = vadd.f32 0.0, %v7070
    %v7072 = vpop.f32.mrb[0].mxu0
    %7073 = vdwg.mxu0
    %v7074 = vadd.f32 %v6999, %v7071
    %v7075 = vadd.f32 %v7074, %v3545
    %v7076 = vxor.u32 %v7075, 2147483648
    %v7077 = vmul.f32 %v7076, 1.442695
    %v7078 = vpow.pop %v7077
    %v7079 = vadd.f32 %v7078, 1.0
    %v7080 = vrcp.pop %v7079
    %v7081 = vmul.f32 1.0, %v7080
    %v7082 = vtanh.pop %v7075
    %v7083 = vmul.f32 %v7081, %v6589
    %7085 = vrot.lane.b32.xlu0 %v7082, 64
    %v7086 = vpop.permute.xlu0 %7085
    %v7088 = vmul.f32 %v7081, %v7086
    %7090 = vrot.lane.b32.xlu0 %v7088, 32
    %v7091 = vpop.permute.xlu0 %7090
    %v7093 = vadd.f32 %v7083, %v7091
    %v7094 = vtanh.pop %v7093
    %7096 = vrot.lane.b32.xlu0 %v7094, 64
    %v7097 = vpop.permute.xlu0 %7096
    %v7099 = vmul.f32 %v7081, %v7097
    %7101 = vrot.lane.b32.xlu0 %v7099, 32
    %v7102 = vpop.permute.xlu0 %7101
    %7104 = vst.msk [vmem:[#allocation5] sm:$0x3] %vm374, %v7102
    %v7105 = vld [vmem:[#allocation20] sm:$0xff]
    %v7106 = vld [vmem:[#allocation20 + $0x8] sm:$0xff]
    %v7107 = vld [vmem:[#allocation20 + $0x10] sm:$0xff]
    %v7108 = vld [vmem:[#allocation20 + $0x18] sm:$0xff]
    %v7109 = vld [vmem:[#allocation20 + $0x20] sm:$0xff]
    %v7110 = vld [vmem:[#allocation20 + $0x28] sm:$0xff]
    %v7111 = vld [vmem:[#allocation20 + $0x30] sm:$0xff]
    %v7112 = vld [vmem:[#allocation20 + $0x38] sm:$0xff]
    %v7113 = vld [vmem:[%s14] sm:$0x1]
    %v7114 = vld [vmem:[#allocation4] sm:$0x3]
    %v7115 = vld [vmem:[#allocation5] sm:$0x3]
    %v7117 = vsel %vm192, %v7115, 0
    %7119 = vmatprep.subr.mxu0 0.0
    %7120 = vmatpush1.msra.mxu0 %v7109
    %7121 = vmatprep.subr.mxu0 0.0
    %7122 = vmatpush1.msra.mxu0 %v7110
    %7123 = vmatprep.subr.mxu0 0.0
    %7124 = vmatpush1.msra.mxu0 %v7111
    %7125 = vmatprep.subr.mxu0 0.0
    %7126 = vmatpush1.msra.mxu0 %v7112
    %7127 = vmatprep.subr.mxu0 0.0
    %7128 = vmatpush1.msra.mxu0 0.0
    %7129 = vmatprep.subr.mxu0 0.0
    %7130 = vmatpush1.msra.mxu0 0.0
    %7131 = vmatprep.subr.mxu0 0.0
    %7132 = vmatpush1.msra.mxu0 0.0
    %7133 = vmatprep.subr.mxu0 0.0
    %7134 = vmatpush1.msra.mxu0 0.0
    %7135 = vmatprep.subr.mxu0 0.0
    %7136 = vmatpush1.msra.mxu0 0.0
    %7137 = vmatprep.subr.mxu0 0.0
    %7138 = vmatpush1.msra.mxu0 0.0
    %7139 = vmatprep.subr.mxu0 0.0
    %7140 = vmatpush1.msra.mxu0 0.0
    %7141 = vmatprep.subr.mxu0 0.0
    %7142 = vmatpush1.msra.mxu0 0.0
    %7143 = vmatprep.subr.mxu0 0.0
    %7144 = vmatpush1.msra.mxu0 0.0
    %7145 = vmatprep.subr.mxu0 0.0
    %7146 = vmatpush1.msra.mxu0 0.0
    %7147 = vmatprep.subr.mxu0 0.0
    %7148 = vmatpush1.msra.mxu0 0.0
    %7149 = vmatprep.subr.mxu0 0.0
    %7150 = vmatpush1.msra.mxu0 0.0
    %7151 = vmatprep.subr.mxu0 0.0
    %7152 = vmatpush1.msra.mxu0 0.0
    %7153 = vmatprep.subr.mxu0 0.0
    %7154 = vmatpush1.msra.mxu0 0.0
    %7155 = vmatprep.subr.mxu0 0.0
    %7156 = vmatpush1.msra.mxu0 0.0
    %7157 = vmatprep.subr.mxu0 0.0
    %7158 = vmatpush1.msra.mxu0 0.0
    %7159 = vmatprep.subr.mxu0 0.0
    %7160 = vmatpush1.msra.mxu0 0.0
    %7161 = vmatprep.subr.mxu0 0.0
    %7162 = vmatpush1.msra.mxu0 0.0
    %7163 = vmatprep.subr.mxu0 0.0
    %7164 = vmatpush1.msra.mxu0 0.0
    %7165 = vmatprep.subr.mxu0 0.0
    %7166 = vmatpush1.msra.mxu0 0.0
    %7167 = vmatprep.subr.mxu0 0.0
    %7168 = vmatpush1.msra.mxu0 0.0
    %7169 = vmatprep.subr.mxu0 0.0
    %7170 = vmatpush1.msra.mxu0 0.0
    %7171 = vmatprep.subr.mxu0 0.0
    %7172 = vmatpush1.msra.mxu0 0.0
    %7173 = vmatprep.subr.mxu0 0.0
    %7174 = vmatpush1.msra.mxu0 0.0
    %7175 = vmatprep.subr.mxu0 0.0
    %7176 = vmatpush1.msra.mxu0 0.0
    %7177 = vmatprep.subr.mxu0 0.0
    %7178 = vmatpush1.msra.mxu0 0.0
    %7179 = vmatprep.subr.mxu0 0.0
    %7180 = vmatpush1.msra.mxu0 0.0
    %7181 = vmatprep.subr.mxu0 0.0
    %7182 = vmatpush1.msra.mxu0 0.0
    %7183 = vmatprep.mubr.f32.mxu0 0.0
    %7184 = vmatmul.mubr.f32.gmra.mrb[0].mxu0 %v7117
    %v7185 = vpop.f32.mrb[0].mxu0
    %v7186 = vadd.f32 0.0, %v7185
    %v7187 = vpop.f32.mrb[0].mxu0
    %7188 = vdwg.mxu0
    %v7190 = vsel %vm192, %v7114, 0
    %7192 = vmatprep.subr.mxu0 0.0
    %7193 = vmatpush1.msra.mxu0 %v7105
    %7194 = vmatprep.subr.mxu0 0.0
    %7195 = vmatpush1.msra.mxu0 %v7106
    %7196 = vmatprep.subr.mxu0 0.0
    %7197 = vmatpush1.msra.mxu0 %v7107
    %7198 = vmatprep.subr.mxu0 0.0
    %7199 = vmatpush1.msra.mxu0 %v7108
    %7200 = vmatprep.subr.mxu0 0.0
    %7201 = vmatpush1.msra.mxu0 0.0
    %7202 = vmatprep.subr.mxu0 0.0
    %7203 = vmatpush1.msra.mxu0 0.0
    %7204 = vmatprep.subr.mxu0 0.0
    %7205 = vmatpush1.msra.mxu0 0.0
    %7206 = vmatprep.subr.mxu0 0.0
    %7207 = vmatpush1.msra.mxu0 0.0
    %7208 = vmatprep.subr.mxu0 0.0
    %7209 = vmatpush1.msra.mxu0 0.0
    %7210 = vmatprep.subr.mxu0 0.0
    %7211 = vmatpush1.msra.mxu0 0.0
    %7212 = vmatprep.subr.mxu0 0.0
    %7213 = vmatpush1.msra.mxu0 0.0
    %7214 = vmatprep.subr.mxu0 0.0
    %7215 = vmatpush1.msra.mxu0 0.0
    %7216 = vmatprep.subr.mxu0 0.0
    %7217 = vmatpush1.msra.mxu0 0.0
    %7218 = vmatprep.subr.mxu0 0.0
    %7219 = vmatpush1.msra.mxu0 0.0
    %7220 = vmatprep.subr.mxu0 0.0
    %7221 = vmatpush1.msra.mxu0 0.0
    %7222 = vmatprep.subr.mxu0 0.0
    %7223 = vmatpush1.msra.mxu0 0.0
    %7224 = vmatprep.subr.mxu0 0.0
    %7225 = vmatpush1.msra.mxu0 0.0
    %7226 = vmatprep.subr.mxu0 0.0
    %7227 = vmatpush1.msra.mxu0 0.0
    %7228 = vmatprep.subr.mxu0 0.0
    %7229 = vmatpush1.msra.mxu0 0.0
    %7230 = vmatprep.subr.mxu0 0.0
    %7231 = vmatpush1.msra.mxu0 0.0
    %7232 = vmatprep.subr.mxu0 0.0
    %7233 = vmatpush1.msra.mxu0 0.0
    %7234 = vmatprep.subr.mxu0 0.0
    %7235 = vmatpush1.msra.mxu0 0.0
    %7236 = vmatprep.subr.mxu0 0.0
    %7237 = vmatpush1.msra.mxu0 0.0
    %7238 = vmatprep.subr.mxu0 0.0
    %7239 = vmatpush1.msra.mxu0 0.0
    %7240 = vmatprep.subr.mxu0 0.0
    %7241 = vmatpush1.msra.mxu0 0.0
    %7242 = vmatprep.subr.mxu0 0.0
    %7243 = vmatpush1.msra.mxu0 0.0
    %7244 = vmatprep.subr.mxu0 0.0
    %7245 = vmatpush1.msra.mxu0 0.0
    %7246 = vmatprep.subr.mxu0 0.0
    %7247 = vmatpush1.msra.mxu0 0.0
    %7248 = vmatprep.subr.mxu0 0.0
    %7249 = vmatpush1.msra.mxu0 0.0
    %7250 = vmatprep.subr.mxu0 0.0
    %7251 = vmatpush1.msra.mxu0 0.0
    %7252 = vmatprep.subr.mxu0 0.0
    %7253 = vmatpush1.msra.mxu0 0.0
    %7254 = vmatprep.subr.mxu0 0.0
    %7255 = vmatpush1.msra.mxu0 0.0
    %7256 = vmatprep.mubr.f32.mxu0 0.0
    %7257 = vmatmul.mubr.f32.gmra.mrb[0].mxu0 %v7190
    %v7258 = vpop.f32.mrb[0].mxu0
    %v7259 = vadd.f32 %v7186, %v7258
    %v7260 = vpop.f32.mrb[0].mxu0
    %7261 = vdwg.mxu0
    %v7263 = vlaneseq
    %v7264 = vshrl.u32 %v7263, 7
    %v7265 = vsub.s32 0, %v7264
    %v7266 = vrot.slane %v7113, %v7265
    %v7268 = vadd.f32 %v7259, %v7266
    %7269 = vst [vmem:[#allocation21] sm:$0x3] %v7268
    %v7270 = vld [vmem:[%s3828] sm:$0x3]
    %v7271 = vld [vmem:[%s6600] sm:$0x3]
    %v7273 = vsel %vm192, %v7271, 0
    %7275 = vmatprep.subr.mxu0 0.0
    %7276 = vmatpush1.msra.mxu0 %v7109
    %7277 = vmatprep.subr.mxu0 0.0
    %7278 = vmatpush1.msra.mxu0 %v7110
    %7279 = vmatprep.subr.mxu0 0.0
    %7280 = vmatpush1.msra.mxu0 %v7111
    %7281 = vmatprep.subr.mxu0 0.0
    %7282 = vmatpush1.msra.mxu0 %v7112
    %7283 = vmatprep.subr.mxu0 0.0
    %7284 = vmatpush1.msra.mxu0 0.0
    %7285 = vmatprep.subr.mxu0 0.0
    %7286 = vmatpush1.msra.mxu0 0.0
    %7287 = vmatprep.subr.mxu0 0.0
    %7288 = vmatpush1.msra.mxu0 0.0
    %7289 = vmatprep.subr.mxu0 0.0
    %7290 = vmatpush1.msra.mxu0 0.0
    %7291 = vmatprep.subr.mxu0 0.0
    %7292 = vmatpush1.msra.mxu0 0.0
    %7293 = vmatprep.subr.mxu0 0.0
    %7294 = vmatpush1.msra.mxu0 0.0
    %7295 = vmatprep.subr.mxu0 0.0
    %7296 = vmatpush1.msra.mxu0 0.0
    %7297 = vmatprep.subr.mxu0 0.0
    %7298 = vmatpush1.msra.mxu0 0.0
    %7299 = vmatprep.subr.mxu0 0.0
    %7300 = vmatpush1.msra.mxu0 0.0
    %7301 = vmatprep.subr.mxu0 0.0
    %7302 = vmatpush1.msra.mxu0 0.0
    %7303 = vmatprep.subr.mxu0 0.0
    %7304 = vmatpush1.msra.mxu0 0.0
    %7305 = vmatprep.subr.mxu0 0.0
    %7306 = vmatpush1.msra.mxu0 0.0
    %7307 = vmatprep.subr.mxu0 0.0
    %7308 = vmatpush1.msra.mxu0 0.0
    %7309 = vmatprep.subr.mxu0 0.0
    %7310 = vmatpush1.msra.mxu0 0.0
    %7311 = vmatprep.subr.mxu0 0.0
    %7312 = vmatpush1.msra.mxu0 0.0
    %7313 = vmatprep.subr.mxu0 0.0
    %7314 = vmatpush1.msra.mxu0 0.0
    %7315 = vmatprep.subr.mxu0 0.0
    %7316 = vmatpush1.msra.mxu0 0.0
    %7317 = vmatprep.subr.mxu0 0.0
    %7318 = vmatpush1.msra.mxu0 0.0
    %7319 = vmatprep.subr.mxu0 0.0
    %7320 = vmatpush1.msra.mxu0 0.0
    %7321 = vmatprep.subr.mxu0 0.0
    %7322 = vmatpush1.msra.mxu0 0.0
    %7323 = vmatprep.subr.mxu0 0.0
    %7324 = vmatpush1.msra.mxu0 0.0
    %7325 = vmatprep.subr.mxu0 0.0
    %7326 = vmatpush1.msra.mxu0 0.0
    %7327 = vmatprep.subr.mxu0 0.0
    %7328 = vmatpush1.msra.mxu0 0.0
    %7329 = vmatprep.subr.mxu0 0.0
    %7330 = vmatpush1.msra.mxu0 0.0
    %7331 = vmatprep.subr.mxu0 0.0
    %7332 = vmatpush1.msra.mxu0 0.0
    %7333 = vmatprep.subr.mxu0 0.0
    %7334 = vmatpush1.msra.mxu0 0.0
    %7335 = vmatprep.subr.mxu0 0.0
    %7336 = vmatpush1.msra.mxu0 0.0
    %7337 = vmatprep.subr.mxu0 0.0
    %7338 = vmatpush1.msra.mxu0 0.0
    %7339 = vmatprep.mubr.f32.mxu0 0.0
    %7340 = vmatmul.mubr.f32.gmra.mrb[0].mxu0 %v7273
    %v7341 = vpop.f32.mrb[0].mxu0
    %v7342 = vadd.f32 0.0, %v7341
    %v7343 = vpop.f32.mrb[0].mxu0
    %7344 = vdwg.mxu0
    %v7346 = vsel %vm192, %v7270, 0
    %7348 = vmatprep.subr.mxu0 0.0
    %7349 = vmatpush1.msra.mxu0 %v7105
    %7350 = vmatprep.subr.mxu0 0.0
    %7351 = vmatpush1.msra.mxu0 %v7106
    %7352 = vmatprep.subr.mxu0 0.0
    %7353 = vmatpush1.msra.mxu0 %v7107
    %7354 = vmatprep.subr.mxu0 0.0
    %7355 = vmatpush1.msra.mxu0 %v7108
    %7356 = vmatprep.subr.mxu0 0.0
    %7357 = vmatpush1.msra.mxu0 0.0
    %7358 = vmatprep.subr.mxu0 0.0
    %7359 = vmatpush1.msra.mxu0 0.0
    %7360 = vmatprep.subr.mxu0 0.0
    %7361 = vmatpush1.msra.mxu0 0.0
    %7362 = vmatprep.subr.mxu0 0.0
    %7363 = vmatpush1.msra.mxu0 0.0
    %7364 = vmatprep.subr.mxu0 0.0
    %7365 = vmatpush1.msra.mxu0 0.0
    %7366 = vmatprep.subr.mxu0 0.0
    %7367 = vmatpush1.msra.mxu0 0.0
    %7368 = vmatprep.subr.mxu0 0.0
    %7369 = vmatpush1.msra.mxu0 0.0
    %7370 = vmatprep.subr.mxu0 0.0
    %7371 = vmatpush1.msra.mxu0 0.0
    %7372 = vmatprep.subr.mxu0 0.0
    %7373 = vmatpush1.msra.mxu0 0.0
    %7374 = vmatprep.subr.mxu0 0.0
    %7375 = vmatpush1.msra.mxu0 0.0
    %7376 = vmatprep.subr.mxu0 0.0
    %7377 = vmatpush1.msra.mxu0 0.0
    %7378 = vmatprep.subr.mxu0 0.0
    %7379 = vmatpush1.msra.mxu0 0.0
    %7380 = vmatprep.subr.mxu0 0.0
    %7381 = vmatpush1.msra.mxu0 0.0
    %7382 = vmatprep.subr.mxu0 0.0
    %7383 = vmatpush1.msra.mxu0 0.0
    %7384 = vmatprep.subr.mxu0 0.0
    %7385 = vmatpush1.msra.mxu0 0.0
    %7386 = vmatprep.subr.mxu0 0.0
    %7387 = vmatpush1.msra.mxu0 0.0
    %7388 = vmatprep.subr.mxu0 0.0
    %7389 = vmatpush1.msra.mxu0 0.0
    %7390 = vmatprep.subr.mxu0 0.0
    %7391 = vmatpush1.msra.mxu0 0.0
    %7392 = vmatprep.subr.mxu0 0.0
    %7393 = vmatpush1.msra.mxu0 0.0
    %7394 = vmatprep.subr.mxu0 0.0
    %7395 = vmatpush1.msra.mxu0 0.0
    %7396 = vmatprep.subr.mxu0 0.0
    %7397 = vmatpush1.msra.mxu0 0.0
    %7398 = vmatprep.subr.mxu0 0.0
    %7399 = vmatpush1.msra.mxu0 0.0
    %7400 = vmatprep.subr.mxu0 0.0
    %7401 = vmatpush1.msra.mxu0 0.0
    %7402 = vmatprep.subr.mxu0 0.0
    %7403 = vmatpush1.msra.mxu0 0.0
    %7404 = vmatprep.subr.mxu0 0.0
    %7405 = vmatpush1.msra.mxu0 0.0
    %7406 = vmatprep.subr.mxu0 0.0
    %7407 = vmatpush1.msra.mxu0 0.0
    %7408 = vmatprep.subr.mxu0 0.0
    %7409 = vmatpush1.msra.mxu0 0.0
    %7410 = vmatprep.subr.mxu0 0.0
    %7411 = vmatpush1.msra.mxu0 0.0
    %7412 = vmatprep.mubr.f32.mxu0 0.0
    %7413 = vmatmul.mubr.f32.gmra.mrb[0].mxu0 %v7346
    %v7414 = vpop.f32.mrb[0].mxu0
    %v7415 = vadd.f32 %v7342, %v7414
    %v7416 = vpop.f32.mrb[0].mxu0
    %7417 = vdwg.mxu0
    %v7418 = vadd.f32 %v7415, %v7266
    %s7419 = scalar_lea.vmem [#allocation21], 2
    %7420 = vst [vmem:[%s7419] sm:$0x3] %v7418
    %v7421 = vld [vmem:[%s4332] sm:$0x3]
    %v7422 = vld [vmem:[%s6096] sm:$0x3]
    %v7424 = vsel %vm192, %v7422, 0
    %7426 = vmatprep.subr.mxu0 0.0
    %7427 = vmatpush1.msra.mxu0 %v7109
    %7428 = vmatprep.subr.mxu0 0.0
    %7429 = vmatpush1.msra.mxu0 %v7110
    %7430 = vmatprep.subr.mxu0 0.0
    %7431 = vmatpush1.msra.mxu0 %v7111
    %7432 = vmatprep.subr.mxu0 0.0
    %7433 = vmatpush1.msra.mxu0 %v7112
    %7434 = vmatprep.subr.mxu0 0.0
    %7435 = vmatpush1.msra.mxu0 0.0
    %7436 = vmatprep.subr.mxu0 0.0
    %7437 = vmatpush1.msra.mxu0 0.0
    %7438 = vmatprep.subr.mxu0 0.0
    %7439 = vmatpush1.msra.mxu0 0.0
    %7440 = vmatprep.subr.mxu0 0.0
    %7441 = vmatpush1.msra.mxu0 0.0
    %7442 = vmatprep.subr.mxu0 0.0
    %7443 = vmatpush1.msra.mxu0 0.0
    %7444 = vmatprep.subr.mxu0 0.0
    %7445 = vmatpush1.msra.mxu0 0.0
    %7446 = vmatprep.subr.mxu0 0.0
    %7447 = vmatpush1.msra.mxu0 0.0
    %7448 = vmatprep.subr.mxu0 0.0
    %7449 = vmatpush1.msra.mxu0 0.0
    %7450 = vmatprep.subr.mxu0 0.0
    %7451 = vmatpush1.msra.mxu0 0.0
    %7452 = vmatprep.subr.mxu0 0.0
    %7453 = vmatpush1.msra.mxu0 0.0
    %7454 = vmatprep.subr.mxu0 0.0
    %7455 = vmatpush1.msra.mxu0 0.0
    %7456 = vmatprep.subr.mxu0 0.0
    %7457 = vmatpush1.msra.mxu0 0.0
    %7458 = vmatprep.subr.mxu0 0.0
    %7459 = vmatpush1.msra.mxu0 0.0
    %7460 = vmatprep.subr.mxu0 0.0
    %7461 = vmatpush1.msra.mxu0 0.0
    %7462 = vmatprep.subr.mxu0 0.0
    %7463 = vmatpush1.msra.mxu0 0.0
    %7464 = vmatprep.subr.mxu0 0.0
    %7465 = vmatpush1.msra.mxu0 0.0
    %7466 = vmatprep.subr.mxu0 0.0
    %7467 = vmatpush1.msra.mxu0 0.0
    %7468 = vmatprep.subr.mxu0 0.0
    %7469 = vmatpush1.msra.mxu0 0.0
    %7470 = vmatprep.subr.mxu0 0.0
    %7471 = vmatpush1.msra.mxu0 0.0
    %7472 = vmatprep.subr.mxu0 0.0
    %7473 = vmatpush1.msra.mxu0 0.0
    %7474 = vmatprep.subr.mxu0 0.0
    %7475 = vmatpush1.msra.mxu0 0.0
    %7476 = vmatprep.subr.mxu0 0.0
    %7477 = vmatpush1.msra.mxu0 0.0
    %7478 = vmatprep.subr.mxu0 0.0
    %7479 = vmatpush1.msra.mxu0 0.0
    %7480 = vmatprep.subr.mxu0 0.0
    %7481 = vmatpush1.msra.mxu0 0.0
    %7482 = vmatprep.subr.mxu0 0.0
    %7483 = vmatpush1.msra.mxu0 0.0
    %7484 = vmatprep.subr.mxu0 0.0
    %7485 = vmatpush1.msra.mxu0 0.0
    %7486 = vmatprep.subr.mxu0 0.0
    %7487 = vmatpush1.msra.mxu0 0.0
    %7488 = vmatprep.subr.mxu0 0.0
    %7489 = vmatpush1.msra.mxu0 0.0
    %7490 = vmatprep.mubr.f32.mxu0 0.0
    %7491 = vmatmul.mubr.f32.gmra.mrb[0].mxu0 %v7424
    %v7492 = vpop.f32.mrb[0].mxu0
    %v7493 = vadd.f32 0.0, %v7492
    %v7494 = vpop.f32.mrb[0].mxu0
    %7495 = vdwg.mxu0
    %v7497 = vsel %vm192, %v7421, 0
    %7499 = vmatprep.subr.mxu0 0.0
    %7500 = vmatpush1.msra.mxu0 %v7105
    %7501 = vmatprep.subr.mxu0 0.0
    %7502 = vmatpush1.msra.mxu0 %v7106
    %7503 = vmatprep.subr.mxu0 0.0
    %7504 = vmatpush1.msra.mxu0 %v7107
    %7505 = vmatprep.subr.mxu0 0.0
    %7506 = vmatpush1.msra.mxu0 %v7108
    %7507 = vmatprep.subr.mxu0 0.0
    %7508 = vmatpush1.msra.mxu0 0.0
    %7509 = vmatprep.subr.mxu0 0.0
    %7510 = vmatpush1.msra.mxu0 0.0
    %7511 = vmatprep.subr.mxu0 0.0
    %7512 = vmatpush1.msra.mxu0 0.0
    %7513 = vmatprep.subr.mxu0 0.0
    %7514 = vmatpush1.msra.mxu0 0.0
    %7515 = vmatprep.subr.mxu0 0.0
    %7516 = vmatpush1.msra.mxu0 0.0
    %7517 = vmatprep.subr.mxu0 0.0
    %7518 = vmatpush1.msra.mxu0 0.0
    %7519 = vmatprep.subr.mxu0 0.0
    %7520 = vmatpush1.msra.mxu0 0.0
    %7521 = vmatprep.subr.mxu0 0.0
    %7522 = vmatpush1.msra.mxu0 0.0
    %7523 = vmatprep.subr.mxu0 0.0
    %7524 = vmatpush1.msra.mxu0 0.0
    %7525 = vmatprep.subr.mxu0 0.0
    %7526 = vmatpush1.msra.mxu0 0.0
    %7527 = vmatprep.subr.mxu0 0.0
    %7528 = vmatpush1.msra.mxu0 0.0
    %7529 = vmatprep.subr.mxu0 0.0
    %7530 = vmatpush1.msra.mxu0 0.0
    %7531 = vmatprep.subr.mxu0 0.0
    %7532 = vmatpush1.msra.mxu0 0.0
    %7533 = vmatprep.subr.mxu0 0.0
    %7534 = vmatpush1.msra.mxu0 0.0
    %7535 = vmatprep.subr.mxu0 0.0
    %7536 = vmatpush1.msra.mxu0 0.0
    %7537 = vmatprep.subr.mxu0 0.0
    %7538 = vmatpush1.msra.mxu0 0.0
    %7539 = vmatprep.subr.mxu0 0.0
    %7540 = vmatpush1.msra.mxu0 0.0
    %7541 = vmatprep.subr.mxu0 0.0
    %7542 = vmatpush1.msra.mxu0 0.0
    %7543 = vmatprep.subr.mxu0 0.0
    %7544 = vmatpush1.msra.mxu0 0.0
    %7545 = vmatprep.subr.mxu0 0.0
    %7546 = vmatpush1.msra.mxu0 0.0
    %7547 = vmatprep.subr.mxu0 0.0
    %7548 = vmatpush1.msra.mxu0 0.0
    %7549 = vmatprep.subr.mxu0 0.0
    %7550 = vmatpush1.msra.mxu0 0.0
    %7551 = vmatprep.subr.mxu0 0.0
    %7552 = vmatpush1.msra.mxu0 0.0
    %7553 = vmatprep.subr.mxu0 0.0
    %7554 = vmatpush1.msra.mxu0 0.0
    %7555 = vmatprep.subr.mxu0 0.0
    %7556 = vmatpush1.msra.mxu0 0.0
    %7557 = vmatprep.subr.mxu0 0.0
    %7558 = vmatpush1.msra.mxu0 0.0
    %7559 = vmatprep.subr.mxu0 0.0
    %7560 = vmatpush1.msra.mxu0 0.0
    %7561 = vmatprep.subr.mxu0 0.0
    %7562 = vmatpush1.msra.mxu0 0.0
    %7563 = vmatprep.mubr.f32.mxu0 0.0
    %7564 = vmatmul.mubr.f32.gmra.mrb[0].mxu0 %v7497
    %v7565 = vpop.f32.mrb[0].mxu0
    %v7566 = vadd.f32 %v7493, %v7565
    %v7567 = vpop.f32.mrb[0].mxu0
    %7568 = vdwg.mxu0
    %v7569 = vadd.f32 %v7566, %v7266
    %s7570 = scalar_lea.vmem [#allocation21], 4
    %7571 = vst [vmem:[%s7570] sm:$0x3] %v7569
    %v7572 = vld [vmem:[%s4836] sm:$0x3]
    %v7573 = vld [vmem:[%s5592] sm:$0x3]
    %v7575 = vsel %vm192, %v7573, 0
    %7577 = vmatprep.subr.mxu0 0.0
    %7578 = vmatpush1.msra.mxu0 %v7109
    %7579 = vmatprep.subr.mxu0 0.0
    %7580 = vmatpush1.msra.mxu0 %v7110
    %7581 = vmatprep.subr.mxu0 0.0
    %7582 = vmatpush1.msra.mxu0 %v7111
    %7583 = vmatprep.subr.mxu0 0.0
    %7584 = vmatpush1.msra.mxu0 %v7112
    %7585 = vmatprep.subr.mxu0 0.0
    %7586 = vmatpush1.msra.mxu0 0.0
    %7587 = vmatprep.subr.mxu0 0.0
    %7588 = vmatpush1.msra.mxu0 0.0
    %7589 = vmatprep.subr.mxu0 0.0
    %7590 = vmatpush1.msra.mxu0 0.0
    %7591 = vmatprep.subr.mxu0 0.0
    %7592 = vmatpush1.msra.mxu0 0.0
    %7593 = vmatprep.subr.mxu0 0.0
    %7594 = vmatpush1.msra.mxu0 0.0
    %7595 = vmatprep.subr.mxu0 0.0
    %7596 = vmatpush1.msra.mxu0 0.0
    %7597 = vmatprep.subr.mxu0 0.0
    %7598 = vmatpush1.msra.mxu0 0.0
    %7599 = vmatprep.subr.mxu0 0.0
    %7600 = vmatpush1.msra.mxu0 0.0
    %7601 = vmatprep.subr.mxu0 0.0
    %7602 = vmatpush1.msra.mxu0 0.0
    %7603 = vmatprep.subr.mxu0 0.0
    %7604 = vmatpush1.msra.mxu0 0.0
    %7605 = vmatprep.subr.mxu0 0.0
    %7606 = vmatpush1.msra.mxu0 0.0
    %7607 = vmatprep.subr.mxu0 0.0
    %7608 = vmatpush1.msra.mxu0 0.0
    %7609 = vmatprep.subr.mxu0 0.0
    %7610 = vmatpush1.msra.mxu0 0.0
    %7611 = vmatprep.subr.mxu0 0.0
    %7612 = vmatpush1.msra.mxu0 0.0
    %7613 = vmatprep.subr.mxu0 0.0
    %7614 = vmatpush1.msra.mxu0 0.0
    %7615 = vmatprep.subr.mxu0 0.0
    %7616 = vmatpush1.msra.mxu0 0.0
    %7617 = vmatprep.subr.mxu0 0.0
    %7618 = vmatpush1.msra.mxu0 0.0
    %7619 = vmatprep.subr.mxu0 0.0
    %7620 = vmatpush1.msra.mxu0 0.0
    %7621 = vmatprep.subr.mxu0 0.0
    %7622 = vmatpush1.msra.mxu0 0.0
    %7623 = vmatprep.subr.mxu0 0.0
    %7624 = vmatpush1.msra.mxu0 0.0
    %7625 = vmatprep.subr.mxu0 0.0
    %7626 = vmatpush1.msra.mxu0 0.0
    %7627 = vmatprep.subr.mxu0 0.0
    %7628 = vmatpush1.msra.mxu0 0.0
    %7629 = vmatprep.subr.mxu0 0.0
    %7630 = vmatpush1.msra.mxu0 0.0
    %7631 = vmatprep.subr.mxu0 0.0
    %7632 = vmatpush1.msra.mxu0 0.0
    %7633 = vmatprep.subr.mxu0 0.0
    %7634 = vmatpush1.msra.mxu0 0.0
    %7635 = vmatprep.subr.mxu0 0.0
    %7636 = vmatpush1.msra.mxu0 0.0
    %7637 = vmatprep.subr.mxu0 0.0
    %7638 = vmatpush1.msra.mxu0 0.0
    %7639 = vmatprep.subr.mxu0 0.0
    %7640 = vmatpush1.msra.mxu0 0.0
    %7641 = vmatprep.mubr.f32.mxu0 0.0
    %7642 = vmatmul.mubr.f32.gmra.mrb[0].mxu0 %v7575
    %v7643 = vpop.f32.mrb[0].mxu0
    %v7644 = vadd.f32 0.0, %v7643
    %v7645 = vpop.f32.mrb[0].mxu0
    %7646 = vdwg.mxu0
    %v7648 = vsel %vm192, %v7572, 0
    %7650 = vmatprep.subr.mxu0 0.0
    %7651 = vmatpush1.msra.mxu0 %v7105
    %7652 = vmatprep.subr.mxu0 0.0
    %7653 = vmatpush1.msra.mxu0 %v7106
    %7654 = vmatprep.subr.mxu0 0.0
    %7655 = vmatpush1.msra.mxu0 %v7107
    %7656 = vmatprep.subr.mxu0 0.0
    %7657 = vmatpush1.msra.mxu0 %v7108
    %7658 = vmatprep.subr.mxu0 0.0
    %7659 = vmatpush1.msra.mxu0 0.0
    %7660 = vmatprep.subr.mxu0 0.0
    %7661 = vmatpush1.msra.mxu0 0.0
    %7662 = vmatprep.subr.mxu0 0.0
    %7663 = vmatpush1.msra.mxu0 0.0
    %7664 = vmatprep.subr.mxu0 0.0
    %7665 = vmatpush1.msra.mxu0 0.0
    %7666 = vmatprep.subr.mxu0 0.0
    %7667 = vmatpush1.msra.mxu0 0.0
    %7668 = vmatprep.subr.mxu0 0.0
    %7669 = vmatpush1.msra.mxu0 0.0
    %7670 = vmatprep.subr.mxu0 0.0
    %7671 = vmatpush1.msra.mxu0 0.0
    %7672 = vmatprep.subr.mxu0 0.0
    %7673 = vmatpush1.msra.mxu0 0.0
    %7674 = vmatprep.subr.mxu0 0.0
    %7675 = vmatpush1.msra.mxu0 0.0
    %7676 = vmatprep.subr.mxu0 0.0
    %7677 = vmatpush1.msra.mxu0 0.0
    %7678 = vmatprep.subr.mxu0 0.0
    %7679 = vmatpush1.msra.mxu0 0.0
    %7680 = vmatprep.subr.mxu0 0.0
    %7681 = vmatpush1.msra.mxu0 0.0
    %7682 = vmatprep.subr.mxu0 0.0
    %7683 = vmatpush1.msra.mxu0 0.0
    %7684 = vmatprep.subr.mxu0 0.0
    %7685 = vmatpush1.msra.mxu0 0.0
    %7686 = vmatprep.subr.mxu0 0.0
    %7687 = vmatpush1.msra.mxu0 0.0
    %7688 = vmatprep.subr.mxu0 0.0
    %7689 = vmatpush1.msra.mxu0 0.0
    %7690 = vmatprep.subr.mxu0 0.0
    %7691 = vmatpush1.msra.mxu0 0.0
    %7692 = vmatprep.subr.mxu0 0.0
    %7693 = vmatpush1.msra.mxu0 0.0
    %7694 = vmatprep.subr.mxu0 0.0
    %7695 = vmatpush1.msra.mxu0 0.0
    %7696 = vmatprep.subr.mxu0 0.0
    %7697 = vmatpush1.msra.mxu0 0.0
    %7698 = vmatprep.subr.mxu0 0.0
    %7699 = vmatpush1.msra.mxu0 0.0
    %7700 = vmatprep.subr.mxu0 0.0
    %7701 = vmatpush1.msra.mxu0 0.0
    %7702 = vmatprep.subr.mxu0 0.0
    %7703 = vmatpush1.msra.mxu0 0.0
    %7704 = vmatprep.subr.mxu0 0.0
    %7705 = vmatpush1.msra.mxu0 0.0
    %7706 = vmatprep.subr.mxu0 0.0
    %7707 = vmatpush1.msra.mxu0 0.0
    %7708 = vmatprep.subr.mxu0 0.0
    %7709 = vmatpush1.msra.mxu0 0.0
    %7710 = vmatprep.subr.mxu0 0.0
    %7711 = vmatpush1.msra.mxu0 0.0
    %7712 = vmatprep.subr.mxu0 0.0
    %7713 = vmatpush1.msra.mxu0 0.0
    %7714 = vmatprep.mubr.f32.mxu0 0.0
    %7715 = vmatmul.mubr.f32.gmra.mrb[0].mxu0 %v7648
    %v7716 = vpop.f32.mrb[0].mxu0
    %v7717 = vadd.f32 %v7644, %v7716
    %v7718 = vpop.f32.mrb[0].mxu0
    %7719 = vdwg.mxu0
    %v7720 = vadd.f32 %v7717, %v7266
    %s7721 = scalar_lea.vmem [#allocation21], 6
    %7722 = vst [vmem:[%s7721] sm:$0x3] %v7720
    %v7723 = vld [vmem:[%s5340] sm:$0x3]
    %v7724 = vld [vmem:[%s5088] sm:$0x3]
    %v7726 = vsel %vm192, %v7724, 0
    %7728 = vmatprep.subr.mxu0 0.0
    %7729 = vmatpush1.msra.mxu0 %v7109
    %7730 = vmatprep.subr.mxu0 0.0
    %7731 = vmatpush1.msra.mxu0 %v7110
    %7732 = vmatprep.subr.mxu0 0.0
    %7733 = vmatpush1.msra.mxu0 %v7111
    %7734 = vmatprep.subr.mxu0 0.0
    %7735 = vmatpush1.msra.mxu0 %v7112
    %7736 = vmatprep.subr.mxu0 0.0
    %7737 = vmatpush1.msra.mxu0 0.0
    %7738 = vmatprep.subr.mxu0 0.0
    %7739 = vmatpush1.msra.mxu0 0.0
    %7740 = vmatprep.subr.mxu0 0.0
    %7741 = vmatpush1.msra.mxu0 0.0
    %7742 = vmatprep.subr.mxu0 0.0
    %7743 = vmatpush1.msra.mxu0 0.0
    %7744 = vmatprep.subr.mxu0 0.0
    %7745 = vmatpush1.msra.mxu0 0.0
    %7746 = vmatprep.subr.mxu0 0.0
    %7747 = vmatpush1.msra.mxu0 0.0
    %7748 = vmatprep.subr.mxu0 0.0
    %7749 = vmatpush1.msra.mxu0 0.0
    %7750 = vmatprep.subr.mxu0 0.0
    %7751 = vmatpush1.msra.mxu0 0.0
    %7752 = vmatprep.subr.mxu0 0.0
    %7753 = vmatpush1.msra.mxu0 0.0
    %7754 = vmatprep.subr.mxu0 0.0
    %7755 = vmatpush1.msra.mxu0 0.0
    %7756 = vmatprep.subr.mxu0 0.0
    %7757 = vmatpush1.msra.mxu0 0.0
    %7758 = vmatprep.subr.mxu0 0.0
    %7759 = vmatpush1.msra.mxu0 0.0
    %7760 = vmatprep.subr.mxu0 0.0
    %7761 = vmatpush1.msra.mxu0 0.0
    %7762 = vmatprep.subr.mxu0 0.0
    %7763 = vmatpush1.msra.mxu0 0.0
    %7764 = vmatprep.subr.mxu0 0.0
    %7765 = vmatpush1.msra.mxu0 0.0
    %7766 = vmatprep.subr.mxu0 0.0
    %7767 = vmatpush1.msra.mxu0 0.0
    %7768 = vmatprep.subr.mxu0 0.0
    %7769 = vmatpush1.msra.mxu0 0.0
    %7770 = vmatprep.subr.mxu0 0.0
    %7771 = vmatpush1.msra.mxu0 0.0
    %7772 = vmatprep.subr.mxu0 0.0
    %7773 = vmatpush1.msra.mxu0 0.0
    %7774 = vmatprep.subr.mxu0 0.0
    %7775 = vmatpush1.msra.mxu0 0.0
    %7776 = vmatprep.subr.mxu0 0.0
    %7777 = vmatpush1.msra.mxu0 0.0
    %7778 = vmatprep.subr.mxu0 0.0
    %7779 = vmatpush1.msra.mxu0 0.0
    %7780 = vmatprep.subr.mxu0 0.0
    %7781 = vmatpush1.msra.mxu0 0.0
    %7782 = vmatprep.subr.mxu0 0.0
    %7783 = vmatpush1.msra.mxu0 0.0
    %7784 = vmatprep.subr.mxu0 0.0
    %7785 = vmatpush1.msra.mxu0 0.0
    %7786 = vmatprep.subr.mxu0 0.0
    %7787 = vmatpush1.msra.mxu0 0.0
    %7788 = vmatprep.subr.mxu0 0.0
    %7789 = vmatpush1.msra.mxu0 0.0
    %7790 = vmatprep.subr.mxu0 0.0
    %7791 = vmatpush1.msra.mxu0 0.0
    %7792 = vmatprep.mubr.f32.mxu0 0.0
    %7793 = vmatmul.mubr.f32.gmra.mrb[0].mxu0 %v7726
    %v7794 = vpop.f32.mrb[0].mxu0
    %v7795 = vadd.f32 0.0, %v7794
    %v7796 = vpop.f32.mrb[0].mxu0
    %7797 = vdwg.mxu0
    %v7799 = vsel %vm192, %v7723, 0
    %7801 = vmatprep.subr.mxu0 0.0
    %7802 = vmatpush1.msra.mxu0 %v7105
    %7803 = vmatprep.subr.mxu0 0.0
    %7804 = vmatpush1.msra.mxu0 %v7106
    %7805 = vmatprep.subr.mxu0 0.0
    %7806 = vmatpush1.msra.mxu0 %v7107
    %7807 = vmatprep.subr.mxu0 0.0
    %7808 = vmatpush1.msra.mxu0 %v7108
    %7809 = vmatprep.subr.mxu0 0.0
    %7810 = vmatpush1.msra.mxu0 0.0
    %7811 = vmatprep.subr.mxu0 0.0
    %7812 = vmatpush1.msra.mxu0 0.0
    %7813 = vmatprep.subr.mxu0 0.0
    %7814 = vmatpush1.msra.mxu0 0.0
    %7815 = vmatprep.subr.mxu0 0.0
    %7816 = vmatpush1.msra.mxu0 0.0
    %7817 = vmatprep.subr.mxu0 0.0
    %7818 = vmatpush1.msra.mxu0 0.0
    %7819 = vmatprep.subr.mxu0 0.0
    %7820 = vmatpush1.msra.mxu0 0.0
    %7821 = vmatprep.subr.mxu0 0.0
    %7822 = vmatpush1.msra.mxu0 0.0
    %7823 = vmatprep.subr.mxu0 0.0
    %7824 = vmatpush1.msra.mxu0 0.0
    %7825 = vmatprep.subr.mxu0 0.0
    %7826 = vmatpush1.msra.mxu0 0.0
    %7827 = vmatprep.subr.mxu0 0.0
    %7828 = vmatpush1.msra.mxu0 0.0
    %7829 = vmatprep.subr.mxu0 0.0
    %7830 = vmatpush1.msra.mxu0 0.0
    %7831 = vmatprep.subr.mxu0 0.0
    %7832 = vmatpush1.msra.mxu0 0.0
    %7833 = vmatprep.subr.mxu0 0.0
    %7834 = vmatpush1.msra.mxu0 0.0
    %7835 = vmatprep.subr.mxu0 0.0
    %7836 = vmatpush1.msra.mxu0 0.0
    %7837 = vmatprep.subr.mxu0 0.0
    %7838 = vmatpush1.msra.mxu0 0.0
    %7839 = vmatprep.subr.mxu0 0.0
    %7840 = vmatpush1.msra.mxu0 0.0
    %7841 = vmatprep.subr.mxu0 0.0
    %7842 = vmatpush1.msra.mxu0 0.0
    %7843 = vmatprep.subr.mxu0 0.0
    %7844 = vmatpush1.msra.mxu0 0.0
    %7845 = vmatprep.subr.mxu0 0.0
    %7846 = vmatpush1.msra.mxu0 0.0
    %7847 = vmatprep.subr.mxu0 0.0
    %7848 = vmatpush1.msra.mxu0 0.0
    %7849 = vmatprep.subr.mxu0 0.0
    %7850 = vmatpush1.msra.mxu0 0.0
    %7851 = vmatprep.subr.mxu0 0.0
    %7852 = vmatpush1.msra.mxu0 0.0
    %7853 = vmatprep.subr.mxu0 0.0
    %7854 = vmatpush1.msra.mxu0 0.0
    %7855 = vmatprep.subr.mxu0 0.0
    %7856 = vmatpush1.msra.mxu0 0.0
    %7857 = vmatprep.subr.mxu0 0.0
    %7858 = vmatpush1.msra.mxu0 0.0
    %7859 = vmatprep.subr.mxu0 0.0
    %7860 = vmatpush1.msra.mxu0 0.0
    %7861 = vmatprep.subr.mxu0 0.0
    %7862 = vmatpush1.msra.mxu0 0.0
    %7863 = vmatprep.subr.mxu0 0.0
    %7864 = vmatpush1.msra.mxu0 0.0
    %7865 = vmatprep.mubr.f32.mxu0 0.0
    %7866 = vmatmul.mubr.f32.gmra.mrb[0].mxu0 %v7799
    %v7867 = vpop.f32.mrb[0].mxu0
    %v7868 = vadd.f32 %v7795, %v7867
    %v7869 = vpop.f32.mrb[0].mxu0
    %7870 = vdwg.mxu0
    %v7871 = vadd.f32 %v7868, %v7266
    %s7872 = scalar_lea.vmem [#allocation21], 8
    %7873 = vst [vmem:[%s7872] sm:$0x3] %v7871
    %v7874 = vld [vmem:[%s5844] sm:$0x3]
    %v7875 = vld [vmem:[%s4584] sm:$0x3]
    %v7877 = vsel %vm192, %v7875, 0
    %7879 = vmatprep.subr.mxu0 0.0
    %7880 = vmatpush1.msra.mxu0 %v7109
    %7881 = vmatprep.subr.mxu0 0.0
    %7882 = vmatpush1.msra.mxu0 %v7110
    %7883 = vmatprep.subr.mxu0 0.0
    %7884 = vmatpush1.msra.mxu0 %v7111
    %7885 = vmatprep.subr.mxu0 0.0
    %7886 = vmatpush1.msra.mxu0 %v7112
    %7887 = vmatprep.subr.mxu0 0.0
    %7888 = vmatpush1.msra.mxu0 0.0
    %7889 = vmatprep.subr.mxu0 0.0
    %7890 = vmatpush1.msra.mxu0 0.0
    %7891 = vmatprep.subr.mxu0 0.0
    %7892 = vmatpush1.msra.mxu0 0.0
    %7893 = vmatprep.subr.mxu0 0.0
    %7894 = vmatpush1.msra.mxu0 0.0
    %7895 = vmatprep.subr.mxu0 0.0
    %7896 = vmatpush1.msra.mxu0 0.0
    %7897 = vmatprep.subr.mxu0 0.0
    %7898 = vmatpush1.msra.mxu0 0.0
    %7899 = vmatprep.subr.mxu0 0.0
    %7900 = vmatpush1.msra.mxu0 0.0
    %7901 = vmatprep.subr.mxu0 0.0
    %7902 = vmatpush1.msra.mxu0 0.0
    %7903 = vmatprep.subr.mxu0 0.0
    %7904 = vmatpush1.msra.mxu0 0.0
    %7905 = vmatprep.subr.mxu0 0.0
    %7906 = vmatpush1.msra.mxu0 0.0
    %7907 = vmatprep.subr.mxu0 0.0
    %7908 = vmatpush1.msra.mxu0 0.0
    %7909 = vmatprep.subr.mxu0 0.0
    %7910 = vmatpush1.msra.mxu0 0.0
    %7911 = vmatprep.subr.mxu0 0.0
    %7912 = vmatpush1.msra.mxu0 0.0
    %7913 = vmatprep.subr.mxu0 0.0
    %7914 = vmatpush1.msra.mxu0 0.0
    %7915 = vmatprep.subr.mxu0 0.0
    %7916 = vmatpush1.msra.mxu0 0.0
    %7917 = vmatprep.subr.mxu0 0.0
    %7918 = vmatpush1.msra.mxu0 0.0
    %7919 = vmatprep.subr.mxu0 0.0
    %7920 = vmatpush1.msra.mxu0 0.0
    %7921 = vmatprep.subr.mxu0 0.0
    %7922 = vmatpush1.msra.mxu0 0.0
    %7923 = vmatprep.subr.mxu0 0.0
    %7924 = vmatpush1.msra.mxu0 0.0
    %7925 = vmatprep.subr.mxu0 0.0
    %7926 = vmatpush1.msra.mxu0 0.0
    %7927 = vmatprep.subr.mxu0 0.0
    %7928 = vmatpush1.msra.mxu0 0.0
    %7929 = vmatprep.subr.mxu0 0.0
    %7930 = vmatpush1.msra.mxu0 0.0
    %7931 = vmatprep.subr.mxu0 0.0
    %7932 = vmatpush1.msra.mxu0 0.0
    %7933 = vmatprep.subr.mxu0 0.0
    %7934 = vmatpush1.msra.mxu0 0.0
    %7935 = vmatprep.subr.mxu0 0.0
    %7936 = vmatpush1.msra.mxu0 0.0
    %7937 = vmatprep.subr.mxu0 0.0
    %7938 = vmatpush1.msra.mxu0 0.0
    %7939 = vmatprep.subr.mxu0 0.0
    %7940 = vmatpush1.msra.mxu0 0.0
    %7941 = vmatprep.subr.mxu0 0.0
    %7942 = vmatpush1.msra.mxu0 0.0
    %7943 = vmatprep.mubr.f32.mxu0 0.0
    %7944 = vmatmul.mubr.f32.gmra.mrb[0].mxu0 %v7877
    %v7945 = vpop.f32.mrb[0].mxu0
    %v7946 = vadd.f32 0.0, %v7945
    %v7947 = vpop.f32.mrb[0].mxu0
    %7948 = vdwg.mxu0
    %v7950 = vsel %vm192, %v7874, 0
    %7952 = vmatprep.subr.mxu0 0.0
    %7953 = vmatpush1.msra.mxu0 %v7105
    %7954 = vmatprep.subr.mxu0 0.0
    %7955 = vmatpush1.msra.mxu0 %v7106
    %7956 = vmatprep.subr.mxu0 0.0
    %7957 = vmatpush1.msra.mxu0 %v7107
    %7958 = vmatprep.subr.mxu0 0.0
    %7959 = vmatpush1.msra.mxu0 %v7108
    %7960 = vmatprep.subr.mxu0 0.0
    %7961 = vmatpush1.msra.mxu0 0.0
    %7962 = vmatprep.subr.mxu0 0.0
    %7963 = vmatpush1.msra.mxu0 0.0
    %7964 = vmatprep.subr.mxu0 0.0
    %7965 = vmatpush1.msra.mxu0 0.0
    %7966 = vmatprep.subr.mxu0 0.0
    %7967 = vmatpush1.msra.mxu0 0.0
    %7968 = vmatprep.subr.mxu0 0.0
    %7969 = vmatpush1.msra.mxu0 0.0
    %7970 = vmatprep.subr.mxu0 0.0
    %7971 = vmatpush1.msra.mxu0 0.0
    %7972 = vmatprep.subr.mxu0 0.0
    %7973 = vmatpush1.msra.mxu0 0.0
    %7974 = vmatprep.subr.mxu0 0.0
    %7975 = vmatpush1.msra.mxu0 0.0
    %7976 = vmatprep.subr.mxu0 0.0
    %7977 = vmatpush1.msra.mxu0 0.0
    %7978 = vmatprep.subr.mxu0 0.0
    %7979 = vmatpush1.msra.mxu0 0.0
    %7980 = vmatprep.subr.mxu0 0.0
    %7981 = vmatpush1.msra.mxu0 0.0
    %7982 = vmatprep.subr.mxu0 0.0
    %7983 = vmatpush1.msra.mxu0 0.0
    %7984 = vmatprep.subr.mxu0 0.0
    %7985 = vmatpush1.msra.mxu0 0.0
    %7986 = vmatprep.subr.mxu0 0.0
    %7987 = vmatpush1.msra.mxu0 0.0
    %7988 = vmatprep.subr.mxu0 0.0
    %7989 = vmatpush1.msra.mxu0 0.0
    %7990 = vmatprep.subr.mxu0 0.0
    %7991 = vmatpush1.msra.mxu0 0.0
    %7992 = vmatprep.subr.mxu0 0.0
    %7993 = vmatpush1.msra.mxu0 0.0
    %7994 = vmatprep.subr.mxu0 0.0
    %7995 = vmatpush1.msra.mxu0 0.0
    %7996 = vmatprep.subr.mxu0 0.0
    %7997 = vmatpush1.msra.mxu0 0.0
    %7998 = vmatprep.subr.mxu0 0.0
    %7999 = vmatpush1.msra.mxu0 0.0
    %8000 = vmatprep.subr.mxu0 0.0
    %8001 = vmatpush1.msra.mxu0 0.0
    %8002 = vmatprep.subr.mxu0 0.0
    %8003 = vmatpush1.msra.mxu0 0.0
    %8004 = vmatprep.subr.mxu0 0.0
    %8005 = vmatpush1.msra.mxu0 0.0
    %8006 = vmatprep.subr.mxu0 0.0
    %8007 = vmatpush1.msra.mxu0 0.0
    %8008 = vmatprep.subr.mxu0 0.0
    %8009 = vmatpush1.msra.mxu0 0.0
    %8010 = vmatprep.subr.mxu0 0.0
    %8011 = vmatpush1.msra.mxu0 0.0
    %8012 = vmatprep.subr.mxu0 0.0
    %8013 = vmatpush1.msra.mxu0 0.0
    %8014 = vmatprep.subr.mxu0 0.0
    %8015 = vmatpush1.msra.mxu0 0.0
    %8016 = vmatprep.mubr.f32.mxu0 0.0
    %8017 = vmatmul.mubr.f32.gmra.mrb[0].mxu0 %v7950
    %v8018 = vpop.f32.mrb[0].mxu0
    %v8019 = vadd.f32 %v7946, %v8018
    %v8020 = vpop.f32.mrb[0].mxu0
    %8021 = vdwg.mxu0
    %v8022 = vadd.f32 %v8019, %v7266
    %s8023 = scalar_lea.vmem [#allocation21], 10
    %8024 = vst [vmem:[%s8023] sm:$0x3] %v8022
    %v8025 = vld [vmem:[%s6348] sm:$0x3]
    %v8026 = vld [vmem:[%s4080] sm:$0x3]
    %v8028 = vsel %vm192, %v8026, 0
    %8030 = vmatprep.subr.mxu0 0.0
    %8031 = vmatpush1.msra.mxu0 %v7109
    %8032 = vmatprep.subr.mxu0 0.0
    %8033 = vmatpush1.msra.mxu0 %v7110
    %8034 = vmatprep.subr.mxu0 0.0
    %8035 = vmatpush1.msra.mxu0 %v7111
    %8036 = vmatprep.subr.mxu0 0.0
    %8037 = vmatpush1.msra.mxu0 %v7112
    %8038 = vmatprep.subr.mxu0 0.0
    %8039 = vmatpush1.msra.mxu0 0.0
    %8040 = vmatprep.subr.mxu0 0.0
    %8041 = vmatpush1.msra.mxu0 0.0
    %8042 = vmatprep.subr.mxu0 0.0
    %8043 = vmatpush1.msra.mxu0 0.0
    %8044 = vmatprep.subr.mxu0 0.0
    %8045 = vmatpush1.msra.mxu0 0.0
    %8046 = vmatprep.subr.mxu0 0.0
    %8047 = vmatpush1.msra.mxu0 0.0
    %8048 = vmatprep.subr.mxu0 0.0
    %8049 = vmatpush1.msra.mxu0 0.0
    %8050 = vmatprep.subr.mxu0 0.0
    %8051 = vmatpush1.msra.mxu0 0.0
    %8052 = vmatprep.subr.mxu0 0.0
    %8053 = vmatpush1.msra.mxu0 0.0
    %8054 = vmatprep.subr.mxu0 0.0
    %8055 = vmatpush1.msra.mxu0 0.0
    %8056 = vmatprep.subr.mxu0 0.0
    %8057 = vmatpush1.msra.mxu0 0.0
    %8058 = vmatprep.subr.mxu0 0.0
    %8059 = vmatpush1.msra.mxu0 0.0
    %8060 = vmatprep.subr.mxu0 0.0
    %8061 = vmatpush1.msra.mxu0 0.0
    %8062 = vmatprep.subr.mxu0 0.0
    %8063 = vmatpush1.msra.mxu0 0.0
    %8064 = vmatprep.subr.mxu0 0.0
    %8065 = vmatpush1.msra.mxu0 0.0
    %8066 = vmatprep.subr.mxu0 0.0
    %8067 = vmatpush1.msra.mxu0 0.0
    %8068 = vmatprep.subr.mxu0 0.0
    %8069 = vmatpush1.msra.mxu0 0.0
    %8070 = vmatprep.subr.mxu0 0.0
    %8071 = vmatpush1.msra.mxu0 0.0
    %8072 = vmatprep.subr.mxu0 0.0
    %8073 = vmatpush1.msra.mxu0 0.0
    %8074 = vmatprep.subr.mxu0 0.0
    %8075 = vmatpush1.msra.mxu0 0.0
    %8076 = vmatprep.subr.mxu0 0.0
    %8077 = vmatpush1.msra.mxu0 0.0
    %8078 = vmatprep.subr.mxu0 0.0
    %8079 = vmatpush1.msra.mxu0 0.0
    %8080 = vmatprep.subr.mxu0 0.0
    %8081 = vmatpush1.msra.mxu0 0.0
    %8082 = vmatprep.subr.mxu0 0.0
    %8083 = vmatpush1.msra.mxu0 0.0
    %8084 = vmatprep.subr.mxu0 0.0
    %8085 = vmatpush1.msra.mxu0 0.0
    %8086 = vmatprep.subr.mxu0 0.0
    %8087 = vmatpush1.msra.mxu0 0.0
    %8088 = vmatprep.subr.mxu0 0.0
    %8089 = vmatpush1.msra.mxu0 0.0
    %8090 = vmatprep.subr.mxu0 0.0
    %8091 = vmatpush1.msra.mxu0 0.0
    %8092 = vmatprep.subr.mxu0 0.0
    %8093 = vmatpush1.msra.mxu0 0.0
    %8094 = vmatprep.mubr.f32.mxu0 0.0
    %8095 = vmatmul.mubr.f32.gmra.mrb[0].mxu0 %v8028
    %v8096 = vpop.f32.mrb[0].mxu0
    %v8097 = vadd.f32 0.0, %v8096
    %v8098 = vpop.f32.mrb[0].mxu0
    %8099 = vdwg.mxu0
    %v8101 = vsel %vm192, %v8025, 0
    %8103 = vmatprep.subr.mxu0 0.0
    %8104 = vmatpush1.msra.mxu0 %v7105
    %8105 = vmatprep.subr.mxu0 0.0
    %8106 = vmatpush1.msra.mxu0 %v7106
    %8107 = vmatprep.subr.mxu0 0.0
    %8108 = vmatpush1.msra.mxu0 %v7107
    %8109 = vmatprep.subr.mxu0 0.0
    %8110 = vmatpush1.msra.mxu0 %v7108
    %8111 = vmatprep.subr.mxu0 0.0
    %8112 = vmatpush1.msra.mxu0 0.0
    %8113 = vmatprep.subr.mxu0 0.0
    %8114 = vmatpush1.msra.mxu0 0.0
    %8115 = vmatprep.subr.mxu0 0.0
    %8116 = vmatpush1.msra.mxu0 0.0
    %8117 = vmatprep.subr.mxu0 0.0
    %8118 = vmatpush1.msra.mxu0 0.0
    %8119 = vmatprep.subr.mxu0 0.0
    %8120 = vmatpush1.msra.mxu0 0.0
    %8121 = vmatprep.subr.mxu0 0.0
    %8122 = vmatpush1.msra.mxu0 0.0
    %8123 = vmatprep.subr.mxu0 0.0
    %8124 = vmatpush1.msra.mxu0 0.0
    %8125 = vmatprep.subr.mxu0 0.0
    %8126 = vmatpush1.msra.mxu0 0.0
    %8127 = vmatprep.subr.mxu0 0.0
    %8128 = vmatpush1.msra.mxu0 0.0
    %8129 = vmatprep.subr.mxu0 0.0
    %8130 = vmatpush1.msra.mxu0 0.0
    %8131 = vmatprep.subr.mxu0 0.0
    %8132 = vmatpush1.msra.mxu0 0.0
    %8133 = vmatprep.subr.mxu0 0.0
    %8134 = vmatpush1.msra.mxu0 0.0
    %8135 = vmatprep.subr.mxu0 0.0
    %8136 = vmatpush1.msra.mxu0 0.0
    %8137 = vmatprep.subr.mxu0 0.0
    %8138 = vmatpush1.msra.mxu0 0.0
    %8139 = vmatprep.subr.mxu0 0.0
    %8140 = vmatpush1.msra.mxu0 0.0
    %8141 = vmatprep.subr.mxu0 0.0
    %8142 = vmatpush1.msra.mxu0 0.0
    %8143 = vmatprep.subr.mxu0 0.0
    %8144 = vmatpush1.msra.mxu0 0.0
    %8145 = vmatprep.subr.mxu0 0.0
    %8146 = vmatpush1.msra.mxu0 0.0
    %8147 = vmatprep.subr.mxu0 0.0
    %8148 = vmatpush1.msra.mxu0 0.0
    %8149 = vmatprep.subr.mxu0 0.0
    %8150 = vmatpush1.msra.mxu0 0.0
    %8151 = vmatprep.subr.mxu0 0.0
    %8152 = vmatpush1.msra.mxu0 0.0
    %8153 = vmatprep.subr.mxu0 0.0
    %8154 = vmatpush1.msra.mxu0 0.0
    %8155 = vmatprep.subr.mxu0 0.0
    %8156 = vmatpush1.msra.mxu0 0.0
    %8157 = vmatprep.subr.mxu0 0.0
    %8158 = vmatpush1.msra.mxu0 0.0
    %8159 = vmatprep.subr.mxu0 0.0
    %8160 = vmatpush1.msra.mxu0 0.0
    %8161 = vmatprep.subr.mxu0 0.0
    %8162 = vmatpush1.msra.mxu0 0.0
    %8163 = vmatprep.subr.mxu0 0.0
    %8164 = vmatpush1.msra.mxu0 0.0
    %8165 = vmatprep.subr.mxu0 0.0
    %8166 = vmatpush1.msra.mxu0 0.0
    %8167 = vmatprep.mubr.f32.mxu0 0.0
    %8168 = vmatmul.mubr.f32.gmra.mrb[0].mxu0 %v8101
    %v8169 = vpop.f32.mrb[0].mxu0
    %v8170 = vadd.f32 %v8097, %v8169
    %v8171 = vpop.f32.mrb[0].mxu0
    %8172 = vdwg.mxu0
    %v8173 = vadd.f32 %v8170, %v7266
    %s8174 = scalar_lea.vmem [#allocation21], 12
    %8175 = vst [vmem:[%s8174] sm:$0x3] %v8173
    %v8176 = vld [vmem:[%s6852] sm:$0x3]
    %v8177 = vld [vmem:[%s3576] sm:$0x3]
    %v8179 = vsel %vm192, %v8177, 0
    %8181 = vmatprep.subr.mxu0 0.0
    %8182 = vmatpush1.msra.mxu0 %v7109
    %8183 = vmatprep.subr.mxu0 0.0
    %8184 = vmatpush1.msra.mxu0 %v7110
    %8185 = vmatprep.subr.mxu0 0.0
    %8186 = vmatpush1.msra.mxu0 %v7111
    %8187 = vmatprep.subr.mxu0 0.0
    %8188 = vmatpush1.msra.mxu0 %v7112
    %8189 = vmatprep.subr.mxu0 0.0
    %8190 = vmatpush1.msra.mxu0 0.0
    %8191 = vmatprep.subr.mxu0 0.0
    %8192 = vmatpush1.msra.mxu0 0.0
    %8193 = vmatprep.subr.mxu0 0.0
    %8194 = vmatpush1.msra.mxu0 0.0
    %8195 = vmatprep.subr.mxu0 0.0
    %8196 = vmatpush1.msra.mxu0 0.0
    %8197 = vmatprep.subr.mxu0 0.0
    %8198 = vmatpush1.msra.mxu0 0.0
    %8199 = vmatprep.subr.mxu0 0.0
    %8200 = vmatpush1.msra.mxu0 0.0
    %8201 = vmatprep.subr.mxu0 0.0
    %8202 = vmatpush1.msra.mxu0 0.0
    %8203 = vmatprep.subr.mxu0 0.0
    %8204 = vmatpush1.msra.mxu0 0.0
    %8205 = vmatprep.subr.mxu0 0.0
    %8206 = vmatpush1.msra.mxu0 0.0
    %8207 = vmatprep.subr.mxu0 0.0
    %8208 = vmatpush1.msra.mxu0 0.0
    %8209 = vmatprep.subr.mxu0 0.0
    %8210 = vmatpush1.msra.mxu0 0.0
    %8211 = vmatprep.subr.mxu0 0.0
    %8212 = vmatpush1.msra.mxu0 0.0
    %8213 = vmatprep.subr.mxu0 0.0
    %8214 = vmatpush1.msra.mxu0 0.0
    %8215 = vmatprep.subr.mxu0 0.0
    %8216 = vmatpush1.msra.mxu0 0.0
    %8217 = vmatprep.subr.mxu0 0.0
    %8218 = vmatpush1.msra.mxu0 0.0
    %8219 = vmatprep.subr.mxu0 0.0
    %8220 = vmatpush1.msra.mxu0 0.0
    %8221 = vmatprep.subr.mxu0 0.0
    %8222 = vmatpush1.msra.mxu0 0.0
    %8223 = vmatprep.subr.mxu0 0.0
    %8224 = vmatpush1.msra.mxu0 0.0
    %8225 = vmatprep.subr.mxu0 0.0
    %8226 = vmatpush1.msra.mxu0 0.0
    %8227 = vmatprep.subr.mxu0 0.0
    %8228 = vmatpush1.msra.mxu0 0.0
    %8229 = vmatprep.subr.mxu0 0.0
    %8230 = vmatpush1.msra.mxu0 0.0
    %8231 = vmatprep.subr.mxu0 0.0
    %8232 = vmatpush1.msra.mxu0 0.0
    %8233 = vmatprep.subr.mxu0 0.0
    %8234 = vmatpush1.msra.mxu0 0.0
    %8235 = vmatprep.subr.mxu0 0.0
    %8236 = vmatpush1.msra.mxu0 0.0
    %8237 = vmatprep.subr.mxu0 0.0
    %8238 = vmatpush1.msra.mxu0 0.0
    %8239 = vmatprep.subr.mxu0 0.0
    %8240 = vmatpush1.msra.mxu0 0.0
    %8241 = vmatprep.subr.mxu0 0.0
    %8242 = vmatpush1.msra.mxu0 0.0
    %8243 = vmatprep.subr.mxu0 0.0
    %8244 = vmatpush1.msra.mxu0 0.0
    %8245 = vmatprep.mubr.f32.mxu0 0.0
    %8246 = vmatmul.mubr.f32.gmra.mrb[0].mxu0 %v8179
    %v8247 = vpop.f32.mrb[0].mxu0
    %v8248 = vadd.f32 0.0, %v8247
    %v8249 = vpop.f32.mrb[0].mxu0
    %8250 = vdwg.mxu0
    %v8252 = vsel %vm192, %v8176, 0
    %8254 = vmatprep.subr.mxu0 0.0
    %8255 = vmatpush1.msra.mxu0 %v7105
    %8256 = vmatprep.subr.mxu0 0.0
    %8257 = vmatpush1.msra.mxu0 %v7106
    %8258 = vmatprep.subr.mxu0 0.0
    %8259 = vmatpush1.msra.mxu0 %v7107
    %8260 = vmatprep.subr.mxu0 0.0
    %8261 = vmatpush1.msra.mxu0 %v7108
    %8262 = vmatprep.subr.mxu0 0.0
    %8263 = vmatpush1.msra.mxu0 0.0
    %8264 = vmatprep.subr.mxu0 0.0
    %8265 = vmatpush1.msra.mxu0 0.0
    %8266 = vmatprep.subr.mxu0 0.0
    %8267 = vmatpush1.msra.mxu0 0.0
    %8268 = vmatprep.subr.mxu0 0.0
    %8269 = vmatpush1.msra.mxu0 0.0
    %8270 = vmatprep.subr.mxu0 0.0
    %8271 = vmatpush1.msra.mxu0 0.0
    %8272 = vmatprep.subr.mxu0 0.0
    %8273 = vmatpush1.msra.mxu0 0.0
    %8274 = vmatprep.subr.mxu0 0.0
    %8275 = vmatpush1.msra.mxu0 0.0
    %8276 = vmatprep.subr.mxu0 0.0
    %8277 = vmatpush1.msra.mxu0 0.0
    %8278 = vmatprep.subr.mxu0 0.0
    %8279 = vmatpush1.msra.mxu0 0.0
    %8280 = vmatprep.subr.mxu0 0.0
    %8281 = vmatpush1.msra.mxu0 0.0
    %8282 = vmatprep.subr.mxu0 0.0
    %8283 = vmatpush1.msra.mxu0 0.0
    %8284 = vmatprep.subr.mxu0 0.0
    %8285 = vmatpush1.msra.mxu0 0.0
    %8286 = vmatprep.subr.mxu0 0.0
    %8287 = vmatpush1.msra.mxu0 0.0
    %8288 = vmatprep.subr.mxu0 0.0
    %8289 = vmatpush1.msra.mxu0 0.0
    %8290 = vmatprep.subr.mxu0 0.0
    %8291 = vmatpush1.msra.mxu0 0.0
    %8292 = vmatprep.subr.mxu0 0.0
    %8293 = vmatpush1.msra.mxu0 0.0
    %8294 = vmatprep.subr.mxu0 0.0
    %8295 = vmatpush1.msra.mxu0 0.0
    %8296 = vmatprep.subr.mxu0 0.0
    %8297 = vmatpush1.msra.mxu0 0.0
    %8298 = vmatprep.subr.mxu0 0.0
    %8299 = vmatpush1.msra.mxu0 0.0
    %8300 = vmatprep.subr.mxu0 0.0
    %8301 = vmatpush1.msra.mxu0 0.0
    %8302 = vmatprep.subr.mxu0 0.0
    %8303 = vmatpush1.msra.mxu0 0.0
    %8304 = vmatprep.subr.mxu0 0.0
    %8305 = vmatpush1.msra.mxu0 0.0
    %8306 = vmatprep.subr.mxu0 0.0
    %8307 = vmatpush1.msra.mxu0 0.0
    %8308 = vmatprep.subr.mxu0 0.0
    %8309 = vmatpush1.msra.mxu0 0.0
    %8310 = vmatprep.subr.mxu0 0.0
    %8311 = vmatpush1.msra.mxu0 0.0
    %8312 = vmatprep.subr.mxu0 0.0
    %8313 = vmatpush1.msra.mxu0 0.0
    %8314 = vmatprep.subr.mxu0 0.0
    %8315 = vmatpush1.msra.mxu0 0.0
    %8316 = vmatprep.subr.mxu0 0.0
    %8317 = vmatpush1.msra.mxu0 0.0
    %8318 = vmatprep.mubr.f32.mxu0 0.0
    %8319 = vmatmul.mubr.f32.gmra.mrb[0].mxu0 %v8252
    %v8320 = vpop.f32.mrb[0].mxu0
    %v8321 = vadd.f32 %v8248, %v8320
    %v8322 = vpop.f32.mrb[0].mxu0
    %8323 = vdwg.mxu0
    %v8324 = vadd.f32 %v8321, %v7266
    %s8325 = scalar_lea.vmem [#allocation21], 14
    %8326 = vst [vmem:[%s8325] sm:$0x3] %v8324
    // Predicated region
    $region98: #{tpu_custom_call.1} parent=1 // pred_check
      _
    $region99: #{tpu_custom_call.1} parent=1 // pred_check_branch
      %8328 = sbr.rel (0) target = $region101
    $region100: #{tpu_custom_call.1} parent=1 // pred_region
      %s8330 = ssub.s32 256, 256
      %8331 = vsyncadd [#allocation8], %s8330
      %s8332 = sshll.u32 [#allocation21], 4
      %s8333 = int_to_ptr.vmem [resolvable:$true] %s8332
      %8338 = dma.vmem_to_hbm [thread:$0]  %s8333, 256, %s15, [#allocation8], 32, 32, 2
    $region101: #{tpu_custom_call.1} parent=1 // pred_fallthru
      _
    // Predicated region
    $region102: #{tpu_custom_call.1} parent=1 // pred_check
      _
    $region103: #{tpu_custom_call.1} parent=1 // pred_check_branch
      %8340 = sbr.rel (0) target = $region105
    $region104: #{tpu_custom_call.1} parent=1 // pred_region
      %8341 = dma.done [#allocation8], 256
    $region105: #{tpu_custom_call.1} parent=1 // pred_fallthru
      _
    %8342 = vsyncpa [#allocation7], 1
    %8343 = vsyncpa [#allocation10], 1
    %8344 = vsyncpa [#allocation13], 1
    %8345 = vsyncpa [#allocation16], 1
    %8346 = vsyncpa [#allocation19], 1
    %8347 = vsyncpa [#allocation8], 1

</llo_original>
